<compile_context>
chip_gen: v5e
topology: v5e:2x2
jax: 0.10.0
libtpu: 0.0.40
codegen_flags: <defaults>
</compile_context>

<pallas_src>
import functools

import jax
import jax.numpy as jnp
from jax.experimental import pallas as pl
from jax.experimental.pallas import tpu as pltpu


_VMEM_LIMIT_BYTES = 32 * 1024 * 1024
_LRELU_SLOPE = 0.2


def _compiler_params():
    return pltpu.CompilerParams(
        dimension_semantics=("parallel",),
        vmem_limit_bytes=_VMEM_LIMIT_BYTES,
    )


# ---------------------------------------------------------------------------
# Pallas kernels
# ---------------------------------------------------------------------------
def _conv3x3_s2_lrelu_kernel(x00_ref, x01_ref, x10_ref, x11_ref,
                             w_ref, b_ref, o_ref, *, Wq, Lo, slope):
    """Fused 3x3 / stride-2 conv + bias + LeakyReLU for one image.

    x??_ref : (1, Cin, L) parity-split, zero-padded, spatially-flattened input
              planes (bf16).  Conv tap (di, dj) is the contiguous slice
              [(di//2)*Wq + dj//2 : ... + Lo] of parity plane (di%2, dj%2).
    w_ref   : (9, Cout, Cin) bf16 weights, tap-major (index = di*3 + dj).
    b_ref   : (Cout, 1) f32 bias.
    o_ref   : (1, Cout, Lo) with Lo = Ho*Wq; the last column of each output
              row is junk and is sliced off by the wrapper.
    """
    planes = (x00_ref, x01_ref, x10_ref, x11_ref)
    cout = w_ref.shape[1]
    acc = jnp.zeros((cout, Lo), jnp.float32)
    for di in range(3):
        for dj in range(3):
            tap = di * 3 + dj
            par = (di % 2) * 2 + (dj % 2)
            off = (di // 2) * Wq + (dj // 2)            # static offset
            x_tap = planes[par][0, :, pl.ds(off, Lo)]   # (Cin, Lo) bf16
            acc = acc + jnp.dot(w_ref[tap], x_tap,
                                preferred_element_type=jnp.float32)
    acc = acc + b_ref[...]                              # (Cout, 1) broadcast
    acc = jnp.where(acc >= 0.0, acc, slope * acc)       # LeakyReLU(0.2)
    o_ref[0] = acc.astype(o_ref.dtype)


def _conv1x1_kernel(x_ref, w_ref, b_ref, o_ref):
    """Final 1x1 conv head (bias, no activation): (Cout,Cin)@(Cin,M) + b."""
    acc = jnp.dot(w_ref[...], x_ref[0], preferred_element_type=jnp.float32)
    o_ref[0] = (acc + b_ref[...]).astype(o_ref.dtype)


def _avgpool3x3_s2_kernel(x00_ref, x01_ref, x10_ref, x11_ref,
                          inv_ref, o_ref, *, Wq, Lo):
    """AvgPool2d(3,2,pad=1,count_include_pad=False): 9 shifted adds + scale."""
    planes = (x00_ref, x01_ref, x10_ref, x11_ref)
    ch = o_ref.shape[1]
    acc = jnp.zeros((ch, Lo), jnp.float32)
    for di in range(3):
        for dj in range(3):
            par = (di % 2) * 2 + (dj % 2)
            off = (di // 2) * Wq + (dj // 2)
            acc = acc + planes[par][0, :, pl.ds(off, Lo)].astype(jnp.float32)
    o_ref[0] = (acc * inv_ref[...]).astype(o_ref.dtype)


# ---------------------------------------------------------------------------
# Host-side glue (layout prep, wrappers, params, forward)
# ---------------------------------------------------------------------------
def _out_hw(h, w):
    """Spatial size after k=3, stride=2, pad=1 (conv and pool share it)."""
    return (h - 1) // 2 + 1, (w - 1) // 2 + 1


def _parity_planes(x, Ho, Wo, dtype):
    """Zero-pad by 1, split into the 4 (row, col) parity planes, zero-pad each
    plane to (Ho+1, Wo+1), flatten spatially and append one trailing zero so
    every 3x3/stride-2 tap becomes a contiguous length-(Ho*(Wo+1)) slice.
    Total data movement ~1x the activation (no 9x im2col amplification)."""
    N, C, _, _ = x.shape
    Wq = Wo + 1
    L = (Ho + 1) * Wq + 1
    xp = jnp.pad(x, ((0, 0), (0, 0), (1, 1), (1, 1))).astype(dtype)
    planes = []
    for p in range(2):
        for q in range(2):
            t = xp[:, :, p::2, q::2]
            hq, wq = t.shape[2], t.shape[3]
            t = jnp.pad(t, ((0, 0), (0, 0), (0, Ho + 1 - hq), (0, Wq - wq)))
            t = t.reshape(N, C, (Ho + 1) * Wq)
            t = jnp.pad(t, ((0, 0), (0, 0), (0, L - (Ho + 1) * Wq)))
            planes.append(t)
    return planes, Wq, L


def conv3x3_s2_lrelu(x, w_taps, b):
    """ConvBlock(k=3, s=2, pad=1, bias=True, norm='none', act=LeakyReLU(0.2))."""
    N, Cin, H, W = x.shape
    Cout = w_taps.shape[1]
    Ho, Wo = _out_hw(H, W)
    planes, Wq, L = _parity_planes(x, Ho, Wo, jnp.bfloat16)
    Lo = Ho * Wq
    kernel = functools.partial(_conv3x3_s2_lrelu_kernel, Wq=Wq, Lo=Lo,
                               slope=_LRELU_SLOPE)
    plane_spec = pl.BlockSpec((1, Cin, L), lambda n: (n, 0, 0))
    out = pl.pallas_call(
        kernel,
        out_shape=jax.ShapeDtypeStruct((N, Cout, Lo), jnp.bfloat16),
        grid=(N,),
        in_specs=[plane_spec] * 4 + [
            pl.BlockSpec((9, Cout, Cin), lambda n: (0, 0, 0)),
            pl.BlockSpec((Cout, 1), lambda n: (0, 0)),
        ],
        out_specs=pl.BlockSpec((1, Cout, Lo), lambda n: (n, 0, 0)),
        compiler_params=_compiler_params(),
    )(*planes, w_taps, b)
    # drop the per-row junk column (lane Wq-1 of every output row)
    return out.reshape(N, Cout, Ho, Wq)[:, :, :, :Wo]


def conv1x1(x, w, b):
    """Final ConvBlock(k=1, s=1, bias=True, no norm/activation) -> f32 logits."""
    N, Cin, H, W = x.shape
    Cout = w.shape[0]
    M = H * W
    xf = x.reshape(N, Cin, M).astype(jnp.bfloat16)
    out = pl.pallas_call(
        _conv1x1_kernel,
        out_shape=jax.ShapeDtypeStruct((N, Cout, M), jnp.float32),
        grid=(N,),
        in_specs=[
            pl.BlockSpec((1, Cin, M), lambda n: (n, 0, 0)),
            pl.BlockSpec((Cout, Cin), lambda n: (0, 0)),
            pl.BlockSpec((Cout, 1), lambda n: (0, 0)),
        ],
        out_specs=pl.BlockSpec((1, Cout, M), lambda n: (n, 0, 0)),
        compiler_params=_compiler_params(),
    )(xf, w, b)
    return out.reshape(N, Cout, H, W)


def avg_pool_3x3_s2_p1(x):
    """nn.AvgPool2d(3, 2, padding=1, count_include_pad=False), NCHW."""
    N, C, H, W = x.shape
    Ho, Wo = _out_hw(H, W)
    planes, Wq, L = _parity_planes(x, Ho, Wo, jnp.float32)
    Lo = Ho * Wq
    # reciprocal of the number of *valid* (non-padding) taps per window
    ho = jnp.arange(Ho)
    wo = jnp.arange(Wo)
    rc = jnp.minimum(2 * ho + 1, H - 1) - jnp.maximum(2 * ho - 1, 0) + 1
    cc = jnp.minimum(2 * wo + 1, W - 1) - jnp.maximum(2 * wo - 1, 0) + 1
    inv = 1.0 / (rc[:, None] * cc[None, :]).astype(jnp.float32)
    inv = jnp.pad(inv, ((0, 0), (0, Wq - Wo)), constant_values=1.0)
    inv = inv.reshape(1, Lo)
    kernel = functools.partial(_avgpool3x3_s2_kernel, Wq=Wq, Lo=Lo)
    plane_spec = pl.BlockSpec((1, C, L), lambda n: (n, 0, 0))
    out = pl.pallas_call(
        kernel,
        out_shape=jax.ShapeDtypeStruct((N, C, Lo), jnp.float32),
        grid=(N,),
        in_specs=[plane_spec] * 4 + [pl.BlockSpec((1, Lo), lambda n: (0, 0))],
        out_specs=pl.BlockSpec((1, C, Lo), lambda n: (n, 0, 0)),
        compiler_params=_compiler_params(),
    )(*planes, inv)
    return out.reshape(N, C, Ho, Wq)[:, :, :, :Wo]


def init_discriminator_params(key, n_scales=3, input_channels=3,
                              initial_c=8, n_conv=4):
    """Deterministic synthetic parameters, PyTorch weight shapes
    (Cout, Cin, kh, kw) and (Cout,) biases."""
    params = []
    for _ in range(n_scales):
        scale_params = []
        in_c, out_c = input_channels, initial_c
        for _ in range(n_conv):
            key, k1, k2 = jax.random.split(key, 3)
            w = jax.random.normal(k1, (out_c, in_c, 3, 3), jnp.float32) * 0.05
            b = jax.random.normal(k2, (out_c,), jnp.float32) * 0.05
            scale_params.append((w, b))
            in_c, out_c = out_c, 2 * out_c
        key, k1, k2 = jax.random.split(key, 3)
        w = jax.random.normal(k1, (1, in_c, 1, 1), jnp.float32) * 0.05
        b = jax.random.normal(k2, (1,), jnp.float32) * 0.05
        scale_params.append((w, b))
        params.append(scale_params)
    return params


def pack_params(params):
    """One-time packing: tap-major bf16 conv weights (9, Cout, Cin), bf16 1x1
    head weights (Cout, Cin), and (Cout, 1) f32 biases (no per-step reshapes
    inside the forward)."""
    packed = []
    for scale_params in params:
        ps = []
        for (w, b) in scale_params[:-1]:
            cout, cin, kh, kw = w.shape
            w_taps = jnp.transpose(w, (2, 3, 0, 1)).reshape(kh * kw, cout, cin)
            ps.append((w_taps.astype(jnp.bfloat16),
                       b.reshape(cout, 1).astype(jnp.float32)))
        w, b = scale_params[-1]
        cout, cin = w.shape[0], w.shape[1]
        ps.append((w.reshape(cout, cin).astype(jnp.bfloat16),
                   b.reshape(cout, 1).astype(jnp.float32)))
        packed.append(ps)
    return packed


def discriminator_forward(x_nchw, packed_params):
    """Multiscale discriminator forward: list of NCHW (N,1,Ho,Wo) f32 logits."""
    x = x_nchw.astype(jnp.float32)
    outputs = []
    n_scales = len(packed_params)
    for s, scale_params in enumerate(packed_params):
        h = x
        for (w_taps, b) in scale_params[:-1]:       # n_conv stride-2 ConvBlocks
            h = conv3x3_s2_lrelu(h, w_taps, b)
        w1, b1 = scale_params[-1]                   # final 1x1 conv, no act
        outputs.append(conv1x1(h, w1, b1))
        if s + 1 < n_scales:                        # skip the dead last pool
            x = avg_pool_3x3_s2_p1(x)
    return outputs


if __name__ == "__main__":
    N, C, H, W = 2, 3, 16, 16
    key = jax.random.PRNGKey(0)
    kx, kp = jax.random.split(key)
    x = jax.random.normal(kx, (N, C, H, W), jnp.float32)
    params = init_discriminator_params(kp, n_scales=3, input_channels=C,
                                       initial_c=8, n_conv=4)
    packed = pack_params(params)

    fwd = jax.jit(discriminator_forward)
    outs = jax.block_until_ready(fwd(x, packed))

    # 16 -> 8 -> 4 -> 2 -> 1 (scale0), 8 -> ... -> 1 (scale1), 4 -> ... -> 1 (scale2)
    expected_shapes = [(N, 1, 1, 1), (N, 1, 1, 1), (N, 1, 1, 1)]
    assert len(outs) == 3
    for o, es in zip(outs, expected_shapes):
        assert o.shape == es, (o.shape, es)
        assert o.dtype == jnp.float32
        assert bool(jnp.all(jnp.isfinite(o)))

    print("KERNEL_OK")
</pallas_src>

<mosaic_0001>
module attributes {stable_mosaic.version = 11 : i64} {
  func.func @_avgpool3x3_s2_kernel(%arg0: i32, %arg1: memref<1x3x82xf32, #tpu.memory_space<vmem>>, %arg2: memref<1x3x82xf32, #tpu.memory_space<vmem>>, %arg3: memref<1x3x82xf32, #tpu.memory_space<vmem>>, %arg4: memref<1x3x82xf32, #tpu.memory_space<vmem>>, %arg5: memref<1x72xf32, #tpu.memory_space<vmem>>, %arg6: memref<1x3x72xf32, #tpu.memory_space<vmem>>) attributes {dimension_semantics = [#tpu.dimension_semantics<parallel>], iteration_bounds = array<i64: 2>, scalar_prefetch = 0 : i64, scratch_operands = 0 : i64, tpu.core_type = #tpu.core_type<tc>, window_params = [{transform_indices = @transform_0, window_bounds = array<i64: 1, 3, 82>}, {transform_indices = @transform_1, window_bounds = array<i64: 1, 3, 82>}, {transform_indices = @transform_2, window_bounds = array<i64: 1, 3, 82>}, {transform_indices = @transform_3, window_bounds = array<i64: 1, 3, 82>}, {pipeline_mode = #tpu.pipeline_mode<synchronous>, transform_indices = @transform_4, window_bounds = array<i64: 1, 72>}, {transform_indices = @transform_5, window_bounds = array<i64: 1, 3, 72>}]} {
    %cst = arith.constant 0.000000e+00 : f32
    %0 = vector.broadcast %cst : f32 to vector<3x72xf32>
    %c0 = arith.constant 0 : index
    %c0_0 = arith.constant 0 : index
    %c0_1 = arith.constant 0 : index
    %1 = vector.load %arg1[%c0, %c0_0, %c0_1] : memref<1x3x82xf32, #tpu.memory_space<vmem>>, vector<1x3x72xf32>
    %2 = vector.shape_cast %1 : vector<1x3x72xf32> to vector<3x72xf32>
    %3 = arith.addf %0, %2 : vector<3x72xf32>
    %c0_2 = arith.constant 0 : index
    %c0_3 = arith.constant 0 : index
    %c0_4 = arith.constant 0 : index
    %4 = vector.load %arg2[%c0_2, %c0_3, %c0_4] : memref<1x3x82xf32, #tpu.memory_space<vmem>>, vector<1x3x72xf32>
    %5 = vector.shape_cast %4 : vector<1x3x72xf32> to vector<3x72xf32>
    %6 = arith.addf %3, %5 : vector<3x72xf32>
    %c0_5 = arith.constant 0 : index
    %c0_6 = arith.constant 0 : index
    %c1 = arith.constant 1 : index
    %7 = vector.load %arg1[%c0_5, %c0_6, %c1] : memref<1x3x82xf32, #tpu.memory_space<vmem>>, vector<1x3x72xf32>
    %8 = vector.shape_cast %7 : vector<1x3x72xf32> to vector<3x72xf32>
    %9 = arith.addf %6, %8 : vector<3x72xf32>
    %c0_7 = arith.constant 0 : index
    %c0_8 = arith.constant 0 : index
    %c0_9 = arith.constant 0 : index
    %10 = vector.load %arg3[%c0_7, %c0_8, %c0_9] : memref<1x3x82xf32, #tpu.memory_space<vmem>>, vector<1x3x72xf32>
    %11 = vector.shape_cast %10 : vector<1x3x72xf32> to vector<3x72xf32>
    %12 = arith.addf %9, %11 : vector<3x72xf32>
    %c0_10 = arith.constant 0 : index
    %c0_11 = arith.constant 0 : index
    %c0_12 = arith.constant 0 : index
    %13 = vector.load %arg4[%c0_10, %c0_11, %c0_12] : memref<1x3x82xf32, #tpu.memory_space<vmem>>, vector<1x3x72xf32>
    %14 = vector.shape_cast %13 : vector<1x3x72xf32> to vector<3x72xf32>
    %15 = arith.addf %12, %14 : vector<3x72xf32>
    %c0_13 = arith.constant 0 : index
    %c0_14 = arith.constant 0 : index
    %c1_15 = arith.constant 1 : index
    %16 = vector.load %arg3[%c0_13, %c0_14, %c1_15] : memref<1x3x82xf32, #tpu.memory_space<vmem>>, vector<1x3x72xf32>
    %17 = vector.shape_cast %16 : vector<1x3x72xf32> to vector<3x72xf32>
    %18 = arith.addf %15, %17 : vector<3x72xf32>
    %c0_16 = arith.constant 0 : index
    %c0_17 = arith.constant 0 : index
    %c9 = arith.constant 9 : index
    %19 = vector.load %arg1[%c0_16, %c0_17, %c9] : memref<1x3x82xf32, #tpu.memory_space<vmem>>, vector<1x3x72xf32>
    %20 = vector.shape_cast %19 : vector<1x3x72xf32> to vector<3x72xf32>
    %21 = arith.addf %18, %20 : vector<3x72xf32>
    %c0_18 = arith.constant 0 : index
    %c0_19 = arith.constant 0 : index
    %c9_20 = arith.constant 9 : index
    %22 = vector.load %arg2[%c0_18, %c0_19, %c9_20] : memref<1x3x82xf32, #tpu.memory_space<vmem>>, vector<1x3x72xf32>
    %23 = vector.shape_cast %22 : vector<1x3x72xf32> to vector<3x72xf32>
    %24 = arith.addf %21, %23 : vector<3x72xf32>
    %c0_21 = arith.constant 0 : index
    %c0_22 = arith.constant 0 : index
    %c10 = arith.constant 10 : index
    %25 = vector.load %arg1[%c0_21, %c0_22, %c10] : memref<1x3x82xf32, #tpu.memory_space<vmem>>, vector<1x3x72xf32>
    %26 = vector.shape_cast %25 : vector<1x3x72xf32> to vector<3x72xf32>
    %27 = arith.addf %24, %26 : vector<3x72xf32>
    %c0_23 = arith.constant 0 : index
    %c0_24 = arith.constant 0 : index
    %28 = vector.load %arg5[%c0_23, %c0_24] : memref<1x72xf32, #tpu.memory_space<vmem>>, vector<1x72xf32>
    %29 = vector.broadcast %28 : vector<1x72xf32> to vector<3x72xf32>
    %30 = arith.mulf %27, %29 : vector<3x72xf32>
    %c0_25 = arith.constant 0 : index
    %c0_26 = arith.constant 0 : index
    %c0_27 = arith.constant 0 : index
    %31 = vector.load %arg6[%c0_25, %c0_26, %c0_27] : memref<1x3x72xf32, #tpu.memory_space<vmem>>, vector<1x3x72xf32>
    %32 = vector.shape_cast %31 : vector<1x3x72xf32> to vector<3x72xf32>
    %33 = vector.shape_cast %30 : vector<3x72xf32> to vector<1x3x72xf32>
    tpu.vector_store %arg6[%c0_25, %c0_26, %c0_27], %33 {strides = array<i32>} : memref<1x3x72xf32, #tpu.memory_space<vmem>>, vector<1x3x72xf32>,
    return
  }
  func.func @transform_0(%arg0: i32) -> (i32, i32, i32) {
    %c0_i32 = arith.constant 0 : i32
    %c0_i32_0 = arith.constant 0 : i32
    %c0_i32_1 = arith.constant 0 : i32
    return %arg0, %c0_i32, %c0_i32_0 : i32, i32, i32
  }
  func.func @transform_1(%arg0: i32) -> (i32, i32, i32) {
    %c0_i32 = arith.constant 0 : i32
    %c0_i32_0 = arith.constant 0 : i32
    %c0_i32_1 = arith.constant 0 : i32
    return %arg0, %c0_i32, %c0_i32_0 : i32, i32, i32
  }
  func.func @transform_2(%arg0: i32) -> (i32, i32, i32) {
    %c0_i32 = arith.constant 0 : i32
    %c0_i32_0 = arith.constant 0 : i32
    %c0_i32_1 = arith.constant 0 : i32
    return %arg0, %c0_i32, %c0_i32_0 : i32, i32, i32
  }
  func.func @transform_3(%arg0: i32) -> (i32, i32, i32) {
    %c0_i32 = arith.constant 0 : i32
    %c0_i32_0 = arith.constant 0 : i32
    %c0_i32_1 = arith.constant 0 : i32
    return %arg0, %c0_i32, %c0_i32_0 : i32, i32, i32
  }
  func.func @transform_4(%arg0: i32) -> (i32, i32) {
    %c0_i32 = arith.constant 0 : i32
    %c0_i32_0 = arith.constant 0 : i32
    %c0_i32_1 = arith.constant 0 : i32
    return %c0_i32, %c0_i32_0 : i32, i32
  }
  func.func @transform_5(%arg0: i32) -> (i32, i32, i32) {
    %c0_i32 = arith.constant 0 : i32
    %c0_i32_0 = arith.constant 0 : i32
    %c0_i32_1 = arith.constant 0 : i32
    return %arg0, %c0_i32, %c0_i32_0 : i32, i32, i32
  }
}

module attributes {stable_mosaic.version = 11 : i64} {
  func.func @_avgpool3x3_s2_kernel(%arg0: i32, %arg1: memref<1x3x26xf32, #tpu.memory_space<vmem>>, %arg2: memref<1x3x26xf32, #tpu.memory_space<vmem>>, %arg3: memref<1x3x26xf32, #tpu.memory_space<vmem>>, %arg4: memref<1x3x26xf32, #tpu.memory_space<vmem>>, %arg5: memref<1x20xf32, #tpu.memory_space<vmem>>, %arg6: memref<1x3x20xf32, #tpu.memory_space<vmem>>) attributes {dimension_semantics = [#tpu.dimension_semantics<parallel>], iteration_bounds = array<i64: 2>, scalar_prefetch = 0 : i64, scratch_operands = 0 : i64, tpu.core_type = #tpu.core_type<tc>, window_params = [{transform_indices = @transform_0, window_bounds = array<i64: 1, 3, 26>}, {transform_indices = @transform_1, window_bounds = array<i64: 1, 3, 26>}, {transform_indices = @transform_2, window_bounds = array<i64: 1, 3, 26>}, {transform_indices = @transform_3, window_bounds = array<i64: 1, 3, 26>}, {pipeline_mode = #tpu.pipeline_mode<synchronous>, transform_indices = @transform_4, window_bounds = array<i64: 1, 20>}, {transform_indices = @transform_5, window_bounds = array<i64: 1, 3, 20>}]} {
    %cst = arith.constant 0.000000e+00 : f32
    %0 = vector.broadcast %cst : f32 to vector<3x20xf32>
    %c0 = arith.constant 0 : index
    %c0_0 = arith.constant 0 : index
    %c0_1 = arith.constant 0 : index
    %1 = vector.load %arg1[%c0, %c0_0, %c0_1] : memref<1x3x26xf32, #tpu.memory_space<vmem>>, vector<1x3x20xf32>
    %2 = vector.shape_cast %1 : vector<1x3x20xf32> to vector<3x20xf32>
    %3 = arith.addf %0, %2 : vector<3x20xf32>
    %c0_2 = arith.constant 0 : index
    %c0_3 = arith.constant 0 : index
    %c0_4 = arith.constant 0 : index
    %4 = vector.load %arg2[%c0_2, %c0_3, %c0_4] : memref<1x3x26xf32, #tpu.memory_space<vmem>>, vector<1x3x20xf32>
    %5 = vector.shape_cast %4 : vector<1x3x20xf32> to vector<3x20xf32>
    %6 = arith.addf %3, %5 : vector<3x20xf32>
    %c0_5 = arith.constant 0 : index
    %c0_6 = arith.constant 0 : index
    %c1 = arith.constant 1 : index
    %7 = vector.load %arg1[%c0_5, %c0_6, %c1] : memref<1x3x26xf32, #tpu.memory_space<vmem>>, vector<1x3x20xf32>
    %8 = vector.shape_cast %7 : vector<1x3x20xf32> to vector<3x20xf32>
    %9 = arith.addf %6, %8 : vector<3x20xf32>
    %c0_7 = arith.constant 0 : index
    %c0_8 = arith.constant 0 : index
    %c0_9 = arith.constant 0 : index
    %10 = vector.load %arg3[%c0_7, %c0_8, %c0_9] : memref<1x3x26xf32, #tpu.memory_space<vmem>>, vector<1x3x20xf32>
    %11 = vector.shape_cast %10 : vector<1x3x20xf32> to vector<3x20xf32>
    %12 = arith.addf %9, %11 : vector<3x20xf32>
    %c0_10 = arith.constant 0 : index
    %c0_11 = arith.constant 0 : index
    %c0_12 = arith.constant 0 : index
    %13 = vector.load %arg4[%c0_10, %c0_11, %c0_12] : memref<1x3x26xf32, #tpu.memory_space<vmem>>, vector<1x3x20xf32>
    %14 = vector.shape_cast %13 : vector<1x3x20xf32> to vector<3x20xf32>
    %15 = arith.addf %12, %14 : vector<3x20xf32>
    %c0_13 = arith.constant 0 : index
    %c0_14 = arith.constant 0 : index
    %c1_15 = arith.constant 1 : index
    %16 = vector.load %arg3[%c0_13, %c0_14, %c1_15] : memref<1x3x26xf32, #tpu.memory_space<vmem>>, vector<1x3x20xf32>
    %17 = vector.shape_cast %16 : vector<1x3x20xf32> to vector<3x20xf32>
    %18 = arith.addf %15, %17 : vector<3x20xf32>
    %c0_16 = arith.constant 0 : index
    %c0_17 = arith.constant 0 : index
    %c5 = arith.constant 5 : index
    %19 = vector.load %arg1[%c0_16, %c0_17, %c5] : memref<1x3x26xf32, #tpu.memory_space<vmem>>, vector<1x3x20xf32>
    %20 = vector.shape_cast %19 : vector<1x3x20xf32> to vector<3x20xf32>
    %21 = arith.addf %18, %20 : vector<3x20xf32>
    %c0_18 = arith.constant 0 : index
    %c0_19 = arith.constant 0 : index
    %c5_20 = arith.constant 5 : index
    %22 = vector.load %arg2[%c0_18, %c0_19, %c5_20] : memref<1x3x26xf32, #tpu.memory_space<vmem>>, vector<1x3x20xf32>
    %23 = vector.shape_cast %22 : vector<1x3x20xf32> to vector<3x20xf32>
    %24 = arith.addf %21, %23 : vector<3x20xf32>
    %c0_21 = arith.constant 0 : index
    %c0_22 = arith.constant 0 : index
    %c6 = arith.constant 6 : index
    %25 = vector.load %arg1[%c0_21, %c0_22, %c6] : memref<1x3x26xf32, #tpu.memory_space<vmem>>, vector<1x3x20xf32>
    %26 = vector.shape_cast %25 : vector<1x3x20xf32> to vector<3x20xf32>
    %27 = arith.addf %24, %26 : vector<3x20xf32>
    %c0_23 = arith.constant 0 : index
    %c0_24 = arith.constant 0 : index
    %28 = vector.load %arg5[%c0_23, %c0_24] : memref<1x20xf32, #tpu.memory_space<vmem>>, vector<1x20xf32>
    %29 = vector.broadcast %28 : vector<1x20xf32> to vector<3x20xf32>
    %30 = arith.mulf %27, %29 : vector<3x20xf32>
    %c0_25 = arith.constant 0 : index
    %c0_26 = arith.constant 0 : index
    %c0_27 = arith.constant 0 : index
    %31 = vector.load %arg6[%c0_25, %c0_26, %c0_27] : memref<1x3x20xf32, #tpu.memory_space<vmem>>, vector<1x3x20xf32>
    %32 = vector.shape_cast %31 : vector<1x3x20xf32> to vector<3x20xf32>
    %33 = vector.shape_cast %30 : vector<3x20xf32> to vector<1x3x20xf32>
    tpu.vector_store %arg6[%c0_25, %c0_26, %c0_27], %33 {strides = array<i32>} : memref<1x3x20xf32, #tpu.memory_space<vmem>>, vector<1x3x20xf32>,
    return
  }
  func.func @transform_0(%arg0: i32) -> (i32, i32, i32) {
    %c0_i32 = arith.constant 0 : i32
    %c0_i32_0 = arith.constant 0 : i32
    %c0_i32_1 = arith.constant 0 : i32
    return %arg0, %c0_i32, %c0_i32_0 : i32, i32, i32
  }
  func.func @transform_1(%arg0: i32) -> (i32, i32, i32) {
    %c0_i32 = arith.constant 0 : i32
    %c0_i32_0 = arith.constant 0 : i32
    %c0_i32_1 = arith.constant 0 : i32
    return %arg0, %c0_i32, %c0_i32_0 : i32, i32, i32
  }
  func.func @transform_2(%arg0: i32) -> (i32, i32, i32) {
    %c0_i32 = arith.constant 0 : i32
    %c0_i32_0 = arith.constant 0 : i32
    %c0_i32_1 = arith.constant 0 : i32
    return %arg0, %c0_i32, %c0_i32_0 : i32, i32, i32
  }
  func.func @transform_3(%arg0: i32) -> (i32, i32, i32) {
    %c0_i32 = arith.constant 0 : i32
    %c0_i32_0 = arith.constant 0 : i32
    %c0_i32_1 = arith.constant 0 : i32
    return %arg0, %c0_i32, %c0_i32_0 : i32, i32, i32
  }
  func.func @transform_4(%arg0: i32) -> (i32, i32) {
    %c0_i32 = arith.constant 0 : i32
    %c0_i32_0 = arith.constant 0 : i32
    %c0_i32_1 = arith.constant 0 : i32
    return %c0_i32, %c0_i32_0 : i32, i32
  }
  func.func @transform_5(%arg0: i32) -> (i32, i32, i32) {
    %c0_i32 = arith.constant 0 : i32
    %c0_i32_0 = arith.constant 0 : i32
    %c0_i32_1 = arith.constant 0 : i32
    return %arg0, %c0_i32, %c0_i32_0 : i32, i32, i32
  }
}

module attributes {stable_mosaic.version = 11 : i64} {
  func.func @_conv3x3_s2_lrelu_kernel(%arg0: i32, %arg1: memref<1x8x5xbf16, #tpu.memory_space<vmem>>, %arg2: memref<1x8x5xbf16, #tpu.memory_space<vmem>>, %arg3: memref<1x8x5xbf16, #tpu.memory_space<vmem>>, %arg4: memref<1x8x5xbf16, #tpu.memory_space<vmem>>, %arg5: memref<9x16x8xbf16, #tpu.memory_space<vmem>>, %arg6: memref<16x1xf32, #tpu.memory_space<vmem>>, %arg7: memref<1x16x2xbf16, #tpu.memory_space<vmem>>) attributes {dimension_semantics = [#tpu.dimension_semantics<parallel>], iteration_bounds = array<i64: 2>, scalar_prefetch = 0 : i64, scratch_operands = 0 : i64, tpu.core_type = #tpu.core_type<tc>, window_params = [{transform_indices = @transform_0, window_bounds = array<i64: 1, 8, 5>}, {transform_indices = @transform_1, window_bounds = array<i64: 1, 8, 5>}, {transform_indices = @transform_2, window_bounds = array<i64: 1, 8, 5>}, {transform_indices = @transform_3, window_bounds = array<i64: 1, 8, 5>}, {pipeline_mode = #tpu.pipeline_mode<synchronous>, transform_indices = @transform_4, window_bounds = array<i64: 9, 16, 8>}, {pipeline_mode = #tpu.pipeline_mode<synchronous>, transform_indices = @transform_5, window_bounds = array<i64: 16, 1>}, {transform_indices = @transform_6, window_bounds = array<i64: 1, 16, 2>}]} {
    %cst = arith.constant 0.000000e+00 : f32
    %0 = vector.broadcast %cst : f32 to vector<16x2xf32>
    %c0 = arith.constant 0 : index
    %c0_0 = arith.constant 0 : index
    %c0_1 = arith.constant 0 : index
    %1 = vector.load %arg1[%c0, %c0_0, %c0_1] : memref<1x8x5xbf16, #tpu.memory_space<vmem>>, vector<1x8x2xbf16>
    %2 = vector.shape_cast %1 : vector<1x8x2xbf16> to vector<8x2xbf16>
    %c0_2 = arith.constant 0 : index
    %c0_3 = arith.constant 0 : index
    %c0_4 = arith.constant 0 : index
    %3 = vector.load %arg5[%c0_2, %c0_3, %c0_4] : memref<9x16x8xbf16, #tpu.memory_space<vmem>>, vector<1x16x8xbf16>
    %4 = vector.shape_cast %3 : vector<1x16x8xbf16> to vector<16x8xbf16>
    %cst_5 = arith.constant dense<0.000000e+00> : vector<16x2xf32>
    %5 = tpu.matmul %4, %2, %cst_5 {dimension_numbers = #tpu.dot_dimension_numbers<[1], [0], [0], [1], [0, 0, 1, 1], [], []>} : vector<16x8xbf16>, vector<8x2xbf16>, vector<16x2xf32> -> vector<16x2xf32>
    %6 = arith.addf %0, %5 : vector<16x2xf32>
    %c0_6 = arith.constant 0 : index
    %c0_7 = arith.constant 0 : index
    %c0_8 = arith.constant 0 : index
    %7 = vector.load %arg2[%c0_6, %c0_7, %c0_8] : memref<1x8x5xbf16, #tpu.memory_space<vmem>>, vector<1x8x2xbf16>
    %8 = vector.shape_cast %7 : vector<1x8x2xbf16> to vector<8x2xbf16>
    %c1 = arith.constant 1 : index
    %c0_9 = arith.constant 0 : index
    %c0_10 = arith.constant 0 : index
    %9 = vector.load %arg5[%c1, %c0_9, %c0_10] : memref<9x16x8xbf16, #tpu.memory_space<vmem>>, vector<1x16x8xbf16>
    %10 = vector.shape_cast %9 : vector<1x16x8xbf16> to vector<16x8xbf16>
    %cst_11 = arith.constant dense<0.000000e+00> : vector<16x2xf32>
    %11 = tpu.matmul %10, %8, %cst_11 {dimension_numbers = #tpu.dot_dimension_numbers<[1], [0], [0], [1], [0, 0, 1, 1], [], []>} : vector<16x8xbf16>, vector<8x2xbf16>, vector<16x2xf32> -> vector<16x2xf32>
    %12 = arith.addf %6, %11 : vector<16x2xf32>
    %c0_12 = arith.constant 0 : index
    %c0_13 = arith.constant 0 : index
    %c1_14 = arith.constant 1 : index
    %13 = vector.load %arg1[%c0_12, %c0_13, %c1_14] : memref<1x8x5xbf16, #tpu.memory_space<vmem>>, vector<1x8x2xbf16>
    %14 = vector.shape_cast %13 : vector<1x8x2xbf16> to vector<8x2xbf16>
    %c2 = arith.constant 2 : index
    %c0_15 = arith.constant 0 : index
    %c0_16 = arith.constant 0 : index
    %15 = vector.load %arg5[%c2, %c0_15, %c0_16] : memref<9x16x8xbf16, #tpu.memory_space<vmem>>, vector<1x16x8xbf16>
    %16 = vector.shape_cast %15 : vector<1x16x8xbf16> to vector<16x8xbf16>
    %cst_17 = arith.constant dense<0.000000e+00> : vector<16x2xf32>
    %17 = tpu.matmul %16, %14, %cst_17 {dimension_numbers = #tpu.dot_dimension_numbers<[1], [0], [0], [1], [0, 0, 1, 1], [], []>} : vector<16x8xbf16>, vector<8x2xbf16>, vector<16x2xf32> -> vector<16x2xf32>
    %18 = arith.addf %12, %17 : vector<16x2xf32>
    %c0_18 = arith.constant 0 : index
    %c0_19 = arith.constant 0 : index
    %c0_20 = arith.constant 0 : index
    %19 = vector.load %arg3[%c0_18, %c0_19, %c0_20] : memref<1x8x5xbf16, #tpu.memory_space<vmem>>, vector<1x8x2xbf16>
    %20 = vector.shape_cast %19 : vector<1x8x2xbf16> to vector<8x2xbf16>
    %c3 = arith.constant 3 : index
    %c0_21 = arith.constant 0 : index
    %c0_22 = arith.constant 0 : index
    %21 = vector.load %arg5[%c3, %c0_21, %c0_22] : memref<9x16x8xbf16, #tpu.memory_space<vmem>>, vector<1x16x8xbf16>
    %22 = vector.shape_cast %21 : vector<1x16x8xbf16> to vector<16x8xbf16>
    %cst_23 = arith.constant dense<0.000000e+00> : vector<16x2xf32>
    %23 = tpu.matmul %22, %20, %cst_23 {dimension_numbers = #tpu.dot_dimension_numbers<[1], [0], [0], [1], [0, 0, 1, 1], [], []>} : vector<16x8xbf16>, vector<8x2xbf16>, vector<16x2xf32> -> vector<16x2xf32>
    %24 = arith.addf %18, %23 : vector<16x2xf32>
    %c0_24 = arith.constant 0 : index
    %c0_25 = arith.constant 0 : index
    %c0_26 = arith.constant 0 : index
    %25 = vector.load %arg4[%c0_24, %c0_25, %c0_26] : memref<1x8x5xbf16, #tpu.memory_space<vmem>>, vector<1x8x2xbf16>
    %26 = vector.shape_cast %25 : vector<1x8x2xbf16> to vector<8x2xbf16>
    %c4 = arith.constant 4 : index
    %c0_27 = arith.constant 0 : index
    %c0_28 = arith.constant 0 : index
    %27 = vector.load %arg5[%c4, %c0_27, %c0_28] : memref<9x16x8xbf16, #tpu.memory_space<vmem>>, vector<1x16x8xbf16>
    %28 = vector.shape_cast %27 : vector<1x16x8xbf16> to vector<16x8xbf16>
    %cst_29 = arith.constant dense<0.000000e+00> : vector<16x2xf32>
    %29 = tpu.matmul %28, %26, %cst_29 {dimension_numbers = #tpu.dot_dimension_numbers<[1], [0], [0], [1], [0, 0, 1, 1], [], []>} : vector<16x8xbf16>, vector<8x2xbf16>, vector<16x2xf32> -> vector<16x2xf32>
    %30 = arith.addf %24, %29 : vector<16x2xf32>
    %c0_30 = arith.constant 0 : index
    %c0_31 = arith.constant 0 : index
    %c1_32 = arith.constant 1 : index
    %31 = vector.load %arg3[%c0_30, %c0_31, %c1_32] : memref<1x8x5xbf16, #tpu.memory_space<vmem>>, vector<1x8x2xbf16>
    %32 = vector.shape_cast %31 : vector<1x8x2xbf16> to vector<8x2xbf16>
    %c5 = arith.constant 5 : index
    %c0_33 = arith.constant 0 : index
    %c0_34 = arith.constant 0 : index
    %33 = vector.load %arg5[%c5, %c0_33, %c0_34] : memref<9x16x8xbf16, #tpu.memory_space<vmem>>, vector<1x16x8xbf16>
    %34 = vector.shape_cast %33 : vector<1x16x8xbf16> to vector<16x8xbf16>
    %cst_35 = arith.constant dense<0.000000e+00> : vector<16x2xf32>
    %35 = tpu.matmul %34, %32, %cst_35 {dimension_numbers = #tpu.dot_dimension_numbers<[1], [0], [0], [1], [0, 0, 1, 1], [], []>} : vector<16x8xbf16>, vector<8x2xbf16>, vector<16x2xf32> -> vector<16x2xf32>
    %36 = arith.addf %30, %35 : vector<16x2xf32>
    %c0_36 = arith.constant 0 : index
    %c0_37 = arith.constant 0 : index
    %c2_38 = arith.constant 2 : index
    %37 = vector.load %arg1[%c0_36, %c0_37, %c2_38] : memref<1x8x5xbf16, #tpu.memory_space<vmem>>, vector<1x8x2xbf16>
    %38 = vector.shape_cast %37 : vector<1x8x2xbf16> to vector<8x2xbf16>
    %c6 = arith.constant 6 : index
    %c0_39 = arith.constant 0 : index
    %c0_40 = arith.constant 0 : index
    %39 = vector.load %arg5[%c6, %c0_39, %c0_40] : memref<9x16x8xbf16, #tpu.memory_space<vmem>>, vector<1x16x8xbf16>
    %40 = vector.shape_cast %39 : vector<1x16x8xbf16> to vector<16x8xbf16>
    %cst_41 = arith.constant dense<0.000000e+00> : vector<16x2xf32>
    %41 = tpu.matmul %40, %38, %cst_41 {dimension_numbers = #tpu.dot_dimension_numbers<[1], [0], [0], [1], [0, 0, 1, 1], [], []>} : vector<16x8xbf16>, vector<8x2xbf16>, vector<16x2xf32> -> vector<16x2xf32>
    %42 = arith.addf %36, %41 : vector<16x2xf32>
    %c0_42 = arith.constant 0 : index
    %c0_43 = arith.constant 0 : index
    %c2_44 = arith.constant 2 : index
    %43 = vector.load %arg2[%c0_42, %c0_43, %c2_44] : memref<1x8x5xbf16, #tpu.memory_space<vmem>>, vector<1x8x2xbf16>
    %44 = vector.shape_cast %43 : vector<1x8x2xbf16> to vector<8x2xbf16>
    %c7 = arith.constant 7 : index
    %c0_45 = arith.constant 0 : index
    %c0_46 = arith.constant 0 : index
    %45 = vector.load %arg5[%c7, %c0_45, %c0_46] : memref<9x16x8xbf16, #tpu.memory_space<vmem>>, vector<1x16x8xbf16>
    %46 = vector.shape_cast %45 : vector<1x16x8xbf16> to vector<16x8xbf16>
    %cst_47 = arith.constant dense<0.000000e+00> : vector<16x2xf32>
    %47 = tpu.matmul %46, %44, %cst_47 {dimension_numbers = #tpu.dot_dimension_numbers<[1], [0], [0], [1], [0, 0, 1, 1], [], []>} : vector<16x8xbf16>, vector<8x2xbf16>, vector<16x2xf32> -> vector<16x2xf32>
    %48 = arith.addf %42, %47 : vector<16x2xf32>
    %c0_48 = arith.constant 0 : index
    %c0_49 = arith.constant 0 : index
    %c3_50 = arith.constant 3 : index
    %49 = vector.load %arg1[%c0_48, %c0_49, %c3_50] : memref<1x8x5xbf16, #tpu.memory_space<vmem>>, vector<1x8x2xbf16>
    %50 = vector.shape_cast %49 : vector<1x8x2xbf16> to vector<8x2xbf16>
    %c8 = arith.constant 8 : index
    %c0_51 = arith.constant 0 : index
    %c0_52 = arith.constant 0 : index
    %51 = vector.load %arg5[%c8, %c0_51, %c0_52] : memref<9x16x8xbf16, #tpu.memory_space<vmem>>, vector<1x16x8xbf16>
    %52 = vector.shape_cast %51 : vector<1x16x8xbf16> to vector<16x8xbf16>
    %cst_53 = arith.constant dense<0.000000e+00> : vector<16x2xf32>
    %53 = tpu.matmul %52, %50, %cst_53 {dimension_numbers = #tpu.dot_dimension_numbers<[1], [0], [0], [1], [0, 0, 1, 1], [], []>} : vector<16x8xbf16>, vector<8x2xbf16>, vector<16x2xf32> -> vector<16x2xf32>
    %54 = arith.addf %48, %53 : vector<16x2xf32>
    %c0_54 = arith.constant 0 : index
    %c0_55 = arith.constant 0 : index
    %55 = vector.load %arg6[%c0_54, %c0_55] : memref<16x1xf32, #tpu.memory_space<vmem>>, vector<16x1xf32>
    %56 = vector.broadcast %55 : vector<16x1xf32> to vector<16x2xf32>
    %57 = arith.addf %54, %56 : vector<16x2xf32>
    %cst_56 = arith.constant 0.000000e+00 : f32
    %58 = vector.broadcast %cst_56 : f32 to vector<16x2xf32>
    %59 = arith.cmpf oge, %57, %58 : vector<16x2xf32>
    %cst_57 = arith.constant 2.000000e-01 : f32
    %60 = vector.broadcast %cst_57 : f32 to vector<16x2xf32>
    %61 = arith.mulf %60, %57 : vector<16x2xf32>
    %62 = arith.select %59, %57, %61 : vector<16x2xi1>, vector<16x2xf32>
    %63 = arith.truncf %62 : vector<16x2xf32> to vector<16x2xbf16>
    %c0_58 = arith.constant 0 : index
    %c0_59 = arith.constant 0 : index
    %c0_60 = arith.constant 0 : index
    %64 = vector.load %arg7[%c0_58, %c0_59, %c0_60] : memref<1x16x2xbf16, #tpu.memory_space<vmem>>, vector<1x16x2xbf16>
    %65 = vector.shape_cast %64 : vector<1x16x2xbf16> to vector<16x2xbf16>
    %66 = vector.shape_cast %63 : vector<16x2xbf16> to vector<1x16x2xbf16>
    tpu.vector_store %arg7[%c0_58, %c0_59, %c0_60], %66 {strides = array<i32>} : memref<1x16x2xbf16, #tpu.memory_space<vmem>>, vector<1x16x2xbf16>,
    return
  }
  func.func @transform_0(%arg0: i32) -> (i32, i32, i32) {
    %c0_i32 = arith.constant 0 : i32
    %c0_i32_0 = arith.constant 0 : i32
    %c0_i32_1 = arith.constant 0 : i32
    return %arg0, %c0_i32, %c0_i32_0 : i32, i32, i32
  }
  func.func @transform_1(%arg0: i32) -> (i32, i32, i32) {
    %c0_i32 = arith.constant 0 : i32
    %c0_i32_0 = arith.constant 0 : i32
    %c0_i32_1 = arith.constant 0 : i32
    return %arg0, %c0_i32, %c0_i32_0 : i32, i32, i32
  }
  func.func @transform_2(%arg0: i32) -> (i32, i32, i32) {
    %c0_i32 = arith.constant 0 : i32
    %c0_i32_0 = arith.constant 0 : i32
    %c0_i32_1 = arith.constant 0 : i32
    return %arg0, %c0_i32, %c0_i32_0 : i32, i32, i32
  }
  func.func @transform_3(%arg0: i32) -> (i32, i32, i32) {
    %c0_i32 = arith.constant 0 : i32
    %c0_i32_0 = arith.constant 0 : i32
    %c0_i32_1 = arith.constant 0 : i32
    return %arg0, %c0_i32, %c0_i32_0 : i32, i32, i32
  }
  func.func @transform_4(%arg0: i32) -> (i32, i32, i32) {
    %c0_i32 = arith.constant 0 : i32
    %c0_i32_0 = arith.constant 0 : i32
    %c0_i32_1 = arith.constant 0 : i32
    %c0_i32_2 = arith.constant 0 : i32
    return %c0_i32, %c0_i32_0, %c0_i32_1 : i32, i32, i32
  }
  func.func @transform_5(%arg0: i32) -> (i32, i32) {
    %c0_i32 = arith.constant 0 : i32
    %c0_i32_0 = arith.constant 0 : i32
    %c0_i32_1 = arith.constant 0 : i32
    return %c0_i32, %c0_i32_0 : i32, i32
  }
  func.func @transform_6(%arg0: i32) -> (i32, i32, i32) {
    %c0_i32 = arith.constant 0 : i32
    %c0_i32_0 = arith.constant 0 : i32
    %c0_i32_1 = arith.constant 0 : i32
    return %arg0, %c0_i32, %c0_i32_0 : i32, i32, i32
  }
}

module attributes {stable_mosaic.version = 11 : i64} {
  func.func @_conv3x3_s2_lrelu_kernel(%arg0: i32, %arg1: memref<1x3x10xbf16, #tpu.memory_space<vmem>>, %arg2: memref<1x3x10xbf16, #tpu.memory_space<vmem>>, %arg3: memref<1x3x10xbf16, #tpu.memory_space<vmem>>, %arg4: memref<1x3x10xbf16, #tpu.memory_space<vmem>>, %arg5: memref<9x8x3xbf16, #tpu.memory_space<vmem>>, %arg6: memref<8x1xf32, #tpu.memory_space<vmem>>, %arg7: memref<1x8x6xbf16, #tpu.memory_space<vmem>>) attributes {dimension_semantics = [#tpu.dimension_semantics<parallel>], iteration_bounds = array<i64: 2>, scalar_prefetch = 0 : i64, scratch_operands = 0 : i64, tpu.core_type = #tpu.core_type<tc>, window_params = [{transform_indices = @transform_0, window_bounds = array<i64: 1, 3, 10>}, {transform_indices = @transform_1, window_bounds = array<i64: 1, 3, 10>}, {transform_indices = @transform_2, window_bounds = array<i64: 1, 3, 10>}, {transform_indices = @transform_3, window_bounds = array<i64: 1, 3, 10>}, {pipeline_mode = #tpu.pipeline_mode<synchronous>, transform_indices = @transform_4, window_bounds = array<i64: 9, 8, 3>}, {pipeline_mode = #tpu.pipeline_mode<synchronous>, transform_indices = @transform_5, window_bounds = array<i64: 8, 1>}, {transform_indices = @transform_6, window_bounds = array<i64: 1, 8, 6>}]} {
    %cst = arith.constant 0.000000e+00 : f32
    %0 = vector.broadcast %cst : f32 to vector<8x6xf32>
    %c0 = arith.constant 0 : index
    %c0_0 = arith.constant 0 : index
    %c0_1 = arith.constant 0 : index
    %1 = vector.load %arg1[%c0, %c0_0, %c0_1] : memref<1x3x10xbf16, #tpu.memory_space<vmem>>, vector<1x3x6xbf16>
    %2 = vector.shape_cast %1 : vector<1x3x6xbf16> to vector<3x6xbf16>
    %c0_2 = arith.constant 0 : index
    %c0_3 = arith.constant 0 : index
    %c0_4 = arith.constant 0 : index
    %3 = vector.load %arg5[%c0_2, %c0_3, %c0_4] : memref<9x8x3xbf16, #tpu.memory_space<vmem>>, vector<1x8x3xbf16>
    %4 = vector.shape_cast %3 : vector<1x8x3xbf16> to vector<8x3xbf16>
    %cst_5 = arith.constant dense<0.000000e+00> : vector<8x6xf32>
    %5 = tpu.matmul %4, %2, %cst_5 {dimension_numbers = #tpu.dot_dimension_numbers<[1], [0], [0], [1], [0, 0, 1, 1], [], []>} : vector<8x3xbf16>, vector<3x6xbf16>, vector<8x6xf32> -> vector<8x6xf32>
    %6 = arith.addf %0, %5 : vector<8x6xf32>
    %c0_6 = arith.constant 0 : index
    %c0_7 = arith.constant 0 : index
    %c0_8 = arith.constant 0 : index
    %7 = vector.load %arg2[%c0_6, %c0_7, %c0_8] : memref<1x3x10xbf16, #tpu.memory_space<vmem>>, vector<1x3x6xbf16>
    %8 = vector.shape_cast %7 : vector<1x3x6xbf16> to vector<3x6xbf16>
    %c1 = arith.constant 1 : index
    %c0_9 = arith.constant 0 : index
    %c0_10 = arith.constant 0 : index
    %9 = vector.load %arg5[%c1, %c0_9, %c0_10] : memref<9x8x3xbf16, #tpu.memory_space<vmem>>, vector<1x8x3xbf16>
    %10 = vector.shape_cast %9 : vector<1x8x3xbf16> to vector<8x3xbf16>
    %cst_11 = arith.constant dense<0.000000e+00> : vector<8x6xf32>
    %11 = tpu.matmul %10, %8, %cst_11 {dimension_numbers = #tpu.dot_dimension_numbers<[1], [0], [0], [1], [0, 0, 1, 1], [], []>} : vector<8x3xbf16>, vector<3x6xbf16>, vector<8x6xf32> -> vector<8x6xf32>
    %12 = arith.addf %6, %11 : vector<8x6xf32>
    %c0_12 = arith.constant 0 : index
    %c0_13 = arith.constant 0 : index
    %c1_14 = arith.constant 1 : index
    %13 = vector.load %arg1[%c0_12, %c0_13, %c1_14] : memref<1x3x10xbf16, #tpu.memory_space<vmem>>, vector<1x3x6xbf16>
    %14 = vector.shape_cast %13 : vector<1x3x6xbf16> to vector<3x6xbf16>
    %c2 = arith.constant 2 : index
    %c0_15 = arith.constant 0 : index
    %c0_16 = arith.constant 0 : index
    %15 = vector.load %arg5[%c2, %c0_15, %c0_16] : memref<9x8x3xbf16, #tpu.memory_space<vmem>>, vector<1x8x3xbf16>
    %16 = vector.shape_cast %15 : vector<1x8x3xbf16> to vector<8x3xbf16>
    %cst_17 = arith.constant dense<0.000000e+00> : vector<8x6xf32>
    %17 = tpu.matmul %16, %14, %cst_17 {dimension_numbers = #tpu.dot_dimension_numbers<[1], [0], [0], [1], [0, 0, 1, 1], [], []>} : vector<8x3xbf16>, vector<3x6xbf16>, vector<8x6xf32> -> vector<8x6xf32>
    %18 = arith.addf %12, %17 : vector<8x6xf32>
    %c0_18 = arith.constant 0 : index
    %c0_19 = arith.constant 0 : index
    %c0_20 = arith.constant 0 : index
    %19 = vector.load %arg3[%c0_18, %c0_19, %c0_20] : memref<1x3x10xbf16, #tpu.memory_space<vmem>>, vector<1x3x6xbf16>
    %20 = vector.shape_cast %19 : vector<1x3x6xbf16> to vector<3x6xbf16>
    %c3 = arith.constant 3 : index
    %c0_21 = arith.constant 0 : index
    %c0_22 = arith.constant 0 : index
    %21 = vector.load %arg5[%c3, %c0_21, %c0_22] : memref<9x8x3xbf16, #tpu.memory_space<vmem>>, vector<1x8x3xbf16>
    %22 = vector.shape_cast %21 : vector<1x8x3xbf16> to vector<8x3xbf16>
    %cst_23 = arith.constant dense<0.000000e+00> : vector<8x6xf32>
    %23 = tpu.matmul %22, %20, %cst_23 {dimension_numbers = #tpu.dot_dimension_numbers<[1], [0], [0], [1], [0, 0, 1, 1], [], []>} : vector<8x3xbf16>, vector<3x6xbf16>, vector<8x6xf32> -> vector<8x6xf32>
    %24 = arith.addf %18, %23 : vector<8x6xf32>
    %c0_24 = arith.constant 0 : index
    %c0_25 = arith.constant 0 : index
    %c0_26 = arith.constant 0 : index
    %25 = vector.load %arg4[%c0_24, %c0_25, %c0_26] : memref<1x3x10xbf16, #tpu.memory_space<vmem>>, vector<1x3x6xbf16>
    %26 = vector.shape_cast %25 : vector<1x3x6xbf16> to vector<3x6xbf16>
    %c4 = arith.constant 4 : index
    %c0_27 = arith.constant 0 : index
    %c0_28 = arith.constant 0 : index
    %27 = vector.load %arg5[%c4, %c0_27, %c0_28] : memref<9x8x3xbf16, #tpu.memory_space<vmem>>, vector<1x8x3xbf16>
    %28 = vector.shape_cast %27 : vector<1x8x3xbf16> to vector<8x3xbf16>
    %cst_29 = arith.constant dense<0.000000e+00> : vector<8x6xf32>
    %29 = tpu.matmul %28, %26, %cst_29 {dimension_numbers = #tpu.dot_dimension_numbers<[1], [0], [0], [1], [0, 0, 1, 1], [], []>} : vector<8x3xbf16>, vector<3x6xbf16>, vector<8x6xf32> -> vector<8x6xf32>
    %30 = arith.addf %24, %29 : vector<8x6xf32>
    %c0_30 = arith.constant 0 : index
    %c0_31 = arith.constant 0 : index
    %c1_32 = arith.constant 1 : index
    %31 = vector.load %arg3[%c0_30, %c0_31, %c1_32] : memref<1x3x10xbf16, #tpu.memory_space<vmem>>, vector<1x3x6xbf16>
    %32 = vector.shape_cast %31 : vector<1x3x6xbf16> to vector<3x6xbf16>
    %c5 = arith.constant 5 : index
    %c0_33 = arith.constant 0 : index
    %c0_34 = arith.constant 0 : index
    %33 = vector.load %arg5[%c5, %c0_33, %c0_34] : memref<9x8x3xbf16, #tpu.memory_space<vmem>>, vector<1x8x3xbf16>
    %34 = vector.shape_cast %33 : vector<1x8x3xbf16> to vector<8x3xbf16>
    %cst_35 = arith.constant dense<0.000000e+00> : vector<8x6xf32>
    %35 = tpu.matmul %34, %32, %cst_35 {dimension_numbers = #tpu.dot_dimension_numbers<[1], [0], [0], [1], [0, 0, 1, 1], [], []>} : vector<8x3xbf16>, vector<3x6xbf16>, vector<8x6xf32> -> vector<8x6xf32>
    %36 = arith.addf %30, %35 : vector<8x6xf32>
    %c0_36 = arith.constant 0 : index
    %c0_37 = arith.constant 0 : index
    %c3_38 = arith.constant 3 : index
    %37 = vector.load %arg1[%c0_36, %c0_37, %c3_38] : memref<1x3x10xbf16, #tpu.memory_space<vmem>>, vector<1x3x6xbf16>
    %38 = vector.shape_cast %37 : vector<1x3x6xbf16> to vector<3x6xbf16>
    %c6 = arith.constant 6 : index
    %c0_39 = arith.constant 0 : index
    %c0_40 = arith.constant 0 : index
    %39 = vector.load %arg5[%c6, %c0_39, %c0_40] : memref<9x8x3xbf16, #tpu.memory_space<vmem>>, vector<1x8x3xbf16>
    %40 = vector.shape_cast %39 : vector<1x8x3xbf16> to vector<8x3xbf16>
    %cst_41 = arith.constant dense<0.000000e+00> : vector<8x6xf32>
    %41 = tpu.matmul %40, %38, %cst_41 {dimension_numbers = #tpu.dot_dimension_numbers<[1], [0], [0], [1], [0, 0, 1, 1], [], []>} : vector<8x3xbf16>, vector<3x6xbf16>, vector<8x6xf32> -> vector<8x6xf32>
    %42 = arith.addf %36, %41 : vector<8x6xf32>
    %c0_42 = arith.constant 0 : index
    %c0_43 = arith.constant 0 : index
    %c3_44 = arith.constant 3 : index
    %43 = vector.load %arg2[%c0_42, %c0_43, %c3_44] : memref<1x3x10xbf16, #tpu.memory_space<vmem>>, vector<1x3x6xbf16>
    %44 = vector.shape_cast %43 : vector<1x3x6xbf16> to vector<3x6xbf16>
    %c7 = arith.constant 7 : index
    %c0_45 = arith.constant 0 : index
    %c0_46 = arith.constant 0 : index
    %45 = vector.load %arg5[%c7, %c0_45, %c0_46] : memref<9x8x3xbf16, #tpu.memory_space<vmem>>, vector<1x8x3xbf16>
    %46 = vector.shape_cast %45 : vector<1x8x3xbf16> to vector<8x3xbf16>
    %cst_47 = arith.constant dense<0.000000e+00> : vector<8x6xf32>
    %47 = tpu.matmul %46, %44, %cst_47 {dimension_numbers = #tpu.dot_dimension_numbers<[1], [0], [0], [1], [0, 0, 1, 1], [], []>} : vector<8x3xbf16>, vector<3x6xbf16>, vector<8x6xf32> -> vector<8x6xf32>
    %48 = arith.addf %42, %47 : vector<8x6xf32>
    %c0_48 = arith.constant 0 : index
    %c0_49 = arith.constant 0 : index
    %c4_50 = arith.constant 4 : index
    %49 = vector.load %arg1[%c0_48, %c0_49, %c4_50] : memref<1x3x10xbf16, #tpu.memory_space<vmem>>, vector<1x3x6xbf16>
    %50 = vector.shape_cast %49 : vector<1x3x6xbf16> to vector<3x6xbf16>
    %c8 = arith.constant 8 : index
    %c0_51 = arith.constant 0 : index
    %c0_52 = arith.constant 0 : index
    %51 = vector.load %arg5[%c8, %c0_51, %c0_52] : memref<9x8x3xbf16, #tpu.memory_space<vmem>>, vector<1x8x3xbf16>
    %52 = vector.shape_cast %51 : vector<1x8x3xbf16> to vector<8x3xbf16>
    %cst_53 = arith.constant dense<0.000000e+00> : vector<8x6xf32>
    %53 = tpu.matmul %52, %50, %cst_53 {dimension_numbers = #tpu.dot_dimension_numbers<[1], [0], [0], [1], [0, 0, 1, 1], [], []>} : vector<8x3xbf16>, vector<3x6xbf16>, vector<8x6xf32> -> vector<8x6xf32>
    %54 = arith.addf %48, %53 : vector<8x6xf32>
    %c0_54 = arith.constant 0 : index
    %c0_55 = arith.constant 0 : index
    %55 = vector.load %arg6[%c0_54, %c0_55] : memref<8x1xf32, #tpu.memory_space<vmem>>, vector<8x1xf32>
    %56 = vector.broadcast %55 : vector<8x1xf32> to vector<8x6xf32>
    %57 = arith.addf %54, %56 : vector<8x6xf32>
    %cst_56 = arith.constant 0.000000e+00 : f32
    %58 = vector.broadcast %cst_56 : f32 to vector<8x6xf32>
    %59 = arith.cmpf oge, %57, %58 : vector<8x6xf32>
    %cst_57 = arith.constant 2.000000e-01 : f32
    %60 = vector.broadcast %cst_57 : f32 to vector<8x6xf32>
    %61 = arith.mulf %60, %57 : vector<8x6xf32>
    %62 = arith.select %59, %57, %61 : vector<8x6xi1>, vector<8x6xf32>
    %63 = arith.truncf %62 : vector<8x6xf32> to vector<8x6xbf16>
    %c0_58 = arith.constant 0 : index
    %c0_59 = arith.constant 0 : index
    %c0_60 = arith.constant 0 : index
    %64 = vector.load %arg7[%c0_58, %c0_59, %c0_60] : memref<1x8x6xbf16, #tpu.memory_space<vmem>>, vector<1x8x6xbf16>
    %65 = vector.shape_cast %64 : vector<1x8x6xbf16> to vector<8x6xbf16>
    %66 = vector.shape_cast %63 : vector<8x6xbf16> to vector<1x8x6xbf16>
    tpu.vector_store %arg7[%c0_58, %c0_59, %c0_60], %66 {strides = array<i32>} : memref<1x8x6xbf16, #tpu.memory_space<vmem>>, vector<1x8x6xbf16>,
    return
  }
  func.func @transform_0(%arg0: i32) -> (i32, i32, i32) {
    %c0_i32 = arith.constant 0 : i32
    %c0_i32_0 = arith.constant 0 : i32
    %c0_i32_1 = arith.constant 0 : i32
    return %arg0, %c0_i32, %c0_i32_0 : i32, i32, i32
  }
  func.func @transform_1(%arg0: i32) -> (i32, i32, i32) {
    %c0_i32 = arith.constant 0 : i32
    %c0_i32_0 = arith.constant 0 : i32
    %c0_i32_1 = arith.constant 0 : i32
    return %arg0, %c0_i32, %c0_i32_0 : i32, i32, i32
  }
  func.func @transform_2(%arg0: i32) -> (i32, i32, i32) {
    %c0_i32 = arith.constant 0 : i32
    %c0_i32_0 = arith.constant 0 : i32
    %c0_i32_1 = arith.constant 0 : i32
    return %arg0, %c0_i32, %c0_i32_0 : i32, i32, i32
  }
  func.func @transform_3(%arg0: i32) -> (i32, i32, i32) {
    %c0_i32 = arith.constant 0 : i32
    %c0_i32_0 = arith.constant 0 : i32
    %c0_i32_1 = arith.constant 0 : i32
    return %arg0, %c0_i32, %c0_i32_0 : i32, i32, i32
  }
  func.func @transform_4(%arg0: i32) -> (i32, i32, i32) {
    %c0_i32 = arith.constant 0 : i32
    %c0_i32_0 = arith.constant 0 : i32
    %c0_i32_1 = arith.constant 0 : i32
    %c0_i32_2 = arith.constant 0 : i32
    return %c0_i32, %c0_i32_0, %c0_i32_1 : i32, i32, i32
  }
  func.func @transform_5(%arg0: i32) -> (i32, i32) {
    %c0_i32 = arith.constant 0 : i32
    %c0_i32_0 = arith.constant 0 : i32
    %c0_i32_1 = arith.constant 0 : i32
    return %c0_i32, %c0_i32_0 : i32, i32
  }
  func.func @transform_6(%arg0: i32) -> (i32, i32, i32) {
    %c0_i32 = arith.constant 0 : i32
    %c0_i32_0 = arith.constant 0 : i32
    %c0_i32_1 = arith.constant 0 : i32
    return %arg0, %c0_i32, %c0_i32_0 : i32, i32, i32
  }
}

module attributes {stable_mosaic.version = 11 : i64} {
  func.func @_conv3x3_s2_lrelu_kernel(%arg0: i32, %arg1: memref<1x16x5xbf16, #tpu.memory_space<vmem>>, %arg2: memref<1x16x5xbf16, #tpu.memory_space<vmem>>, %arg3: memref<1x16x5xbf16, #tpu.memory_space<vmem>>, %arg4: memref<1x16x5xbf16, #tpu.memory_space<vmem>>, %arg5: memref<9x32x16xbf16, #tpu.memory_space<vmem>>, %arg6: memref<32x1xf32, #tpu.memory_space<vmem>>, %arg7: memref<1x32x2xbf16, #tpu.memory_space<vmem>>) attributes {dimension_semantics = [#tpu.dimension_semantics<parallel>], iteration_bounds = array<i64: 2>, scalar_prefetch = 0 : i64, scratch_operands = 0 : i64, tpu.core_type = #tpu.core_type<tc>, window_params = [{transform_indices = @transform_0, window_bounds = array<i64: 1, 16, 5>}, {transform_indices = @transform_1, window_bounds = array<i64: 1, 16, 5>}, {transform_indices = @transform_2, window_bounds = array<i64: 1, 16, 5>}, {transform_indices = @transform_3, window_bounds = array<i64: 1, 16, 5>}, {pipeline_mode = #tpu.pipeline_mode<synchronous>, transform_indices = @transform_4, window_bounds = array<i64: 9, 32, 16>}, {pipeline_mode = #tpu.pipeline_mode<synchronous>, transform_indices = @transform_5, window_bounds = array<i64: 32, 1>}, {transform_indices = @transform_6, window_bounds = array<i64: 1, 32, 2>}]} {
    %cst = arith.constant 0.000000e+00 : f32
    %0 = vector.broadcast %cst : f32 to vector<32x2xf32>
    %c0 = arith.constant 0 : index
    %c0_0 = arith.constant 0 : index
    %c0_1 = arith.constant 0 : index
    %1 = vector.load %arg1[%c0, %c0_0, %c0_1] : memref<1x16x5xbf16, #tpu.memory_space<vmem>>, vector<1x16x2xbf16>
    %2 = vector.shape_cast %1 : vector<1x16x2xbf16> to vector<16x2xbf16>
    %c0_2 = arith.constant 0 : index
    %c0_3 = arith.constant 0 : index
    %c0_4 = arith.constant 0 : index
    %3 = vector.load %arg5[%c0_2, %c0_3, %c0_4] : memref<9x32x16xbf16, #tpu.memory_space<vmem>>, vector<1x32x16xbf16>
    %4 = vector.shape_cast %3 : vector<1x32x16xbf16> to vector<32x16xbf16>
    %cst_5 = arith.constant dense<0.000000e+00> : vector<32x2xf32>
    %5 = tpu.matmul %4, %2, %cst_5 {dimension_numbers = #tpu.dot_dimension_numbers<[1], [0], [0], [1], [0, 0, 1, 1], [], []>} : vector<32x16xbf16>, vector<16x2xbf16>, vector<32x2xf32> -> vector<32x2xf32>
    %6 = arith.addf %0, %5 : vector<32x2xf32>
    %c0_6 = arith.constant 0 : index
    %c0_7 = arith.constant 0 : index
    %c0_8 = arith.constant 0 : index
    %7 = vector.load %arg2[%c0_6, %c0_7, %c0_8] : memref<1x16x5xbf16, #tpu.memory_space<vmem>>, vector<1x16x2xbf16>
    %8 = vector.shape_cast %7 : vector<1x16x2xbf16> to vector<16x2xbf16>
    %c1 = arith.constant 1 : index
    %c0_9 = arith.constant 0 : index
    %c0_10 = arith.constant 0 : index
    %9 = vector.load %arg5[%c1, %c0_9, %c0_10] : memref<9x32x16xbf16, #tpu.memory_space<vmem>>, vector<1x32x16xbf16>
    %10 = vector.shape_cast %9 : vector<1x32x16xbf16> to vector<32x16xbf16>
    %cst_11 = arith.constant dense<0.000000e+00> : vector<32x2xf32>
    %11 = tpu.matmul %10, %8, %cst_11 {dimension_numbers = #tpu.dot_dimension_numbers<[1], [0], [0], [1], [0, 0, 1, 1], [], []>} : vector<32x16xbf16>, vector<16x2xbf16>, vector<32x2xf32> -> vector<32x2xf32>
    %12 = arith.addf %6, %11 : vector<32x2xf32>
    %c0_12 = arith.constant 0 : index
    %c0_13 = arith.constant 0 : index
    %c1_14 = arith.constant 1 : index
    %13 = vector.load %arg1[%c0_12, %c0_13, %c1_14] : memref<1x16x5xbf16, #tpu.memory_space<vmem>>, vector<1x16x2xbf16>
    %14 = vector.shape_cast %13 : vector<1x16x2xbf16> to vector<16x2xbf16>
    %c2 = arith.constant 2 : index
    %c0_15 = arith.constant 0 : index
    %c0_16 = arith.constant 0 : index
    %15 = vector.load %arg5[%c2, %c0_15, %c0_16] : memref<9x32x16xbf16, #tpu.memory_space<vmem>>, vector<1x32x16xbf16>
    %16 = vector.shape_cast %15 : vector<1x32x16xbf16> to vector<32x16xbf16>
    %cst_17 = arith.constant dense<0.000000e+00> : vector<32x2xf32>
    %17 = tpu.matmul %16, %14, %cst_17 {dimension_numbers = #tpu.dot_dimension_numbers<[1], [0], [0], [1], [0, 0, 1, 1], [], []>} : vector<32x16xbf16>, vector<16x2xbf16>, vector<32x2xf32> -> vector<32x2xf32>
    %18 = arith.addf %12, %17 : vector<32x2xf32>
    %c0_18 = arith.constant 0 : index
    %c0_19 = arith.constant 0 : index
    %c0_20 = arith.constant 0 : index
    %19 = vector.load %arg3[%c0_18, %c0_19, %c0_20] : memref<1x16x5xbf16, #tpu.memory_space<vmem>>, vector<1x16x2xbf16>
    %20 = vector.shape_cast %19 : vector<1x16x2xbf16> to vector<16x2xbf16>
    %c3 = arith.constant 3 : index
    %c0_21 = arith.constant 0 : index
    %c0_22 = arith.constant 0 : index
    %21 = vector.load %arg5[%c3, %c0_21, %c0_22] : memref<9x32x16xbf16, #tpu.memory_space<vmem>>, vector<1x32x16xbf16>
    %22 = vector.shape_cast %21 : vector<1x32x16xbf16> to vector<32x16xbf16>
    %cst_23 = arith.constant dense<0.000000e+00> : vector<32x2xf32>
    %23 = tpu.matmul %22, %20, %cst_23 {dimension_numbers = #tpu.dot_dimension_numbers<[1], [0], [0], [1], [0, 0, 1, 1], [], []>} : vector<32x16xbf16>, vector<16x2xbf16>, vector<32x2xf32> -> vector<32x2xf32>
    %24 = arith.addf %18, %23 : vector<32x2xf32>
    %c0_24 = arith.constant 0 : index
    %c0_25 = arith.constant 0 : index
    %c0_26 = arith.constant 0 : index
    %25 = vector.load %arg4[%c0_24, %c0_25, %c0_26] : memref<1x16x5xbf16, #tpu.memory_space<vmem>>, vector<1x16x2xbf16>
    %26 = vector.shape_cast %25 : vector<1x16x2xbf16> to vector<16x2xbf16>
    %c4 = arith.constant 4 : index
    %c0_27 = arith.constant 0 : index
    %c0_28 = arith.constant 0 : index
    %27 = vector.load %arg5[%c4, %c0_27, %c0_28] : memref<9x32x16xbf16, #tpu.memory_space<vmem>>, vector<1x32x16xbf16>
    %28 = vector.shape_cast %27 : vector<1x32x16xbf16> to vector<32x16xbf16>
    %cst_29 = arith.constant dense<0.000000e+00> : vector<32x2xf32>
    %29 = tpu.matmul %28, %26, %cst_29 {dimension_numbers = #tpu.dot_dimension_numbers<[1], [0], [0], [1], [0, 0, 1, 1], [], []>} : vector<32x16xbf16>, vector<16x2xbf16>, vector<32x2xf32> -> vector<32x2xf32>
    %30 = arith.addf %24, %29 : vector<32x2xf32>
    %c0_30 = arith.constant 0 : index
    %c0_31 = arith.constant 0 : index
    %c1_32 = arith.constant 1 : index
    %31 = vector.load %arg3[%c0_30, %c0_31, %c1_32] : memref<1x16x5xbf16, #tpu.memory_space<vmem>>, vector<1x16x2xbf16>
    %32 = vector.shape_cast %31 : vector<1x16x2xbf16> to vector<16x2xbf16>
    %c5 = arith.constant 5 : index
    %c0_33 = arith.constant 0 : index
    %c0_34 = arith.constant 0 : index
    %33 = vector.load %arg5[%c5, %c0_33, %c0_34] : memref<9x32x16xbf16, #tpu.memory_space<vmem>>, vector<1x32x16xbf16>
    %34 = vector.shape_cast %33 : vector<1x32x16xbf16> to vector<32x16xbf16>
    %cst_35 = arith.constant dense<0.000000e+00> : vector<32x2xf32>
    %35 = tpu.matmul %34, %32, %cst_35 {dimension_numbers = #tpu.dot_dimension_numbers<[1], [0], [0], [1], [0, 0, 1, 1], [], []>} : vector<32x16xbf16>, vector<16x2xbf16>, vector<32x2xf32> -> vector<32x2xf32>
    %36 = arith.addf %30, %35 : vector<32x2xf32>
    %c0_36 = arith.constant 0 : index
    %c0_37 = arith.constant 0 : index
    %c2_38 = arith.constant 2 : index
    %37 = vector.load %arg1[%c0_36, %c0_37, %c2_38] : memref<1x16x5xbf16, #tpu.memory_space<vmem>>, vector<1x16x2xbf16>
    %38 = vector.shape_cast %37 : vector<1x16x2xbf16> to vector<16x2xbf16>
    %c6 = arith.constant 6 : index
    %c0_39 = arith.constant 0 : index
    %c0_40 = arith.constant 0 : index
    %39 = vector.load %arg5[%c6, %c0_39, %c0_40] : memref<9x32x16xbf16, #tpu.memory_space<vmem>>, vector<1x32x16xbf16>
    %40 = vector.shape_cast %39 : vector<1x32x16xbf16> to vector<32x16xbf16>
    %cst_41 = arith.constant dense<0.000000e+00> : vector<32x2xf32>
    %41 = tpu.matmul %40, %38, %cst_41 {dimension_numbers = #tpu.dot_dimension_numbers<[1], [0], [0], [1], [0, 0, 1, 1], [], []>} : vector<32x16xbf16>, vector<16x2xbf16>, vector<32x2xf32> -> vector<32x2xf32>
    %42 = arith.addf %36, %41 : vector<32x2xf32>
    %c0_42 = arith.constant 0 : index
    %c0_43 = arith.constant 0 : index
    %c2_44 = arith.constant 2 : index
    %43 = vector.load %arg2[%c0_42, %c0_43, %c2_44] : memref<1x16x5xbf16, #tpu.memory_space<vmem>>, vector<1x16x2xbf16>
    %44 = vector.shape_cast %43 : vector<1x16x2xbf16> to vector<16x2xbf16>
    %c7 = arith.constant 7 : index
    %c0_45 = arith.constant 0 : index
    %c0_46 = arith.constant 0 : index
    %45 = vector.load %arg5[%c7, %c0_45, %c0_46] : memref<9x32x16xbf16, #tpu.memory_space<vmem>>, vector<1x32x16xbf16>
    %46 = vector.shape_cast %45 : vector<1x32x16xbf16> to vector<32x16xbf16>
    %cst_47 = arith.constant dense<0.000000e+00> : vector<32x2xf32>
    %47 = tpu.matmul %46, %44, %cst_47 {dimension_numbers = #tpu.dot_dimension_numbers<[1], [0], [0], [1], [0, 0, 1, 1], [], []>} : vector<32x16xbf16>, vector<16x2xbf16>, vector<32x2xf32> -> vector<32x2xf32>
    %48 = arith.addf %42, %47 : vector<32x2xf32>
    %c0_48 = arith.constant 0 : index
    %c0_49 = arith.constant 0 : index
    %c3_50 = arith.constant 3 : index
    %49 = vector.load %arg1[%c0_48, %c0_49, %c3_50] : memref<1x16x5xbf16, #tpu.memory_space<vmem>>, vector<1x16x2xbf16>
    %50 = vector.shape_cast %49 : vector<1x16x2xbf16> to vector<16x2xbf16>
    %c8 = arith.constant 8 : index
    %c0_51 = arith.constant 0 : index
    %c0_52 = arith.constant 0 : index
    %51 = vector.load %arg5[%c8, %c0_51, %c0_52] : memref<9x32x16xbf16, #tpu.memory_space<vmem>>, vector<1x32x16xbf16>
    %52 = vector.shape_cast %51 : vector<1x32x16xbf16> to vector<32x16xbf16>
    %cst_53 = arith.constant dense<0.000000e+00> : vector<32x2xf32>
    %53 = tpu.matmul %52, %50, %cst_53 {dimension_numbers = #tpu.dot_dimension_numbers<[1], [0], [0], [1], [0, 0, 1, 1], [], []>} : vector<32x16xbf16>, vector<16x2xbf16>, vector<32x2xf32> -> vector<32x2xf32>
    %54 = arith.addf %48, %53 : vector<32x2xf32>
    %c0_54 = arith.constant 0 : index
    %c0_55 = arith.constant 0 : index
    %55 = vector.load %arg6[%c0_54, %c0_55] : memref<32x1xf32, #tpu.memory_space<vmem>>, vector<32x1xf32>
    %56 = vector.broadcast %55 : vector<32x1xf32> to vector<32x2xf32>
    %57 = arith.addf %54, %56 : vector<32x2xf32>
    %cst_56 = arith.constant 0.000000e+00 : f32
    %58 = vector.broadcast %cst_56 : f32 to vector<32x2xf32>
    %59 = arith.cmpf oge, %57, %58 : vector<32x2xf32>
    %cst_57 = arith.constant 2.000000e-01 : f32
    %60 = vector.broadcast %cst_57 : f32 to vector<32x2xf32>
    %61 = arith.mulf %60, %57 : vector<32x2xf32>
    %62 = arith.select %59, %57, %61 : vector<32x2xi1>, vector<32x2xf32>
    %63 = arith.truncf %62 : vector<32x2xf32> to vector<32x2xbf16>
    %c0_58 = arith.constant 0 : index
    %c0_59 = arith.constant 0 : index
    %c0_60 = arith.constant 0 : index
    %64 = vector.load %arg7[%c0_58, %c0_59, %c0_60] : memref<1x32x2xbf16, #tpu.memory_space<vmem>>, vector<1x32x2xbf16>
    %65 = vector.shape_cast %64 : vector<1x32x2xbf16> to vector<32x2xbf16>
    %66 = vector.shape_cast %63 : vector<32x2xbf16> to vector<1x32x2xbf16>
    tpu.vector_store %arg7[%c0_58, %c0_59, %c0_60], %66 {strides = array<i32>} : memref<1x32x2xbf16, #tpu.memory_space<vmem>>, vector<1x32x2xbf16>,
    return
  }
  func.func @transform_0(%arg0: i32) -> (i32, i32, i32) {
    %c0_i32 = arith.constant 0 : i32
    %c0_i32_0 = arith.constant 0 : i32
    %c0_i32_1 = arith.constant 0 : i32
    return %arg0, %c0_i32, %c0_i32_0 : i32, i32, i32
  }
  func.func @transform_1(%arg0: i32) -> (i32, i32, i32) {
    %c0_i32 = arith.constant 0 : i32
    %c0_i32_0 = arith.constant 0 : i32
    %c0_i32_1 = arith.constant 0 : i32
    return %arg0, %c0_i32, %c0_i32_0 : i32, i32, i32
  }
  func.func @transform_2(%arg0: i32) -> (i32, i32, i32) {
    %c0_i32 = arith.constant 0 : i32
    %c0_i32_0 = arith.constant 0 : i32
    %c0_i32_1 = arith.constant 0 : i32
    return %arg0, %c0_i32, %c0_i32_0 : i32, i32, i32
  }
  func.func @transform_3(%arg0: i32) -> (i32, i32, i32) {
    %c0_i32 = arith.constant 0 : i32
    %c0_i32_0 = arith.constant 0 : i32
    %c0_i32_1 = arith.constant 0 : i32
    return %arg0, %c0_i32, %c0_i32_0 : i32, i32, i32
  }
  func.func @transform_4(%arg0: i32) -> (i32, i32, i32) {
    %c0_i32 = arith.constant 0 : i32
    %c0_i32_0 = arith.constant 0 : i32
    %c0_i32_1 = arith.constant 0 : i32
    %c0_i32_2 = arith.constant 0 : i32
    return %c0_i32, %c0_i32_0, %c0_i32_1 : i32, i32, i32
  }
  func.func @transform_5(%arg0: i32) -> (i32, i32) {
    %c0_i32 = arith.constant 0 : i32
    %c0_i32_0 = arith.constant 0 : i32
    %c0_i32_1 = arith.constant 0 : i32
    return %c0_i32, %c0_i32_0 : i32, i32
  }
  func.func @transform_6(%arg0: i32) -> (i32, i32, i32) {
    %c0_i32 = arith.constant 0 : i32
    %c0_i32_0 = arith.constant 0 : i32
    %c0_i32_1 = arith.constant 0 : i32
    return %arg0, %c0_i32, %c0_i32_0 : i32, i32, i32
  }
}

module attributes {stable_mosaic.version = 11 : i64} {
  func.func @_conv3x3_s2_lrelu_kernel(%arg0: i32, %arg1: memref<1x32x5xbf16, #tpu.memory_space<vmem>>, %arg2: memref<1x32x5xbf16, #tpu.memory_space<vmem>>, %arg3: memref<1x32x5xbf16, #tpu.memory_space<vmem>>, %arg4: memref<1x32x5xbf16, #tpu.memory_space<vmem>>, %arg5: memref<9x64x32xbf16, #tpu.memory_space<vmem>>, %arg6: memref<64x1xf32, #tpu.memory_space<vmem>>, %arg7: memref<1x64x2xbf16, #tpu.memory_space<vmem>>) attributes {dimension_semantics = [#tpu.dimension_semantics<parallel>], iteration_bounds = array<i64: 2>, scalar_prefetch = 0 : i64, scratch_operands = 0 : i64, tpu.core_type = #tpu.core_type<tc>, window_params = [{transform_indices = @transform_0, window_bounds = array<i64: 1, 32, 5>}, {transform_indices = @transform_1, window_bounds = array<i64: 1, 32, 5>}, {transform_indices = @transform_2, window_bounds = array<i64: 1, 32, 5>}, {transform_indices = @transform_3, window_bounds = array<i64: 1, 32, 5>}, {pipeline_mode = #tpu.pipeline_mode<synchronous>, transform_indices = @transform_4, window_bounds = array<i64: 9, 64, 32>}, {pipeline_mode = #tpu.pipeline_mode<synchronous>, transform_indices = @transform_5, window_bounds = array<i64: 64, 1>}, {transform_indices = @transform_6, window_bounds = array<i64: 1, 64, 2>}]} {
    %cst = arith.constant 0.000000e+00 : f32
    %0 = vector.broadcast %cst : f32 to vector<64x2xf32>
    %c0 = arith.constant 0 : index
    %c0_0 = arith.constant 0 : index
    %c0_1 = arith.constant 0 : index
    %1 = vector.load %arg1[%c0, %c0_0, %c0_1] : memref<1x32x5xbf16, #tpu.memory_space<vmem>>, vector<1x32x2xbf16>
    %2 = vector.shape_cast %1 : vector<1x32x2xbf16> to vector<32x2xbf16>
    %c0_2 = arith.constant 0 : index
    %c0_3 = arith.constant 0 : index
    %c0_4 = arith.constant 0 : index
    %3 = vector.load %arg5[%c0_2, %c0_3, %c0_4] : memref<9x64x32xbf16, #tpu.memory_space<vmem>>, vector<1x64x32xbf16>
    %4 = vector.shape_cast %3 : vector<1x64x32xbf16> to vector<64x32xbf16>
    %cst_5 = arith.constant dense<0.000000e+00> : vector<64x2xf32>
    %5 = tpu.matmul %4, %2, %cst_5 {dimension_numbers = #tpu.dot_dimension_numbers<[1], [0], [0], [1], [0, 0, 1, 1], [], []>} : vector<64x32xbf16>, vector<32x2xbf16>, vector<64x2xf32> -> vector<64x2xf32>
    %6 = arith.addf %0, %5 : vector<64x2xf32>
    %c0_6 = arith.constant 0 : index
    %c0_7 = arith.constant 0 : index
    %c0_8 = arith.constant 0 : index
    %7 = vector.load %arg2[%c0_6, %c0_7, %c0_8] : memref<1x32x5xbf16, #tpu.memory_space<vmem>>, vector<1x32x2xbf16>
    %8 = vector.shape_cast %7 : vector<1x32x2xbf16> to vector<32x2xbf16>
    %c1 = arith.constant 1 : index
    %c0_9 = arith.constant 0 : index
    %c0_10 = arith.constant 0 : index
    %9 = vector.load %arg5[%c1, %c0_9, %c0_10] : memref<9x64x32xbf16, #tpu.memory_space<vmem>>, vector<1x64x32xbf16>
    %10 = vector.shape_cast %9 : vector<1x64x32xbf16> to vector<64x32xbf16>
    %cst_11 = arith.constant dense<0.000000e+00> : vector<64x2xf32>
    %11 = tpu.matmul %10, %8, %cst_11 {dimension_numbers = #tpu.dot_dimension_numbers<[1], [0], [0], [1], [0, 0, 1, 1], [], []>} : vector<64x32xbf16>, vector<32x2xbf16>, vector<64x2xf32> -> vector<64x2xf32>
    %12 = arith.addf %6, %11 : vector<64x2xf32>
    %c0_12 = arith.constant 0 : index
    %c0_13 = arith.constant 0 : index
    %c1_14 = arith.constant 1 : index
    %13 = vector.load %arg1[%c0_12, %c0_13, %c1_14] : memref<1x32x5xbf16, #tpu.memory_space<vmem>>, vector<1x32x2xbf16>
    %14 = vector.shape_cast %13 : vector<1x32x2xbf16> to vector<32x2xbf16>
    %c2 = arith.constant 2 : index
    %c0_15 = arith.constant 0 : index
    %c0_16 = arith.constant 0 : index
    %15 = vector.load %arg5[%c2, %c0_15, %c0_16] : memref<9x64x32xbf16, #tpu.memory_space<vmem>>, vector<1x64x32xbf16>
    %16 = vector.shape_cast %15 : vector<1x64x32xbf16> to vector<64x32xbf16>
    %cst_17 = arith.constant dense<0.000000e+00> : vector<64x2xf32>
    %17 = tpu.matmul %16, %14, %cst_17 {dimension_numbers = #tpu.dot_dimension_numbers<[1], [0], [0], [1], [0, 0, 1, 1], [], []>} : vector<64x32xbf16>, vector<32x2xbf16>, vector<64x2xf32> -> vector<64x2xf32>
    %18 = arith.addf %12, %17 : vector<64x2xf32>
    %c0_18 = arith.constant 0 : index
    %c0_19 = arith.constant 0 : index
    %c0_20 = arith.constant 0 : index
    %19 = vector.load %arg3[%c0_18, %c0_19, %c0_20] : memref<1x32x5xbf16, #tpu.memory_space<vmem>>, vector<1x32x2xbf16>
    %20 = vector.shape_cast %19 : vector<1x32x2xbf16> to vector<32x2xbf16>
    %c3 = arith.constant 3 : index
    %c0_21 = arith.constant 0 : index
    %c0_22 = arith.constant 0 : index
    %21 = vector.load %arg5[%c3, %c0_21, %c0_22] : memref<9x64x32xbf16, #tpu.memory_space<vmem>>, vector<1x64x32xbf16>
    %22 = vector.shape_cast %21 : vector<1x64x32xbf16> to vector<64x32xbf16>
    %cst_23 = arith.constant dense<0.000000e+00> : vector<64x2xf32>
    %23 = tpu.matmul %22, %20, %cst_23 {dimension_numbers = #tpu.dot_dimension_numbers<[1], [0], [0], [1], [0, 0, 1, 1], [], []>} : vector<64x32xbf16>, vector<32x2xbf16>, vector<64x2xf32> -> vector<64x2xf32>
    %24 = arith.addf %18, %23 : vector<64x2xf32>
    %c0_24 = arith.constant 0 : index
    %c0_25 = arith.constant 0 : index
    %c0_26 = arith.constant 0 : index
    %25 = vector.load %arg4[%c0_24, %c0_25, %c0_26] : memref<1x32x5xbf16, #tpu.memory_space<vmem>>, vector<1x32x2xbf16>
    %26 = vector.shape_cast %25 : vector<1x32x2xbf16> to vector<32x2xbf16>
    %c4 = arith.constant 4 : index
    %c0_27 = arith.constant 0 : index
    %c0_28 = arith.constant 0 : index
    %27 = vector.load %arg5[%c4, %c0_27, %c0_28] : memref<9x64x32xbf16, #tpu.memory_space<vmem>>, vector<1x64x32xbf16>
    %28 = vector.shape_cast %27 : vector<1x64x32xbf16> to vector<64x32xbf16>
    %cst_29 = arith.constant dense<0.000000e+00> : vector<64x2xf32>
    %29 = tpu.matmul %28, %26, %cst_29 {dimension_numbers = #tpu.dot_dimension_numbers<[1], [0], [0], [1], [0, 0, 1, 1], [], []>} : vector<64x32xbf16>, vector<32x2xbf16>, vector<64x2xf32> -> vector<64x2xf32>
    %30 = arith.addf %24, %29 : vector<64x2xf32>
    %c0_30 = arith.constant 0 : index
    %c0_31 = arith.constant 0 : index
    %c1_32 = arith.constant 1 : index
    %31 = vector.load %arg3[%c0_30, %c0_31, %c1_32] : memref<1x32x5xbf16, #tpu.memory_space<vmem>>, vector<1x32x2xbf16>
    %32 = vector.shape_cast %31 : vector<1x32x2xbf16> to vector<32x2xbf16>
    %c5 = arith.constant 5 : index
    %c0_33 = arith.constant 0 : index
    %c0_34 = arith.constant 0 : index
    %33 = vector.load %arg5[%c5, %c0_33, %c0_34] : memref<9x64x32xbf16, #tpu.memory_space<vmem>>, vector<1x64x32xbf16>
    %34 = vector.shape_cast %33 : vector<1x64x32xbf16> to vector<64x32xbf16>
    %cst_35 = arith.constant dense<0.000000e+00> : vector<64x2xf32>
    %35 = tpu.matmul %34, %32, %cst_35 {dimension_numbers = #tpu.dot_dimension_numbers<[1], [0], [0], [1], [0, 0, 1, 1], [], []>} : vector<64x32xbf16>, vector<32x2xbf16>, vector<64x2xf32> -> vector<64x2xf32>
    %36 = arith.addf %30, %35 : vector<64x2xf32>
    %c0_36 = arith.constant 0 : index
    %c0_37 = arith.constant 0 : index
    %c2_38 = arith.constant 2 : index
    %37 = vector.load %arg1[%c0_36, %c0_37, %c2_38] : memref<1x32x5xbf16, #tpu.memory_space<vmem>>, vector<1x32x2xbf16>
    %38 = vector.shape_cast %37 : vector<1x32x2xbf16> to vector<32x2xbf16>
    %c6 = arith.constant 6 : index
    %c0_39 = arith.constant 0 : index
    %c0_40 = arith.constant 0 : index
    %39 = vector.load %arg5[%c6, %c0_39, %c0_40] : memref<9x64x32xbf16, #tpu.memory_space<vmem>>, vector<1x64x32xbf16>
    %40 = vector.shape_cast %39 : vector<1x64x32xbf16> to vector<64x32xbf16>
    %cst_41 = arith.constant dense<0.000000e+00> : vector<64x2xf32>
    %41 = tpu.matmul %40, %38, %cst_41 {dimension_numbers = #tpu.dot_dimension_numbers<[1], [0], [0], [1], [0, 0, 1, 1], [], []>} : vector<64x32xbf16>, vector<32x2xbf16>, vector<64x2xf32> -> vector<64x2xf32>
    %42 = arith.addf %36, %41 : vector<64x2xf32>
    %c0_42 = arith.constant 0 : index
    %c0_43 = arith.constant 0 : index
    %c2_44 = arith.constant 2 : index
    %43 = vector.load %arg2[%c0_42, %c0_43, %c2_44] : memref<1x32x5xbf16, #tpu.memory_space<vmem>>, vector<1x32x2xbf16>
    %44 = vector.shape_cast %43 : vector<1x32x2xbf16> to vector<32x2xbf16>
    %c7 = arith.constant 7 : index
    %c0_45 = arith.constant 0 : index
    %c0_46 = arith.constant 0 : index
    %45 = vector.load %arg5[%c7, %c0_45, %c0_46] : memref<9x64x32xbf16, #tpu.memory_space<vmem>>, vector<1x64x32xbf16>
    %46 = vector.shape_cast %45 : vector<1x64x32xbf16> to vector<64x32xbf16>
    %cst_47 = arith.constant dense<0.000000e+00> : vector<64x2xf32>
    %47 = tpu.matmul %46, %44, %cst_47 {dimension_numbers = #tpu.dot_dimension_numbers<[1], [0], [0], [1], [0, 0, 1, 1], [], []>} : vector<64x32xbf16>, vector<32x2xbf16>, vector<64x2xf32> -> vector<64x2xf32>
    %48 = arith.addf %42, %47 : vector<64x2xf32>
    %c0_48 = arith.constant 0 : index
    %c0_49 = arith.constant 0 : index
    %c3_50 = arith.constant 3 : index
    %49 = vector.load %arg1[%c0_48, %c0_49, %c3_50] : memref<1x32x5xbf16, #tpu.memory_space<vmem>>, vector<1x32x2xbf16>
    %50 = vector.shape_cast %49 : vector<1x32x2xbf16> to vector<32x2xbf16>
    %c8 = arith.constant 8 : index
    %c0_51 = arith.constant 0 : index
    %c0_52 = arith.constant 0 : index
    %51 = vector.load %arg5[%c8, %c0_51, %c0_52] : memref<9x64x32xbf16, #tpu.memory_space<vmem>>, vector<1x64x32xbf16>
    %52 = vector.shape_cast %51 : vector<1x64x32xbf16> to vector<64x32xbf16>
    %cst_53 = arith.constant dense<0.000000e+00> : vector<64x2xf32>
    %53 = tpu.matmul %52, %50, %cst_53 {dimension_numbers = #tpu.dot_dimension_numbers<[1], [0], [0], [1], [0, 0, 1, 1], [], []>} : vector<64x32xbf16>, vector<32x2xbf16>, vector<64x2xf32> -> vector<64x2xf32>
    %54 = arith.addf %48, %53 : vector<64x2xf32>
    %c0_54 = arith.constant 0 : index
    %c0_55 = arith.constant 0 : index
    %55 = vector.load %arg6[%c0_54, %c0_55] : memref<64x1xf32, #tpu.memory_space<vmem>>, vector<64x1xf32>
    %56 = vector.broadcast %55 : vector<64x1xf32> to vector<64x2xf32>
    %57 = arith.addf %54, %56 : vector<64x2xf32>
    %cst_56 = arith.constant 0.000000e+00 : f32
    %58 = vector.broadcast %cst_56 : f32 to vector<64x2xf32>
    %59 = arith.cmpf oge, %57, %58 : vector<64x2xf32>
    %cst_57 = arith.constant 2.000000e-01 : f32
    %60 = vector.broadcast %cst_57 : f32 to vector<64x2xf32>
    %61 = arith.mulf %60, %57 : vector<64x2xf32>
    %62 = arith.select %59, %57, %61 : vector<64x2xi1>, vector<64x2xf32>
    %63 = arith.truncf %62 : vector<64x2xf32> to vector<64x2xbf16>
    %c0_58 = arith.constant 0 : index
    %c0_59 = arith.constant 0 : index
    %c0_60 = arith.constant 0 : index
    %64 = vector.load %arg7[%c0_58, %c0_59, %c0_60] : memref<1x64x2xbf16, #tpu.memory_space<vmem>>, vector<1x64x2xbf16>
    %65 = vector.shape_cast %64 : vector<1x64x2xbf16> to vector<64x2xbf16>
    %66 = vector.shape_cast %63 : vector<64x2xbf16> to vector<1x64x2xbf16>
    tpu.vector_store %arg7[%c0_58, %c0_59, %c0_60], %66 {strides = array<i32>} : memref<1x64x2xbf16, #tpu.memory_space<vmem>>, vector<1x64x2xbf16>,
    return
  }
  func.func @transform_0(%arg0: i32) -> (i32, i32, i32) {
    %c0_i32 = arith.constant 0 : i32
    %c0_i32_0 = arith.constant 0 : i32
    %c0_i32_1 = arith.constant 0 : i32
    return %arg0, %c0_i32, %c0_i32_0 : i32, i32, i32
  }
  func.func @transform_1(%arg0: i32) -> (i32, i32, i32) {
    %c0_i32 = arith.constant 0 : i32
    %c0_i32_0 = arith.constant 0 : i32
    %c0_i32_1 = arith.constant 0 : i32
    return %arg0, %c0_i32, %c0_i32_0 : i32, i32, i32
  }
  func.func @transform_2(%arg0: i32) -> (i32, i32, i32) {
    %c0_i32 = arith.constant 0 : i32
    %c0_i32_0 = arith.constant 0 : i32
    %c0_i32_1 = arith.constant 0 : i32
    return %arg0, %c0_i32, %c0_i32_0 : i32, i32, i32
  }
  func.func @transform_3(%arg0: i32) -> (i32, i32, i32) {
    %c0_i32 = arith.constant 0 : i32
    %c0_i32_0 = arith.constant 0 : i32
    %c0_i32_1 = arith.constant 0 : i32
    return %arg0, %c0_i32, %c0_i32_0 : i32, i32, i32
  }
  func.func @transform_4(%arg0: i32) -> (i32, i32, i32) {
    %c0_i32 = arith.constant 0 : i32
    %c0_i32_0 = arith.constant 0 : i32
    %c0_i32_1 = arith.constant 0 : i32
    %c0_i32_2 = arith.constant 0 : i32
    return %c0_i32, %c0_i32_0, %c0_i32_1 : i32, i32, i32
  }
  func.func @transform_5(%arg0: i32) -> (i32, i32) {
    %c0_i32 = arith.constant 0 : i32
    %c0_i32_0 = arith.constant 0 : i32
    %c0_i32_1 = arith.constant 0 : i32
    return %c0_i32, %c0_i32_0 : i32, i32
  }
  func.func @transform_6(%arg0: i32) -> (i32, i32, i32) {
    %c0_i32 = arith.constant 0 : i32
    %c0_i32_0 = arith.constant 0 : i32
    %c0_i32_1 = arith.constant 0 : i32
    return %arg0, %c0_i32, %c0_i32_0 : i32, i32, i32
  }
}

module attributes {stable_mosaic.version = 11 : i64} {
  func.func @_conv1x1_kernel(%arg0: i32, %arg1: memref<1x64x1xbf16, #tpu.memory_space<vmem>>, %arg2: memref<1x64xbf16, #tpu.memory_space<vmem>>, %arg3: memref<1x1xf32, #tpu.memory_space<vmem>>, %arg4: memref<1x1x1xf32, #tpu.memory_space<vmem>>) attributes {dimension_semantics = [#tpu.dimension_semantics<parallel>], iteration_bounds = array<i64: 2>, scalar_prefetch = 0 : i64, scratch_operands = 0 : i64, tpu.core_type = #tpu.core_type<tc>, window_params = [{transform_indices = @transform_0, window_bounds = array<i64: 1, 64, 1>}, {pipeline_mode = #tpu.pipeline_mode<synchronous>, transform_indices = @transform_1, window_bounds = array<i64: 1, 64>}, {pipeline_mode = #tpu.pipeline_mode<synchronous>, transform_indices = @transform_2, window_bounds = array<i64: 1, 1>}, {transform_indices = @transform_3, window_bounds = array<i64: 1, 1, 1>}]} {
    %c0 = arith.constant 0 : index
    %c0_0 = arith.constant 0 : index
    %0 = vector.load %arg2[%c0, %c0_0] : memref<1x64xbf16, #tpu.memory_space<vmem>>, vector<1x64xbf16>
    %c0_1 = arith.constant 0 : index
    %c0_2 = arith.constant 0 : index
    %c0_3 = arith.constant 0 : index
    %1 = vector.load %arg1[%c0_1, %c0_2, %c0_3] : memref<1x64x1xbf16, #tpu.memory_space<vmem>>, vector<1x64x1xbf16>
    %2 = vector.shape_cast %1 : vector<1x64x1xbf16> to vector<64x1xbf16>
    %cst = arith.constant dense<0.000000e+00> : vector<1x1xf32>
    %3 = tpu.matmul %0, %2, %cst {dimension_numbers = #tpu.dot_dimension_numbers<[1], [0], [0], [1], [0, 0, 1, 1], [], []>} : vector<1x64xbf16>, vector<64x1xbf16>, vector<1x1xf32> -> vector<1x1xf32>
    %c0_4 = arith.constant 0 : index
    %c0_5 = arith.constant 0 : index
    %4 = vector.load %arg3[%c0_4, %c0_5] : memref<1x1xf32, #tpu.memory_space<vmem>>, vector<1x1xf32>
    %5 = arith.addf %3, %4 : vector<1x1xf32>
    %c0_6 = arith.constant 0 : index
    %c0_7 = arith.constant 0 : index
    %c0_8 = arith.constant 0 : index
    %6 = vector.load %arg4[%c0_6, %c0_7, %c0_8] : memref<1x1x1xf32, #tpu.memory_space<vmem>>, vector<1x1x1xf32>
    %7 = vector.shape_cast %6 : vector<1x1x1xf32> to vector<1x1xf32>
    %8 = vector.shape_cast %5 : vector<1x1xf32> to vector<1x1x1xf32>
    tpu.vector_store %arg4[%c0_6, %c0_7, %c0_8], %8 {strides = array<i32>} : memref<1x1x1xf32, #tpu.memory_space<vmem>>, vector<1x1x1xf32>,
    return
  }
  func.func @transform_0(%arg0: i32) -> (i32, i32, i32) {
    %c0_i32 = arith.constant 0 : i32
    %c0_i32_0 = arith.constant 0 : i32
    %c0_i32_1 = arith.constant 0 : i32
    return %arg0, %c0_i32, %c0_i32_0 : i32, i32, i32
  }
  func.func @transform_1(%arg0: i32) -> (i32, i32) {
    %c0_i32 = arith.constant 0 : i32
    %c0_i32_0 = arith.constant 0 : i32
    %c0_i32_1 = arith.constant 0 : i32
    return %c0_i32, %c0_i32_0 : i32, i32
  }
  func.func @transform_2(%arg0: i32) -> (i32, i32) {
    %c0_i32 = arith.constant 0 : i32
    %c0_i32_0 = arith.constant 0 : i32
    %c0_i32_1 = arith.constant 0 : i32
    return %c0_i32, %c0_i32_0 : i32, i32
  }
  func.func @transform_3(%arg0: i32) -> (i32, i32, i32) {
    %c0_i32 = arith.constant 0 : i32
    %c0_i32_0 = arith.constant 0 : i32
    %c0_i32_1 = arith.constant 0 : i32
    return %arg0, %c0_i32, %c0_i32_0 : i32, i32, i32
  }
}

module attributes {stable_mosaic.version = 11 : i64} {
  func.func @_conv3x3_s2_lrelu_kernel(%arg0: i32, %arg1: memref<1x3x26xbf16, #tpu.memory_space<vmem>>, %arg2: memref<1x3x26xbf16, #tpu.memory_space<vmem>>, %arg3: memref<1x3x26xbf16, #tpu.memory_space<vmem>>, %arg4: memref<1x3x26xbf16, #tpu.memory_space<vmem>>, %arg5: memref<9x8x3xbf16, #tpu.memory_space<vmem>>, %arg6: memref<8x1xf32, #tpu.memory_space<vmem>>, %arg7: memref<1x8x20xbf16, #tpu.memory_space<vmem>>) attributes {dimension_semantics = [#tpu.dimension_semantics<parallel>], iteration_bounds = array<i64: 2>, scalar_prefetch = 0 : i64, scratch_operands = 0 : i64, tpu.core_type = #tpu.core_type<tc>, window_params = [{transform_indices = @transform_0, window_bounds = array<i64: 1, 3, 26>}, {transform_indices = @transform_1, window_bounds = array<i64: 1, 3, 26>}, {transform_indices = @transform_2, window_bounds = array<i64: 1, 3, 26>}, {transform_indices = @transform_3, window_bounds = array<i64: 1, 3, 26>}, {pipeline_mode = #tpu.pipeline_mode<synchronous>, transform_indices = @transform_4, window_bounds = array<i64: 9, 8, 3>}, {pipeline_mode = #tpu.pipeline_mode<synchronous>, transform_indices = @transform_5, window_bounds = array<i64: 8, 1>}, {transform_indices = @transform_6, window_bounds = array<i64: 1, 8, 20>}]} {
    %cst = arith.constant 0.000000e+00 : f32
    %0 = vector.broadcast %cst : f32 to vector<8x20xf32>
    %c0 = arith.constant 0 : index
    %c0_0 = arith.constant 0 : index
    %c0_1 = arith.constant 0 : index
    %1 = vector.load %arg1[%c0, %c0_0, %c0_1] : memref<1x3x26xbf16, #tpu.memory_space<vmem>>, vector<1x3x20xbf16>
    %2 = vector.shape_cast %1 : vector<1x3x20xbf16> to vector<3x20xbf16>
    %c0_2 = arith.constant 0 : index
    %c0_3 = arith.constant 0 : index
    %c0_4 = arith.constant 0 : index
    %3 = vector.load %arg5[%c0_2, %c0_3, %c0_4] : memref<9x8x3xbf16, #tpu.memory_space<vmem>>, vector<1x8x3xbf16>
    %4 = vector.shape_cast %3 : vector<1x8x3xbf16> to vector<8x3xbf16>
    %cst_5 = arith.constant dense<0.000000e+00> : vector<8x20xf32>
    %5 = tpu.matmul %4, %2, %cst_5 {dimension_numbers = #tpu.dot_dimension_numbers<[1], [0], [0], [1], [0, 0, 1, 1], [], []>} : vector<8x3xbf16>, vector<3x20xbf16>, vector<8x20xf32> -> vector<8x20xf32>
    %6 = arith.addf %0, %5 : vector<8x20xf32>
    %c0_6 = arith.constant 0 : index
    %c0_7 = arith.constant 0 : index
    %c0_8 = arith.constant 0 : index
    %7 = vector.load %arg2[%c0_6, %c0_7, %c0_8] : memref<1x3x26xbf16, #tpu.memory_space<vmem>>, vector<1x3x20xbf16>
    %8 = vector.shape_cast %7 : vector<1x3x20xbf16> to vector<3x20xbf16>
    %c1 = arith.constant 1 : index
    %c0_9 = arith.constant 0 : index
    %c0_10 = arith.constant 0 : index
    %9 = vector.load %arg5[%c1, %c0_9, %c0_10] : memref<9x8x3xbf16, #tpu.memory_space<vmem>>, vector<1x8x3xbf16>
    %10 = vector.shape_cast %9 : vector<1x8x3xbf16> to vector<8x3xbf16>
    %cst_11 = arith.constant dense<0.000000e+00> : vector<8x20xf32>
    %11 = tpu.matmul %10, %8, %cst_11 {dimension_numbers = #tpu.dot_dimension_numbers<[1], [0], [0], [1], [0, 0, 1, 1], [], []>} : vector<8x3xbf16>, vector<3x20xbf16>, vector<8x20xf32> -> vector<8x20xf32>
    %12 = arith.addf %6, %11 : vector<8x20xf32>
    %c0_12 = arith.constant 0 : index
    %c0_13 = arith.constant 0 : index
    %c1_14 = arith.constant 1 : index
    %13 = vector.load %arg1[%c0_12, %c0_13, %c1_14] : memref<1x3x26xbf16, #tpu.memory_space<vmem>>, vector<1x3x20xbf16>
    %14 = vector.shape_cast %13 : vector<1x3x20xbf16> to vector<3x20xbf16>
    %c2 = arith.constant 2 : index
    %c0_15 = arith.constant 0 : index
    %c0_16 = arith.constant 0 : index
    %15 = vector.load %arg5[%c2, %c0_15, %c0_16] : memref<9x8x3xbf16, #tpu.memory_space<vmem>>, vector<1x8x3xbf16>
    %16 = vector.shape_cast %15 : vector<1x8x3xbf16> to vector<8x3xbf16>
    %cst_17 = arith.constant dense<0.000000e+00> : vector<8x20xf32>
    %17 = tpu.matmul %16, %14, %cst_17 {dimension_numbers = #tpu.dot_dimension_numbers<[1], [0], [0], [1], [0, 0, 1, 1], [], []>} : vector<8x3xbf16>, vector<3x20xbf16>, vector<8x20xf32> -> vector<8x20xf32>
    %18 = arith.addf %12, %17 : vector<8x20xf32>
    %c0_18 = arith.constant 0 : index
    %c0_19 = arith.constant 0 : index
    %c0_20 = arith.constant 0 : index
    %19 = vector.load %arg3[%c0_18, %c0_19, %c0_20] : memref<1x3x26xbf16, #tpu.memory_space<vmem>>, vector<1x3x20xbf16>
    %20 = vector.shape_cast %19 : vector<1x3x20xbf16> to vector<3x20xbf16>
    %c3 = arith.constant 3 : index
    %c0_21 = arith.constant 0 : index
    %c0_22 = arith.constant 0 : index
    %21 = vector.load %arg5[%c3, %c0_21, %c0_22] : memref<9x8x3xbf16, #tpu.memory_space<vmem>>, vector<1x8x3xbf16>
    %22 = vector.shape_cast %21 : vector<1x8x3xbf16> to vector<8x3xbf16>
    %cst_23 = arith.constant dense<0.000000e+00> : vector<8x20xf32>
    %23 = tpu.matmul %22, %20, %cst_23 {dimension_numbers = #tpu.dot_dimension_numbers<[1], [0], [0], [1], [0, 0, 1, 1], [], []>} : vector<8x3xbf16>, vector<3x20xbf16>, vector<8x20xf32> -> vector<8x20xf32>
    %24 = arith.addf %18, %23 : vector<8x20xf32>
    %c0_24 = arith.constant 0 : index
    %c0_25 = arith.constant 0 : index
    %c0_26 = arith.constant 0 : index
    %25 = vector.load %arg4[%c0_24, %c0_25, %c0_26] : memref<1x3x26xbf16, #tpu.memory_space<vmem>>, vector<1x3x20xbf16>
    %26 = vector.shape_cast %25 : vector<1x3x20xbf16> to vector<3x20xbf16>
    %c4 = arith.constant 4 : index
    %c0_27 = arith.constant 0 : index
    %c0_28 = arith.constant 0 : index
    %27 = vector.load %arg5[%c4, %c0_27, %c0_28] : memref<9x8x3xbf16, #tpu.memory_space<vmem>>, vector<1x8x3xbf16>
    %28 = vector.shape_cast %27 : vector<1x8x3xbf16> to vector<8x3xbf16>
    %cst_29 = arith.constant dense<0.000000e+00> : vector<8x20xf32>
    %29 = tpu.matmul %28, %26, %cst_29 {dimension_numbers = #tpu.dot_dimension_numbers<[1], [0], [0], [1], [0, 0, 1, 1], [], []>} : vector<8x3xbf16>, vector<3x20xbf16>, vector<8x20xf32> -> vector<8x20xf32>
    %30 = arith.addf %24, %29 : vector<8x20xf32>
    %c0_30 = arith.constant 0 : index
    %c0_31 = arith.constant 0 : index
    %c1_32 = arith.constant 1 : index
    %31 = vector.load %arg3[%c0_30, %c0_31, %c1_32] : memref<1x3x26xbf16, #tpu.memory_space<vmem>>, vector<1x3x20xbf16>
    %32 = vector.shape_cast %31 : vector<1x3x20xbf16> to vector<3x20xbf16>
    %c5 = arith.constant 5 : index
    %c0_33 = arith.constant 0 : index
    %c0_34 = arith.constant 0 : index
    %33 = vector.load %arg5[%c5, %c0_33, %c0_34] : memref<9x8x3xbf16, #tpu.memory_space<vmem>>, vector<1x8x3xbf16>
    %34 = vector.shape_cast %33 : vector<1x8x3xbf16> to vector<8x3xbf16>
    %cst_35 = arith.constant dense<0.000000e+00> : vector<8x20xf32>
    %35 = tpu.matmul %34, %32, %cst_35 {dimension_numbers = #tpu.dot_dimension_numbers<[1], [0], [0], [1], [0, 0, 1, 1], [], []>} : vector<8x3xbf16>, vector<3x20xbf16>, vector<8x20xf32> -> vector<8x20xf32>
    %36 = arith.addf %30, %35 : vector<8x20xf32>
    %c0_36 = arith.constant 0 : index
    %c0_37 = arith.constant 0 : index
    %c5_38 = arith.constant 5 : index
    %37 = vector.load %arg1[%c0_36, %c0_37, %c5_38] : memref<1x3x26xbf16, #tpu.memory_space<vmem>>, vector<1x3x20xbf16>
    %38 = vector.shape_cast %37 : vector<1x3x20xbf16> to vector<3x20xbf16>
    %c6 = arith.constant 6 : index
    %c0_39 = arith.constant 0 : index
    %c0_40 = arith.constant 0 : index
    %39 = vector.load %arg5[%c6, %c0_39, %c0_40] : memref<9x8x3xbf16, #tpu.memory_space<vmem>>, vector<1x8x3xbf16>
    %40 = vector.shape_cast %39 : vector<1x8x3xbf16> to vector<8x3xbf16>
    %cst_41 = arith.constant dense<0.000000e+00> : vector<8x20xf32>
    %41 = tpu.matmul %40, %38, %cst_41 {dimension_numbers = #tpu.dot_dimension_numbers<[1], [0], [0], [1], [0, 0, 1, 1], [], []>} : vector<8x3xbf16>, vector<3x20xbf16>, vector<8x20xf32> -> vector<8x20xf32>
    %42 = arith.addf %36, %41 : vector<8x20xf32>
    %c0_42 = arith.constant 0 : index
    %c0_43 = arith.constant 0 : index
    %c5_44 = arith.constant 5 : index
    %43 = vector.load %arg2[%c0_42, %c0_43, %c5_44] : memref<1x3x26xbf16, #tpu.memory_space<vmem>>, vector<1x3x20xbf16>
    %44 = vector.shape_cast %43 : vector<1x3x20xbf16> to vector<3x20xbf16>
    %c7 = arith.constant 7 : index
    %c0_45 = arith.constant 0 : index
    %c0_46 = arith.constant 0 : index
    %45 = vector.load %arg5[%c7, %c0_45, %c0_46] : memref<9x8x3xbf16, #tpu.memory_space<vmem>>, vector<1x8x3xbf16>
    %46 = vector.shape_cast %45 : vector<1x8x3xbf16> to vector<8x3xbf16>
    %cst_47 = arith.constant dense<0.000000e+00> : vector<8x20xf32>
    %47 = tpu.matmul %46, %44, %cst_47 {dimension_numbers = #tpu.dot_dimension_numbers<[1], [0], [0], [1], [0, 0, 1, 1], [], []>} : vector<8x3xbf16>, vector<3x20xbf16>, vector<8x20xf32> -> vector<8x20xf32>
    %48 = arith.addf %42, %47 : vector<8x20xf32>
    %c0_48 = arith.constant 0 : index
    %c0_49 = arith.constant 0 : index
    %c6_50 = arith.constant 6 : index
    %49 = vector.load %arg1[%c0_48, %c0_49, %c6_50] : memref<1x3x26xbf16, #tpu.memory_space<vmem>>, vector<1x3x20xbf16>
    %50 = vector.shape_cast %49 : vector<1x3x20xbf16> to vector<3x20xbf16>
    %c8 = arith.constant 8 : index
    %c0_51 = arith.constant 0 : index
    %c0_52 = arith.constant 0 : index
    %51 = vector.load %arg5[%c8, %c0_51, %c0_52] : memref<9x8x3xbf16, #tpu.memory_space<vmem>>, vector<1x8x3xbf16>
    %52 = vector.shape_cast %51 : vector<1x8x3xbf16> to vector<8x3xbf16>
    %cst_53 = arith.constant dense<0.000000e+00> : vector<8x20xf32>
    %53 = tpu.matmul %52, %50, %cst_53 {dimension_numbers = #tpu.dot_dimension_numbers<[1], [0], [0], [1], [0, 0, 1, 1], [], []>} : vector<8x3xbf16>, vector<3x20xbf16>, vector<8x20xf32> -> vector<8x20xf32>
    %54 = arith.addf %48, %53 : vector<8x20xf32>
    %c0_54 = arith.constant 0 : index
    %c0_55 = arith.constant 0 : index
    %55 = vector.load %arg6[%c0_54, %c0_55] : memref<8x1xf32, #tpu.memory_space<vmem>>, vector<8x1xf32>
    %56 = vector.broadcast %55 : vector<8x1xf32> to vector<8x20xf32>
    %57 = arith.addf %54, %56 : vector<8x20xf32>
    %cst_56 = arith.constant 0.000000e+00 : f32
    %58 = vector.broadcast %cst_56 : f32 to vector<8x20xf32>
    %59 = arith.cmpf oge, %57, %58 : vector<8x20xf32>
    %cst_57 = arith.constant 2.000000e-01 : f32
    %60 = vector.broadcast %cst_57 : f32 to vector<8x20xf32>
    %61 = arith.mulf %60, %57 : vector<8x20xf32>
    %62 = arith.select %59, %57, %61 : vector<8x20xi1>, vector<8x20xf32>
    %63 = arith.truncf %62 : vector<8x20xf32> to vector<8x20xbf16>
    %c0_58 = arith.constant 0 : index
    %c0_59 = arith.constant 0 : index
    %c0_60 = arith.constant 0 : index
    %64 = vector.load %arg7[%c0_58, %c0_59, %c0_60] : memref<1x8x20xbf16, #tpu.memory_space<vmem>>, vector<1x8x20xbf16>
    %65 = vector.shape_cast %64 : vector<1x8x20xbf16> to vector<8x20xbf16>
    %66 = vector.shape_cast %63 : vector<8x20xbf16> to vector<1x8x20xbf16>
    tpu.vector_store %arg7[%c0_58, %c0_59, %c0_60], %66 {strides = array<i32>} : memref<1x8x20xbf16, #tpu.memory_space<vmem>>, vector<1x8x20xbf16>,
    return
  }
  func.func @transform_0(%arg0: i32) -> (i32, i32, i32) {
    %c0_i32 = arith.constant 0 : i32
    %c0_i32_0 = arith.constant 0 : i32
    %c0_i32_1 = arith.constant 0 : i32
    return %arg0, %c0_i32, %c0_i32_0 : i32, i32, i32
  }
  func.func @transform_1(%arg0: i32) -> (i32, i32, i32) {
    %c0_i32 = arith.constant 0 : i32
    %c0_i32_0 = arith.constant 0 : i32
    %c0_i32_1 = arith.constant 0 : i32
    return %arg0, %c0_i32, %c0_i32_0 : i32, i32, i32
  }
  func.func @transform_2(%arg0: i32) -> (i32, i32, i32) {
    %c0_i32 = arith.constant 0 : i32
    %c0_i32_0 = arith.constant 0 : i32
    %c0_i32_1 = arith.constant 0 : i32
    return %arg0, %c0_i32, %c0_i32_0 : i32, i32, i32
  }
  func.func @transform_3(%arg0: i32) -> (i32, i32, i32) {
    %c0_i32 = arith.constant 0 : i32
    %c0_i32_0 = arith.constant 0 : i32
    %c0_i32_1 = arith.constant 0 : i32
    return %arg0, %c0_i32, %c0_i32_0 : i32, i32, i32
  }
  func.func @transform_4(%arg0: i32) -> (i32, i32, i32) {
    %c0_i32 = arith.constant 0 : i32
    %c0_i32_0 = arith.constant 0 : i32
    %c0_i32_1 = arith.constant 0 : i32
    %c0_i32_2 = arith.constant 0 : i32
    return %c0_i32, %c0_i32_0, %c0_i32_1 : i32, i32, i32
  }
  func.func @transform_5(%arg0: i32) -> (i32, i32) {
    %c0_i32 = arith.constant 0 : i32
    %c0_i32_0 = arith.constant 0 : i32
    %c0_i32_1 = arith.constant 0 : i32
    return %c0_i32, %c0_i32_0 : i32, i32
  }
  func.func @transform_6(%arg0: i32) -> (i32, i32, i32) {
    %c0_i32 = arith.constant 0 : i32
    %c0_i32_0 = arith.constant 0 : i32
    %c0_i32_1 = arith.constant 0 : i32
    return %arg0, %c0_i32, %c0_i32_0 : i32, i32, i32
  }
}

module attributes {stable_mosaic.version = 11 : i64} {
  func.func @_conv3x3_s2_lrelu_kernel(%arg0: i32, %arg1: memref<1x8x10xbf16, #tpu.memory_space<vmem>>, %arg2: memref<1x8x10xbf16, #tpu.memory_space<vmem>>, %arg3: memref<1x8x10xbf16, #tpu.memory_space<vmem>>, %arg4: memref<1x8x10xbf16, #tpu.memory_space<vmem>>, %arg5: memref<9x16x8xbf16, #tpu.memory_space<vmem>>, %arg6: memref<16x1xf32, #tpu.memory_space<vmem>>, %arg7: memref<1x16x6xbf16, #tpu.memory_space<vmem>>) attributes {dimension_semantics = [#tpu.dimension_semantics<parallel>], iteration_bounds = array<i64: 2>, scalar_prefetch = 0 : i64, scratch_operands = 0 : i64, tpu.core_type = #tpu.core_type<tc>, window_params = [{transform_indices = @transform_0, window_bounds = array<i64: 1, 8, 10>}, {transform_indices = @transform_1, window_bounds = array<i64: 1, 8, 10>}, {transform_indices = @transform_2, window_bounds = array<i64: 1, 8, 10>}, {transform_indices = @transform_3, window_bounds = array<i64: 1, 8, 10>}, {pipeline_mode = #tpu.pipeline_mode<synchronous>, transform_indices = @transform_4, window_bounds = array<i64: 9, 16, 8>}, {pipeline_mode = #tpu.pipeline_mode<synchronous>, transform_indices = @transform_5, window_bounds = array<i64: 16, 1>}, {transform_indices = @transform_6, window_bounds = array<i64: 1, 16, 6>}]} {
    %cst = arith.constant 0.000000e+00 : f32
    %0 = vector.broadcast %cst : f32 to vector<16x6xf32>
    %c0 = arith.constant 0 : index
    %c0_0 = arith.constant 0 : index
    %c0_1 = arith.constant 0 : index
    %1 = vector.load %arg1[%c0, %c0_0, %c0_1] : memref<1x8x10xbf16, #tpu.memory_space<vmem>>, vector<1x8x6xbf16>
    %2 = vector.shape_cast %1 : vector<1x8x6xbf16> to vector<8x6xbf16>
    %c0_2 = arith.constant 0 : index
    %c0_3 = arith.constant 0 : index
    %c0_4 = arith.constant 0 : index
    %3 = vector.load %arg5[%c0_2, %c0_3, %c0_4] : memref<9x16x8xbf16, #tpu.memory_space<vmem>>, vector<1x16x8xbf16>
    %4 = vector.shape_cast %3 : vector<1x16x8xbf16> to vector<16x8xbf16>
    %cst_5 = arith.constant dense<0.000000e+00> : vector<16x6xf32>
    %5 = tpu.matmul %4, %2, %cst_5 {dimension_numbers = #tpu.dot_dimension_numbers<[1], [0], [0], [1], [0, 0, 1, 1], [], []>} : vector<16x8xbf16>, vector<8x6xbf16>, vector<16x6xf32> -> vector<16x6xf32>
    %6 = arith.addf %0, %5 : vector<16x6xf32>
    %c0_6 = arith.constant 0 : index
    %c0_7 = arith.constant 0 : index
    %c0_8 = arith.constant 0 : index
    %7 = vector.load %arg2[%c0_6, %c0_7, %c0_8] : memref<1x8x10xbf16, #tpu.memory_space<vmem>>, vector<1x8x6xbf16>
    %8 = vector.shape_cast %7 : vector<1x8x6xbf16> to vector<8x6xbf16>
    %c1 = arith.constant 1 : index
    %c0_9 = arith.constant 0 : index
    %c0_10 = arith.constant 0 : index
    %9 = vector.load %arg5[%c1, %c0_9, %c0_10] : memref<9x16x8xbf16, #tpu.memory_space<vmem>>, vector<1x16x8xbf16>
    %10 = vector.shape_cast %9 : vector<1x16x8xbf16> to vector<16x8xbf16>
    %cst_11 = arith.constant dense<0.000000e+00> : vector<16x6xf32>
    %11 = tpu.matmul %10, %8, %cst_11 {dimension_numbers = #tpu.dot_dimension_numbers<[1], [0], [0], [1], [0, 0, 1, 1], [], []>} : vector<16x8xbf16>, vector<8x6xbf16>, vector<16x6xf32> -> vector<16x6xf32>
    %12 = arith.addf %6, %11 : vector<16x6xf32>
    %c0_12 = arith.constant 0 : index
    %c0_13 = arith.constant 0 : index
    %c1_14 = arith.constant 1 : index
    %13 = vector.load %arg1[%c0_12, %c0_13, %c1_14] : memref<1x8x10xbf16, #tpu.memory_space<vmem>>, vector<1x8x6xbf16>
    %14 = vector.shape_cast %13 : vector<1x8x6xbf16> to vector<8x6xbf16>
    %c2 = arith.constant 2 : index
    %c0_15 = arith.constant 0 : index
    %c0_16 = arith.constant 0 : index
    %15 = vector.load %arg5[%c2, %c0_15, %c0_16] : memref<9x16x8xbf16, #tpu.memory_space<vmem>>, vector<1x16x8xbf16>
    %16 = vector.shape_cast %15 : vector<1x16x8xbf16> to vector<16x8xbf16>
    %cst_17 = arith.constant dense<0.000000e+00> : vector<16x6xf32>
    %17 = tpu.matmul %16, %14, %cst_17 {dimension_numbers = #tpu.dot_dimension_numbers<[1], [0], [0], [1], [0, 0, 1, 1], [], []>} : vector<16x8xbf16>, vector<8x6xbf16>, vector<16x6xf32> -> vector<16x6xf32>
    %18 = arith.addf %12, %17 : vector<16x6xf32>
    %c0_18 = arith.constant 0 : index
    %c0_19 = arith.constant 0 : index
    %c0_20 = arith.constant 0 : index
    %19 = vector.load %arg3[%c0_18, %c0_19, %c0_20] : memref<1x8x10xbf16, #tpu.memory_space<vmem>>, vector<1x8x6xbf16>
    %20 = vector.shape_cast %19 : vector<1x8x6xbf16> to vector<8x6xbf16>
    %c3 = arith.constant 3 : index
    %c0_21 = arith.constant 0 : index
    %c0_22 = arith.constant 0 : index
    %21 = vector.load %arg5[%c3, %c0_21, %c0_22] : memref<9x16x8xbf16, #tpu.memory_space<vmem>>, vector<1x16x8xbf16>
    %22 = vector.shape_cast %21 : vector<1x16x8xbf16> to vector<16x8xbf16>
    %cst_23 = arith.constant dense<0.000000e+00> : vector<16x6xf32>
    %23 = tpu.matmul %22, %20, %cst_23 {dimension_numbers = #tpu.dot_dimension_numbers<[1], [0], [0], [1], [0, 0, 1, 1], [], []>} : vector<16x8xbf16>, vector<8x6xbf16>, vector<16x6xf32> -> vector<16x6xf32>
    %24 = arith.addf %18, %23 : vector<16x6xf32>
    %c0_24 = arith.constant 0 : index
    %c0_25 = arith.constant 0 : index
    %c0_26 = arith.constant 0 : index
    %25 = vector.load %arg4[%c0_24, %c0_25, %c0_26] : memref<1x8x10xbf16, #tpu.memory_space<vmem>>, vector<1x8x6xbf16>
    %26 = vector.shape_cast %25 : vector<1x8x6xbf16> to vector<8x6xbf16>
    %c4 = arith.constant 4 : index
    %c0_27 = arith.constant 0 : index
    %c0_28 = arith.constant 0 : index
    %27 = vector.load %arg5[%c4, %c0_27, %c0_28] : memref<9x16x8xbf16, #tpu.memory_space<vmem>>, vector<1x16x8xbf16>
    %28 = vector.shape_cast %27 : vector<1x16x8xbf16> to vector<16x8xbf16>
    %cst_29 = arith.constant dense<0.000000e+00> : vector<16x6xf32>
    %29 = tpu.matmul %28, %26, %cst_29 {dimension_numbers = #tpu.dot_dimension_numbers<[1], [0], [0], [1], [0, 0, 1, 1], [], []>} : vector<16x8xbf16>, vector<8x6xbf16>, vector<16x6xf32> -> vector<16x6xf32>
    %30 = arith.addf %24, %29 : vector<16x6xf32>
    %c0_30 = arith.constant 0 : index
    %c0_31 = arith.constant 0 : index
    %c1_32 = arith.constant 1 : index
    %31 = vector.load %arg3[%c0_30, %c0_31, %c1_32] : memref<1x8x10xbf16, #tpu.memory_space<vmem>>, vector<1x8x6xbf16>
    %32 = vector.shape_cast %31 : vector<1x8x6xbf16> to vector<8x6xbf16>
    %c5 = arith.constant 5 : index
    %c0_33 = arith.constant 0 : index
    %c0_34 = arith.constant 0 : index
    %33 = vector.load %arg5[%c5, %c0_33, %c0_34] : memref<9x16x8xbf16, #tpu.memory_space<vmem>>, vector<1x16x8xbf16>
    %34 = vector.shape_cast %33 : vector<1x16x8xbf16> to vector<16x8xbf16>
    %cst_35 = arith.constant dense<0.000000e+00> : vector<16x6xf32>
    %35 = tpu.matmul %34, %32, %cst_35 {dimension_numbers = #tpu.dot_dimension_numbers<[1], [0], [0], [1], [0, 0, 1, 1], [], []>} : vector<16x8xbf16>, vector<8x6xbf16>, vector<16x6xf32> -> vector<16x6xf32>
    %36 = arith.addf %30, %35 : vector<16x6xf32>
    %c0_36 = arith.constant 0 : index
    %c0_37 = arith.constant 0 : index
    %c3_38 = arith.constant 3 : index
    %37 = vector.load %arg1[%c0_36, %c0_37, %c3_38] : memref<1x8x10xbf16, #tpu.memory_space<vmem>>, vector<1x8x6xbf16>
    %38 = vector.shape_cast %37 : vector<1x8x6xbf16> to vector<8x6xbf16>
    %c6 = arith.constant 6 : index
    %c0_39 = arith.constant 0 : index
    %c0_40 = arith.constant 0 : index
    %39 = vector.load %arg5[%c6, %c0_39, %c0_40] : memref<9x16x8xbf16, #tpu.memory_space<vmem>>, vector<1x16x8xbf16>
    %40 = vector.shape_cast %39 : vector<1x16x8xbf16> to vector<16x8xbf16>
    %cst_41 = arith.constant dense<0.000000e+00> : vector<16x6xf32>
    %41 = tpu.matmul %40, %38, %cst_41 {dimension_numbers = #tpu.dot_dimension_numbers<[1], [0], [0], [1], [0, 0, 1, 1], [], []>} : vector<16x8xbf16>, vector<8x6xbf16>, vector<16x6xf32> -> vector<16x6xf32>
    %42 = arith.addf %36, %41 : vector<16x6xf32>
    %c0_42 = arith.constant 0 : index
    %c0_43 = arith.constant 0 : index
    %c3_44 = arith.constant 3 : index
    %43 = vector.load %arg2[%c0_42, %c0_43, %c3_44] : memref<1x8x10xbf16, #tpu.memory_space<vmem>>, vector<1x8x6xbf16>
    %44 = vector.shape_cast %43 : vector<1x8x6xbf16> to vector<8x6xbf16>
    %c7 = arith.constant 7 : index
    %c0_45 = arith.constant 0 : index
    %c0_46 = arith.constant 0 : index
    %45 = vector.load %arg5[%c7, %c0_45, %c0_46] : memref<9x16x8xbf16, #tpu.memory_space<vmem>>, vector<1x16x8xbf16>
    %46 = vector.shape_cast %45 : vector<1x16x8xbf16> to vector<16x8xbf16>
    %cst_47 = arith.constant dense<0.000000e+00> : vector<16x6xf32>
    %47 = tpu.matmul %46, %44, %cst_47 {dimension_numbers = #tpu.dot_dimension_numbers<[1], [0], [0], [1], [0, 0, 1, 1], [], []>} : vector<16x8xbf16>, vector<8x6xbf16>, vector<16x6xf32> -> vector<16x6xf32>
    %48 = arith.addf %42, %47 : vector<16x6xf32>
    %c0_48 = arith.constant 0 : index
    %c0_49 = arith.constant 0 : index
    %c4_50 = arith.constant 4 : index
    %49 = vector.load %arg1[%c0_48, %c0_49, %c4_50] : memref<1x8x10xbf16, #tpu.memory_space<vmem>>, vector<1x8x6xbf16>
    %50 = vector.shape_cast %49 : vector<1x8x6xbf16> to vector<8x6xbf16>
    %c8 = arith.constant 8 : index
    %c0_51 = arith.constant 0 : index
    %c0_52 = arith.constant 0 : index
    %51 = vector.load %arg5[%c8, %c0_51, %c0_52] : memref<9x16x8xbf16, #tpu.memory_space<vmem>>, vector<1x16x8xbf16>
    %52 = vector.shape_cast %51 : vector<1x16x8xbf16> to vector<16x8xbf16>
    %cst_53 = arith.constant dense<0.000000e+00> : vector<16x6xf32>
    %53 = tpu.matmul %52, %50, %cst_53 {dimension_numbers = #tpu.dot_dimension_numbers<[1], [0], [0], [1], [0, 0, 1, 1], [], []>} : vector<16x8xbf16>, vector<8x6xbf16>, vector<16x6xf32> -> vector<16x6xf32>
    %54 = arith.addf %48, %53 : vector<16x6xf32>
    %c0_54 = arith.constant 0 : index
    %c0_55 = arith.constant 0 : index
    %55 = vector.load %arg6[%c0_54, %c0_55] : memref<16x1xf32, #tpu.memory_space<vmem>>, vector<16x1xf32>
    %56 = vector.broadcast %55 : vector<16x1xf32> to vector<16x6xf32>
    %57 = arith.addf %54, %56 : vector<16x6xf32>
    %cst_56 = arith.constant 0.000000e+00 : f32
    %58 = vector.broadcast %cst_56 : f32 to vector<16x6xf32>
    %59 = arith.cmpf oge, %57, %58 : vector<16x6xf32>
    %cst_57 = arith.constant 2.000000e-01 : f32
    %60 = vector.broadcast %cst_57 : f32 to vector<16x6xf32>
    %61 = arith.mulf %60, %57 : vector<16x6xf32>
    %62 = arith.select %59, %57, %61 : vector<16x6xi1>, vector<16x6xf32>
    %63 = arith.truncf %62 : vector<16x6xf32> to vector<16x6xbf16>
    %c0_58 = arith.constant 0 : index
    %c0_59 = arith.constant 0 : index
    %c0_60 = arith.constant 0 : index
    %64 = vector.load %arg7[%c0_58, %c0_59, %c0_60] : memref<1x16x6xbf16, #tpu.memory_space<vmem>>, vector<1x16x6xbf16>
    %65 = vector.shape_cast %64 : vector<1x16x6xbf16> to vector<16x6xbf16>
    %66 = vector.shape_cast %63 : vector<16x6xbf16> to vector<1x16x6xbf16>
    tpu.vector_store %arg7[%c0_58, %c0_59, %c0_60], %66 {strides = array<i32>} : memref<1x16x6xbf16, #tpu.memory_space<vmem>>, vector<1x16x6xbf16>,
    return
  }
  func.func @transform_0(%arg0: i32) -> (i32, i32, i32) {
    %c0_i32 = arith.constant 0 : i32
    %c0_i32_0 = arith.constant 0 : i32
    %c0_i32_1 = arith.constant 0 : i32
    return %arg0, %c0_i32, %c0_i32_0 : i32, i32, i32
  }
  func.func @transform_1(%arg0: i32) -> (i32, i32, i32) {
    %c0_i32 = arith.constant 0 : i32
    %c0_i32_0 = arith.constant 0 : i32
    %c0_i32_1 = arith.constant 0 : i32
    return %arg0, %c0_i32, %c0_i32_0 : i32, i32, i32
  }
  func.func @transform_2(%arg0: i32) -> (i32, i32, i32) {
    %c0_i32 = arith.constant 0 : i32
    %c0_i32_0 = arith.constant 0 : i32
    %c0_i32_1 = arith.constant 0 : i32
    return %arg0, %c0_i32, %c0_i32_0 : i32, i32, i32
  }
  func.func @transform_3(%arg0: i32) -> (i32, i32, i32) {
    %c0_i32 = arith.constant 0 : i32
    %c0_i32_0 = arith.constant 0 : i32
    %c0_i32_1 = arith.constant 0 : i32
    return %arg0, %c0_i32, %c0_i32_0 : i32, i32, i32
  }
  func.func @transform_4(%arg0: i32) -> (i32, i32, i32) {
    %c0_i32 = arith.constant 0 : i32
    %c0_i32_0 = arith.constant 0 : i32
    %c0_i32_1 = arith.constant 0 : i32
    %c0_i32_2 = arith.constant 0 : i32
    return %c0_i32, %c0_i32_0, %c0_i32_1 : i32, i32, i32
  }
  func.func @transform_5(%arg0: i32) -> (i32, i32) {
    %c0_i32 = arith.constant 0 : i32
    %c0_i32_0 = arith.constant 0 : i32
    %c0_i32_1 = arith.constant 0 : i32
    return %c0_i32, %c0_i32_0 : i32, i32
  }
  func.func @transform_6(%arg0: i32) -> (i32, i32, i32) {
    %c0_i32 = arith.constant 0 : i32
    %c0_i32_0 = arith.constant 0 : i32
    %c0_i32_1 = arith.constant 0 : i32
    return %arg0, %c0_i32, %c0_i32_0 : i32, i32, i32
  }
}

module attributes {stable_mosaic.version = 11 : i64} {
  func.func @_conv3x3_s2_lrelu_kernel(%arg0: i32, %arg1: memref<1x8x26xbf16, #tpu.memory_space<vmem>>, %arg2: memref<1x8x26xbf16, #tpu.memory_space<vmem>>, %arg3: memref<1x8x26xbf16, #tpu.memory_space<vmem>>, %arg4: memref<1x8x26xbf16, #tpu.memory_space<vmem>>, %arg5: memref<9x16x8xbf16, #tpu.memory_space<vmem>>, %arg6: memref<16x1xf32, #tpu.memory_space<vmem>>, %arg7: memref<1x16x20xbf16, #tpu.memory_space<vmem>>) attributes {dimension_semantics = [#tpu.dimension_semantics<parallel>], iteration_bounds = array<i64: 2>, scalar_prefetch = 0 : i64, scratch_operands = 0 : i64, tpu.core_type = #tpu.core_type<tc>, window_params = [{transform_indices = @transform_0, window_bounds = array<i64: 1, 8, 26>}, {transform_indices = @transform_1, window_bounds = array<i64: 1, 8, 26>}, {transform_indices = @transform_2, window_bounds = array<i64: 1, 8, 26>}, {transform_indices = @transform_3, window_bounds = array<i64: 1, 8, 26>}, {pipeline_mode = #tpu.pipeline_mode<synchronous>, transform_indices = @transform_4, window_bounds = array<i64: 9, 16, 8>}, {pipeline_mode = #tpu.pipeline_mode<synchronous>, transform_indices = @transform_5, window_bounds = array<i64: 16, 1>}, {transform_indices = @transform_6, window_bounds = array<i64: 1, 16, 20>}]} {
    %cst = arith.constant 0.000000e+00 : f32
    %0 = vector.broadcast %cst : f32 to vector<16x20xf32>
    %c0 = arith.constant 0 : index
    %c0_0 = arith.constant 0 : index
    %c0_1 = arith.constant 0 : index
    %1 = vector.load %arg1[%c0, %c0_0, %c0_1] : memref<1x8x26xbf16, #tpu.memory_space<vmem>>, vector<1x8x20xbf16>
    %2 = vector.shape_cast %1 : vector<1x8x20xbf16> to vector<8x20xbf16>
    %c0_2 = arith.constant 0 : index
    %c0_3 = arith.constant 0 : index
    %c0_4 = arith.constant 0 : index
    %3 = vector.load %arg5[%c0_2, %c0_3, %c0_4] : memref<9x16x8xbf16, #tpu.memory_space<vmem>>, vector<1x16x8xbf16>
    %4 = vector.shape_cast %3 : vector<1x16x8xbf16> to vector<16x8xbf16>
    %cst_5 = arith.constant dense<0.000000e+00> : vector<16x20xf32>
    %5 = tpu.matmul %4, %2, %cst_5 {dimension_numbers = #tpu.dot_dimension_numbers<[1], [0], [0], [1], [0, 0, 1, 1], [], []>} : vector<16x8xbf16>, vector<8x20xbf16>, vector<16x20xf32> -> vector<16x20xf32>
    %6 = arith.addf %0, %5 : vector<16x20xf32>
    %c0_6 = arith.constant 0 : index
    %c0_7 = arith.constant 0 : index
    %c0_8 = arith.constant 0 : index
    %7 = vector.load %arg2[%c0_6, %c0_7, %c0_8] : memref<1x8x26xbf16, #tpu.memory_space<vmem>>, vector<1x8x20xbf16>
    %8 = vector.shape_cast %7 : vector<1x8x20xbf16> to vector<8x20xbf16>
    %c1 = arith.constant 1 : index
    %c0_9 = arith.constant 0 : index
    %c0_10 = arith.constant 0 : index
    %9 = vector.load %arg5[%c1, %c0_9, %c0_10] : memref<9x16x8xbf16, #tpu.memory_space<vmem>>, vector<1x16x8xbf16>
    %10 = vector.shape_cast %9 : vector<1x16x8xbf16> to vector<16x8xbf16>
    %cst_11 = arith.constant dense<0.000000e+00> : vector<16x20xf32>
    %11 = tpu.matmul %10, %8, %cst_11 {dimension_numbers = #tpu.dot_dimension_numbers<[1], [0], [0], [1], [0, 0, 1, 1], [], []>} : vector<16x8xbf16>, vector<8x20xbf16>, vector<16x20xf32> -> vector<16x20xf32>
    %12 = arith.addf %6, %11 : vector<16x20xf32>
    %c0_12 = arith.constant 0 : index
    %c0_13 = arith.constant 0 : index
    %c1_14 = arith.constant 1 : index
    %13 = vector.load %arg1[%c0_12, %c0_13, %c1_14] : memref<1x8x26xbf16, #tpu.memory_space<vmem>>, vector<1x8x20xbf16>
    %14 = vector.shape_cast %13 : vector<1x8x20xbf16> to vector<8x20xbf16>
    %c2 = arith.constant 2 : index
    %c0_15 = arith.constant 0 : index
    %c0_16 = arith.constant 0 : index
    %15 = vector.load %arg5[%c2, %c0_15, %c0_16] : memref<9x16x8xbf16, #tpu.memory_space<vmem>>, vector<1x16x8xbf16>
    %16 = vector.shape_cast %15 : vector<1x16x8xbf16> to vector<16x8xbf16>
    %cst_17 = arith.constant dense<0.000000e+00> : vector<16x20xf32>
    %17 = tpu.matmul %16, %14, %cst_17 {dimension_numbers = #tpu.dot_dimension_numbers<[1], [0], [0], [1], [0, 0, 1, 1], [], []>} : vector<16x8xbf16>, vector<8x20xbf16>, vector<16x20xf32> -> vector<16x20xf32>
    %18 = arith.addf %12, %17 : vector<16x20xf32>
    %c0_18 = arith.constant 0 : index
    %c0_19 = arith.constant 0 : index
    %c0_20 = arith.constant 0 : index
    %19 = vector.load %arg3[%c0_18, %c0_19, %c0_20] : memref<1x8x26xbf16, #tpu.memory_space<vmem>>, vector<1x8x20xbf16>
    %20 = vector.shape_cast %19 : vector<1x8x20xbf16> to vector<8x20xbf16>
    %c3 = arith.constant 3 : index
    %c0_21 = arith.constant 0 : index
    %c0_22 = arith.constant 0 : index
    %21 = vector.load %arg5[%c3, %c0_21, %c0_22] : memref<9x16x8xbf16, #tpu.memory_space<vmem>>, vector<1x16x8xbf16>
    %22 = vector.shape_cast %21 : vector<1x16x8xbf16> to vector<16x8xbf16>
    %cst_23 = arith.constant dense<0.000000e+00> : vector<16x20xf32>
    %23 = tpu.matmul %22, %20, %cst_23 {dimension_numbers = #tpu.dot_dimension_numbers<[1], [0], [0], [1], [0, 0, 1, 1], [], []>} : vector<16x8xbf16>, vector<8x20xbf16>, vector<16x20xf32> -> vector<16x20xf32>
    %24 = arith.addf %18, %23 : vector<16x20xf32>
    %c0_24 = arith.constant 0 : index
    %c0_25 = arith.constant 0 : index
    %c0_26 = arith.constant 0 : index
    %25 = vector.load %arg4[%c0_24, %c0_25, %c0_26] : memref<1x8x26xbf16, #tpu.memory_space<vmem>>, vector<1x8x20xbf16>
    %26 = vector.shape_cast %25 : vector<1x8x20xbf16> to vector<8x20xbf16>
    %c4 = arith.constant 4 : index
    %c0_27 = arith.constant 0 : index
    %c0_28 = arith.constant 0 : index
    %27 = vector.load %arg5[%c4, %c0_27, %c0_28] : memref<9x16x8xbf16, #tpu.memory_space<vmem>>, vector<1x16x8xbf16>
    %28 = vector.shape_cast %27 : vector<1x16x8xbf16> to vector<16x8xbf16>
    %cst_29 = arith.constant dense<0.000000e+00> : vector<16x20xf32>
    %29 = tpu.matmul %28, %26, %cst_29 {dimension_numbers = #tpu.dot_dimension_numbers<[1], [0], [0], [1], [0, 0, 1, 1], [], []>} : vector<16x8xbf16>, vector<8x20xbf16>, vector<16x20xf32> -> vector<16x20xf32>
    %30 = arith.addf %24, %29 : vector<16x20xf32>
    %c0_30 = arith.constant 0 : index
    %c0_31 = arith.constant 0 : index
    %c1_32 = arith.constant 1 : index
    %31 = vector.load %arg3[%c0_30, %c0_31, %c1_32] : memref<1x8x26xbf16, #tpu.memory_space<vmem>>, vector<1x8x20xbf16>
    %32 = vector.shape_cast %31 : vector<1x8x20xbf16> to vector<8x20xbf16>
    %c5 = arith.constant 5 : index
    %c0_33 = arith.constant 0 : index
    %c0_34 = arith.constant 0 : index
    %33 = vector.load %arg5[%c5, %c0_33, %c0_34] : memref<9x16x8xbf16, #tpu.memory_space<vmem>>, vector<1x16x8xbf16>
    %34 = vector.shape_cast %33 : vector<1x16x8xbf16> to vector<16x8xbf16>
    %cst_35 = arith.constant dense<0.000000e+00> : vector<16x20xf32>
    %35 = tpu.matmul %34, %32, %cst_35 {dimension_numbers = #tpu.dot_dimension_numbers<[1], [0], [0], [1], [0, 0, 1, 1], [], []>} : vector<16x8xbf16>, vector<8x20xbf16>, vector<16x20xf32> -> vector<16x20xf32>
    %36 = arith.addf %30, %35 : vector<16x20xf32>
    %c0_36 = arith.constant 0 : index
    %c0_37 = arith.constant 0 : index
    %c5_38 = arith.constant 5 : index
    %37 = vector.load %arg1[%c0_36, %c0_37, %c5_38] : memref<1x8x26xbf16, #tpu.memory_space<vmem>>, vector<1x8x20xbf16>
    %38 = vector.shape_cast %37 : vector<1x8x20xbf16> to vector<8x20xbf16>
    %c6 = arith.constant 6 : index
    %c0_39 = arith.constant 0 : index
    %c0_40 = arith.constant 0 : index
    %39 = vector.load %arg5[%c6, %c0_39, %c0_40] : memref<9x16x8xbf16, #tpu.memory_space<vmem>>, vector<1x16x8xbf16>
    %40 = vector.shape_cast %39 : vector<1x16x8xbf16> to vector<16x8xbf16>
    %cst_41 = arith.constant dense<0.000000e+00> : vector<16x20xf32>
    %41 = tpu.matmul %40, %38, %cst_41 {dimension_numbers = #tpu.dot_dimension_numbers<[1], [0], [0], [1], [0, 0, 1, 1], [], []>} : vector<16x8xbf16>, vector<8x20xbf16>, vector<16x20xf32> -> vector<16x20xf32>
    %42 = arith.addf %36, %41 : vector<16x20xf32>
    %c0_42 = arith.constant 0 : index
    %c0_43 = arith.constant 0 : index
    %c5_44 = arith.constant 5 : index
    %43 = vector.load %arg2[%c0_42, %c0_43, %c5_44] : memref<1x8x26xbf16, #tpu.memory_space<vmem>>, vector<1x8x20xbf16>
    %44 = vector.shape_cast %43 : vector<1x8x20xbf16> to vector<8x20xbf16>
    %c7 = arith.constant 7 : index
    %c0_45 = arith.constant 0 : index
    %c0_46 = arith.constant 0 : index
    %45 = vector.load %arg5[%c7, %c0_45, %c0_46] : memref<9x16x8xbf16, #tpu.memory_space<vmem>>, vector<1x16x8xbf16>
    %46 = vector.shape_cast %45 : vector<1x16x8xbf16> to vector<16x8xbf16>
    %cst_47 = arith.constant dense<0.000000e+00> : vector<16x20xf32>
    %47 = tpu.matmul %46, %44, %cst_47 {dimension_numbers = #tpu.dot_dimension_numbers<[1], [0], [0], [1], [0, 0, 1, 1], [], []>} : vector<16x8xbf16>, vector<8x20xbf16>, vector<16x20xf32> -> vector<16x20xf32>
    %48 = arith.addf %42, %47 : vector<16x20xf32>
    %c0_48 = arith.constant 0 : index
    %c0_49 = arith.constant 0 : index
    %c6_50 = arith.constant 6 : index
    %49 = vector.load %arg1[%c0_48, %c0_49, %c6_50] : memref<1x8x26xbf16, #tpu.memory_space<vmem>>, vector<1x8x20xbf16>
    %50 = vector.shape_cast %49 : vector<1x8x20xbf16> to vector<8x20xbf16>
    %c8 = arith.constant 8 : index
    %c0_51 = arith.constant 0 : index
    %c0_52 = arith.constant 0 : index
    %51 = vector.load %arg5[%c8, %c0_51, %c0_52] : memref<9x16x8xbf16, #tpu.memory_space<vmem>>, vector<1x16x8xbf16>
    %52 = vector.shape_cast %51 : vector<1x16x8xbf16> to vector<16x8xbf16>
    %cst_53 = arith.constant dense<0.000000e+00> : vector<16x20xf32>
    %53 = tpu.matmul %52, %50, %cst_53 {dimension_numbers = #tpu.dot_dimension_numbers<[1], [0], [0], [1], [0, 0, 1, 1], [], []>} : vector<16x8xbf16>, vector<8x20xbf16>, vector<16x20xf32> -> vector<16x20xf32>
    %54 = arith.addf %48, %53 : vector<16x20xf32>
    %c0_54 = arith.constant 0 : index
    %c0_55 = arith.constant 0 : index
    %55 = vector.load %arg6[%c0_54, %c0_55] : memref<16x1xf32, #tpu.memory_space<vmem>>, vector<16x1xf32>
    %56 = vector.broadcast %55 : vector<16x1xf32> to vector<16x20xf32>
    %57 = arith.addf %54, %56 : vector<16x20xf32>
    %cst_56 = arith.constant 0.000000e+00 : f32
    %58 = vector.broadcast %cst_56 : f32 to vector<16x20xf32>
    %59 = arith.cmpf oge, %57, %58 : vector<16x20xf32>
    %cst_57 = arith.constant 2.000000e-01 : f32
    %60 = vector.broadcast %cst_57 : f32 to vector<16x20xf32>
    %61 = arith.mulf %60, %57 : vector<16x20xf32>
    %62 = arith.select %59, %57, %61 : vector<16x20xi1>, vector<16x20xf32>
    %63 = arith.truncf %62 : vector<16x20xf32> to vector<16x20xbf16>
    %c0_58 = arith.constant 0 : index
    %c0_59 = arith.constant 0 : index
    %c0_60 = arith.constant 0 : index
    %64 = vector.load %arg7[%c0_58, %c0_59, %c0_60] : memref<1x16x20xbf16, #tpu.memory_space<vmem>>, vector<1x16x20xbf16>
    %65 = vector.shape_cast %64 : vector<1x16x20xbf16> to vector<16x20xbf16>
    %66 = vector.shape_cast %63 : vector<16x20xbf16> to vector<1x16x20xbf16>
    tpu.vector_store %arg7[%c0_58, %c0_59, %c0_60], %66 {strides = array<i32>} : memref<1x16x20xbf16, #tpu.memory_space<vmem>>, vector<1x16x20xbf16>,
    return
  }
  func.func @transform_0(%arg0: i32) -> (i32, i32, i32) {
    %c0_i32 = arith.constant 0 : i32
    %c0_i32_0 = arith.constant 0 : i32
    %c0_i32_1 = arith.constant 0 : i32
    return %arg0, %c0_i32, %c0_i32_0 : i32, i32, i32
  }
  func.func @transform_1(%arg0: i32) -> (i32, i32, i32) {
    %c0_i32 = arith.constant 0 : i32
    %c0_i32_0 = arith.constant 0 : i32
    %c0_i32_1 = arith.constant 0 : i32
    return %arg0, %c0_i32, %c0_i32_0 : i32, i32, i32
  }
  func.func @transform_2(%arg0: i32) -> (i32, i32, i32) {
    %c0_i32 = arith.constant 0 : i32
    %c0_i32_0 = arith.constant 0 : i32
    %c0_i32_1 = arith.constant 0 : i32
    return %arg0, %c0_i32, %c0_i32_0 : i32, i32, i32
  }
  func.func @transform_3(%arg0: i32) -> (i32, i32, i32) {
    %c0_i32 = arith.constant 0 : i32
    %c0_i32_0 = arith.constant 0 : i32
    %c0_i32_1 = arith.constant 0 : i32
    return %arg0, %c0_i32, %c0_i32_0 : i32, i32, i32
  }
  func.func @transform_4(%arg0: i32) -> (i32, i32, i32) {
    %c0_i32 = arith.constant 0 : i32
    %c0_i32_0 = arith.constant 0 : i32
    %c0_i32_1 = arith.constant 0 : i32
    %c0_i32_2 = arith.constant 0 : i32
    return %c0_i32, %c0_i32_0, %c0_i32_1 : i32, i32, i32
  }
  func.func @transform_5(%arg0: i32) -> (i32, i32) {
    %c0_i32 = arith.constant 0 : i32
    %c0_i32_0 = arith.constant 0 : i32
    %c0_i32_1 = arith.constant 0 : i32
    return %c0_i32, %c0_i32_0 : i32, i32
  }
  func.func @transform_6(%arg0: i32) -> (i32, i32, i32) {
    %c0_i32 = arith.constant 0 : i32
    %c0_i32_0 = arith.constant 0 : i32
    %c0_i32_1 = arith.constant 0 : i32
    return %arg0, %c0_i32, %c0_i32_0 : i32, i32, i32
  }
}

module attributes {stable_mosaic.version = 11 : i64} {
  func.func @_conv3x3_s2_lrelu_kernel(%arg0: i32, %arg1: memref<1x3x82xbf16, #tpu.memory_space<vmem>>, %arg2: memref<1x3x82xbf16, #tpu.memory_space<vmem>>, %arg3: memref<1x3x82xbf16, #tpu.memory_space<vmem>>, %arg4: memref<1x3x82xbf16, #tpu.memory_space<vmem>>, %arg5: memref<9x8x3xbf16, #tpu.memory_space<vmem>>, %arg6: memref<8x1xf32, #tpu.memory_space<vmem>>, %arg7: memref<1x8x72xbf16, #tpu.memory_space<vmem>>) attributes {dimension_semantics = [#tpu.dimension_semantics<parallel>], iteration_bounds = array<i64: 2>, scalar_prefetch = 0 : i64, scratch_operands = 0 : i64, tpu.core_type = #tpu.core_type<tc>, window_params = [{transform_indices = @transform_0, window_bounds = array<i64: 1, 3, 82>}, {transform_indices = @transform_1, window_bounds = array<i64: 1, 3, 82>}, {transform_indices = @transform_2, window_bounds = array<i64: 1, 3, 82>}, {transform_indices = @transform_3, window_bounds = array<i64: 1, 3, 82>}, {pipeline_mode = #tpu.pipeline_mode<synchronous>, transform_indices = @transform_4, window_bounds = array<i64: 9, 8, 3>}, {pipeline_mode = #tpu.pipeline_mode<synchronous>, transform_indices = @transform_5, window_bounds = array<i64: 8, 1>}, {transform_indices = @transform_6, window_bounds = array<i64: 1, 8, 72>}]} {
    %cst = arith.constant 0.000000e+00 : f32
    %0 = vector.broadcast %cst : f32 to vector<8x72xf32>
    %c0 = arith.constant 0 : index
    %c0_0 = arith.constant 0 : index
    %c0_1 = arith.constant 0 : index
    %1 = vector.load %arg1[%c0, %c0_0, %c0_1] : memref<1x3x82xbf16, #tpu.memory_space<vmem>>, vector<1x3x72xbf16>
    %2 = vector.shape_cast %1 : vector<1x3x72xbf16> to vector<3x72xbf16>
    %c0_2 = arith.constant 0 : index
    %c0_3 = arith.constant 0 : index
    %c0_4 = arith.constant 0 : index
    %3 = vector.load %arg5[%c0_2, %c0_3, %c0_4] : memref<9x8x3xbf16, #tpu.memory_space<vmem>>, vector<1x8x3xbf16>
    %4 = vector.shape_cast %3 : vector<1x8x3xbf16> to vector<8x3xbf16>
    %cst_5 = arith.constant dense<0.000000e+00> : vector<8x72xf32>
    %5 = tpu.matmul %4, %2, %cst_5 {dimension_numbers = #tpu.dot_dimension_numbers<[1], [0], [0], [1], [0, 0, 1, 1], [], []>} : vector<8x3xbf16>, vector<3x72xbf16>, vector<8x72xf32> -> vector<8x72xf32>
    %6 = arith.addf %0, %5 : vector<8x72xf32>
    %c0_6 = arith.constant 0 : index
    %c0_7 = arith.constant 0 : index
    %c0_8 = arith.constant 0 : index
    %7 = vector.load %arg2[%c0_6, %c0_7, %c0_8] : memref<1x3x82xbf16, #tpu.memory_space<vmem>>, vector<1x3x72xbf16>
    %8 = vector.shape_cast %7 : vector<1x3x72xbf16> to vector<3x72xbf16>
    %c1 = arith.constant 1 : index
    %c0_9 = arith.constant 0 : index
    %c0_10 = arith.constant 0 : index
    %9 = vector.load %arg5[%c1, %c0_9, %c0_10] : memref<9x8x3xbf16, #tpu.memory_space<vmem>>, vector<1x8x3xbf16>
    %10 = vector.shape_cast %9 : vector<1x8x3xbf16> to vector<8x3xbf16>
    %cst_11 = arith.constant dense<0.000000e+00> : vector<8x72xf32>
    %11 = tpu.matmul %10, %8, %cst_11 {dimension_numbers = #tpu.dot_dimension_numbers<[1], [0], [0], [1], [0, 0, 1, 1], [], []>} : vector<8x3xbf16>, vector<3x72xbf16>, vector<8x72xf32> -> vector<8x72xf32>
    %12 = arith.addf %6, %11 : vector<8x72xf32>
    %c0_12 = arith.constant 0 : index
    %c0_13 = arith.constant 0 : index
    %c1_14 = arith.constant 1 : index
    %13 = vector.load %arg1[%c0_12, %c0_13, %c1_14] : memref<1x3x82xbf16, #tpu.memory_space<vmem>>, vector<1x3x72xbf16>
    %14 = vector.shape_cast %13 : vector<1x3x72xbf16> to vector<3x72xbf16>
    %c2 = arith.constant 2 : index
    %c0_15 = arith.constant 0 : index
    %c0_16 = arith.constant 0 : index
    %15 = vector.load %arg5[%c2, %c0_15, %c0_16] : memref<9x8x3xbf16, #tpu.memory_space<vmem>>, vector<1x8x3xbf16>
    %16 = vector.shape_cast %15 : vector<1x8x3xbf16> to vector<8x3xbf16>
    %cst_17 = arith.constant dense<0.000000e+00> : vector<8x72xf32>
    %17 = tpu.matmul %16, %14, %cst_17 {dimension_numbers = #tpu.dot_dimension_numbers<[1], [0], [0], [1], [0, 0, 1, 1], [], []>} : vector<8x3xbf16>, vector<3x72xbf16>, vector<8x72xf32> -> vector<8x72xf32>
    %18 = arith.addf %12, %17 : vector<8x72xf32>
    %c0_18 = arith.constant 0 : index
    %c0_19 = arith.constant 0 : index
    %c0_20 = arith.constant 0 : index
    %19 = vector.load %arg3[%c0_18, %c0_19, %c0_20] : memref<1x3x82xbf16, #tpu.memory_space<vmem>>, vector<1x3x72xbf16>
    %20 = vector.shape_cast %19 : vector<1x3x72xbf16> to vector<3x72xbf16>
    %c3 = arith.constant 3 : index
    %c0_21 = arith.constant 0 : index
    %c0_22 = arith.constant 0 : index
    %21 = vector.load %arg5[%c3, %c0_21, %c0_22] : memref<9x8x3xbf16, #tpu.memory_space<vmem>>, vector<1x8x3xbf16>
    %22 = vector.shape_cast %21 : vector<1x8x3xbf16> to vector<8x3xbf16>
    %cst_23 = arith.constant dense<0.000000e+00> : vector<8x72xf32>
    %23 = tpu.matmul %22, %20, %cst_23 {dimension_numbers = #tpu.dot_dimension_numbers<[1], [0], [0], [1], [0, 0, 1, 1], [], []>} : vector<8x3xbf16>, vector<3x72xbf16>, vector<8x72xf32> -> vector<8x72xf32>
    %24 = arith.addf %18, %23 : vector<8x72xf32>
    %c0_24 = arith.constant 0 : index
    %c0_25 = arith.constant 0 : index
    %c0_26 = arith.constant 0 : index
    %25 = vector.load %arg4[%c0_24, %c0_25, %c0_26] : memref<1x3x82xbf16, #tpu.memory_space<vmem>>, vector<1x3x72xbf16>
    %26 = vector.shape_cast %25 : vector<1x3x72xbf16> to vector<3x72xbf16>
    %c4 = arith.constant 4 : index
    %c0_27 = arith.constant 0 : index
    %c0_28 = arith.constant 0 : index
    %27 = vector.load %arg5[%c4, %c0_27, %c0_28] : memref<9x8x3xbf16, #tpu.memory_space<vmem>>, vector<1x8x3xbf16>
    %28 = vector.shape_cast %27 : vector<1x8x3xbf16> to vector<8x3xbf16>
    %cst_29 = arith.constant dense<0.000000e+00> : vector<8x72xf32>
    %29 = tpu.matmul %28, %26, %cst_29 {dimension_numbers = #tpu.dot_dimension_numbers<[1], [0], [0], [1], [0, 0, 1, 1], [], []>} : vector<8x3xbf16>, vector<3x72xbf16>, vector<8x72xf32> -> vector<8x72xf32>
    %30 = arith.addf %24, %29 : vector<8x72xf32>
    %c0_30 = arith.constant 0 : index
    %c0_31 = arith.constant 0 : index
    %c1_32 = arith.constant 1 : index
    %31 = vector.load %arg3[%c0_30, %c0_31, %c1_32] : memref<1x3x82xbf16, #tpu.memory_space<vmem>>, vector<1x3x72xbf16>
    %32 = vector.shape_cast %31 : vector<1x3x72xbf16> to vector<3x72xbf16>
    %c5 = arith.constant 5 : index
    %c0_33 = arith.constant 0 : index
    %c0_34 = arith.constant 0 : index
    %33 = vector.load %arg5[%c5, %c0_33, %c0_34] : memref<9x8x3xbf16, #tpu.memory_space<vmem>>, vector<1x8x3xbf16>
    %34 = vector.shape_cast %33 : vector<1x8x3xbf16> to vector<8x3xbf16>
    %cst_35 = arith.constant dense<0.000000e+00> : vector<8x72xf32>
    %35 = tpu.matmul %34, %32, %cst_35 {dimension_numbers = #tpu.dot_dimension_numbers<[1], [0], [0], [1], [0, 0, 1, 1], [], []>} : vector<8x3xbf16>, vector<3x72xbf16>, vector<8x72xf32> -> vector<8x72xf32>
    %36 = arith.addf %30, %35 : vector<8x72xf32>
    %c0_36 = arith.constant 0 : index
    %c0_37 = arith.constant 0 : index
    %c9 = arith.constant 9 : index
    %37 = vector.load %arg1[%c0_36, %c0_37, %c9] : memref<1x3x82xbf16, #tpu.memory_space<vmem>>, vector<1x3x72xbf16>
    %38 = vector.shape_cast %37 : vector<1x3x72xbf16> to vector<3x72xbf16>
    %c6 = arith.constant 6 : index
    %c0_38 = arith.constant 0 : index
    %c0_39 = arith.constant 0 : index
    %39 = vector.load %arg5[%c6, %c0_38, %c0_39] : memref<9x8x3xbf16, #tpu.memory_space<vmem>>, vector<1x8x3xbf16>
    %40 = vector.shape_cast %39 : vector<1x8x3xbf16> to vector<8x3xbf16>
    %cst_40 = arith.constant dense<0.000000e+00> : vector<8x72xf32>
    %41 = tpu.matmul %40, %38, %cst_40 {dimension_numbers = #tpu.dot_dimension_numbers<[1], [0], [0], [1], [0, 0, 1, 1], [], []>} : vector<8x3xbf16>, vector<3x72xbf16>, vector<8x72xf32> -> vector<8x72xf32>
    %42 = arith.addf %36, %41 : vector<8x72xf32>
    %c0_41 = arith.constant 0 : index
    %c0_42 = arith.constant 0 : index
    %c9_43 = arith.constant 9 : index
    %43 = vector.load %arg2[%c0_41, %c0_42, %c9_43] : memref<1x3x82xbf16, #tpu.memory_space<vmem>>, vector<1x3x72xbf16>
    %44 = vector.shape_cast %43 : vector<1x3x72xbf16> to vector<3x72xbf16>
    %c7 = arith.constant 7 : index
    %c0_44 = arith.constant 0 : index
    %c0_45 = arith.constant 0 : index
    %45 = vector.load %arg5[%c7, %c0_44, %c0_45] : memref<9x8x3xbf16, #tpu.memory_space<vmem>>, vector<1x8x3xbf16>
    %46 = vector.shape_cast %45 : vector<1x8x3xbf16> to vector<8x3xbf16>
    %cst_46 = arith.constant dense<0.000000e+00> : vector<8x72xf32>
    %47 = tpu.matmul %46, %44, %cst_46 {dimension_numbers = #tpu.dot_dimension_numbers<[1], [0], [0], [1], [0, 0, 1, 1], [], []>} : vector<8x3xbf16>, vector<3x72xbf16>, vector<8x72xf32> -> vector<8x72xf32>
    %48 = arith.addf %42, %47 : vector<8x72xf32>
    %c0_47 = arith.constant 0 : index
    %c0_48 = arith.constant 0 : index
    %c10 = arith.constant 10 : index
    %49 = vector.load %arg1[%c0_47, %c0_48, %c10] : memref<1x3x82xbf16, #tpu.memory_space<vmem>>, vector<1x3x72xbf16>
    %50 = vector.shape_cast %49 : vector<1x3x72xbf16> to vector<3x72xbf16>
    %c8 = arith.constant 8 : index
    %c0_49 = arith.constant 0 : index
    %c0_50 = arith.constant 0 : index
    %51 = vector.load %arg5[%c8, %c0_49, %c0_50] : memref<9x8x3xbf16, #tpu.memory_space<vmem>>, vector<1x8x3xbf16>
    %52 = vector.shape_cast %51 : vector<1x8x3xbf16> to vector<8x3xbf16>
    %cst_51 = arith.constant dense<0.000000e+00> : vector<8x72xf32>
    %53 = tpu.matmul %52, %50, %cst_51 {dimension_numbers = #tpu.dot_dimension_numbers<[1], [0], [0], [1], [0, 0, 1, 1], [], []>} : vector<8x3xbf16>, vector<3x72xbf16>, vector<8x72xf32> -> vector<8x72xf32>
    %54 = arith.addf %48, %53 : vector<8x72xf32>
    %c0_52 = arith.constant 0 : index
    %c0_53 = arith.constant 0 : index
    %55 = vector.load %arg6[%c0_52, %c0_53] : memref<8x1xf32, #tpu.memory_space<vmem>>, vector<8x1xf32>
    %56 = vector.broadcast %55 : vector<8x1xf32> to vector<8x72xf32>
    %57 = arith.addf %54, %56 : vector<8x72xf32>
    %cst_54 = arith.constant 0.000000e+00 : f32
    %58 = vector.broadcast %cst_54 : f32 to vector<8x72xf32>
    %59 = arith.cmpf oge, %57, %58 : vector<8x72xf32>
    %cst_55 = arith.constant 2.000000e-01 : f32
    %60 = vector.broadcast %cst_55 : f32 to vector<8x72xf32>
    %61 = arith.mulf %60, %57 : vector<8x72xf32>
    %62 = arith.select %59, %57, %61 : vector<8x72xi1>, vector<8x72xf32>
    %63 = arith.truncf %62 : vector<8x72xf32> to vector<8x72xbf16>
    %c0_56 = arith.constant 0 : index
    %c0_57 = arith.constant 0 : index
    %c0_58 = arith.constant 0 : index
    %64 = vector.load %arg7[%c0_56, %c0_57, %c0_58] : memref<1x8x72xbf16, #tpu.memory_space<vmem>>, vector<1x8x72xbf16>
    %65 = vector.shape_cast %64 : vector<1x8x72xbf16> to vector<8x72xbf16>
    %66 = vector.shape_cast %63 : vector<8x72xbf16> to vector<1x8x72xbf16>
    tpu.vector_store %arg7[%c0_56, %c0_57, %c0_58], %66 {strides = array<i32>} : memref<1x8x72xbf16, #tpu.memory_space<vmem>>, vector<1x8x72xbf16>,
    return
  }
  func.func @transform_0(%arg0: i32) -> (i32, i32, i32) {
    %c0_i32 = arith.constant 0 : i32
    %c0_i32_0 = arith.constant 0 : i32
    %c0_i32_1 = arith.constant 0 : i32
    return %arg0, %c0_i32, %c0_i32_0 : i32, i32, i32
  }
  func.func @transform_1(%arg0: i32) -> (i32, i32, i32) {
    %c0_i32 = arith.constant 0 : i32
    %c0_i32_0 = arith.constant 0 : i32
    %c0_i32_1 = arith.constant 0 : i32
    return %arg0, %c0_i32, %c0_i32_0 : i32, i32, i32
  }
  func.func @transform_2(%arg0: i32) -> (i32, i32, i32) {
    %c0_i32 = arith.constant 0 : i32
    %c0_i32_0 = arith.constant 0 : i32
    %c0_i32_1 = arith.constant 0 : i32
    return %arg0, %c0_i32, %c0_i32_0 : i32, i32, i32
  }
  func.func @transform_3(%arg0: i32) -> (i32, i32, i32) {
    %c0_i32 = arith.constant 0 : i32
    %c0_i32_0 = arith.constant 0 : i32
    %c0_i32_1 = arith.constant 0 : i32
    return %arg0, %c0_i32, %c0_i32_0 : i32, i32, i32
  }
  func.func @transform_4(%arg0: i32) -> (i32, i32, i32) {
    %c0_i32 = arith.constant 0 : i32
    %c0_i32_0 = arith.constant 0 : i32
    %c0_i32_1 = arith.constant 0 : i32
    %c0_i32_2 = arith.constant 0 : i32
    return %c0_i32, %c0_i32_0, %c0_i32_1 : i32, i32, i32
  }
  func.func @transform_5(%arg0: i32) -> (i32, i32) {
    %c0_i32 = arith.constant 0 : i32
    %c0_i32_0 = arith.constant 0 : i32
    %c0_i32_1 = arith.constant 0 : i32
    return %c0_i32, %c0_i32_0 : i32, i32
  }
  func.func @transform_6(%arg0: i32) -> (i32, i32, i32) {
    %c0_i32 = arith.constant 0 : i32
    %c0_i32_0 = arith.constant 0 : i32
    %c0_i32_1 = arith.constant 0 : i32
    return %arg0, %c0_i32, %c0_i32_0 : i32, i32, i32
  }
}

module attributes {stable_mosaic.version = 11 : i64} {
  func.func @_conv3x3_s2_lrelu_kernel(%arg0: i32, %arg1: memref<1x16x10xbf16, #tpu.memory_space<vmem>>, %arg2: memref<1x16x10xbf16, #tpu.memory_space<vmem>>, %arg3: memref<1x16x10xbf16, #tpu.memory_space<vmem>>, %arg4: memref<1x16x10xbf16, #tpu.memory_space<vmem>>, %arg5: memref<9x32x16xbf16, #tpu.memory_space<vmem>>, %arg6: memref<32x1xf32, #tpu.memory_space<vmem>>, %arg7: memref<1x32x6xbf16, #tpu.memory_space<vmem>>) attributes {dimension_semantics = [#tpu.dimension_semantics<parallel>], iteration_bounds = array<i64: 2>, scalar_prefetch = 0 : i64, scratch_operands = 0 : i64, tpu.core_type = #tpu.core_type<tc>, window_params = [{transform_indices = @transform_0, window_bounds = array<i64: 1, 16, 10>}, {transform_indices = @transform_1, window_bounds = array<i64: 1, 16, 10>}, {transform_indices = @transform_2, window_bounds = array<i64: 1, 16, 10>}, {transform_indices = @transform_3, window_bounds = array<i64: 1, 16, 10>}, {pipeline_mode = #tpu.pipeline_mode<synchronous>, transform_indices = @transform_4, window_bounds = array<i64: 9, 32, 16>}, {pipeline_mode = #tpu.pipeline_mode<synchronous>, transform_indices = @transform_5, window_bounds = array<i64: 32, 1>}, {transform_indices = @transform_6, window_bounds = array<i64: 1, 32, 6>}]} {
    %cst = arith.constant 0.000000e+00 : f32
    %0 = vector.broadcast %cst : f32 to vector<32x6xf32>
    %c0 = arith.constant 0 : index
    %c0_0 = arith.constant 0 : index
    %c0_1 = arith.constant 0 : index
    %1 = vector.load %arg1[%c0, %c0_0, %c0_1] : memref<1x16x10xbf16, #tpu.memory_space<vmem>>, vector<1x16x6xbf16>
    %2 = vector.shape_cast %1 : vector<1x16x6xbf16> to vector<16x6xbf16>
    %c0_2 = arith.constant 0 : index
    %c0_3 = arith.constant 0 : index
    %c0_4 = arith.constant 0 : index
    %3 = vector.load %arg5[%c0_2, %c0_3, %c0_4] : memref<9x32x16xbf16, #tpu.memory_space<vmem>>, vector<1x32x16xbf16>
    %4 = vector.shape_cast %3 : vector<1x32x16xbf16> to vector<32x16xbf16>
    %cst_5 = arith.constant dense<0.000000e+00> : vector<32x6xf32>
    %5 = tpu.matmul %4, %2, %cst_5 {dimension_numbers = #tpu.dot_dimension_numbers<[1], [0], [0], [1], [0, 0, 1, 1], [], []>} : vector<32x16xbf16>, vector<16x6xbf16>, vector<32x6xf32> -> vector<32x6xf32>
    %6 = arith.addf %0, %5 : vector<32x6xf32>
    %c0_6 = arith.constant 0 : index
    %c0_7 = arith.constant 0 : index
    %c0_8 = arith.constant 0 : index
    %7 = vector.load %arg2[%c0_6, %c0_7, %c0_8] : memref<1x16x10xbf16, #tpu.memory_space<vmem>>, vector<1x16x6xbf16>
    %8 = vector.shape_cast %7 : vector<1x16x6xbf16> to vector<16x6xbf16>
    %c1 = arith.constant 1 : index
    %c0_9 = arith.constant 0 : index
    %c0_10 = arith.constant 0 : index
    %9 = vector.load %arg5[%c1, %c0_9, %c0_10] : memref<9x32x16xbf16, #tpu.memory_space<vmem>>, vector<1x32x16xbf16>
    %10 = vector.shape_cast %9 : vector<1x32x16xbf16> to vector<32x16xbf16>
    %cst_11 = arith.constant dense<0.000000e+00> : vector<32x6xf32>
    %11 = tpu.matmul %10, %8, %cst_11 {dimension_numbers = #tpu.dot_dimension_numbers<[1], [0], [0], [1], [0, 0, 1, 1], [], []>} : vector<32x16xbf16>, vector<16x6xbf16>, vector<32x6xf32> -> vector<32x6xf32>
    %12 = arith.addf %6, %11 : vector<32x6xf32>
    %c0_12 = arith.constant 0 : index
    %c0_13 = arith.constant 0 : index
    %c1_14 = arith.constant 1 : index
    %13 = vector.load %arg1[%c0_12, %c0_13, %c1_14] : memref<1x16x10xbf16, #tpu.memory_space<vmem>>, vector<1x16x6xbf16>
    %14 = vector.shape_cast %13 : vector<1x16x6xbf16> to vector<16x6xbf16>
    %c2 = arith.constant 2 : index
    %c0_15 = arith.constant 0 : index
    %c0_16 = arith.constant 0 : index
    %15 = vector.load %arg5[%c2, %c0_15, %c0_16] : memref<9x32x16xbf16, #tpu.memory_space<vmem>>, vector<1x32x16xbf16>
    %16 = vector.shape_cast %15 : vector<1x32x16xbf16> to vector<32x16xbf16>
    %cst_17 = arith.constant dense<0.000000e+00> : vector<32x6xf32>
    %17 = tpu.matmul %16, %14, %cst_17 {dimension_numbers = #tpu.dot_dimension_numbers<[1], [0], [0], [1], [0, 0, 1, 1], [], []>} : vector<32x16xbf16>, vector<16x6xbf16>, vector<32x6xf32> -> vector<32x6xf32>
    %18 = arith.addf %12, %17 : vector<32x6xf32>
    %c0_18 = arith.constant 0 : index
    %c0_19 = arith.constant 0 : index
    %c0_20 = arith.constant 0 : index
    %19 = vector.load %arg3[%c0_18, %c0_19, %c0_20] : memref<1x16x10xbf16, #tpu.memory_space<vmem>>, vector<1x16x6xbf16>
    %20 = vector.shape_cast %19 : vector<1x16x6xbf16> to vector<16x6xbf16>
    %c3 = arith.constant 3 : index
    %c0_21 = arith.constant 0 : index
    %c0_22 = arith.constant 0 : index
    %21 = vector.load %arg5[%c3, %c0_21, %c0_22] : memref<9x32x16xbf16, #tpu.memory_space<vmem>>, vector<1x32x16xbf16>
    %22 = vector.shape_cast %21 : vector<1x32x16xbf16> to vector<32x16xbf16>
    %cst_23 = arith.constant dense<0.000000e+00> : vector<32x6xf32>
    %23 = tpu.matmul %22, %20, %cst_23 {dimension_numbers = #tpu.dot_dimension_numbers<[1], [0], [0], [1], [0, 0, 1, 1], [], []>} : vector<32x16xbf16>, vector<16x6xbf16>, vector<32x6xf32> -> vector<32x6xf32>
    %24 = arith.addf %18, %23 : vector<32x6xf32>
    %c0_24 = arith.constant 0 : index
    %c0_25 = arith.constant 0 : index
    %c0_26 = arith.constant 0 : index
    %25 = vector.load %arg4[%c0_24, %c0_25, %c0_26] : memref<1x16x10xbf16, #tpu.memory_space<vmem>>, vector<1x16x6xbf16>
    %26 = vector.shape_cast %25 : vector<1x16x6xbf16> to vector<16x6xbf16>
    %c4 = arith.constant 4 : index
    %c0_27 = arith.constant 0 : index
    %c0_28 = arith.constant 0 : index
    %27 = vector.load %arg5[%c4, %c0_27, %c0_28] : memref<9x32x16xbf16, #tpu.memory_space<vmem>>, vector<1x32x16xbf16>
    %28 = vector.shape_cast %27 : vector<1x32x16xbf16> to vector<32x16xbf16>
    %cst_29 = arith.constant dense<0.000000e+00> : vector<32x6xf32>
    %29 = tpu.matmul %28, %26, %cst_29 {dimension_numbers = #tpu.dot_dimension_numbers<[1], [0], [0], [1], [0, 0, 1, 1], [], []>} : vector<32x16xbf16>, vector<16x6xbf16>, vector<32x6xf32> -> vector<32x6xf32>
    %30 = arith.addf %24, %29 : vector<32x6xf32>
    %c0_30 = arith.constant 0 : index
    %c0_31 = arith.constant 0 : index
    %c1_32 = arith.constant 1 : index
    %31 = vector.load %arg3[%c0_30, %c0_31, %c1_32] : memref<1x16x10xbf16, #tpu.memory_space<vmem>>, vector<1x16x6xbf16>
    %32 = vector.shape_cast %31 : vector<1x16x6xbf16> to vector<16x6xbf16>
    %c5 = arith.constant 5 : index
    %c0_33 = arith.constant 0 : index
    %c0_34 = arith.constant 0 : index
    %33 = vector.load %arg5[%c5, %c0_33, %c0_34] : memref<9x32x16xbf16, #tpu.memory_space<vmem>>, vector<1x32x16xbf16>
    %34 = vector.shape_cast %33 : vector<1x32x16xbf16> to vector<32x16xbf16>
    %cst_35 = arith.constant dense<0.000000e+00> : vector<32x6xf32>
    %35 = tpu.matmul %34, %32, %cst_35 {dimension_numbers = #tpu.dot_dimension_numbers<[1], [0], [0], [1], [0, 0, 1, 1], [], []>} : vector<32x16xbf16>, vector<16x6xbf16>, vector<32x6xf32> -> vector<32x6xf32>
    %36 = arith.addf %30, %35 : vector<32x6xf32>
    %c0_36 = arith.constant 0 : index
    %c0_37 = arith.constant 0 : index
    %c3_38 = arith.constant 3 : index
    %37 = vector.load %arg1[%c0_36, %c0_37, %c3_38] : memref<1x16x10xbf16, #tpu.memory_space<vmem>>, vector<1x16x6xbf16>
    %38 = vector.shape_cast %37 : vector<1x16x6xbf16> to vector<16x6xbf16>
    %c6 = arith.constant 6 : index
    %c0_39 = arith.constant 0 : index
    %c0_40 = arith.constant 0 : index
    %39 = vector.load %arg5[%c6, %c0_39, %c0_40] : memref<9x32x16xbf16, #tpu.memory_space<vmem>>, vector<1x32x16xbf16>
    %40 = vector.shape_cast %39 : vector<1x32x16xbf16> to vector<32x16xbf16>
    %cst_41 = arith.constant dense<0.000000e+00> : vector<32x6xf32>
    %41 = tpu.matmul %40, %38, %cst_41 {dimension_numbers = #tpu.dot_dimension_numbers<[1], [0], [0], [1], [0, 0, 1, 1], [], []>} : vector<32x16xbf16>, vector<16x6xbf16>, vector<32x6xf32> -> vector<32x6xf32>
    %42 = arith.addf %36, %41 : vector<32x6xf32>
    %c0_42 = arith.constant 0 : index
    %c0_43 = arith.constant 0 : index
    %c3_44 = arith.constant 3 : index
    %43 = vector.load %arg2[%c0_42, %c0_43, %c3_44] : memref<1x16x10xbf16, #tpu.memory_space<vmem>>, vector<1x16x6xbf16>
    %44 = vector.shape_cast %43 : vector<1x16x6xbf16> to vector<16x6xbf16>
    %c7 = arith.constant 7 : index
    %c0_45 = arith.constant 0 : index
    %c0_46 = arith.constant 0 : index
    %45 = vector.load %arg5[%c7, %c0_45, %c0_46] : memref<9x32x16xbf16, #tpu.memory_space<vmem>>, vector<1x32x16xbf16>
    %46 = vector.shape_cast %45 : vector<1x32x16xbf16> to vector<32x16xbf16>
    %cst_47 = arith.constant dense<0.000000e+00> : vector<32x6xf32>
    %47 = tpu.matmul %46, %44, %cst_47 {dimension_numbers = #tpu.dot_dimension_numbers<[1], [0], [0], [1], [0, 0, 1, 1], [], []>} : vector<32x16xbf16>, vector<16x6xbf16>, vector<32x6xf32> -> vector<32x6xf32>
    %48 = arith.addf %42, %47 : vector<32x6xf32>
    %c0_48 = arith.constant 0 : index
    %c0_49 = arith.constant 0 : index
    %c4_50 = arith.constant 4 : index
    %49 = vector.load %arg1[%c0_48, %c0_49, %c4_50] : memref<1x16x10xbf16, #tpu.memory_space<vmem>>, vector<1x16x6xbf16>
    %50 = vector.shape_cast %49 : vector<1x16x6xbf16> to vector<16x6xbf16>
    %c8 = arith.constant 8 : index
    %c0_51 = arith.constant 0 : index
    %c0_52 = arith.constant 0 : index
    %51 = vector.load %arg5[%c8, %c0_51, %c0_52] : memref<9x32x16xbf16, #tpu.memory_space<vmem>>, vector<1x32x16xbf16>
    %52 = vector.shape_cast %51 : vector<1x32x16xbf16> to vector<32x16xbf16>
    %cst_53 = arith.constant dense<0.000000e+00> : vector<32x6xf32>
    %53 = tpu.matmul %52, %50, %cst_53 {dimension_numbers = #tpu.dot_dimension_numbers<[1], [0], [0], [1], [0, 0, 1, 1], [], []>} : vector<32x16xbf16>, vector<16x6xbf16>, vector<32x6xf32> -> vector<32x6xf32>
    %54 = arith.addf %48, %53 : vector<32x6xf32>
    %c0_54 = arith.constant 0 : index
    %c0_55 = arith.constant 0 : index
    %55 = vector.load %arg6[%c0_54, %c0_55] : memref<32x1xf32, #tpu.memory_space<vmem>>, vector<32x1xf32>
    %56 = vector.broadcast %55 : vector<32x1xf32> to vector<32x6xf32>
    %57 = arith.addf %54, %56 : vector<32x6xf32>
    %cst_56 = arith.constant 0.000000e+00 : f32
    %58 = vector.broadcast %cst_56 : f32 to vector<32x6xf32>
    %59 = arith.cmpf oge, %57, %58 : vector<32x6xf32>
    %cst_57 = arith.constant 2.000000e-01 : f32
    %60 = vector.broadcast %cst_57 : f32 to vector<32x6xf32>
    %61 = arith.mulf %60, %57 : vector<32x6xf32>
    %62 = arith.select %59, %57, %61 : vector<32x6xi1>, vector<32x6xf32>
    %63 = arith.truncf %62 : vector<32x6xf32> to vector<32x6xbf16>
    %c0_58 = arith.constant 0 : index
    %c0_59 = arith.constant 0 : index
    %c0_60 = arith.constant 0 : index
    %64 = vector.load %arg7[%c0_58, %c0_59, %c0_60] : memref<1x32x6xbf16, #tpu.memory_space<vmem>>, vector<1x32x6xbf16>
    %65 = vector.shape_cast %64 : vector<1x32x6xbf16> to vector<32x6xbf16>
    %66 = vector.shape_cast %63 : vector<32x6xbf16> to vector<1x32x6xbf16>
    tpu.vector_store %arg7[%c0_58, %c0_59, %c0_60], %66 {strides = array<i32>} : memref<1x32x6xbf16, #tpu.memory_space<vmem>>, vector<1x32x6xbf16>,
    return
  }
  func.func @transform_0(%arg0: i32) -> (i32, i32, i32) {
    %c0_i32 = arith.constant 0 : i32
    %c0_i32_0 = arith.constant 0 : i32
    %c0_i32_1 = arith.constant 0 : i32
    return %arg0, %c0_i32, %c0_i32_0 : i32, i32, i32
  }
  func.func @transform_1(%arg0: i32) -> (i32, i32, i32) {
    %c0_i32 = arith.constant 0 : i32
    %c0_i32_0 = arith.constant 0 : i32
    %c0_i32_1 = arith.constant 0 : i32
    return %arg0, %c0_i32, %c0_i32_0 : i32, i32, i32
  }
  func.func @transform_2(%arg0: i32) -> (i32, i32, i32) {
    %c0_i32 = arith.constant 0 : i32
    %c0_i32_0 = arith.constant 0 : i32
    %c0_i32_1 = arith.constant 0 : i32
    return %arg0, %c0_i32, %c0_i32_0 : i32, i32, i32
  }
  func.func @transform_3(%arg0: i32) -> (i32, i32, i32) {
    %c0_i32 = arith.constant 0 : i32
    %c0_i32_0 = arith.constant 0 : i32
    %c0_i32_1 = arith.constant 0 : i32
    return %arg0, %c0_i32, %c0_i32_0 : i32, i32, i32
  }
  func.func @transform_4(%arg0: i32) -> (i32, i32, i32) {
    %c0_i32 = arith.constant 0 : i32
    %c0_i32_0 = arith.constant 0 : i32
    %c0_i32_1 = arith.constant 0 : i32
    %c0_i32_2 = arith.constant 0 : i32
    return %c0_i32, %c0_i32_0, %c0_i32_1 : i32, i32, i32
  }
  func.func @transform_5(%arg0: i32) -> (i32, i32) {
    %c0_i32 = arith.constant 0 : i32
    %c0_i32_0 = arith.constant 0 : i32
    %c0_i32_1 = arith.constant 0 : i32
    return %c0_i32, %c0_i32_0 : i32, i32
  }
  func.func @transform_6(%arg0: i32) -> (i32, i32, i32) {
    %c0_i32 = arith.constant 0 : i32
    %c0_i32_0 = arith.constant 0 : i32
    %c0_i32_1 = arith.constant 0 : i32
    return %arg0, %c0_i32, %c0_i32_0 : i32, i32, i32
  }
}

</mosaic_0001>

<llo_original>
// kernel: discriminator_forward.22
$region0: #{discriminator_forward.22}
  #allocation0 [shape = 'u32[]', space=smem, size = 0x4, offset = 0x4, fixed_abs, tag = 'smem constant byte address 0x4 - core index']
  #allocation1 [shape = 'u32[72,128]{1,0:T(1,128)}', space=vmem, size = 0x9000, scoped, tag = 'internal scratch']
  %s0 = inlined_call_operand.vmem [shape: f32[2,3,82], index: 0, kind: input, shape index: {}]
  %s1 = inlined_call_operand.vmem [shape: f32[2,3,82], index: 1, kind: input, shape index: {}]
  %s2 = inlined_call_operand.vmem [shape: f32[2,3,82], index: 2, kind: input, shape index: {}]
  %s3 = inlined_call_operand.vmem [shape: f32[2,3,82], index: 3, kind: input, shape index: {}]
  %s4 = inlined_call_operand.vmem [shape: f32[1,72], index: 4, kind: input, shape index: {}]
  %s5 = inlined_call_operand.vmem [shape: f32[2,3,72], index: 5, kind: output, shape index: {}]
  %s6 = sld [smem:[#allocation0]]
  $region53: #{discriminator_forward.22} parent=0
    _
  %s8 = ssub.s32 1, %s6
  %s9 = scalar_select 0, %s8, %s6
  loop: start=0, step=1, limit=4
  $region2: #{discriminator_forward.22} parent=0 // loop_pre_header
    _
  $region3: #{discriminator_forward.22} parent=0 // loop_header
    %s11 = sphi 0, %s15
    %p12 = scmp.ge.s32.totalorder %s11, 4
    %s21 = sphi 0, %s23
    %s24 = sphi 0, %s21
    %s25 = sphi 0, %s24
    %s41 = sphi 0, %s25
    %s47 = sphi 0, %s49
    %s50 = sphi 0, %s47
    %s51 = sphi 0, %s50
    %s67 = sphi 0, %s51
    %s73 = sphi 0, %s75
    %s76 = sphi 0, %s73
    %s77 = sphi 0, %s76
    %s93 = sphi 0, %s77
    %s99 = sphi 0, %s101
    %s102 = sphi 0, %s99
    %s103 = sphi 0, %s102
    %s119 = sphi 0, %s103
    %s123 = sphi 0, %s123
    %s125 = sphi 0, %s123
    %s126 = sphi 0, %s125
    %s140 = sphi 0, %s126
    %s146 = sphi 0, %s148
    %s149 = sphi 0, %s146
    %s150 = sphi 0, %s149
    %s166 = sphi 0, %s150
  $region4: #{discriminator_forward.22} parent=0 // loop_header_branch
    %14 = sbr.rel (%p12) target = $region8
  $region5: #{discriminator_forward.22} parent=0 // loop_body
    %s16 = ssub.s32 %s11, 1
    %s17 = ssub.s32 %s11, 2
    %s18 = sadd.s32 %s11, 1
    %s19 = ssub.s32 %s11, %s18
    %p20 = scmp.eq.s32.totalorder %s19, 0
    %s22 = sadd.s32 %s21, 1
    %s23 = scalar_select %p20, %s21, %s22
    %p26 = pneg %p20
    %p27 = scmp.eq.s32.totalorder %s11, 1
    %p28 = por %p26, %p27
    %p29 = scmp.ne.s32.totalorder %s21, %s24
    %p30 = scmp.eq.s32.totalorder %s11, 0
    %p31 = por %p29, %p30
    %p32 = scmp.ne.s32.totalorder %s21, %s24
    %p33 = scmp.eq.s32.totalorder %s16, 1
    %p34 = por %p32, %p33
    %p35 = scmp.ne.s32.totalorder %s24, %s25
    %p36 = scmp.eq.s32.totalorder %s16, 0
    %p37 = por %p35, %p36
    %p38 = scmp.ne.s32.totalorder %s24, %s25
    %p39 = scmp.eq.s32.totalorder %s17, 1
    %p40 = por %p38, %p39
    %p42 = scmp.ne.s32.totalorder %s25, %s41
    %p43 = scmp.eq.s32.totalorder %s17, 0
    %p44 = por %p42, %p43
    %s45 = ssub.s32 %s11, %s18
    %p46 = scmp.eq.s32.totalorder %s45, 0
    %s48 = sadd.s32 %s47, 1
    %s49 = scalar_select %p46, %s47, %s48
    %p52 = pneg %p46
    %p53 = scmp.eq.s32.totalorder %s11, 1
    %p54 = por %p52, %p53
    %p55 = scmp.ne.s32.totalorder %s47, %s50
    %p56 = scmp.eq.s32.totalorder %s11, 0
    %p57 = por %p55, %p56
    %p58 = scmp.ne.s32.totalorder %s47, %s50
    %p59 = scmp.eq.s32.totalorder %s16, 1
    %p60 = por %p58, %p59
    %p61 = scmp.ne.s32.totalorder %s50, %s51
    %p62 = scmp.eq.s32.totalorder %s16, 0
    %p63 = por %p61, %p62
    %p64 = scmp.ne.s32.totalorder %s50, %s51
    %p65 = scmp.eq.s32.totalorder %s17, 1
    %p66 = por %p64, %p65
    %p68 = scmp.ne.s32.totalorder %s51, %s67
    %p69 = scmp.eq.s32.totalorder %s17, 0
    %p70 = por %p68, %p69
    %s71 = ssub.s32 %s11, %s18
    %p72 = scmp.eq.s32.totalorder %s71, 0
    %s74 = sadd.s32 %s73, 1
    %s75 = scalar_select %p72, %s73, %s74
    %p78 = pneg %p72
    %p79 = scmp.eq.s32.totalorder %s11, 1
    %p80 = por %p78, %p79
    %p81 = scmp.ne.s32.totalorder %s73, %s76
    %p82 = scmp.eq.s32.totalorder %s11, 0
    %p83 = por %p81, %p82
    %p84 = scmp.ne.s32.totalorder %s73, %s76
    %p85 = scmp.eq.s32.totalorder %s16, 1
    %p86 = por %p84, %p85
    %p87 = scmp.ne.s32.totalorder %s76, %s77
    %p88 = scmp.eq.s32.totalorder %s16, 0
    %p89 = por %p87, %p88
    %p90 = scmp.ne.s32.totalorder %s76, %s77
    %p91 = scmp.eq.s32.totalorder %s17, 1
    %p92 = por %p90, %p91
    %p94 = scmp.ne.s32.totalorder %s77, %s93
    %p95 = scmp.eq.s32.totalorder %s17, 0
    %p96 = por %p94, %p95
    %s97 = ssub.s32 %s11, %s18
    %p98 = scmp.eq.s32.totalorder %s97, 0
    %s100 = sadd.s32 %s99, 1
    %s101 = scalar_select %p98, %s99, %s100
    %p104 = pneg %p98
    %p105 = scmp.eq.s32.totalorder %s11, 1
    %p106 = por %p104, %p105
    %p107 = scmp.ne.s32.totalorder %s99, %s102
    %p108 = scmp.eq.s32.totalorder %s11, 0
    %p109 = por %p107, %p108
    %p110 = scmp.ne.s32.totalorder %s99, %s102
    %p111 = scmp.eq.s32.totalorder %s16, 1
    %p112 = por %p110, %p111
    %p113 = scmp.ne.s32.totalorder %s102, %s103
    %p114 = scmp.eq.s32.totalorder %s16, 0
    %p115 = por %p113, %p114
    %p116 = scmp.ne.s32.totalorder %s102, %s103
    %p117 = scmp.eq.s32.totalorder %s17, 1
    %p118 = por %p116, %p117
    %p120 = scmp.ne.s32.totalorder %s103, %s119
    %p121 = scmp.eq.s32.totalorder %s17, 0
    %p122 = por %p120, %p121
    %s124 = sadd.s32 %s123, 1
    %p127 = scmp.eq.s32.totalorder %s11, 1
    %p128 = scmp.ne.s32.totalorder %s123, %s125
    %p129 = scmp.eq.s32.totalorder %s11, 0
    %p130 = por %p128, %p129
    %p131 = scmp.ne.s32.totalorder %s123, %s125
    %p132 = scmp.eq.s32.totalorder %s16, 1
    %p133 = por %p131, %p132
    %p134 = scmp.ne.s32.totalorder %s125, %s126
    %p135 = scmp.eq.s32.totalorder %s16, 0
    %p136 = por %p134, %p135
    %p137 = scmp.ne.s32.totalorder %s125, %s126
    %p138 = scmp.eq.s32.totalorder %s17, 1
    %p139 = por %p137, %p138
    %p141 = scmp.ne.s32.totalorder %s126, %s140
    %p142 = scmp.eq.s32.totalorder %s17, 0
    %p143 = por %p141, %p142
    %s144 = ssub.s32 %s11, %s18
    %p145 = scmp.eq.s32.totalorder %s144, 0
    %s147 = sadd.s32 %s146, 1
    %s148 = scalar_select %p145, %s146, %s147
    %p151 = pneg %p145
    %p152 = scmp.eq.s32.totalorder %s11, 1
    %p153 = por %p151, %p152
    %p154 = scmp.ne.s32.totalorder %s146, %s149
    %p155 = scmp.eq.s32.totalorder %s11, 0
    %p156 = por %p154, %p155
    %p157 = scmp.ne.s32.totalorder %s146, %s149
    %p158 = scmp.eq.s32.totalorder %s16, 1
    %p159 = por %p157, %p158
    %p160 = scmp.ne.s32.totalorder %s149, %s150
    %p161 = scmp.eq.s32.totalorder %s16, 0
    %p162 = por %p160, %p161
    %p163 = scmp.ne.s32.totalorder %s149, %s150
    %p164 = scmp.eq.s32.totalorder %s17, 1
    %p165 = por %p163, %p164
    %p167 = scmp.ne.s32.totalorder %s150, %s166
    %p168 = scmp.eq.s32.totalorder %s17, 0
    %p169 = por %p167, %p168
    %p170 = scmp.le.s32.totalorder 1, %s11
    %p171 = scmp.lt.s32.totalorder %s11, 3
    %p172 = pnand %p170, %p171
    %p173 = pneg %p172
    // Predicated region
    $region9: #{discriminator_forward.22} parent=5 // pred_check
      _
    $region10: #{discriminator_forward.22} parent=5 // pred_check_branch
      %175 = sbr.rel (%p172) target = $region12
    $region11: #{discriminator_forward.22} parent=5 // pred_region
      %s176 = ssub.s32 %s11, 1
      // Predicated region
      $region13: #{discriminator_forward.22} parent=11 // pred_check
        %p177 = pneg %p136
      $region14: #{discriminator_forward.22} parent=11 // pred_check_branch
        %179 = sbr.rel (%p177) target = $region16
      $region15: #{discriminator_forward.22} parent=11 // pred_region
        _
      $region16: #{discriminator_forward.22} parent=11 // pred_fallthru
        _
    $region12: #{discriminator_forward.22} parent=5 // pred_fallthru
      _
    %p180 = scmp.lt.s32.totalorder %s11, 2
    // Predicated region
    $region17: #{discriminator_forward.22} parent=5 // pred_check
      %p181 = pneg %p180
    $region18: #{discriminator_forward.22} parent=5 // pred_check_branch
      %183 = sbr.rel (%p181) target = $region20
    $region19: #{discriminator_forward.22} parent=5 // pred_region
      // Predicated region
      $region21: #{discriminator_forward.22} parent=19 // pred_check
        %p184 = pneg %p31
      $region22: #{discriminator_forward.22} parent=19 // pred_check_branch
        %186 = sbr.rel (%p184) target = $region24
      $region23: #{discriminator_forward.22} parent=19 // pred_region
        %p187 = scmp.lt.s32.totalorder %s11, 1
        %s188 = scalar_select %p187, %s11, 1
        %s189 = smul.addr %s188, 4
        %s190 = scalar_lea.vmem %s0, %s189
      $region24: #{discriminator_forward.22} parent=19 // pred_fallthru
        _
      // Predicated region
      $region25: #{discriminator_forward.22} parent=19 // pred_check
        %p191 = pneg %p57
      $region26: #{discriminator_forward.22} parent=19 // pred_check_branch
        %193 = sbr.rel (%p191) target = $region28
      $region27: #{discriminator_forward.22} parent=19 // pred_region
        %p194 = scmp.lt.s32.totalorder %s11, 1
        %s195 = scalar_select %p194, %s11, 1
        %s196 = smul.addr %s195, 4
        %s197 = scalar_lea.vmem %s1, %s196
      $region28: #{discriminator_forward.22} parent=19 // pred_fallthru
        _
      // Predicated region
      $region29: #{discriminator_forward.22} parent=19 // pred_check
        %p198 = pneg %p83
      $region30: #{discriminator_forward.22} parent=19 // pred_check_branch
        %200 = sbr.rel (%p198) target = $region32
      $region31: #{discriminator_forward.22} parent=19 // pred_region
        %p201 = scmp.lt.s32.totalorder %s11, 1
        %s202 = scalar_select %p201, %s11, 1
        %s203 = smul.addr %s202, 4
        %s204 = scalar_lea.vmem %s2, %s203
      $region32: #{discriminator_forward.22} parent=19 // pred_fallthru
        _
      // Predicated region
      $region33: #{discriminator_forward.22} parent=19 // pred_check
        %p205 = pneg %p109
      $region34: #{discriminator_forward.22} parent=19 // pred_check_branch
        %207 = sbr.rel (%p205) target = $region36
      $region35: #{discriminator_forward.22} parent=19 // pred_region
        %p208 = scmp.lt.s32.totalorder %s11, 1
        %s209 = scalar_select %p208, %s11, 1
        %s210 = smul.addr %s209, 4
        %s211 = scalar_lea.vmem %s3, %s210
      $region36: #{discriminator_forward.22} parent=19 // pred_fallthru
        _
    $region20: #{discriminator_forward.22} parent=5 // pred_fallthru
      _
    %p212 = scmp.le.s32.totalorder 1, %s11
    %p213 = scmp.lt.s32.totalorder %s11, 3
    %p214 = pnand %p212, %p213
    %p215 = pneg %p214
    // Predicated region
    $region37: #{discriminator_forward.22} parent=5 // pred_check
      _
    $region38: #{discriminator_forward.22} parent=5 // pred_check_branch
      %217 = sbr.rel (%p214) target = $region40
    $region39: #{discriminator_forward.22} parent=5 // pred_region
      %s218 = ssub.s32 %s11, 1
      %p219 = scmp.lt.s32.totalorder %s16, 1
      %s220 = scalar_select %p219, %s16, 1
      %s221 = smul.addr %s220, 4
      %s222 = scalar_lea.vmem %s0, %s221
      %p223 = pneg %p37
      %p224 = pneg %p34
      %p225 = scmp.lt.s32.totalorder %s16, 1
      %s226 = scalar_select %p225, %s16, 1
      %s227 = smul.addr %s226, 4
      %s228 = scalar_lea.vmem %s1, %s227
      %p229 = pneg %p63
      %p230 = pneg %p60
      %p231 = scmp.lt.s32.totalorder %s16, 1
      %s232 = scalar_select %p231, %s16, 1
      %s233 = smul.addr %s232, 4
      %s234 = scalar_lea.vmem %s2, %s233
      %p235 = pneg %p89
      %p236 = pneg %p86
      %p237 = scmp.lt.s32.totalorder %s16, 1
      %s238 = scalar_select %p237, %s16, 1
      %s239 = smul.addr %s238, 4
      %s240 = scalar_lea.vmem %s3, %s239
      %p241 = pneg %p115
      %p242 = pneg %p112
      %p243 = pneg %p136
      %p244 = pneg %p133
      %p245 = pneg %p162
      %p246 = pneg %p159
      %p247 = scmp.lt.s32.totalorder %s16, 1
      %s248 = scalar_select %p247, %s16, 1
      %s249 = smul.addr %s248, 4
      %s250 = scalar_lea.vmem %s5, %s249
      %p251 = scmp.lt.s32.totalorder %s16, 1
      %s252 = scalar_select %p251, %s16, 1
      %s253 = smul.addr %s252, 4
      %s254 = scalar_lea.vmem %s0, %s253
      %p255 = scmp.lt.s32.totalorder %s16, 1
      %s256 = scalar_select %p255, %s16, 1
      %s257 = smul.addr %s256, 4
      %s258 = scalar_lea.vmem %s1, %s257
      %p259 = scmp.lt.s32.totalorder %s16, 1
      %s260 = scalar_select %p259, %s16, 1
      %s261 = smul.addr %s260, 4
      %s262 = scalar_lea.vmem %s2, %s261
      %p263 = scmp.lt.s32.totalorder %s16, 1
      %s264 = scalar_select %p263, %s16, 1
      %s265 = smul.addr %s264, 4
      %s266 = scalar_lea.vmem %s3, %s265
      %p267 = scmp.lt.s32.totalorder %s16, 1
      %s268 = scalar_select %p267, %s16, 1
      %s269 = smul.addr %s268, 4
      %s270 = scalar_lea.vmem %s5, %s269
      %v271 = vld [vmem:[%s254] sm:$0x7]
      %v272 = vadd.f32 %v271, 0.0
      %v273 = vld [vmem:[%s258] sm:$0x7]
      %v274 = vadd.f32 %v272, %v273
      %276 = vrot.lane.b32.xlu0 %v271, 127
      %v277 = vpop.permute.xlu0 %276
      %v279 = vadd.f32 %v274, %v277
      %v280 = vld [vmem:[%s262] sm:$0x7]
      %v281 = vadd.f32 %v279, %v280
      %v282 = vld [vmem:[%s266] sm:$0x7]
      %v283 = vadd.f32 %v281, %v282
      %285 = vrot.lane.b32.xlu0 %v280, 127
      %v286 = vpop.permute.xlu0 %285
      %v288 = vadd.f32 %v283, %v286
      %289 = vrot.lane.b32.xlu0 %v271, 119
      %v290 = vpop.permute.xlu0 %289
      %v292 = vadd.f32 %v288, %v290
      %294 = vrot.lane.b32.xlu0 %v273, 119
      %v295 = vpop.permute.xlu0 %294
      %v297 = vadd.f32 %v292, %v295
      %298 = vrot.lane.b32.xlu0 %v271, 118
      %v299 = vpop.permute.xlu0 %298
      %v301 = vadd.f32 %v297, %v299
      %v302 = vld [vmem:[%s4] sm:$0x1]
      %v304 = vperm.slane %v302, 0
      %v306 = vmul.f32 %v301, %v304
      %vm307 = vcmask 583680
      %308 = vst.msk [vmem:[%s270] sm:$0x7] %vm307, %v306
      %p309 = scmp.lt.s32.totalorder %s16, 1
      %s310 = scalar_select %p309, %s16, 1
      %s311 = smul.addr %s310, 4
      %s312 = scalar_lea.vmem %s5, %s311
      // Predicated region
      $region41: #{discriminator_forward.22} parent=39 // pred_check
        %p313 = pneg %p159
      $region42: #{discriminator_forward.22} parent=39 // pred_check_branch
        %315 = sbr.rel (%p313) target = $region44
      $region43: #{discriminator_forward.22} parent=39 // pred_region
        _
      $region44: #{discriminator_forward.22} parent=39 // pred_fallthru
        _
    $region40: #{discriminator_forward.22} parent=5 // pred_fallthru
      _
    %p316 = scmp.le.s32.totalorder 2, %s11
    // Predicated region
    $region45: #{discriminator_forward.22} parent=5 // pred_check
      %p317 = pneg %p316
    $region46: #{discriminator_forward.22} parent=5 // pred_check_branch
      %319 = sbr.rel (%p317) target = $region48
    $region47: #{discriminator_forward.22} parent=5 // pred_region
      %s320 = ssub.s32 %s11, 2
      // Predicated region
      $region49: #{discriminator_forward.22} parent=47 // pred_check
        %p321 = pneg %p165
      $region50: #{discriminator_forward.22} parent=47 // pred_check_branch
        %323 = sbr.rel (%p321) target = $region52
      $region51: #{discriminator_forward.22} parent=47 // pred_region
        %p324 = scmp.lt.s32.totalorder %s17, 1
        %s325 = scalar_select %p324, %s17, 1
        %s326 = smul.addr %s325, 4
        %s327 = scalar_lea.vmem %s5, %s326
      $region52: #{discriminator_forward.22} parent=47 // pred_fallthru
        _
    $region48: #{discriminator_forward.22} parent=5 // pred_fallthru
      _
  $region6: #{discriminator_forward.22} parent=0 // loop_footer
    %s15 = sadd.s32 1, %s11
  $region7: #{discriminator_forward.22} parent=0 // loop_footer_branch
    %10 = sbr.rel target = $region3
  $region8: #{discriminator_forward.22} parent=0 // loop_exit
    _

// kernel: discriminator_forward.28
$region0: #{discriminator_forward.28}
  #allocation0 [shape = 'u32[]', space=smem, size = 0x4, offset = 0x4, fixed_abs, tag = 'smem constant byte address 0x4 - core index']
  #allocation1 [shape = 'u32[72,128]{1,0:T(1,128)}', space=vmem, size = 0x9000, scoped, tag = 'internal scratch']
  %s0 = inlined_call_operand.vmem [shape: f32[2,3,26], index: 0, kind: input, shape index: {}]
  %s1 = inlined_call_operand.vmem [shape: f32[2,3,26], index: 1, kind: input, shape index: {}]
  %s2 = inlined_call_operand.vmem [shape: f32[2,3,26], index: 2, kind: input, shape index: {}]
  %s3 = inlined_call_operand.vmem [shape: f32[2,3,26], index: 3, kind: input, shape index: {}]
  %s4 = inlined_call_operand.vmem [shape: f32[1,20], index: 4, kind: input, shape index: {}]
  %s5 = inlined_call_operand.vmem [shape: f32[2,3,20], index: 5, kind: output, shape index: {}]
  %s6 = sld [smem:[#allocation0]]
  $region53: #{discriminator_forward.28} parent=0
    _
  %s8 = ssub.s32 1, %s6
  %s9 = scalar_select 0, %s8, %s6
  loop: start=0, step=1, limit=4
  $region2: #{discriminator_forward.28} parent=0 // loop_pre_header
    _
  $region3: #{discriminator_forward.28} parent=0 // loop_header
    %s11 = sphi 0, %s15
    %p12 = scmp.ge.s32.totalorder %s11, 4
    %s21 = sphi 0, %s23
    %s24 = sphi 0, %s21
    %s25 = sphi 0, %s24
    %s41 = sphi 0, %s25
    %s47 = sphi 0, %s49
    %s50 = sphi 0, %s47
    %s51 = sphi 0, %s50
    %s67 = sphi 0, %s51
    %s73 = sphi 0, %s75
    %s76 = sphi 0, %s73
    %s77 = sphi 0, %s76
    %s93 = sphi 0, %s77
    %s99 = sphi 0, %s101
    %s102 = sphi 0, %s99
    %s103 = sphi 0, %s102
    %s119 = sphi 0, %s103
    %s123 = sphi 0, %s123
    %s125 = sphi 0, %s123
    %s126 = sphi 0, %s125
    %s140 = sphi 0, %s126
    %s146 = sphi 0, %s148
    %s149 = sphi 0, %s146
    %s150 = sphi 0, %s149
    %s166 = sphi 0, %s150
  $region4: #{discriminator_forward.28} parent=0 // loop_header_branch
    %14 = sbr.rel (%p12) target = $region8
  $region5: #{discriminator_forward.28} parent=0 // loop_body
    %s16 = ssub.s32 %s11, 1
    %s17 = ssub.s32 %s11, 2
    %s18 = sadd.s32 %s11, 1
    %s19 = ssub.s32 %s11, %s18
    %p20 = scmp.eq.s32.totalorder %s19, 0
    %s22 = sadd.s32 %s21, 1
    %s23 = scalar_select %p20, %s21, %s22
    %p26 = pneg %p20
    %p27 = scmp.eq.s32.totalorder %s11, 1
    %p28 = por %p26, %p27
    %p29 = scmp.ne.s32.totalorder %s21, %s24
    %p30 = scmp.eq.s32.totalorder %s11, 0
    %p31 = por %p29, %p30
    %p32 = scmp.ne.s32.totalorder %s21, %s24
    %p33 = scmp.eq.s32.totalorder %s16, 1
    %p34 = por %p32, %p33
    %p35 = scmp.ne.s32.totalorder %s24, %s25
    %p36 = scmp.eq.s32.totalorder %s16, 0
    %p37 = por %p35, %p36
    %p38 = scmp.ne.s32.totalorder %s24, %s25
    %p39 = scmp.eq.s32.totalorder %s17, 1
    %p40 = por %p38, %p39
    %p42 = scmp.ne.s32.totalorder %s25, %s41
    %p43 = scmp.eq.s32.totalorder %s17, 0
    %p44 = por %p42, %p43
    %s45 = ssub.s32 %s11, %s18
    %p46 = scmp.eq.s32.totalorder %s45, 0
    %s48 = sadd.s32 %s47, 1
    %s49 = scalar_select %p46, %s47, %s48
    %p52 = pneg %p46
    %p53 = scmp.eq.s32.totalorder %s11, 1
    %p54 = por %p52, %p53
    %p55 = scmp.ne.s32.totalorder %s47, %s50
    %p56 = scmp.eq.s32.totalorder %s11, 0
    %p57 = por %p55, %p56
    %p58 = scmp.ne.s32.totalorder %s47, %s50
    %p59 = scmp.eq.s32.totalorder %s16, 1
    %p60 = por %p58, %p59
    %p61 = scmp.ne.s32.totalorder %s50, %s51
    %p62 = scmp.eq.s32.totalorder %s16, 0
    %p63 = por %p61, %p62
    %p64 = scmp.ne.s32.totalorder %s50, %s51
    %p65 = scmp.eq.s32.totalorder %s17, 1
    %p66 = por %p64, %p65
    %p68 = scmp.ne.s32.totalorder %s51, %s67
    %p69 = scmp.eq.s32.totalorder %s17, 0
    %p70 = por %p68, %p69
    %s71 = ssub.s32 %s11, %s18
    %p72 = scmp.eq.s32.totalorder %s71, 0
    %s74 = sadd.s32 %s73, 1
    %s75 = scalar_select %p72, %s73, %s74
    %p78 = pneg %p72
    %p79 = scmp.eq.s32.totalorder %s11, 1
    %p80 = por %p78, %p79
    %p81 = scmp.ne.s32.totalorder %s73, %s76
    %p82 = scmp.eq.s32.totalorder %s11, 0
    %p83 = por %p81, %p82
    %p84 = scmp.ne.s32.totalorder %s73, %s76
    %p85 = scmp.eq.s32.totalorder %s16, 1
    %p86 = por %p84, %p85
    %p87 = scmp.ne.s32.totalorder %s76, %s77
    %p88 = scmp.eq.s32.totalorder %s16, 0
    %p89 = por %p87, %p88
    %p90 = scmp.ne.s32.totalorder %s76, %s77
    %p91 = scmp.eq.s32.totalorder %s17, 1
    %p92 = por %p90, %p91
    %p94 = scmp.ne.s32.totalorder %s77, %s93
    %p95 = scmp.eq.s32.totalorder %s17, 0
    %p96 = por %p94, %p95
    %s97 = ssub.s32 %s11, %s18
    %p98 = scmp.eq.s32.totalorder %s97, 0
    %s100 = sadd.s32 %s99, 1
    %s101 = scalar_select %p98, %s99, %s100
    %p104 = pneg %p98
    %p105 = scmp.eq.s32.totalorder %s11, 1
    %p106 = por %p104, %p105
    %p107 = scmp.ne.s32.totalorder %s99, %s102
    %p108 = scmp.eq.s32.totalorder %s11, 0
    %p109 = por %p107, %p108
    %p110 = scmp.ne.s32.totalorder %s99, %s102
    %p111 = scmp.eq.s32.totalorder %s16, 1
    %p112 = por %p110, %p111
    %p113 = scmp.ne.s32.totalorder %s102, %s103
    %p114 = scmp.eq.s32.totalorder %s16, 0
    %p115 = por %p113, %p114
    %p116 = scmp.ne.s32.totalorder %s102, %s103
    %p117 = scmp.eq.s32.totalorder %s17, 1
    %p118 = por %p116, %p117
    %p120 = scmp.ne.s32.totalorder %s103, %s119
    %p121 = scmp.eq.s32.totalorder %s17, 0
    %p122 = por %p120, %p121
    %s124 = sadd.s32 %s123, 1
    %p127 = scmp.eq.s32.totalorder %s11, 1
    %p128 = scmp.ne.s32.totalorder %s123, %s125
    %p129 = scmp.eq.s32.totalorder %s11, 0
    %p130 = por %p128, %p129
    %p131 = scmp.ne.s32.totalorder %s123, %s125
    %p132 = scmp.eq.s32.totalorder %s16, 1
    %p133 = por %p131, %p132
    %p134 = scmp.ne.s32.totalorder %s125, %s126
    %p135 = scmp.eq.s32.totalorder %s16, 0
    %p136 = por %p134, %p135
    %p137 = scmp.ne.s32.totalorder %s125, %s126
    %p138 = scmp.eq.s32.totalorder %s17, 1
    %p139 = por %p137, %p138
    %p141 = scmp.ne.s32.totalorder %s126, %s140
    %p142 = scmp.eq.s32.totalorder %s17, 0
    %p143 = por %p141, %p142
    %s144 = ssub.s32 %s11, %s18
    %p145 = scmp.eq.s32.totalorder %s144, 0
    %s147 = sadd.s32 %s146, 1
    %s148 = scalar_select %p145, %s146, %s147
    %p151 = pneg %p145
    %p152 = scmp.eq.s32.totalorder %s11, 1
    %p153 = por %p151, %p152
    %p154 = scmp.ne.s32.totalorder %s146, %s149
    %p155 = scmp.eq.s32.totalorder %s11, 0
    %p156 = por %p154, %p155
    %p157 = scmp.ne.s32.totalorder %s146, %s149
    %p158 = scmp.eq.s32.totalorder %s16, 1
    %p159 = por %p157, %p158
    %p160 = scmp.ne.s32.totalorder %s149, %s150
    %p161 = scmp.eq.s32.totalorder %s16, 0
    %p162 = por %p160, %p161
    %p163 = scmp.ne.s32.totalorder %s149, %s150
    %p164 = scmp.eq.s32.totalorder %s17, 1
    %p165 = por %p163, %p164
    %p167 = scmp.ne.s32.totalorder %s150, %s166
    %p168 = scmp.eq.s32.totalorder %s17, 0
    %p169 = por %p167, %p168
    %p170 = scmp.le.s32.totalorder 1, %s11
    %p171 = scmp.lt.s32.totalorder %s11, 3
    %p172 = pnand %p170, %p171
    %p173 = pneg %p172
    // Predicated region
    $region9: #{discriminator_forward.28} parent=5 // pred_check
      _
    $region10: #{discriminator_forward.28} parent=5 // pred_check_branch
      %175 = sbr.rel (%p172) target = $region12
    $region11: #{discriminator_forward.28} parent=5 // pred_region
      %s176 = ssub.s32 %s11, 1
      // Predicated region
      $region13: #{discriminator_forward.28} parent=11 // pred_check
        %p177 = pneg %p136
      $region14: #{discriminator_forward.28} parent=11 // pred_check_branch
        %179 = sbr.rel (%p177) target = $region16
      $region15: #{discriminator_forward.28} parent=11 // pred_region
        _
      $region16: #{discriminator_forward.28} parent=11 // pred_fallthru
        _
    $region12: #{discriminator_forward.28} parent=5 // pred_fallthru
      _
    %p180 = scmp.lt.s32.totalorder %s11, 2
    // Predicated region
    $region17: #{discriminator_forward.28} parent=5 // pred_check
      %p181 = pneg %p180
    $region18: #{discriminator_forward.28} parent=5 // pred_check_branch
      %183 = sbr.rel (%p181) target = $region20
    $region19: #{discriminator_forward.28} parent=5 // pred_region
      // Predicated region
      $region21: #{discriminator_forward.28} parent=19 // pred_check
        %p184 = pneg %p31
      $region22: #{discriminator_forward.28} parent=19 // pred_check_branch
        %186 = sbr.rel (%p184) target = $region24
      $region23: #{discriminator_forward.28} parent=19 // pred_region
        %p187 = scmp.lt.s32.totalorder %s11, 1
        %s188 = scalar_select %p187, %s11, 1
        %s189 = smul.addr %s188, 4
        %s190 = scalar_lea.vmem %s0, %s189
      $region24: #{discriminator_forward.28} parent=19 // pred_fallthru
        _
      // Predicated region
      $region25: #{discriminator_forward.28} parent=19 // pred_check
        %p191 = pneg %p57
      $region26: #{discriminator_forward.28} parent=19 // pred_check_branch
        %193 = sbr.rel (%p191) target = $region28
      $region27: #{discriminator_forward.28} parent=19 // pred_region
        %p194 = scmp.lt.s32.totalorder %s11, 1
        %s195 = scalar_select %p194, %s11, 1
        %s196 = smul.addr %s195, 4
        %s197 = scalar_lea.vmem %s1, %s196
      $region28: #{discriminator_forward.28} parent=19 // pred_fallthru
        _
      // Predicated region
      $region29: #{discriminator_forward.28} parent=19 // pred_check
        %p198 = pneg %p83
      $region30: #{discriminator_forward.28} parent=19 // pred_check_branch
        %200 = sbr.rel (%p198) target = $region32
      $region31: #{discriminator_forward.28} parent=19 // pred_region
        %p201 = scmp.lt.s32.totalorder %s11, 1
        %s202 = scalar_select %p201, %s11, 1
        %s203 = smul.addr %s202, 4
        %s204 = scalar_lea.vmem %s2, %s203
      $region32: #{discriminator_forward.28} parent=19 // pred_fallthru
        _
      // Predicated region
      $region33: #{discriminator_forward.28} parent=19 // pred_check
        %p205 = pneg %p109
      $region34: #{discriminator_forward.28} parent=19 // pred_check_branch
        %207 = sbr.rel (%p205) target = $region36
      $region35: #{discriminator_forward.28} parent=19 // pred_region
        %p208 = scmp.lt.s32.totalorder %s11, 1
        %s209 = scalar_select %p208, %s11, 1
        %s210 = smul.addr %s209, 4
        %s211 = scalar_lea.vmem %s3, %s210
      $region36: #{discriminator_forward.28} parent=19 // pred_fallthru
        _
    $region20: #{discriminator_forward.28} parent=5 // pred_fallthru
      _
    %p212 = scmp.le.s32.totalorder 1, %s11
    %p213 = scmp.lt.s32.totalorder %s11, 3
    %p214 = pnand %p212, %p213
    %p215 = pneg %p214
    // Predicated region
    $region37: #{discriminator_forward.28} parent=5 // pred_check
      _
    $region38: #{discriminator_forward.28} parent=5 // pred_check_branch
      %217 = sbr.rel (%p214) target = $region40
    $region39: #{discriminator_forward.28} parent=5 // pred_region
      %s218 = ssub.s32 %s11, 1
      %p219 = scmp.lt.s32.totalorder %s16, 1
      %s220 = scalar_select %p219, %s16, 1
      %s221 = smul.addr %s220, 4
      %s222 = scalar_lea.vmem %s0, %s221
      %p223 = pneg %p37
      %p224 = pneg %p34
      %p225 = scmp.lt.s32.totalorder %s16, 1
      %s226 = scalar_select %p225, %s16, 1
      %s227 = smul.addr %s226, 4
      %s228 = scalar_lea.vmem %s1, %s227
      %p229 = pneg %p63
      %p230 = pneg %p60
      %p231 = scmp.lt.s32.totalorder %s16, 1
      %s232 = scalar_select %p231, %s16, 1
      %s233 = smul.addr %s232, 4
      %s234 = scalar_lea.vmem %s2, %s233
      %p235 = pneg %p89
      %p236 = pneg %p86
      %p237 = scmp.lt.s32.totalorder %s16, 1
      %s238 = scalar_select %p237, %s16, 1
      %s239 = smul.addr %s238, 4
      %s240 = scalar_lea.vmem %s3, %s239
      %p241 = pneg %p115
      %p242 = pneg %p112
      %p243 = pneg %p136
      %p244 = pneg %p133
      %p245 = pneg %p162
      %p246 = pneg %p159
      %p247 = scmp.lt.s32.totalorder %s16, 1
      %s248 = scalar_select %p247, %s16, 1
      %s249 = smul.addr %s248, 4
      %s250 = scalar_lea.vmem %s5, %s249
      %p251 = scmp.lt.s32.totalorder %s16, 1
      %s252 = scalar_select %p251, %s16, 1
      %s253 = smul.addr %s252, 4
      %s254 = scalar_lea.vmem %s0, %s253
      %p255 = scmp.lt.s32.totalorder %s16, 1
      %s256 = scalar_select %p255, %s16, 1
      %s257 = smul.addr %s256, 4
      %s258 = scalar_lea.vmem %s1, %s257
      %p259 = scmp.lt.s32.totalorder %s16, 1
      %s260 = scalar_select %p259, %s16, 1
      %s261 = smul.addr %s260, 4
      %s262 = scalar_lea.vmem %s2, %s261
      %p263 = scmp.lt.s32.totalorder %s16, 1
      %s264 = scalar_select %p263, %s16, 1
      %s265 = smul.addr %s264, 4
      %s266 = scalar_lea.vmem %s3, %s265
      %p267 = scmp.lt.s32.totalorder %s16, 1
      %s268 = scalar_select %p267, %s16, 1
      %s269 = smul.addr %s268, 4
      %s270 = scalar_lea.vmem %s5, %s269
      %v271 = vld [vmem:[%s254] sm:$0x7]
      %v272 = vadd.f32 %v271, 0.0
      %v273 = vld [vmem:[%s258] sm:$0x7]
      %v274 = vadd.f32 %v272, %v273
      %276 = vrot.lane.b32.xlu0 %v271, 127
      %v277 = vpop.permute.xlu0 %276
      %v279 = vadd.f32 %v274, %v277
      %v280 = vld [vmem:[%s262] sm:$0x7]
      %v281 = vadd.f32 %v279, %v280
      %v282 = vld [vmem:[%s266] sm:$0x7]
      %v283 = vadd.f32 %v281, %v282
      %285 = vrot.lane.b32.xlu0 %v280, 127
      %v286 = vpop.permute.xlu0 %285
      %v288 = vadd.f32 %v283, %v286
      %289 = vrot.lane.b32.xlu0 %v271, 123
      %v290 = vpop.permute.xlu0 %289
      %v292 = vadd.f32 %v288, %v290
      %294 = vrot.lane.b32.xlu0 %v273, 123
      %v295 = vpop.permute.xlu0 %294
      %v297 = vadd.f32 %v292, %v295
      %298 = vrot.lane.b32.xlu0 %v271, 122
      %v299 = vpop.permute.xlu0 %298
      %v301 = vadd.f32 %v297, %v299
      %v302 = vld [vmem:[%s4] sm:$0x1]
      %v304 = vperm.slane %v302, 0
      %v306 = vmul.f32 %v301, %v304
      %vm307 = vcmask 157696
      %308 = vst.msk [vmem:[%s270] sm:$0x7] %vm307, %v306
      %p309 = scmp.lt.s32.totalorder %s16, 1
      %s310 = scalar_select %p309, %s16, 1
      %s311 = smul.addr %s310, 4
      %s312 = scalar_lea.vmem %s5, %s311
      // Predicated region
      $region41: #{discriminator_forward.28} parent=39 // pred_check
        %p313 = pneg %p159
      $region42: #{discriminator_forward.28} parent=39 // pred_check_branch
        %315 = sbr.rel (%p313) target = $region44
      $region43: #{discriminator_forward.28} parent=39 // pred_region
        _
      $region44: #{discriminator_forward.28} parent=39 // pred_fallthru
        _
    $region40: #{discriminator_forward.28} parent=5 // pred_fallthru
      _
    %p316 = scmp.le.s32.totalorder 2, %s11
    // Predicated region
    $region45: #{discriminator_forward.28} parent=5 // pred_check
      %p317 = pneg %p316
    $region46: #{discriminator_forward.28} parent=5 // pred_check_branch
      %319 = sbr.rel (%p317) target = $region48
    $region47: #{discriminator_forward.28} parent=5 // pred_region
      %s320 = ssub.s32 %s11, 2
      // Predicated region
      $region49: #{discriminator_forward.28} parent=47 // pred_check
        %p321 = pneg %p165
      $region50: #{discriminator_forward.28} parent=47 // pred_check_branch
        %323 = sbr.rel (%p321) target = $region52
      $region51: #{discriminator_forward.28} parent=47 // pred_region
        %p324 = scmp.lt.s32.totalorder %s17, 1
        %s325 = scalar_select %p324, %s17, 1
        %s326 = smul.addr %s325, 4
        %s327 = scalar_lea.vmem %s5, %s326
      $region52: #{discriminator_forward.28} parent=47 // pred_fallthru
        _
    $region48: #{discriminator_forward.28} parent=5 // pred_fallthru
      _
  $region6: #{discriminator_forward.28} parent=0 // loop_footer
    %s15 = sadd.s32 1, %s11
  $region7: #{discriminator_forward.28} parent=0 // loop_footer_branch
    %10 = sbr.rel target = $region3
  $region8: #{discriminator_forward.28} parent=0 // loop_exit
    _

// kernel: discriminator_forward.30
$region0: #{discriminator_forward.30}
  #allocation0 [shape = 'u32[]', space=smem, size = 0x4, offset = 0x4, fixed_abs, tag = 'smem constant byte address 0x4 - core index']
  #allocation1 [shape = 'u32[72,128]{1,0:T(1,128)}', space=vmem, size = 0x9000, scoped, tag = 'internal scratch']
  %s0 = inlined_call_operand.vmem [shape: bf16[2,8,5], index: 0, kind: input, shape index: {}]
  %s1 = inlined_call_operand.vmem [shape: bf16[2,8,5], index: 1, kind: input, shape index: {}]
  %s2 = inlined_call_operand.vmem [shape: bf16[2,8,5], index: 2, kind: input, shape index: {}]
  %s3 = inlined_call_operand.vmem [shape: bf16[2,8,5], index: 3, kind: input, shape index: {}]
  %s4 = inlined_call_operand.vmem [shape: bf16[9,16,8], index: 4, kind: input, shape index: {}]
  %s5 = inlined_call_operand.vmem [shape: f32[16,1], index: 5, kind: input, shape index: {}]
  %s6 = inlined_call_operand.vmem [shape: bf16[2,16,2], index: 6, kind: output, shape index: {}]
  %s7 = sld [smem:[#allocation0]]
  $region57: #{discriminator_forward.30} parent=0
    _
  %s9 = ssub.s32 1, %s7
  %s10 = scalar_select 0, %s9, %s7
  loop: start=0, step=1, limit=4
  $region2: #{discriminator_forward.30} parent=0 // loop_pre_header
    _
  $region3: #{discriminator_forward.30} parent=0 // loop_header
    %s12 = sphi 0, %s16
    %p13 = scmp.ge.s32.totalorder %s12, 4
    %s22 = sphi 0, %s24
    %s25 = sphi 0, %s22
    %s26 = sphi 0, %s25
    %s42 = sphi 0, %s26
    %s48 = sphi 0, %s50
    %s51 = sphi 0, %s48
    %s52 = sphi 0, %s51
    %s68 = sphi 0, %s52
    %s74 = sphi 0, %s76
    %s77 = sphi 0, %s74
    %s78 = sphi 0, %s77
    %s94 = sphi 0, %s78
    %s100 = sphi 0, %s102
    %s103 = sphi 0, %s100
    %s104 = sphi 0, %s103
    %s120 = sphi 0, %s104
    %s124 = sphi 0, %s124
    %s126 = sphi 0, %s124
    %s127 = sphi 0, %s126
    %s141 = sphi 0, %s127
    %s145 = sphi 0, %s145
    %s147 = sphi 0, %s145
    %s148 = sphi 0, %s147
    %s162 = sphi 0, %s148
    %s168 = sphi 0, %s170
    %s171 = sphi 0, %s168
    %s172 = sphi 0, %s171
    %s188 = sphi 0, %s172
  $region4: #{discriminator_forward.30} parent=0 // loop_header_branch
    %15 = sbr.rel (%p13) target = $region8
  $region5: #{discriminator_forward.30} parent=0 // loop_body
    %s17 = ssub.s32 %s12, 1
    %s18 = ssub.s32 %s12, 2
    %s19 = sadd.s32 %s12, 1
    %s20 = ssub.s32 %s12, %s19
    %p21 = scmp.eq.s32.totalorder %s20, 0
    %s23 = sadd.s32 %s22, 1
    %s24 = scalar_select %p21, %s22, %s23
    %p27 = pneg %p21
    %p28 = scmp.eq.s32.totalorder %s12, 1
    %p29 = por %p27, %p28
    %p30 = scmp.ne.s32.totalorder %s22, %s25
    %p31 = scmp.eq.s32.totalorder %s12, 0
    %p32 = por %p30, %p31
    %p33 = scmp.ne.s32.totalorder %s22, %s25
    %p34 = scmp.eq.s32.totalorder %s17, 1
    %p35 = por %p33, %p34
    %p36 = scmp.ne.s32.totalorder %s25, %s26
    %p37 = scmp.eq.s32.totalorder %s17, 0
    %p38 = por %p36, %p37
    %p39 = scmp.ne.s32.totalorder %s25, %s26
    %p40 = scmp.eq.s32.totalorder %s18, 1
    %p41 = por %p39, %p40
    %p43 = scmp.ne.s32.totalorder %s26, %s42
    %p44 = scmp.eq.s32.totalorder %s18, 0
    %p45 = por %p43, %p44
    %s46 = ssub.s32 %s12, %s19
    %p47 = scmp.eq.s32.totalorder %s46, 0
    %s49 = sadd.s32 %s48, 1
    %s50 = scalar_select %p47, %s48, %s49
    %p53 = pneg %p47
    %p54 = scmp.eq.s32.totalorder %s12, 1
    %p55 = por %p53, %p54
    %p56 = scmp.ne.s32.totalorder %s48, %s51
    %p57 = scmp.eq.s32.totalorder %s12, 0
    %p58 = por %p56, %p57
    %p59 = scmp.ne.s32.totalorder %s48, %s51
    %p60 = scmp.eq.s32.totalorder %s17, 1
    %p61 = por %p59, %p60
    %p62 = scmp.ne.s32.totalorder %s51, %s52
    %p63 = scmp.eq.s32.totalorder %s17, 0
    %p64 = por %p62, %p63
    %p65 = scmp.ne.s32.totalorder %s51, %s52
    %p66 = scmp.eq.s32.totalorder %s18, 1
    %p67 = por %p65, %p66
    %p69 = scmp.ne.s32.totalorder %s52, %s68
    %p70 = scmp.eq.s32.totalorder %s18, 0
    %p71 = por %p69, %p70
    %s72 = ssub.s32 %s12, %s19
    %p73 = scmp.eq.s32.totalorder %s72, 0
    %s75 = sadd.s32 %s74, 1
    %s76 = scalar_select %p73, %s74, %s75
    %p79 = pneg %p73
    %p80 = scmp.eq.s32.totalorder %s12, 1
    %p81 = por %p79, %p80
    %p82 = scmp.ne.s32.totalorder %s74, %s77
    %p83 = scmp.eq.s32.totalorder %s12, 0
    %p84 = por %p82, %p83
    %p85 = scmp.ne.s32.totalorder %s74, %s77
    %p86 = scmp.eq.s32.totalorder %s17, 1
    %p87 = por %p85, %p86
    %p88 = scmp.ne.s32.totalorder %s77, %s78
    %p89 = scmp.eq.s32.totalorder %s17, 0
    %p90 = por %p88, %p89
    %p91 = scmp.ne.s32.totalorder %s77, %s78
    %p92 = scmp.eq.s32.totalorder %s18, 1
    %p93 = por %p91, %p92
    %p95 = scmp.ne.s32.totalorder %s78, %s94
    %p96 = scmp.eq.s32.totalorder %s18, 0
    %p97 = por %p95, %p96
    %s98 = ssub.s32 %s12, %s19
    %p99 = scmp.eq.s32.totalorder %s98, 0
    %s101 = sadd.s32 %s100, 1
    %s102 = scalar_select %p99, %s100, %s101
    %p105 = pneg %p99
    %p106 = scmp.eq.s32.totalorder %s12, 1
    %p107 = por %p105, %p106
    %p108 = scmp.ne.s32.totalorder %s100, %s103
    %p109 = scmp.eq.s32.totalorder %s12, 0
    %p110 = por %p108, %p109
    %p111 = scmp.ne.s32.totalorder %s100, %s103
    %p112 = scmp.eq.s32.totalorder %s17, 1
    %p113 = por %p111, %p112
    %p114 = scmp.ne.s32.totalorder %s103, %s104
    %p115 = scmp.eq.s32.totalorder %s17, 0
    %p116 = por %p114, %p115
    %p117 = scmp.ne.s32.totalorder %s103, %s104
    %p118 = scmp.eq.s32.totalorder %s18, 1
    %p119 = por %p117, %p118
    %p121 = scmp.ne.s32.totalorder %s104, %s120
    %p122 = scmp.eq.s32.totalorder %s18, 0
    %p123 = por %p121, %p122
    %s125 = sadd.s32 %s124, 1
    %p128 = scmp.eq.s32.totalorder %s12, 1
    %p129 = scmp.ne.s32.totalorder %s124, %s126
    %p130 = scmp.eq.s32.totalorder %s12, 0
    %p131 = por %p129, %p130
    %p132 = scmp.ne.s32.totalorder %s124, %s126
    %p133 = scmp.eq.s32.totalorder %s17, 1
    %p134 = por %p132, %p133
    %p135 = scmp.ne.s32.totalorder %s126, %s127
    %p136 = scmp.eq.s32.totalorder %s17, 0
    %p137 = por %p135, %p136
    %p138 = scmp.ne.s32.totalorder %s126, %s127
    %p139 = scmp.eq.s32.totalorder %s18, 1
    %p140 = por %p138, %p139
    %p142 = scmp.ne.s32.totalorder %s127, %s141
    %p143 = scmp.eq.s32.totalorder %s18, 0
    %p144 = por %p142, %p143
    %s146 = sadd.s32 %s145, 1
    %p149 = scmp.eq.s32.totalorder %s12, 1
    %p150 = scmp.ne.s32.totalorder %s145, %s147
    %p151 = scmp.eq.s32.totalorder %s12, 0
    %p152 = por %p150, %p151
    %p153 = scmp.ne.s32.totalorder %s145, %s147
    %p154 = scmp.eq.s32.totalorder %s17, 1
    %p155 = por %p153, %p154
    %p156 = scmp.ne.s32.totalorder %s147, %s148
    %p157 = scmp.eq.s32.totalorder %s17, 0
    %p158 = por %p156, %p157
    %p159 = scmp.ne.s32.totalorder %s147, %s148
    %p160 = scmp.eq.s32.totalorder %s18, 1
    %p161 = por %p159, %p160
    %p163 = scmp.ne.s32.totalorder %s148, %s162
    %p164 = scmp.eq.s32.totalorder %s18, 0
    %p165 = por %p163, %p164
    %s166 = ssub.s32 %s12, %s19
    %p167 = scmp.eq.s32.totalorder %s166, 0
    %s169 = sadd.s32 %s168, 1
    %s170 = scalar_select %p167, %s168, %s169
    %p173 = pneg %p167
    %p174 = scmp.eq.s32.totalorder %s12, 1
    %p175 = por %p173, %p174
    %p176 = scmp.ne.s32.totalorder %s168, %s171
    %p177 = scmp.eq.s32.totalorder %s12, 0
    %p178 = por %p176, %p177
    %p179 = scmp.ne.s32.totalorder %s168, %s171
    %p180 = scmp.eq.s32.totalorder %s17, 1
    %p181 = por %p179, %p180
    %p182 = scmp.ne.s32.totalorder %s171, %s172
    %p183 = scmp.eq.s32.totalorder %s17, 0
    %p184 = por %p182, %p183
    %p185 = scmp.ne.s32.totalorder %s171, %s172
    %p186 = scmp.eq.s32.totalorder %s18, 1
    %p187 = por %p185, %p186
    %p189 = scmp.ne.s32.totalorder %s172, %s188
    %p190 = scmp.eq.s32.totalorder %s18, 0
    %p191 = por %p189, %p190
    %p192 = scmp.le.s32.totalorder 1, %s12
    %p193 = scmp.lt.s32.totalorder %s12, 3
    %p194 = pnand %p192, %p193
    %p195 = pneg %p194
    // Predicated region
    $region9: #{discriminator_forward.30} parent=5 // pred_check
      _
    $region10: #{discriminator_forward.30} parent=5 // pred_check_branch
      %197 = sbr.rel (%p194) target = $region12
    $region11: #{discriminator_forward.30} parent=5 // pred_region
      %s198 = ssub.s32 %s12, 1
      // Predicated region
      $region13: #{discriminator_forward.30} parent=11 // pred_check
        %p199 = pneg %p137
      $region14: #{discriminator_forward.30} parent=11 // pred_check_branch
        %201 = sbr.rel (%p199) target = $region16
      $region15: #{discriminator_forward.30} parent=11 // pred_region
        _
      $region16: #{discriminator_forward.30} parent=11 // pred_fallthru
        _
      // Predicated region
      $region17: #{discriminator_forward.30} parent=11 // pred_check
        %p202 = pneg %p158
      $region18: #{discriminator_forward.30} parent=11 // pred_check_branch
        %204 = sbr.rel (%p202) target = $region20
      $region19: #{discriminator_forward.30} parent=11 // pred_region
        _
      $region20: #{discriminator_forward.30} parent=11 // pred_fallthru
        _
    $region12: #{discriminator_forward.30} parent=5 // pred_fallthru
      _
    %p205 = scmp.lt.s32.totalorder %s12, 2
    // Predicated region
    $region21: #{discriminator_forward.30} parent=5 // pred_check
      %p206 = pneg %p205
    $region22: #{discriminator_forward.30} parent=5 // pred_check_branch
      %208 = sbr.rel (%p206) target = $region24
    $region23: #{discriminator_forward.30} parent=5 // pred_region
      // Predicated region
      $region25: #{discriminator_forward.30} parent=23 // pred_check
        %p209 = pneg %p32
      $region26: #{discriminator_forward.30} parent=23 // pred_check_branch
        %211 = sbr.rel (%p209) target = $region28
      $region27: #{discriminator_forward.30} parent=23 // pred_region
        %p212 = scmp.lt.s32.totalorder %s12, 1
        %s213 = scalar_select %p212, %s12, 1
        %s214 = smul.addr %s213, 4
        %s215 = scalar_lea.vmem %s0, %s214
      $region28: #{discriminator_forward.30} parent=23 // pred_fallthru
        _
      // Predicated region
      $region29: #{discriminator_forward.30} parent=23 // pred_check
        %p216 = pneg %p58
      $region30: #{discriminator_forward.30} parent=23 // pred_check_branch
        %218 = sbr.rel (%p216) target = $region32
      $region31: #{discriminator_forward.30} parent=23 // pred_region
        %p219 = scmp.lt.s32.totalorder %s12, 1
        %s220 = scalar_select %p219, %s12, 1
        %s221 = smul.addr %s220, 4
        %s222 = scalar_lea.vmem %s1, %s221
      $region32: #{discriminator_forward.30} parent=23 // pred_fallthru
        _
      // Predicated region
      $region33: #{discriminator_forward.30} parent=23 // pred_check
        %p223 = pneg %p84
      $region34: #{discriminator_forward.30} parent=23 // pred_check_branch
        %225 = sbr.rel (%p223) target = $region36
      $region35: #{discriminator_forward.30} parent=23 // pred_region
        %p226 = scmp.lt.s32.totalorder %s12, 1
        %s227 = scalar_select %p226, %s12, 1
        %s228 = smul.addr %s227, 4
        %s229 = scalar_lea.vmem %s2, %s228
      $region36: #{discriminator_forward.30} parent=23 // pred_fallthru
        _
      // Predicated region
      $region37: #{discriminator_forward.30} parent=23 // pred_check
        %p230 = pneg %p110
      $region38: #{discriminator_forward.30} parent=23 // pred_check_branch
        %232 = sbr.rel (%p230) target = $region40
      $region39: #{discriminator_forward.30} parent=23 // pred_region
        %p233 = scmp.lt.s32.totalorder %s12, 1
        %s234 = scalar_select %p233, %s12, 1
        %s235 = smul.addr %s234, 4
        %s236 = scalar_lea.vmem %s3, %s235
      $region40: #{discriminator_forward.30} parent=23 // pred_fallthru
        _
    $region24: #{discriminator_forward.30} parent=5 // pred_fallthru
      _
    %p237 = scmp.le.s32.totalorder 1, %s12
    %p238 = scmp.lt.s32.totalorder %s12, 3
    %p239 = pnand %p237, %p238
    %p240 = pneg %p239
    // Predicated region
    $region41: #{discriminator_forward.30} parent=5 // pred_check
      _
    $region42: #{discriminator_forward.30} parent=5 // pred_check_branch
      %242 = sbr.rel (%p239) target = $region44
    $region43: #{discriminator_forward.30} parent=5 // pred_region
      %s243 = ssub.s32 %s12, 1
      %p244 = scmp.lt.s32.totalorder %s17, 1
      %s245 = scalar_select %p244, %s17, 1
      %s246 = smul.addr %s245, 4
      %s247 = scalar_lea.vmem %s0, %s246
      %p248 = pneg %p38
      %p249 = pneg %p35
      %p250 = scmp.lt.s32.totalorder %s17, 1
      %s251 = scalar_select %p250, %s17, 1
      %s252 = smul.addr %s251, 4
      %s253 = scalar_lea.vmem %s1, %s252
      %p254 = pneg %p64
      %p255 = pneg %p61
      %p256 = scmp.lt.s32.totalorder %s17, 1
      %s257 = scalar_select %p256, %s17, 1
      %s258 = smul.addr %s257, 4
      %s259 = scalar_lea.vmem %s2, %s258
      %p260 = pneg %p90
      %p261 = pneg %p87
      %p262 = scmp.lt.s32.totalorder %s17, 1
      %s263 = scalar_select %p262, %s17, 1
      %s264 = smul.addr %s263, 4
      %s265 = scalar_lea.vmem %s3, %s264
      %p266 = pneg %p116
      %p267 = pneg %p113
      %p268 = pneg %p137
      %p269 = pneg %p134
      %p270 = pneg %p158
      %p271 = pneg %p155
      %p272 = pneg %p184
      %p273 = pneg %p181
      %p274 = scmp.lt.s32.totalorder %s17, 1
      %s275 = scalar_select %p274, %s17, 1
      %s276 = smul.addr %s275, 2
      %s277 = smul.addr %s276, 4
      %s278 = scalar_lea.vmem %s6, %s277
      %p279 = scmp.lt.s32.totalorder %s17, 1
      %s280 = scalar_select %p279, %s17, 1
      %s281 = smul.addr %s280, 4
      %s282 = scalar_lea.vmem %s0, %s281
      %p283 = scmp.lt.s32.totalorder %s17, 1
      %s284 = scalar_select %p283, %s17, 1
      %s285 = smul.addr %s284, 4
      %s286 = scalar_lea.vmem %s1, %s285
      %p287 = scmp.lt.s32.totalorder %s17, 1
      %s288 = scalar_select %p287, %s17, 1
      %s289 = smul.addr %s288, 4
      %s290 = scalar_lea.vmem %s2, %s289
      %p291 = scmp.lt.s32.totalorder %s17, 1
      %s292 = scalar_select %p291, %s17, 1
      %s293 = smul.addr %s292, 4
      %s294 = scalar_lea.vmem %s3, %s293
      %p295 = scmp.lt.s32.totalorder %s17, 1
      %s296 = scalar_select %p295, %s17, 1
      %s297 = smul.addr %s296, 2
      %s298 = smul.addr %s297, 4
      %s299 = scalar_lea.vmem %s6, %s298
      %v301 = vld [vmem:[%s282] sm:$0xf]
      %v302 = vld [vmem:[%s4] sm:$0xf]
      %v303 = vld [vmem:[%s4 + $0x4] sm:$0xf]
      %v304 = vld [vmem:[%s286] sm:$0xf]
      %s305 = scalar_lea.vmem %s4, 8
      %v306 = vld [vmem:[%s305] sm:$0xf]
      %v307 = vld [vmem:[%s305 + $0x4] sm:$0xf]
      %v310 = vunpack.c.l.b16 %v306
      %v311 = vunpack.c.l.b16 %v307
      %v312 = vpack.c.b16 %v311, %v310
      %vm313 = vcmask 64512
      %v315 = vsel %vm313, %v312, 0
      %vm317 = vcmask 1043456
      %v319 = vsel %vm317, %v304, 0
      %321 = vmatpush.bf16.msra.mxu0 0
      %322 = vmatpush.bf16.msra.mxu0 0
      %323 = vmatpush.bf16.msra.mxu0 0
      %324 = vmatpush.bf16.msra.mxu0 0
      %325 = vmatpush.bf16.msra.mxu0 0
      %326 = vmatpush.bf16.msra.mxu0 0
      %327 = vmatpush.bf16.msra.mxu0 0
      %328 = vmatpush.bf16.msra.mxu0 %v319
      %329 = vmatmul.bf16.gmra.mxu0 %v315
      %v330 = vpop.f32.mrf.mxu0
      %v331 = vadd.f32 0.0, %v330
      %v332 = vpop.f32.mrf.mxu0
      %v333 = vadd.f32 0.0, %v332
      %334 = vdwg.mxu0
      %v337 = vunpack.c.l.b16 %v302
      %v338 = vunpack.c.l.b16 %v303
      %v339 = vpack.c.b16 %v338, %v337
      %v341 = vsel %vm313, %v339, 0
      %v344 = vsel %vm317, %v301, 0
      %346 = vmatpush.bf16.msra.mxu0 0
      %347 = vmatpush.bf16.msra.mxu0 0
      %348 = vmatpush.bf16.msra.mxu0 0
      %349 = vmatpush.bf16.msra.mxu0 0
      %350 = vmatpush.bf16.msra.mxu0 0
      %351 = vmatpush.bf16.msra.mxu0 0
      %352 = vmatpush.bf16.msra.mxu0 0
      %353 = vmatpush.bf16.msra.mxu0 %v344
      %354 = vmatmul.bf16.gmra.mxu0 %v341
      %v355 = vpop.f32.mrf.mxu0
      %v356 = vadd.f32 %v331, %v355
      %v357 = vpop.f32.mrf.mxu0
      %v358 = vadd.f32 %v333, %v357
      %359 = vdwg.mxu0
      %s360 = scalar_lea.vmem %s4, 16
      %v361 = vld [vmem:[%s360] sm:$0xf]
      %v362 = vld [vmem:[%s360 + $0x4] sm:$0xf]
      %v365 = vunpack.c.l.b16 %v361
      %v366 = vunpack.c.l.b16 %v362
      %v367 = vpack.c.b16 %v366, %v365
      %v369 = vunpack.c.l.b16 %v301
      %v370 = vpack.c.b16 %v369, %v369
      %371 = vrot.lane.b32.xlu0 %v370, 127
      %v372 = vpop.permute.xlu0 %371
      %v374 = vsel %vm313, %v367, 0
      %v377 = vsel %vm317, %v372, 0
      %379 = vmatpush.bf16.msra.mxu0 0
      %380 = vmatpush.bf16.msra.mxu0 0
      %381 = vmatpush.bf16.msra.mxu0 0
      %382 = vmatpush.bf16.msra.mxu0 0
      %383 = vmatpush.bf16.msra.mxu0 0
      %384 = vmatpush.bf16.msra.mxu0 0
      %385 = vmatpush.bf16.msra.mxu0 0
      %386 = vmatpush.bf16.msra.mxu0 %v377
      %387 = vmatmul.bf16.gmra.mxu0 %v374
      %v388 = vpop.f32.mrf.mxu0
      %v389 = vadd.f32 0.0, %v388
      %v390 = vpop.f32.mrf.mxu0
      %v391 = vadd.f32 0.0, %v390
      %392 = vdwg.mxu0
      %v393 = vadd.f32 %v356, %v389
      %v394 = vadd.f32 %v358, %v391
      %v395 = vld [vmem:[%s290] sm:$0xf]
      %s396 = scalar_lea.vmem %s4, 24
      %v397 = vld [vmem:[%s396] sm:$0xf]
      %v398 = vld [vmem:[%s396 + $0x4] sm:$0xf]
      %v401 = vunpack.c.l.b16 %v397
      %v402 = vunpack.c.l.b16 %v398
      %v403 = vpack.c.b16 %v402, %v401
      %v405 = vsel %vm313, %v403, 0
      %v408 = vsel %vm317, %v395, 0
      %410 = vmatpush.bf16.msra.mxu0 0
      %411 = vmatpush.bf16.msra.mxu0 0
      %412 = vmatpush.bf16.msra.mxu0 0
      %413 = vmatpush.bf16.msra.mxu0 0
      %414 = vmatpush.bf16.msra.mxu0 0
      %415 = vmatpush.bf16.msra.mxu0 0
      %416 = vmatpush.bf16.msra.mxu0 0
      %417 = vmatpush.bf16.msra.mxu0 %v408
      %418 = vmatmul.bf16.gmra.mxu0 %v405
      %v419 = vpop.f32.mrf.mxu0
      %v420 = vadd.f32 0.0, %v419
      %v421 = vpop.f32.mrf.mxu0
      %v422 = vadd.f32 0.0, %v421
      %423 = vdwg.mxu0
      %v424 = vadd.f32 %v393, %v420
      %v425 = vadd.f32 %v394, %v422
      %v426 = vld [vmem:[%s294] sm:$0xf]
      %s427 = scalar_lea.vmem %s4, 32
      %v428 = vld [vmem:[%s427] sm:$0xf]
      %v429 = vld [vmem:[%s427 + $0x4] sm:$0xf]
      %v432 = vunpack.c.l.b16 %v428
      %v433 = vunpack.c.l.b16 %v429
      %v434 = vpack.c.b16 %v433, %v432
      %v436 = vsel %vm313, %v434, 0
      %v439 = vsel %vm317, %v426, 0
      %441 = vmatpush.bf16.msra.mxu0 0
      %442 = vmatpush.bf16.msra.mxu0 0
      %443 = vmatpush.bf16.msra.mxu0 0
      %444 = vmatpush.bf16.msra.mxu0 0
      %445 = vmatpush.bf16.msra.mxu0 0
      %446 = vmatpush.bf16.msra.mxu0 0
      %447 = vmatpush.bf16.msra.mxu0 0
      %448 = vmatpush.bf16.msra.mxu0 %v439
      %449 = vmatmul.bf16.gmra.mxu0 %v436
      %v450 = vpop.f32.mrf.mxu0
      %v451 = vadd.f32 0.0, %v450
      %v452 = vpop.f32.mrf.mxu0
      %v453 = vadd.f32 0.0, %v452
      %454 = vdwg.mxu0
      %v455 = vadd.f32 %v424, %v451
      %v456 = vadd.f32 %v425, %v453
      %s457 = scalar_lea.vmem %s4, 40
      %v458 = vld [vmem:[%s457] sm:$0xf]
      %v459 = vld [vmem:[%s457 + $0x4] sm:$0xf]
      %v462 = vunpack.c.l.b16 %v458
      %v463 = vunpack.c.l.b16 %v459
      %v464 = vpack.c.b16 %v463, %v462
      %v466 = vunpack.c.l.b16 %v395
      %v467 = vpack.c.b16 %v466, %v466
      %468 = vrot.lane.b32.xlu0 %v467, 127
      %v469 = vpop.permute.xlu0 %468
      %v471 = vsel %vm313, %v464, 0
      %v474 = vsel %vm317, %v469, 0
      %476 = vmatpush.bf16.msra.mxu0 0
      %477 = vmatpush.bf16.msra.mxu0 0
      %478 = vmatpush.bf16.msra.mxu0 0
      %479 = vmatpush.bf16.msra.mxu0 0
      %480 = vmatpush.bf16.msra.mxu0 0
      %481 = vmatpush.bf16.msra.mxu0 0
      %482 = vmatpush.bf16.msra.mxu0 0
      %483 = vmatpush.bf16.msra.mxu0 %v474
      %484 = vmatmul.bf16.gmra.mxu0 %v471
      %v485 = vpop.f32.mrf.mxu0
      %v486 = vadd.f32 0.0, %v485
      %v487 = vpop.f32.mrf.mxu0
      %v488 = vadd.f32 0.0, %v487
      %489 = vdwg.mxu0
      %v490 = vadd.f32 %v455, %v486
      %v491 = vadd.f32 %v456, %v488
      %s492 = scalar_lea.vmem %s4, 48
      %v493 = vld [vmem:[%s492] sm:$0xf]
      %v494 = vld [vmem:[%s492 + $0x4] sm:$0xf]
      %v497 = vunpack.c.l.b16 %v493
      %v498 = vunpack.c.l.b16 %v494
      %v499 = vpack.c.b16 %v498, %v497
      %500 = vrot.lane.b32.xlu0 %v370, 126
      %v501 = vpop.permute.xlu0 %500
      %v503 = vsel %vm313, %v499, 0
      %v506 = vsel %vm317, %v501, 0
      %508 = vmatpush.bf16.msra.mxu0 0
      %509 = vmatpush.bf16.msra.mxu0 0
      %510 = vmatpush.bf16.msra.mxu0 0
      %511 = vmatpush.bf16.msra.mxu0 0
      %512 = vmatpush.bf16.msra.mxu0 0
      %513 = vmatpush.bf16.msra.mxu0 0
      %514 = vmatpush.bf16.msra.mxu0 0
      %515 = vmatpush.bf16.msra.mxu0 %v506
      %516 = vmatmul.bf16.gmra.mxu0 %v503
      %v517 = vpop.f32.mrf.mxu0
      %v518 = vadd.f32 0.0, %v517
      %v519 = vpop.f32.mrf.mxu0
      %v520 = vadd.f32 0.0, %v519
      %521 = vdwg.mxu0
      %v522 = vadd.f32 %v490, %v518
      %v523 = vadd.f32 %v491, %v520
      %s524 = scalar_lea.vmem %s4, 56
      %v525 = vld [vmem:[%s524] sm:$0xf]
      %v526 = vld [vmem:[%s524 + $0x4] sm:$0xf]
      %v529 = vunpack.c.l.b16 %v525
      %v530 = vunpack.c.l.b16 %v526
      %v531 = vpack.c.b16 %v530, %v529
      %v533 = vunpack.c.l.b16 %v304
      %v534 = vpack.c.b16 %v533, %v533
      %535 = vrot.lane.b32.xlu0 %v534, 126
      %v536 = vpop.permute.xlu0 %535
      %v538 = vsel %vm313, %v531, 0
      %v541 = vsel %vm317, %v536, 0
      %543 = vmatpush.bf16.msra.mxu0 0
      %544 = vmatpush.bf16.msra.mxu0 0
      %545 = vmatpush.bf16.msra.mxu0 0
      %546 = vmatpush.bf16.msra.mxu0 0
      %547 = vmatpush.bf16.msra.mxu0 0
      %548 = vmatpush.bf16.msra.mxu0 0
      %549 = vmatpush.bf16.msra.mxu0 0
      %550 = vmatpush.bf16.msra.mxu0 %v541
      %551 = vmatmul.bf16.gmra.mxu0 %v538
      %v552 = vpop.f32.mrf.mxu0
      %v553 = vadd.f32 0.0, %v552
      %v554 = vpop.f32.mrf.mxu0
      %v555 = vadd.f32 0.0, %v554
      %556 = vdwg.mxu0
      %v557 = vadd.f32 %v522, %v553
      %v558 = vadd.f32 %v523, %v555
      %s559 = scalar_lea.vmem %s4, 64
      %v560 = vld [vmem:[%s559] sm:$0xf]
      %v561 = vld [vmem:[%s559 + $0x4] sm:$0xf]
      %v564 = vunpack.c.l.b16 %v560
      %v565 = vunpack.c.l.b16 %v561
      %v566 = vpack.c.b16 %v565, %v564
      %567 = vrot.lane.b32.xlu0 %v370, 125
      %v568 = vpop.permute.xlu0 %567
      %v570 = vsel %vm313, %v566, 0
      %v573 = vsel %vm317, %v568, 0
      %575 = vmatpush.bf16.msra.mxu0 0
      %576 = vmatpush.bf16.msra.mxu0 0
      %577 = vmatpush.bf16.msra.mxu0 0
      %578 = vmatpush.bf16.msra.mxu0 0
      %579 = vmatpush.bf16.msra.mxu0 0
      %580 = vmatpush.bf16.msra.mxu0 0
      %581 = vmatpush.bf16.msra.mxu0 0
      %582 = vmatpush.bf16.msra.mxu0 %v573
      %583 = vmatmul.bf16.gmra.mxu0 %v570
      %v584 = vpop.f32.mrf.mxu0
      %v585 = vadd.f32 0.0, %v584
      %v586 = vpop.f32.mrf.mxu0
      %v587 = vadd.f32 0.0, %v586
      %588 = vdwg.mxu0
      %v589 = vadd.f32 %v557, %v585
      %v590 = vadd.f32 %v558, %v587
      %v591 = vld [vmem:[%s5] sm:$0xff]
      %v592 = vld [vmem:[%s5 + $0x8] sm:$0xff]
      %594 = vset.pattern.permute.xlu0 0
      %595 = vperm.xlu0 %594, %v591
      %v596 = vpop.permute.xlu0 %595
      %599 = vset.pattern.permute.xlu0 0
      %600 = vperm.xlu0 %599, %v592
      %v601 = vpop.permute.xlu0 %600
      %v603 = vadd.f32 %v589, %v596
      %v604 = vadd.f32 %v590, %v601
      %vm605 = vcmp.ge.f32.partialorder %v603, 0.0
      %vm606 = vcmp.ge.f32.partialorder %v604, 0.0
      %v607 = vmul.f32 %v603, 0.2
      %v608 = vmul.f32 %v604, 0.2
      %v609 = vsel %vm605, %v603, %v607
      %v610 = vsel %vm606, %v604, %v608
      %v611 = vpack.c.bf16 %v609, %v609
      %v612 = vpack.c.bf16 %v610, %v610
      %vm613 = vcmask 11264
      %614 = vst.msk [vmem:[%s299] sm:$0xf] %vm613, %v611
      %615 = vst.msk [vmem:[%s299 + $0x4] sm:$0xf] %vm613, %v612
      %p616 = scmp.lt.s32.totalorder %s17, 1
      %s617 = scalar_select %p616, %s17, 1
      %s618 = smul.addr %s617, 2
      %s619 = smul.addr %s618, 4
      %s620 = scalar_lea.vmem %s6, %s619
      // Predicated region
      $region45: #{discriminator_forward.30} parent=43 // pred_check
        %p621 = pneg %p181
      $region46: #{discriminator_forward.30} parent=43 // pred_check_branch
        %623 = sbr.rel (%p621) target = $region48
      $region47: #{discriminator_forward.30} parent=43 // pred_region
        _
      $region48: #{discriminator_forward.30} parent=43 // pred_fallthru
        _
    $region44: #{discriminator_forward.30} parent=5 // pred_fallthru
      _
    %p624 = scmp.le.s32.totalorder 2, %s12
    // Predicated region
    $region49: #{discriminator_forward.30} parent=5 // pred_check
      %p625 = pneg %p624
    $region50: #{discriminator_forward.30} parent=5 // pred_check_branch
      %627 = sbr.rel (%p625) target = $region52
    $region51: #{discriminator_forward.30} parent=5 // pred_region
      %s628 = ssub.s32 %s12, 2
      // Predicated region
      $region53: #{discriminator_forward.30} parent=51 // pred_check
        %p629 = pneg %p187
      $region54: #{discriminator_forward.30} parent=51 // pred_check_branch
        %631 = sbr.rel (%p629) target = $region56
      $region55: #{discriminator_forward.30} parent=51 // pred_region
        %p632 = scmp.lt.s32.totalorder %s18, 1
        %s633 = scalar_select %p632, %s18, 1
        %s634 = smul.addr %s633, 2
        %s635 = smul.addr %s634, 4
        %s636 = scalar_lea.vmem %s6, %s635
      $region56: #{discriminator_forward.30} parent=51 // pred_fallthru
        _
    $region52: #{discriminator_forward.30} parent=5 // pred_fallthru
      _
  $region6: #{discriminator_forward.30} parent=0 // loop_footer
    %s16 = sadd.s32 1, %s12
  $region7: #{discriminator_forward.30} parent=0 // loop_footer_branch
    %11 = sbr.rel target = $region3
  $region8: #{discriminator_forward.30} parent=0 // loop_exit
    _

// kernel: discriminator_forward.29
$region0: #{discriminator_forward.29}
  #allocation0 [shape = 'u32[]', space=smem, size = 0x4, offset = 0x4, fixed_abs, tag = 'smem constant byte address 0x4 - core index']
  #allocation1 [shape = 'u32[72,128]{1,0:T(1,128)}', space=vmem, size = 0x9000, scoped, tag = 'internal scratch']
  %s0 = inlined_call_operand.vmem [shape: bf16[2,3,10], index: 0, kind: input, shape index: {}]
  %s1 = inlined_call_operand.vmem [shape: bf16[2,3,10], index: 1, kind: input, shape index: {}]
  %s2 = inlined_call_operand.vmem [shape: bf16[2,3,10], index: 2, kind: input, shape index: {}]
  %s3 = inlined_call_operand.vmem [shape: bf16[2,3,10], index: 3, kind: input, shape index: {}]
  %s4 = inlined_call_operand.vmem [shape: bf16[9,8,3], index: 4, kind: input, shape index: {}]
  %s5 = inlined_call_operand.vmem [shape: f32[8,1], index: 5, kind: input, shape index: {}]
  %s6 = inlined_call_operand.vmem [shape: bf16[2,8,6], index: 6, kind: output, shape index: {}]
  %s7 = sld [smem:[#allocation0]]
  $region57: #{discriminator_forward.29} parent=0
    _
  %s9 = ssub.s32 1, %s7
  %s10 = scalar_select 0, %s9, %s7
  loop: start=0, step=1, limit=4
  $region2: #{discriminator_forward.29} parent=0 // loop_pre_header
    _
  $region3: #{discriminator_forward.29} parent=0 // loop_header
    %s12 = sphi 0, %s16
    %p13 = scmp.ge.s32.totalorder %s12, 4
    %s22 = sphi 0, %s24
    %s25 = sphi 0, %s22
    %s26 = sphi 0, %s25
    %s42 = sphi 0, %s26
    %s48 = sphi 0, %s50
    %s51 = sphi 0, %s48
    %s52 = sphi 0, %s51
    %s68 = sphi 0, %s52
    %s74 = sphi 0, %s76
    %s77 = sphi 0, %s74
    %s78 = sphi 0, %s77
    %s94 = sphi 0, %s78
    %s100 = sphi 0, %s102
    %s103 = sphi 0, %s100
    %s104 = sphi 0, %s103
    %s120 = sphi 0, %s104
    %s124 = sphi 0, %s124
    %s126 = sphi 0, %s124
    %s127 = sphi 0, %s126
    %s141 = sphi 0, %s127
    %s145 = sphi 0, %s145
    %s147 = sphi 0, %s145
    %s148 = sphi 0, %s147
    %s162 = sphi 0, %s148
    %s168 = sphi 0, %s170
    %s171 = sphi 0, %s168
    %s172 = sphi 0, %s171
    %s188 = sphi 0, %s172
  $region4: #{discriminator_forward.29} parent=0 // loop_header_branch
    %15 = sbr.rel (%p13) target = $region8
  $region5: #{discriminator_forward.29} parent=0 // loop_body
    %s17 = ssub.s32 %s12, 1
    %s18 = ssub.s32 %s12, 2
    %s19 = sadd.s32 %s12, 1
    %s20 = ssub.s32 %s12, %s19
    %p21 = scmp.eq.s32.totalorder %s20, 0
    %s23 = sadd.s32 %s22, 1
    %s24 = scalar_select %p21, %s22, %s23
    %p27 = pneg %p21
    %p28 = scmp.eq.s32.totalorder %s12, 1
    %p29 = por %p27, %p28
    %p30 = scmp.ne.s32.totalorder %s22, %s25
    %p31 = scmp.eq.s32.totalorder %s12, 0
    %p32 = por %p30, %p31
    %p33 = scmp.ne.s32.totalorder %s22, %s25
    %p34 = scmp.eq.s32.totalorder %s17, 1
    %p35 = por %p33, %p34
    %p36 = scmp.ne.s32.totalorder %s25, %s26
    %p37 = scmp.eq.s32.totalorder %s17, 0
    %p38 = por %p36, %p37
    %p39 = scmp.ne.s32.totalorder %s25, %s26
    %p40 = scmp.eq.s32.totalorder %s18, 1
    %p41 = por %p39, %p40
    %p43 = scmp.ne.s32.totalorder %s26, %s42
    %p44 = scmp.eq.s32.totalorder %s18, 0
    %p45 = por %p43, %p44
    %s46 = ssub.s32 %s12, %s19
    %p47 = scmp.eq.s32.totalorder %s46, 0
    %s49 = sadd.s32 %s48, 1
    %s50 = scalar_select %p47, %s48, %s49
    %p53 = pneg %p47
    %p54 = scmp.eq.s32.totalorder %s12, 1
    %p55 = por %p53, %p54
    %p56 = scmp.ne.s32.totalorder %s48, %s51
    %p57 = scmp.eq.s32.totalorder %s12, 0
    %p58 = por %p56, %p57
    %p59 = scmp.ne.s32.totalorder %s48, %s51
    %p60 = scmp.eq.s32.totalorder %s17, 1
    %p61 = por %p59, %p60
    %p62 = scmp.ne.s32.totalorder %s51, %s52
    %p63 = scmp.eq.s32.totalorder %s17, 0
    %p64 = por %p62, %p63
    %p65 = scmp.ne.s32.totalorder %s51, %s52
    %p66 = scmp.eq.s32.totalorder %s18, 1
    %p67 = por %p65, %p66
    %p69 = scmp.ne.s32.totalorder %s52, %s68
    %p70 = scmp.eq.s32.totalorder %s18, 0
    %p71 = por %p69, %p70
    %s72 = ssub.s32 %s12, %s19
    %p73 = scmp.eq.s32.totalorder %s72, 0
    %s75 = sadd.s32 %s74, 1
    %s76 = scalar_select %p73, %s74, %s75
    %p79 = pneg %p73
    %p80 = scmp.eq.s32.totalorder %s12, 1
    %p81 = por %p79, %p80
    %p82 = scmp.ne.s32.totalorder %s74, %s77
    %p83 = scmp.eq.s32.totalorder %s12, 0
    %p84 = por %p82, %p83
    %p85 = scmp.ne.s32.totalorder %s74, %s77
    %p86 = scmp.eq.s32.totalorder %s17, 1
    %p87 = por %p85, %p86
    %p88 = scmp.ne.s32.totalorder %s77, %s78
    %p89 = scmp.eq.s32.totalorder %s17, 0
    %p90 = por %p88, %p89
    %p91 = scmp.ne.s32.totalorder %s77, %s78
    %p92 = scmp.eq.s32.totalorder %s18, 1
    %p93 = por %p91, %p92
    %p95 = scmp.ne.s32.totalorder %s78, %s94
    %p96 = scmp.eq.s32.totalorder %s18, 0
    %p97 = por %p95, %p96
    %s98 = ssub.s32 %s12, %s19
    %p99 = scmp.eq.s32.totalorder %s98, 0
    %s101 = sadd.s32 %s100, 1
    %s102 = scalar_select %p99, %s100, %s101
    %p105 = pneg %p99
    %p106 = scmp.eq.s32.totalorder %s12, 1
    %p107 = por %p105, %p106
    %p108 = scmp.ne.s32.totalorder %s100, %s103
    %p109 = scmp.eq.s32.totalorder %s12, 0
    %p110 = por %p108, %p109
    %p111 = scmp.ne.s32.totalorder %s100, %s103
    %p112 = scmp.eq.s32.totalorder %s17, 1
    %p113 = por %p111, %p112
    %p114 = scmp.ne.s32.totalorder %s103, %s104
    %p115 = scmp.eq.s32.totalorder %s17, 0
    %p116 = por %p114, %p115
    %p117 = scmp.ne.s32.totalorder %s103, %s104
    %p118 = scmp.eq.s32.totalorder %s18, 1
    %p119 = por %p117, %p118
    %p121 = scmp.ne.s32.totalorder %s104, %s120
    %p122 = scmp.eq.s32.totalorder %s18, 0
    %p123 = por %p121, %p122
    %s125 = sadd.s32 %s124, 1
    %p128 = scmp.eq.s32.totalorder %s12, 1
    %p129 = scmp.ne.s32.totalorder %s124, %s126
    %p130 = scmp.eq.s32.totalorder %s12, 0
    %p131 = por %p129, %p130
    %p132 = scmp.ne.s32.totalorder %s124, %s126
    %p133 = scmp.eq.s32.totalorder %s17, 1
    %p134 = por %p132, %p133
    %p135 = scmp.ne.s32.totalorder %s126, %s127
    %p136 = scmp.eq.s32.totalorder %s17, 0
    %p137 = por %p135, %p136
    %p138 = scmp.ne.s32.totalorder %s126, %s127
    %p139 = scmp.eq.s32.totalorder %s18, 1
    %p140 = por %p138, %p139
    %p142 = scmp.ne.s32.totalorder %s127, %s141
    %p143 = scmp.eq.s32.totalorder %s18, 0
    %p144 = por %p142, %p143
    %s146 = sadd.s32 %s145, 1
    %p149 = scmp.eq.s32.totalorder %s12, 1
    %p150 = scmp.ne.s32.totalorder %s145, %s147
    %p151 = scmp.eq.s32.totalorder %s12, 0
    %p152 = por %p150, %p151
    %p153 = scmp.ne.s32.totalorder %s145, %s147
    %p154 = scmp.eq.s32.totalorder %s17, 1
    %p155 = por %p153, %p154
    %p156 = scmp.ne.s32.totalorder %s147, %s148
    %p157 = scmp.eq.s32.totalorder %s17, 0
    %p158 = por %p156, %p157
    %p159 = scmp.ne.s32.totalorder %s147, %s148
    %p160 = scmp.eq.s32.totalorder %s18, 1
    %p161 = por %p159, %p160
    %p163 = scmp.ne.s32.totalorder %s148, %s162
    %p164 = scmp.eq.s32.totalorder %s18, 0
    %p165 = por %p163, %p164
    %s166 = ssub.s32 %s12, %s19
    %p167 = scmp.eq.s32.totalorder %s166, 0
    %s169 = sadd.s32 %s168, 1
    %s170 = scalar_select %p167, %s168, %s169
    %p173 = pneg %p167
    %p174 = scmp.eq.s32.totalorder %s12, 1
    %p175 = por %p173, %p174
    %p176 = scmp.ne.s32.totalorder %s168, %s171
    %p177 = scmp.eq.s32.totalorder %s12, 0
    %p178 = por %p176, %p177
    %p179 = scmp.ne.s32.totalorder %s168, %s171
    %p180 = scmp.eq.s32.totalorder %s17, 1
    %p181 = por %p179, %p180
    %p182 = scmp.ne.s32.totalorder %s171, %s172
    %p183 = scmp.eq.s32.totalorder %s17, 0
    %p184 = por %p182, %p183
    %p185 = scmp.ne.s32.totalorder %s171, %s172
    %p186 = scmp.eq.s32.totalorder %s18, 1
    %p187 = por %p185, %p186
    %p189 = scmp.ne.s32.totalorder %s172, %s188
    %p190 = scmp.eq.s32.totalorder %s18, 0
    %p191 = por %p189, %p190
    %p192 = scmp.le.s32.totalorder 1, %s12
    %p193 = scmp.lt.s32.totalorder %s12, 3
    %p194 = pnand %p192, %p193
    %p195 = pneg %p194
    // Predicated region
    $region9: #{discriminator_forward.29} parent=5 // pred_check
      _
    $region10: #{discriminator_forward.29} parent=5 // pred_check_branch
      %197 = sbr.rel (%p194) target = $region12
    $region11: #{discriminator_forward.29} parent=5 // pred_region
      %s198 = ssub.s32 %s12, 1
      // Predicated region
      $region13: #{discriminator_forward.29} parent=11 // pred_check
        %p199 = pneg %p137
      $region14: #{discriminator_forward.29} parent=11 // pred_check_branch
        %201 = sbr.rel (%p199) target = $region16
      $region15: #{discriminator_forward.29} parent=11 // pred_region
        _
      $region16: #{discriminator_forward.29} parent=11 // pred_fallthru
        _
      // Predicated region
      $region17: #{discriminator_forward.29} parent=11 // pred_check
        %p202 = pneg %p158
      $region18: #{discriminator_forward.29} parent=11 // pred_check_branch
        %204 = sbr.rel (%p202) target = $region20
      $region19: #{discriminator_forward.29} parent=11 // pred_region
        _
      $region20: #{discriminator_forward.29} parent=11 // pred_fallthru
        _
    $region12: #{discriminator_forward.29} parent=5 // pred_fallthru
      _
    %p205 = scmp.lt.s32.totalorder %s12, 2
    // Predicated region
    $region21: #{discriminator_forward.29} parent=5 // pred_check
      %p206 = pneg %p205
    $region22: #{discriminator_forward.29} parent=5 // pred_check_branch
      %208 = sbr.rel (%p206) target = $region24
    $region23: #{discriminator_forward.29} parent=5 // pred_region
      // Predicated region
      $region25: #{discriminator_forward.29} parent=23 // pred_check
        %p209 = pneg %p32
      $region26: #{discriminator_forward.29} parent=23 // pred_check_branch
        %211 = sbr.rel (%p209) target = $region28
      $region27: #{discriminator_forward.29} parent=23 // pred_region
        %p212 = scmp.lt.s32.totalorder %s12, 1
        %s213 = scalar_select %p212, %s12, 1
        %s214 = smul.addr %s213, 2
        %s215 = scalar_lea.vmem %s0, %s214
      $region28: #{discriminator_forward.29} parent=23 // pred_fallthru
        _
      // Predicated region
      $region29: #{discriminator_forward.29} parent=23 // pred_check
        %p216 = pneg %p58
      $region30: #{discriminator_forward.29} parent=23 // pred_check_branch
        %218 = sbr.rel (%p216) target = $region32
      $region31: #{discriminator_forward.29} parent=23 // pred_region
        %p219 = scmp.lt.s32.totalorder %s12, 1
        %s220 = scalar_select %p219, %s12, 1
        %s221 = smul.addr %s220, 2
        %s222 = scalar_lea.vmem %s1, %s221
      $region32: #{discriminator_forward.29} parent=23 // pred_fallthru
        _
      // Predicated region
      $region33: #{discriminator_forward.29} parent=23 // pred_check
        %p223 = pneg %p84
      $region34: #{discriminator_forward.29} parent=23 // pred_check_branch
        %225 = sbr.rel (%p223) target = $region36
      $region35: #{discriminator_forward.29} parent=23 // pred_region
        %p226 = scmp.lt.s32.totalorder %s12, 1
        %s227 = scalar_select %p226, %s12, 1
        %s228 = smul.addr %s227, 2
        %s229 = scalar_lea.vmem %s2, %s228
      $region36: #{discriminator_forward.29} parent=23 // pred_fallthru
        _
      // Predicated region
      $region37: #{discriminator_forward.29} parent=23 // pred_check
        %p230 = pneg %p110
      $region38: #{discriminator_forward.29} parent=23 // pred_check_branch
        %232 = sbr.rel (%p230) target = $region40
      $region39: #{discriminator_forward.29} parent=23 // pred_region
        %p233 = scmp.lt.s32.totalorder %s12, 1
        %s234 = scalar_select %p233, %s12, 1
        %s235 = smul.addr %s234, 2
        %s236 = scalar_lea.vmem %s3, %s235
      $region40: #{discriminator_forward.29} parent=23 // pred_fallthru
        _
    $region24: #{discriminator_forward.29} parent=5 // pred_fallthru
      _
    %p237 = scmp.le.s32.totalorder 1, %s12
    %p238 = scmp.lt.s32.totalorder %s12, 3
    %p239 = pnand %p237, %p238
    %p240 = pneg %p239
    // Predicated region
    $region41: #{discriminator_forward.29} parent=5 // pred_check
      _
    $region42: #{discriminator_forward.29} parent=5 // pred_check_branch
      %242 = sbr.rel (%p239) target = $region44
    $region43: #{discriminator_forward.29} parent=5 // pred_region
      %s243 = ssub.s32 %s12, 1
      %p244 = scmp.lt.s32.totalorder %s17, 1
      %s245 = scalar_select %p244, %s17, 1
      %s246 = smul.addr %s245, 2
      %s247 = scalar_lea.vmem %s0, %s246
      %p248 = pneg %p38
      %p249 = pneg %p35
      %p250 = scmp.lt.s32.totalorder %s17, 1
      %s251 = scalar_select %p250, %s17, 1
      %s252 = smul.addr %s251, 2
      %s253 = scalar_lea.vmem %s1, %s252
      %p254 = pneg %p64
      %p255 = pneg %p61
      %p256 = scmp.lt.s32.totalorder %s17, 1
      %s257 = scalar_select %p256, %s17, 1
      %s258 = smul.addr %s257, 2
      %s259 = scalar_lea.vmem %s2, %s258
      %p260 = pneg %p90
      %p261 = pneg %p87
      %p262 = scmp.lt.s32.totalorder %s17, 1
      %s263 = scalar_select %p262, %s17, 1
      %s264 = smul.addr %s263, 2
      %s265 = scalar_lea.vmem %s3, %s264
      %p266 = pneg %p116
      %p267 = pneg %p113
      %p268 = pneg %p137
      %p269 = pneg %p134
      %p270 = pneg %p158
      %p271 = pneg %p155
      %p272 = pneg %p184
      %p273 = pneg %p181
      %p274 = scmp.lt.s32.totalorder %s17, 1
      %s275 = scalar_select %p274, %s17, 1
      %s276 = smul.addr %s275, 4
      %s277 = scalar_lea.vmem %s6, %s276
      %p278 = scmp.lt.s32.totalorder %s17, 1
      %s279 = scalar_select %p278, %s17, 1
      %s280 = smul.addr %s279, 2
      %s281 = scalar_lea.vmem %s0, %s280
      %p282 = scmp.lt.s32.totalorder %s17, 1
      %s283 = scalar_select %p282, %s17, 1
      %s284 = smul.addr %s283, 2
      %s285 = scalar_lea.vmem %s1, %s284
      %p286 = scmp.lt.s32.totalorder %s17, 1
      %s287 = scalar_select %p286, %s17, 1
      %s288 = smul.addr %s287, 2
      %s289 = scalar_lea.vmem %s2, %s288
      %p290 = scmp.lt.s32.totalorder %s17, 1
      %s291 = scalar_select %p290, %s17, 1
      %s292 = smul.addr %s291, 2
      %s293 = scalar_lea.vmem %s3, %s292
      %p294 = scmp.lt.s32.totalorder %s17, 1
      %s295 = scalar_select %p294, %s17, 1
      %s296 = smul.addr %s295, 4
      %s297 = scalar_lea.vmem %s6, %s296
      %v299 = vld [vmem:[%s281] sm:$0x3]
      %v300 = vld [vmem:[%s4] sm:$0xf]
      %v301 = vld [vmem:[%s285] sm:$0x3]
      %s302 = scalar_lea.vmem %s4, 4
      %v303 = vld [vmem:[%s302] sm:$0xf]
      %vm304 = vcmask 23552
      %v306 = vsel %vm304, %v303, 0
      %vm308 = vcmask 1040384
      %vm309 = vcmask 1041408
      %v310 = vsel %vm308, 4294967295, 65535
      %v311 = vsel %vm309, %v310, 0
      %v313 = vand.u32 %v301, %v311
      %315 = vmatpush.bf16.msra.mxu0 0
      %316 = vmatpush.bf16.msra.mxu0 0
      %317 = vmatpush.bf16.msra.mxu0 0
      %318 = vmatpush.bf16.msra.mxu0 0
      %319 = vmatpush.bf16.msra.mxu0 0
      %320 = vmatpush.bf16.msra.mxu0 0
      %321 = vmatpush.bf16.msra.mxu0 0
      %322 = vmatpush.bf16.msra.mxu0 %v313
      %323 = vmatmul.bf16.gmra.mxu0 %v306
      %v324 = vpop.f32.mrf.mxu0
      %v325 = vadd.f32 0.0, %v324
      %v326 = vpop.f32.mrf.mxu0
      %327 = vdwg.mxu0
      %v329 = vsel %vm304, %v300, 0
      %v332 = vand.u32 %v299, %v311
      %334 = vmatpush.bf16.msra.mxu0 0
      %335 = vmatpush.bf16.msra.mxu0 0
      %336 = vmatpush.bf16.msra.mxu0 0
      %337 = vmatpush.bf16.msra.mxu0 0
      %338 = vmatpush.bf16.msra.mxu0 0
      %339 = vmatpush.bf16.msra.mxu0 0
      %340 = vmatpush.bf16.msra.mxu0 0
      %341 = vmatpush.bf16.msra.mxu0 %v332
      %342 = vmatmul.bf16.gmra.mxu0 %v329
      %v343 = vpop.f32.mrf.mxu0
      %v344 = vadd.f32 %v325, %v343
      %v345 = vpop.f32.mrf.mxu0
      %346 = vdwg.mxu0
      %s347 = scalar_lea.vmem %s4, 8
      %v348 = vld [vmem:[%s347] sm:$0xf]
      %349 = vst [vmem:[#allocation1] ss:$4 sm:$0xff] %v299
      %v350 = vld.sshfl [vmem:[#allocation1] sm:$0xff pattern:$0x73625140]
      %352 = vrot.lane.b32.xlu0 %v350, 127
      %v353 = vpop.permute.xlu0 %352
      %v355 = vsel %vm304, %v348, 0
      %v358 = vand.u32 %v353, %v311
      %360 = vmatpush.bf16.msra.mxu0 0
      %361 = vmatpush.bf16.msra.mxu0 0
      %362 = vmatpush.bf16.msra.mxu0 0
      %363 = vmatpush.bf16.msra.mxu0 0
      %364 = vmatpush.bf16.msra.mxu0 0
      %365 = vmatpush.bf16.msra.mxu0 0
      %366 = vmatpush.bf16.msra.mxu0 0
      %367 = vmatpush.bf16.msra.mxu0 %v358
      %368 = vmatmul.bf16.gmra.mxu0 %v355
      %v369 = vpop.f32.mrf.mxu0
      %v370 = vadd.f32 0.0, %v369
      %v371 = vpop.f32.mrf.mxu0
      %372 = vdwg.mxu0
      %v373 = vadd.f32 %v344, %v370
      %v374 = vld [vmem:[%s289] sm:$0x3]
      %s375 = scalar_lea.vmem %s4, 12
      %v376 = vld [vmem:[%s375] sm:$0xf]
      %v378 = vsel %vm304, %v376, 0
      %v381 = vand.u32 %v374, %v311
      %383 = vmatpush.bf16.msra.mxu0 0
      %384 = vmatpush.bf16.msra.mxu0 0
      %385 = vmatpush.bf16.msra.mxu0 0
      %386 = vmatpush.bf16.msra.mxu0 0
      %387 = vmatpush.bf16.msra.mxu0 0
      %388 = vmatpush.bf16.msra.mxu0 0
      %389 = vmatpush.bf16.msra.mxu0 0
      %390 = vmatpush.bf16.msra.mxu0 %v381
      %391 = vmatmul.bf16.gmra.mxu0 %v378
      %v392 = vpop.f32.mrf.mxu0
      %v393 = vadd.f32 0.0, %v392
      %v394 = vpop.f32.mrf.mxu0
      %395 = vdwg.mxu0
      %v396 = vadd.f32 %v373, %v393
      %v397 = vld [vmem:[%s293] sm:$0x3]
      %s398 = scalar_lea.vmem %s4, 16
      %v399 = vld [vmem:[%s398] sm:$0xf]
      %v401 = vsel %vm304, %v399, 0
      %v404 = vand.u32 %v397, %v311
      %406 = vmatpush.bf16.msra.mxu0 0
      %407 = vmatpush.bf16.msra.mxu0 0
      %408 = vmatpush.bf16.msra.mxu0 0
      %409 = vmatpush.bf16.msra.mxu0 0
      %410 = vmatpush.bf16.msra.mxu0 0
      %411 = vmatpush.bf16.msra.mxu0 0
      %412 = vmatpush.bf16.msra.mxu0 0
      %413 = vmatpush.bf16.msra.mxu0 %v404
      %414 = vmatmul.bf16.gmra.mxu0 %v401
      %v415 = vpop.f32.mrf.mxu0
      %v416 = vadd.f32 0.0, %v415
      %v417 = vpop.f32.mrf.mxu0
      %418 = vdwg.mxu0
      %v419 = vadd.f32 %v396, %v416
      %s420 = scalar_lea.vmem %s4, 20
      %v421 = vld [vmem:[%s420] sm:$0xf]
      %422 = vst [vmem:[#allocation1] ss:$4 sm:$0xff] %v374
      %v423 = vld.sshfl [vmem:[#allocation1] sm:$0xff pattern:$0x73625140]
      %425 = vrot.lane.b32.xlu0 %v423, 127
      %v426 = vpop.permute.xlu0 %425
      %v428 = vsel %vm304, %v421, 0
      %v431 = vand.u32 %v426, %v311
      %433 = vmatpush.bf16.msra.mxu0 0
      %434 = vmatpush.bf16.msra.mxu0 0
      %435 = vmatpush.bf16.msra.mxu0 0
      %436 = vmatpush.bf16.msra.mxu0 0
      %437 = vmatpush.bf16.msra.mxu0 0
      %438 = vmatpush.bf16.msra.mxu0 0
      %439 = vmatpush.bf16.msra.mxu0 0
      %440 = vmatpush.bf16.msra.mxu0 %v431
      %441 = vmatmul.bf16.gmra.mxu0 %v428
      %v442 = vpop.f32.mrf.mxu0
      %v443 = vadd.f32 0.0, %v442
      %v444 = vpop.f32.mrf.mxu0
      %445 = vdwg.mxu0
      %v446 = vadd.f32 %v419, %v443
      %v447 = vld [vmem:[%s281] sm:$0x3]
      %s448 = scalar_lea.vmem %s4, 24
      %v449 = vld [vmem:[%s448] sm:$0xf]
      %451 = vst [vmem:[#allocation1] ss:$4 sm:$0xff] %v447
      %v452 = vld.sshfl [vmem:[#allocation1] sm:$0xff pattern:$0x73625140]
      %454 = vrot.lane.b32.xlu0 %v452, 125
      %v455 = vpop.permute.xlu0 %454
      %v457 = vsel %vm304, %v449, 0
      %v460 = vand.u32 %v455, %v311
      %462 = vmatpush.bf16.msra.mxu0 0
      %463 = vmatpush.bf16.msra.mxu0 0
      %464 = vmatpush.bf16.msra.mxu0 0
      %465 = vmatpush.bf16.msra.mxu0 0
      %466 = vmatpush.bf16.msra.mxu0 0
      %467 = vmatpush.bf16.msra.mxu0 0
      %468 = vmatpush.bf16.msra.mxu0 0
      %469 = vmatpush.bf16.msra.mxu0 %v460
      %470 = vmatmul.bf16.gmra.mxu0 %v457
      %v471 = vpop.f32.mrf.mxu0
      %v472 = vadd.f32 0.0, %v471
      %v473 = vpop.f32.mrf.mxu0
      %474 = vdwg.mxu0
      %v475 = vadd.f32 %v446, %v472
      %v476 = vld [vmem:[%s285] sm:$0x3]
      %s477 = scalar_lea.vmem %s4, 28
      %v478 = vld [vmem:[%s477] sm:$0xf]
      %480 = vst [vmem:[#allocation1] ss:$4 sm:$0xff] %v476
      %v481 = vld.sshfl [vmem:[#allocation1] sm:$0xff pattern:$0x73625140]
      %483 = vrot.lane.b32.xlu0 %v481, 125
      %v484 = vpop.permute.xlu0 %483
      %v486 = vsel %vm304, %v478, 0
      %v489 = vand.u32 %v484, %v311
      %491 = vmatpush.bf16.msra.mxu0 0
      %492 = vmatpush.bf16.msra.mxu0 0
      %493 = vmatpush.bf16.msra.mxu0 0
      %494 = vmatpush.bf16.msra.mxu0 0
      %495 = vmatpush.bf16.msra.mxu0 0
      %496 = vmatpush.bf16.msra.mxu0 0
      %497 = vmatpush.bf16.msra.mxu0 0
      %498 = vmatpush.bf16.msra.mxu0 %v489
      %499 = vmatmul.bf16.gmra.mxu0 %v486
      %v500 = vpop.f32.mrf.mxu0
      %v501 = vadd.f32 0.0, %v500
      %v502 = vpop.f32.mrf.mxu0
      %503 = vdwg.mxu0
      %v504 = vadd.f32 %v475, %v501
      %v505 = vld [vmem:[%s281] sm:$0x3]
      %s506 = scalar_lea.vmem %s4, 32
      %v507 = vld [vmem:[%s506] sm:$0xf]
      %509 = vst [vmem:[#allocation1] ss:$4 sm:$0xff] %v505
      %v510 = vld.sshfl [vmem:[#allocation1] sm:$0xff pattern:$0x73625140]
      %512 = vrot.lane.b32.xlu0 %v510, 124
      %v513 = vpop.permute.xlu0 %512
      %v515 = vsel %vm304, %v507, 0
      %v518 = vand.u32 %v513, %v311
      %520 = vmatpush.bf16.msra.mxu0 0
      %521 = vmatpush.bf16.msra.mxu0 0
      %522 = vmatpush.bf16.msra.mxu0 0
      %523 = vmatpush.bf16.msra.mxu0 0
      %524 = vmatpush.bf16.msra.mxu0 0
      %525 = vmatpush.bf16.msra.mxu0 0
      %526 = vmatpush.bf16.msra.mxu0 0
      %527 = vmatpush.bf16.msra.mxu0 %v518
      %528 = vmatmul.bf16.gmra.mxu0 %v515
      %v529 = vpop.f32.mrf.mxu0
      %v530 = vadd.f32 0.0, %v529
      %v531 = vpop.f32.mrf.mxu0
      %532 = vdwg.mxu0
      %v533 = vadd.f32 %v504, %v530
      %v534 = vld [vmem:[%s5] sm:$0xff]
      %536 = vset.pattern.permute.xlu0 0
      %537 = vperm.xlu0 %536, %v534
      %v538 = vpop.permute.xlu0 %537
      %v540 = vadd.f32 %v533, %v538
      %vm541 = vcmp.ge.f32.partialorder %v540, 0.0
      %v542 = vmul.f32 %v540, 0.2
      %v543 = vsel %vm541, %v540, %v542
      %v544 = vpack.c.bf16 %v543, %v543
      %vm545 = vcmask 44032
      %546 = vst.msk [vmem:[%s297] sm:$0xf] %vm545, %v544
      %p547 = scmp.lt.s32.totalorder %s17, 1
      %s548 = scalar_select %p547, %s17, 1
      %s549 = smul.addr %s548, 4
      %s550 = scalar_lea.vmem %s6, %s549
      // Predicated region
      $region45: #{discriminator_forward.29} parent=43 // pred_check
        %p551 = pneg %p181
      $region46: #{discriminator_forward.29} parent=43 // pred_check_branch
        %553 = sbr.rel (%p551) target = $region48
      $region47: #{discriminator_forward.29} parent=43 // pred_region
        _
      $region48: #{discriminator_forward.29} parent=43 // pred_fallthru
        _
    $region44: #{discriminator_forward.29} parent=5 // pred_fallthru
      _
    %p554 = scmp.le.s32.totalorder 2, %s12
    // Predicated region
    $region49: #{discriminator_forward.29} parent=5 // pred_check
      %p555 = pneg %p554
    $region50: #{discriminator_forward.29} parent=5 // pred_check_branch
      %557 = sbr.rel (%p555) target = $region52
    $region51: #{discriminator_forward.29} parent=5 // pred_region
      %s558 = ssub.s32 %s12, 2
      // Predicated region
      $region53: #{discriminator_forward.29} parent=51 // pred_check
        %p559 = pneg %p187
      $region54: #{discriminator_forward.29} parent=51 // pred_check_branch
        %561 = sbr.rel (%p559) target = $region56
      $region55: #{discriminator_forward.29} parent=51 // pred_region
        %p562 = scmp.lt.s32.totalorder %s18, 1
        %s563 = scalar_select %p562, %s18, 1
        %s564 = smul.addr %s563, 4
        %s565 = scalar_lea.vmem %s6, %s564
      $region56: #{discriminator_forward.29} parent=51 // pred_fallthru
        _
    $region52: #{discriminator_forward.29} parent=5 // pred_fallthru
      _
  $region6: #{discriminator_forward.29} parent=0 // loop_footer
    %s16 = sadd.s32 1, %s12
  $region7: #{discriminator_forward.29} parent=0 // loop_footer_branch
    %11 = sbr.rel target = $region3
  $region8: #{discriminator_forward.29} parent=0 // loop_exit
    _

// kernel: discriminator_forward.31
$region0: #{discriminator_forward.31}
  #allocation0 [shape = 'u32[]', space=smem, size = 0x4, offset = 0x4, fixed_abs, tag = 'smem constant byte address 0x4 - core index']
  #allocation1 [shape = 'u32[72,128]{1,0:T(1,128)}', space=vmem, size = 0x9000, scoped, tag = 'internal scratch']
  %s0 = inlined_call_operand.vmem [shape: bf16[2,16,5], index: 0, kind: input, shape index: {}]
  %s1 = inlined_call_operand.vmem [shape: bf16[2,16,5], index: 1, kind: input, shape index: {}]
  %s2 = inlined_call_operand.vmem [shape: bf16[2,16,5], index: 2, kind: input, shape index: {}]
  %s3 = inlined_call_operand.vmem [shape: bf16[2,16,5], index: 3, kind: input, shape index: {}]
  %s4 = inlined_call_operand.vmem [shape: bf16[9,32,16], index: 4, kind: input, shape index: {}]
  %s5 = inlined_call_operand.vmem [shape: f32[32,1], index: 5, kind: input, shape index: {}]
  %s6 = inlined_call_operand.vmem [shape: bf16[2,32,2], index: 6, kind: output, shape index: {}]
  %s7 = sld [smem:[#allocation0]]
  $region57: #{discriminator_forward.31} parent=0
    _
  %s9 = ssub.s32 1, %s7
  %s10 = scalar_select 0, %s9, %s7
  loop: start=0, step=1, limit=4
  $region2: #{discriminator_forward.31} parent=0 // loop_pre_header
    _
  $region3: #{discriminator_forward.31} parent=0 // loop_header
    %s12 = sphi 0, %s16
    %p13 = scmp.ge.s32.totalorder %s12, 4
    %s22 = sphi 0, %s24
    %s25 = sphi 0, %s22
    %s26 = sphi 0, %s25
    %s42 = sphi 0, %s26
    %s48 = sphi 0, %s50
    %s51 = sphi 0, %s48
    %s52 = sphi 0, %s51
    %s68 = sphi 0, %s52
    %s74 = sphi 0, %s76
    %s77 = sphi 0, %s74
    %s78 = sphi 0, %s77
    %s94 = sphi 0, %s78
    %s100 = sphi 0, %s102
    %s103 = sphi 0, %s100
    %s104 = sphi 0, %s103
    %s120 = sphi 0, %s104
    %s124 = sphi 0, %s124
    %s126 = sphi 0, %s124
    %s127 = sphi 0, %s126
    %s141 = sphi 0, %s127
    %s145 = sphi 0, %s145
    %s147 = sphi 0, %s145
    %s148 = sphi 0, %s147
    %s162 = sphi 0, %s148
    %s168 = sphi 0, %s170
    %s171 = sphi 0, %s168
    %s172 = sphi 0, %s171
    %s188 = sphi 0, %s172
  $region4: #{discriminator_forward.31} parent=0 // loop_header_branch
    %15 = sbr.rel (%p13) target = $region8
  $region5: #{discriminator_forward.31} parent=0 // loop_body
    %s17 = ssub.s32 %s12, 1
    %s18 = ssub.s32 %s12, 2
    %s19 = sadd.s32 %s12, 1
    %s20 = ssub.s32 %s12, %s19
    %p21 = scmp.eq.s32.totalorder %s20, 0
    %s23 = sadd.s32 %s22, 1
    %s24 = scalar_select %p21, %s22, %s23
    %p27 = pneg %p21
    %p28 = scmp.eq.s32.totalorder %s12, 1
    %p29 = por %p27, %p28
    %p30 = scmp.ne.s32.totalorder %s22, %s25
    %p31 = scmp.eq.s32.totalorder %s12, 0
    %p32 = por %p30, %p31
    %p33 = scmp.ne.s32.totalorder %s22, %s25
    %p34 = scmp.eq.s32.totalorder %s17, 1
    %p35 = por %p33, %p34
    %p36 = scmp.ne.s32.totalorder %s25, %s26
    %p37 = scmp.eq.s32.totalorder %s17, 0
    %p38 = por %p36, %p37
    %p39 = scmp.ne.s32.totalorder %s25, %s26
    %p40 = scmp.eq.s32.totalorder %s18, 1
    %p41 = por %p39, %p40
    %p43 = scmp.ne.s32.totalorder %s26, %s42
    %p44 = scmp.eq.s32.totalorder %s18, 0
    %p45 = por %p43, %p44
    %s46 = ssub.s32 %s12, %s19
    %p47 = scmp.eq.s32.totalorder %s46, 0
    %s49 = sadd.s32 %s48, 1
    %s50 = scalar_select %p47, %s48, %s49
    %p53 = pneg %p47
    %p54 = scmp.eq.s32.totalorder %s12, 1
    %p55 = por %p53, %p54
    %p56 = scmp.ne.s32.totalorder %s48, %s51
    %p57 = scmp.eq.s32.totalorder %s12, 0
    %p58 = por %p56, %p57
    %p59 = scmp.ne.s32.totalorder %s48, %s51
    %p60 = scmp.eq.s32.totalorder %s17, 1
    %p61 = por %p59, %p60
    %p62 = scmp.ne.s32.totalorder %s51, %s52
    %p63 = scmp.eq.s32.totalorder %s17, 0
    %p64 = por %p62, %p63
    %p65 = scmp.ne.s32.totalorder %s51, %s52
    %p66 = scmp.eq.s32.totalorder %s18, 1
    %p67 = por %p65, %p66
    %p69 = scmp.ne.s32.totalorder %s52, %s68
    %p70 = scmp.eq.s32.totalorder %s18, 0
    %p71 = por %p69, %p70
    %s72 = ssub.s32 %s12, %s19
    %p73 = scmp.eq.s32.totalorder %s72, 0
    %s75 = sadd.s32 %s74, 1
    %s76 = scalar_select %p73, %s74, %s75
    %p79 = pneg %p73
    %p80 = scmp.eq.s32.totalorder %s12, 1
    %p81 = por %p79, %p80
    %p82 = scmp.ne.s32.totalorder %s74, %s77
    %p83 = scmp.eq.s32.totalorder %s12, 0
    %p84 = por %p82, %p83
    %p85 = scmp.ne.s32.totalorder %s74, %s77
    %p86 = scmp.eq.s32.totalorder %s17, 1
    %p87 = por %p85, %p86
    %p88 = scmp.ne.s32.totalorder %s77, %s78
    %p89 = scmp.eq.s32.totalorder %s17, 0
    %p90 = por %p88, %p89
    %p91 = scmp.ne.s32.totalorder %s77, %s78
    %p92 = scmp.eq.s32.totalorder %s18, 1
    %p93 = por %p91, %p92
    %p95 = scmp.ne.s32.totalorder %s78, %s94
    %p96 = scmp.eq.s32.totalorder %s18, 0
    %p97 = por %p95, %p96
    %s98 = ssub.s32 %s12, %s19
    %p99 = scmp.eq.s32.totalorder %s98, 0
    %s101 = sadd.s32 %s100, 1
    %s102 = scalar_select %p99, %s100, %s101
    %p105 = pneg %p99
    %p106 = scmp.eq.s32.totalorder %s12, 1
    %p107 = por %p105, %p106
    %p108 = scmp.ne.s32.totalorder %s100, %s103
    %p109 = scmp.eq.s32.totalorder %s12, 0
    %p110 = por %p108, %p109
    %p111 = scmp.ne.s32.totalorder %s100, %s103
    %p112 = scmp.eq.s32.totalorder %s17, 1
    %p113 = por %p111, %p112
    %p114 = scmp.ne.s32.totalorder %s103, %s104
    %p115 = scmp.eq.s32.totalorder %s17, 0
    %p116 = por %p114, %p115
    %p117 = scmp.ne.s32.totalorder %s103, %s104
    %p118 = scmp.eq.s32.totalorder %s18, 1
    %p119 = por %p117, %p118
    %p121 = scmp.ne.s32.totalorder %s104, %s120
    %p122 = scmp.eq.s32.totalorder %s18, 0
    %p123 = por %p121, %p122
    %s125 = sadd.s32 %s124, 1
    %p128 = scmp.eq.s32.totalorder %s12, 1
    %p129 = scmp.ne.s32.totalorder %s124, %s126
    %p130 = scmp.eq.s32.totalorder %s12, 0
    %p131 = por %p129, %p130
    %p132 = scmp.ne.s32.totalorder %s124, %s126
    %p133 = scmp.eq.s32.totalorder %s17, 1
    %p134 = por %p132, %p133
    %p135 = scmp.ne.s32.totalorder %s126, %s127
    %p136 = scmp.eq.s32.totalorder %s17, 0
    %p137 = por %p135, %p136
    %p138 = scmp.ne.s32.totalorder %s126, %s127
    %p139 = scmp.eq.s32.totalorder %s18, 1
    %p140 = por %p138, %p139
    %p142 = scmp.ne.s32.totalorder %s127, %s141
    %p143 = scmp.eq.s32.totalorder %s18, 0
    %p144 = por %p142, %p143
    %s146 = sadd.s32 %s145, 1
    %p149 = scmp.eq.s32.totalorder %s12, 1
    %p150 = scmp.ne.s32.totalorder %s145, %s147
    %p151 = scmp.eq.s32.totalorder %s12, 0
    %p152 = por %p150, %p151
    %p153 = scmp.ne.s32.totalorder %s145, %s147
    %p154 = scmp.eq.s32.totalorder %s17, 1
    %p155 = por %p153, %p154
    %p156 = scmp.ne.s32.totalorder %s147, %s148
    %p157 = scmp.eq.s32.totalorder %s17, 0
    %p158 = por %p156, %p157
    %p159 = scmp.ne.s32.totalorder %s147, %s148
    %p160 = scmp.eq.s32.totalorder %s18, 1
    %p161 = por %p159, %p160
    %p163 = scmp.ne.s32.totalorder %s148, %s162
    %p164 = scmp.eq.s32.totalorder %s18, 0
    %p165 = por %p163, %p164
    %s166 = ssub.s32 %s12, %s19
    %p167 = scmp.eq.s32.totalorder %s166, 0
    %s169 = sadd.s32 %s168, 1
    %s170 = scalar_select %p167, %s168, %s169
    %p173 = pneg %p167
    %p174 = scmp.eq.s32.totalorder %s12, 1
    %p175 = por %p173, %p174
    %p176 = scmp.ne.s32.totalorder %s168, %s171
    %p177 = scmp.eq.s32.totalorder %s12, 0
    %p178 = por %p176, %p177
    %p179 = scmp.ne.s32.totalorder %s168, %s171
    %p180 = scmp.eq.s32.totalorder %s17, 1
    %p181 = por %p179, %p180
    %p182 = scmp.ne.s32.totalorder %s171, %s172
    %p183 = scmp.eq.s32.totalorder %s17, 0
    %p184 = por %p182, %p183
    %p185 = scmp.ne.s32.totalorder %s171, %s172
    %p186 = scmp.eq.s32.totalorder %s18, 1
    %p187 = por %p185, %p186
    %p189 = scmp.ne.s32.totalorder %s172, %s188
    %p190 = scmp.eq.s32.totalorder %s18, 0
    %p191 = por %p189, %p190
    %p192 = scmp.le.s32.totalorder 1, %s12
    %p193 = scmp.lt.s32.totalorder %s12, 3
    %p194 = pnand %p192, %p193
    %p195 = pneg %p194
    // Predicated region
    $region9: #{discriminator_forward.31} parent=5 // pred_check
      _
    $region10: #{discriminator_forward.31} parent=5 // pred_check_branch
      %197 = sbr.rel (%p194) target = $region12
    $region11: #{discriminator_forward.31} parent=5 // pred_region
      %s198 = ssub.s32 %s12, 1
      // Predicated region
      $region13: #{discriminator_forward.31} parent=11 // pred_check
        %p199 = pneg %p137
      $region14: #{discriminator_forward.31} parent=11 // pred_check_branch
        %201 = sbr.rel (%p199) target = $region16
      $region15: #{discriminator_forward.31} parent=11 // pred_region
        _
      $region16: #{discriminator_forward.31} parent=11 // pred_fallthru
        _
      // Predicated region
      $region17: #{discriminator_forward.31} parent=11 // pred_check
        %p202 = pneg %p158
      $region18: #{discriminator_forward.31} parent=11 // pred_check_branch
        %204 = sbr.rel (%p202) target = $region20
      $region19: #{discriminator_forward.31} parent=11 // pred_region
        _
      $region20: #{discriminator_forward.31} parent=11 // pred_fallthru
        _
    $region12: #{discriminator_forward.31} parent=5 // pred_fallthru
      _
    %p205 = scmp.lt.s32.totalorder %s12, 2
    // Predicated region
    $region21: #{discriminator_forward.31} parent=5 // pred_check
      %p206 = pneg %p205
    $region22: #{discriminator_forward.31} parent=5 // pred_check_branch
      %208 = sbr.rel (%p206) target = $region24
    $region23: #{discriminator_forward.31} parent=5 // pred_region
      // Predicated region
      $region25: #{discriminator_forward.31} parent=23 // pred_check
        %p209 = pneg %p32
      $region26: #{discriminator_forward.31} parent=23 // pred_check_branch
        %211 = sbr.rel (%p209) target = $region28
      $region27: #{discriminator_forward.31} parent=23 // pred_region
        %p212 = scmp.lt.s32.totalorder %s12, 1
        %s213 = scalar_select %p212, %s12, 1
        %s214 = smul.addr %s213, 2
        %s215 = smul.addr %s214, 4
        %s216 = scalar_lea.vmem %s0, %s215
      $region28: #{discriminator_forward.31} parent=23 // pred_fallthru
        _
      // Predicated region
      $region29: #{discriminator_forward.31} parent=23 // pred_check
        %p217 = pneg %p58
      $region30: #{discriminator_forward.31} parent=23 // pred_check_branch
        %219 = sbr.rel (%p217) target = $region32
      $region31: #{discriminator_forward.31} parent=23 // pred_region
        %p220 = scmp.lt.s32.totalorder %s12, 1
        %s221 = scalar_select %p220, %s12, 1
        %s222 = smul.addr %s221, 2
        %s223 = smul.addr %s222, 4
        %s224 = scalar_lea.vmem %s1, %s223
      $region32: #{discriminator_forward.31} parent=23 // pred_fallthru
        _
      // Predicated region
      $region33: #{discriminator_forward.31} parent=23 // pred_check
        %p225 = pneg %p84
      $region34: #{discriminator_forward.31} parent=23 // pred_check_branch
        %227 = sbr.rel (%p225) target = $region36
      $region35: #{discriminator_forward.31} parent=23 // pred_region
        %p228 = scmp.lt.s32.totalorder %s12, 1
        %s229 = scalar_select %p228, %s12, 1
        %s230 = smul.addr %s229, 2
        %s231 = smul.addr %s230, 4
        %s232 = scalar_lea.vmem %s2, %s231
      $region36: #{discriminator_forward.31} parent=23 // pred_fallthru
        _
      // Predicated region
      $region37: #{discriminator_forward.31} parent=23 // pred_check
        %p233 = pneg %p110
      $region38: #{discriminator_forward.31} parent=23 // pred_check_branch
        %235 = sbr.rel (%p233) target = $region40
      $region39: #{discriminator_forward.31} parent=23 // pred_region
        %p236 = scmp.lt.s32.totalorder %s12, 1
        %s237 = scalar_select %p236, %s12, 1
        %s238 = smul.addr %s237, 2
        %s239 = smul.addr %s238, 4
        %s240 = scalar_lea.vmem %s3, %s239
      $region40: #{discriminator_forward.31} parent=23 // pred_fallthru
        _
    $region24: #{discriminator_forward.31} parent=5 // pred_fallthru
      _
    %p241 = scmp.le.s32.totalorder 1, %s12
    %p242 = scmp.lt.s32.totalorder %s12, 3
    %p243 = pnand %p241, %p242
    %p244 = pneg %p243
    // Predicated region
    $region41: #{discriminator_forward.31} parent=5 // pred_check
      _
    $region42: #{discriminator_forward.31} parent=5 // pred_check_branch
      %246 = sbr.rel (%p243) target = $region44
    $region43: #{discriminator_forward.31} parent=5 // pred_region
      %s247 = ssub.s32 %s12, 1
      %p248 = scmp.lt.s32.totalorder %s17, 1
      %s249 = scalar_select %p248, %s17, 1
      %s250 = smul.addr %s249, 2
      %s251 = smul.addr %s250, 4
      %s252 = scalar_lea.vmem %s0, %s251
      %p253 = pneg %p38
      %p254 = pneg %p35
      %p255 = scmp.lt.s32.totalorder %s17, 1
      %s256 = scalar_select %p255, %s17, 1
      %s257 = smul.addr %s256, 2
      %s258 = smul.addr %s257, 4
      %s259 = scalar_lea.vmem %s1, %s258
      %p260 = pneg %p64
      %p261 = pneg %p61
      %p262 = scmp.lt.s32.totalorder %s17, 1
      %s263 = scalar_select %p262, %s17, 1
      %s264 = smul.addr %s263, 2
      %s265 = smul.addr %s264, 4
      %s266 = scalar_lea.vmem %s2, %s265
      %p267 = pneg %p90
      %p268 = pneg %p87
      %p269 = scmp.lt.s32.totalorder %s17, 1
      %s270 = scalar_select %p269, %s17, 1
      %s271 = smul.addr %s270, 2
      %s272 = smul.addr %s271, 4
      %s273 = scalar_lea.vmem %s3, %s272
      %p274 = pneg %p116
      %p275 = pneg %p113
      %p276 = pneg %p137
      %p277 = pneg %p134
      %p278 = pneg %p158
      %p279 = pneg %p155
      %p280 = pneg %p184
      %p281 = pneg %p181
      %p282 = scmp.lt.s32.totalorder %s17, 1
      %s283 = scalar_select %p282, %s17, 1
      %s284 = smul.addr %s283, 4
      %s285 = smul.addr %s284, 4
      %s286 = scalar_lea.vmem %s6, %s285
      %p287 = scmp.lt.s32.totalorder %s17, 1
      %s288 = scalar_select %p287, %s17, 1
      %s289 = smul.addr %s288, 2
      %s290 = smul.addr %s289, 4
      %s291 = scalar_lea.vmem %s0, %s290
      %p292 = scmp.lt.s32.totalorder %s17, 1
      %s293 = scalar_select %p292, %s17, 1
      %s294 = smul.addr %s293, 2
      %s295 = smul.addr %s294, 4
      %s296 = scalar_lea.vmem %s1, %s295
      %p297 = scmp.lt.s32.totalorder %s17, 1
      %s298 = scalar_select %p297, %s17, 1
      %s299 = smul.addr %s298, 2
      %s300 = smul.addr %s299, 4
      %s301 = scalar_lea.vmem %s2, %s300
      %p302 = scmp.lt.s32.totalorder %s17, 1
      %s303 = scalar_select %p302, %s17, 1
      %s304 = smul.addr %s303, 2
      %s305 = smul.addr %s304, 4
      %s306 = scalar_lea.vmem %s3, %s305
      %p307 = scmp.lt.s32.totalorder %s17, 1
      %s308 = scalar_select %p307, %s17, 1
      %s309 = smul.addr %s308, 4
      %s310 = smul.addr %s309, 4
      %s311 = scalar_lea.vmem %s6, %s310
      %v313 = vld [vmem:[%s291] sm:$0xf]
      %v314 = vld [vmem:[%s291 + $0x4] sm:$0xf]
      %v315 = vld [vmem:[%s4] sm:$0xf]
      %v316 = vld [vmem:[%s4 + $0x4] sm:$0xf]
      %v317 = vld [vmem:[%s4 + $0x8] sm:$0xf]
      %v318 = vld [vmem:[%s4 + $0xc] sm:$0xf]
      %v319 = vld [vmem:[%s296] sm:$0xf]
      %v320 = vld [vmem:[%s296 + $0x4] sm:$0xf]
      %s321 = scalar_lea.vmem %s4, 16
      %v322 = vld [vmem:[%s321] sm:$0xf]
      %v323 = vld [vmem:[%s321 + $0x4] sm:$0xf]
      %v324 = vld [vmem:[%s321 + $0x8] sm:$0xf]
      %v325 = vld [vmem:[%s321 + $0xc] sm:$0xf]
      %v330 = vunpack.c.l.b16 %v322
      %v331 = vunpack.c.l.b16 %v323
      %v332 = vunpack.c.l.b16 %v324
      %v333 = vunpack.c.l.b16 %v325
      %v334 = vpack.c.b16 %v331, %v330
      %v335 = vpack.c.b16 %v333, %v332
      %v338 = vunpack.c.l.b16 %v319
      %v339 = vunpack.c.l.b16 %v320
      %v340 = vpack.c.b16 %v339, %v338
      %vm342 = vcmask 130048
      %v344 = vsel %vm342, %v334, 0
      %v347 = vsel %vm342, %v335, 0
      %349 = vmatpush.bf16.msra.mxu0 0
      %350 = vmatpush.bf16.msra.mxu0 0
      %351 = vmatpush.bf16.msra.mxu0 0
      %352 = vmatpush.bf16.msra.mxu0 0
      %353 = vmatpush.bf16.msra.mxu0 0
      %354 = vmatpush.bf16.msra.mxu0 0
      %355 = vmatpush.bf16.msra.mxu0 0
      %356 = vmatpush.bf16.msra.mxu0 %v340
      %357 = vmatmul.bf16.gmra.mxu0 %v344
      %v358 = vpop.f32.mrf.mxu0
      %v359 = vadd.f32 0.0, %v358
      %v360 = vpop.f32.mrf.mxu0
      %v361 = vadd.f32 0.0, %v360
      %362 = vmatmul.bf16.gmra.mxu0 %v347
      %v363 = vpop.f32.mrf.mxu0
      %v364 = vadd.f32 0.0, %v363
      %v365 = vpop.f32.mrf.mxu0
      %v366 = vadd.f32 0.0, %v365
      %367 = vdwg.mxu0
      %v372 = vunpack.c.l.b16 %v315
      %v373 = vunpack.c.l.b16 %v316
      %v374 = vunpack.c.l.b16 %v317
      %v375 = vunpack.c.l.b16 %v318
      %v376 = vpack.c.b16 %v373, %v372
      %v377 = vpack.c.b16 %v375, %v374
      %v380 = vunpack.c.l.b16 %v313
      %v381 = vunpack.c.l.b16 %v314
      %v382 = vpack.c.b16 %v381, %v380
      %v385 = vsel %vm342, %v376, 0
      %v388 = vsel %vm342, %v377, 0
      %390 = vmatpush.bf16.msra.mxu0 0
      %391 = vmatpush.bf16.msra.mxu0 0
      %392 = vmatpush.bf16.msra.mxu0 0
      %393 = vmatpush.bf16.msra.mxu0 0
      %394 = vmatpush.bf16.msra.mxu0 0
      %395 = vmatpush.bf16.msra.mxu0 0
      %396 = vmatpush.bf16.msra.mxu0 0
      %397 = vmatpush.bf16.msra.mxu0 %v382
      %398 = vmatmul.bf16.gmra.mxu0 %v385
      %v399 = vpop.f32.mrf.mxu0
      %v400 = vadd.f32 %v359, %v399
      %v401 = vpop.f32.mrf.mxu0
      %v402 = vadd.f32 %v361, %v401
      %403 = vmatmul.bf16.gmra.mxu0 %v388
      %v404 = vpop.f32.mrf.mxu0
      %v405 = vadd.f32 %v364, %v404
      %v406 = vpop.f32.mrf.mxu0
      %v407 = vadd.f32 %v366, %v406
      %408 = vdwg.mxu0
      %s409 = scalar_lea.vmem %s4, 32
      %v410 = vld [vmem:[%s409] sm:$0xf]
      %v411 = vld [vmem:[%s409 + $0x4] sm:$0xf]
      %v412 = vld [vmem:[%s409 + $0x8] sm:$0xf]
      %v413 = vld [vmem:[%s409 + $0xc] sm:$0xf]
      %v418 = vunpack.c.l.b16 %v410
      %v419 = vunpack.c.l.b16 %v411
      %v420 = vunpack.c.l.b16 %v412
      %v421 = vunpack.c.l.b16 %v413
      %v422 = vpack.c.b16 %v419, %v418
      %v423 = vpack.c.b16 %v421, %v420
      %424 = vrot.lane.b32.xlu0 %v382, 127
      %v425 = vpop.permute.xlu0 %424
      %v428 = vsel %vm342, %v422, 0
      %v431 = vsel %vm342, %v423, 0
      %433 = vmatpush.bf16.msra.mxu0 0
      %434 = vmatpush.bf16.msra.mxu0 0
      %435 = vmatpush.bf16.msra.mxu0 0
      %436 = vmatpush.bf16.msra.mxu0 0
      %437 = vmatpush.bf16.msra.mxu0 0
      %438 = vmatpush.bf16.msra.mxu0 0
      %439 = vmatpush.bf16.msra.mxu0 0
      %440 = vmatpush.bf16.msra.mxu0 %v425
      %441 = vmatmul.bf16.gmra.mxu0 %v428
      %v442 = vpop.f32.mrf.mxu0
      %v443 = vadd.f32 0.0, %v442
      %v444 = vpop.f32.mrf.mxu0
      %v445 = vadd.f32 0.0, %v444
      %446 = vmatmul.bf16.gmra.mxu0 %v431
      %v447 = vpop.f32.mrf.mxu0
      %v448 = vadd.f32 0.0, %v447
      %v449 = vpop.f32.mrf.mxu0
      %v450 = vadd.f32 0.0, %v449
      %451 = vdwg.mxu0
      %v452 = vadd.f32 %v400, %v443
      %v453 = vadd.f32 %v402, %v445
      %v454 = vadd.f32 %v405, %v448
      %v455 = vadd.f32 %v407, %v450
      %v456 = vld [vmem:[%s301] sm:$0xf]
      %v457 = vld [vmem:[%s301 + $0x4] sm:$0xf]
      %s458 = scalar_lea.vmem %s4, 48
      %v459 = vld [vmem:[%s458] sm:$0xf]
      %v460 = vld [vmem:[%s458 + $0x4] sm:$0xf]
      %v461 = vld [vmem:[%s458 + $0x8] sm:$0xf]
      %v462 = vld [vmem:[%s458 + $0xc] sm:$0xf]
      %v467 = vunpack.c.l.b16 %v459
      %v468 = vunpack.c.l.b16 %v460
      %v469 = vunpack.c.l.b16 %v461
      %v470 = vunpack.c.l.b16 %v462
      %v471 = vpack.c.b16 %v468, %v467
      %v472 = vpack.c.b16 %v470, %v469
      %v475 = vunpack.c.l.b16 %v456
      %v476 = vunpack.c.l.b16 %v457
      %v477 = vpack.c.b16 %v476, %v475
      %v480 = vsel %vm342, %v471, 0
      %v483 = vsel %vm342, %v472, 0
      %485 = vmatpush.bf16.msra.mxu0 0
      %486 = vmatpush.bf16.msra.mxu0 0
      %487 = vmatpush.bf16.msra.mxu0 0
      %488 = vmatpush.bf16.msra.mxu0 0
      %489 = vmatpush.bf16.msra.mxu0 0
      %490 = vmatpush.bf16.msra.mxu0 0
      %491 = vmatpush.bf16.msra.mxu0 0
      %492 = vmatpush.bf16.msra.mxu0 %v477
      %493 = vmatmul.bf16.gmra.mxu0 %v480
      %v494 = vpop.f32.mrf.mxu0
      %v495 = vadd.f32 0.0, %v494
      %v496 = vpop.f32.mrf.mxu0
      %v497 = vadd.f32 0.0, %v496
      %498 = vmatmul.bf16.gmra.mxu0 %v483
      %v499 = vpop.f32.mrf.mxu0
      %v500 = vadd.f32 0.0, %v499
      %v501 = vpop.f32.mrf.mxu0
      %v502 = vadd.f32 0.0, %v501
      %503 = vdwg.mxu0
      %v504 = vadd.f32 %v452, %v495
      %v505 = vadd.f32 %v453, %v497
      %v506 = vadd.f32 %v454, %v500
      %v507 = vadd.f32 %v455, %v502
      %v508 = vld [vmem:[%s306] sm:$0xf]
      %v509 = vld [vmem:[%s306 + $0x4] sm:$0xf]
      %s510 = scalar_lea.vmem %s4, 64
      %v511 = vld [vmem:[%s510] sm:$0xf]
      %v512 = vld [vmem:[%s510 + $0x4] sm:$0xf]
      %v513 = vld [vmem:[%s510 + $0x8] sm:$0xf]
      %v514 = vld [vmem:[%s510 + $0xc] sm:$0xf]
      %v519 = vunpack.c.l.b16 %v511
      %v520 = vunpack.c.l.b16 %v512
      %v521 = vunpack.c.l.b16 %v513
      %v522 = vunpack.c.l.b16 %v514
      %v523 = vpack.c.b16 %v520, %v519
      %v524 = vpack.c.b16 %v522, %v521
      %v527 = vunpack.c.l.b16 %v508
      %v528 = vunpack.c.l.b16 %v509
      %v529 = vpack.c.b16 %v528, %v527
      %v532 = vsel %vm342, %v523, 0
      %v535 = vsel %vm342, %v524, 0
      %537 = vmatpush.bf16.msra.mxu0 0
      %538 = vmatpush.bf16.msra.mxu0 0
      %539 = vmatpush.bf16.msra.mxu0 0
      %540 = vmatpush.bf16.msra.mxu0 0
      %541 = vmatpush.bf16.msra.mxu0 0
      %542 = vmatpush.bf16.msra.mxu0 0
      %543 = vmatpush.bf16.msra.mxu0 0
      %544 = vmatpush.bf16.msra.mxu0 %v529
      %545 = vmatmul.bf16.gmra.mxu0 %v532
      %v546 = vpop.f32.mrf.mxu0
      %v547 = vadd.f32 0.0, %v546
      %v548 = vpop.f32.mrf.mxu0
      %v549 = vadd.f32 0.0, %v548
      %550 = vmatmul.bf16.gmra.mxu0 %v535
      %v551 = vpop.f32.mrf.mxu0
      %v552 = vadd.f32 0.0, %v551
      %v553 = vpop.f32.mrf.mxu0
      %v554 = vadd.f32 0.0, %v553
      %555 = vdwg.mxu0
      %v556 = vadd.f32 %v504, %v547
      %v557 = vadd.f32 %v505, %v549
      %v558 = vadd.f32 %v506, %v552
      %v559 = vadd.f32 %v507, %v554
      %s560 = scalar_lea.vmem %s4, 80
      %v561 = vld [vmem:[%s560] sm:$0xf]
      %v562 = vld [vmem:[%s560 + $0x4] sm:$0xf]
      %v563 = vld [vmem:[%s560 + $0x8] sm:$0xf]
      %v564 = vld [vmem:[%s560 + $0xc] sm:$0xf]
      %v569 = vunpack.c.l.b16 %v561
      %v570 = vunpack.c.l.b16 %v562
      %v571 = vunpack.c.l.b16 %v563
      %v572 = vunpack.c.l.b16 %v564
      %v573 = vpack.c.b16 %v570, %v569
      %v574 = vpack.c.b16 %v572, %v571
      %575 = vrot.lane.b32.xlu0 %v477, 127
      %v576 = vpop.permute.xlu0 %575
      %v579 = vsel %vm342, %v573, 0
      %v582 = vsel %vm342, %v574, 0
      %584 = vmatpush.bf16.msra.mxu0 0
      %585 = vmatpush.bf16.msra.mxu0 0
      %586 = vmatpush.bf16.msra.mxu0 0
      %587 = vmatpush.bf16.msra.mxu0 0
      %588 = vmatpush.bf16.msra.mxu0 0
      %589 = vmatpush.bf16.msra.mxu0 0
      %590 = vmatpush.bf16.msra.mxu0 0
      %591 = vmatpush.bf16.msra.mxu0 %v576
      %592 = vmatmul.bf16.gmra.mxu0 %v579
      %v593 = vpop.f32.mrf.mxu0
      %v594 = vadd.f32 0.0, %v593
      %v595 = vpop.f32.mrf.mxu0
      %v596 = vadd.f32 0.0, %v595
      %597 = vmatmul.bf16.gmra.mxu0 %v582
      %v598 = vpop.f32.mrf.mxu0
      %v599 = vadd.f32 0.0, %v598
      %v600 = vpop.f32.mrf.mxu0
      %v601 = vadd.f32 0.0, %v600
      %602 = vdwg.mxu0
      %v603 = vadd.f32 %v556, %v594
      %v604 = vadd.f32 %v557, %v596
      %v605 = vadd.f32 %v558, %v599
      %v606 = vadd.f32 %v559, %v601
      %s607 = scalar_lea.vmem %s4, 96
      %v608 = vld [vmem:[%s607] sm:$0xf]
      %v609 = vld [vmem:[%s607 + $0x4] sm:$0xf]
      %v610 = vld [vmem:[%s607 + $0x8] sm:$0xf]
      %v611 = vld [vmem:[%s607 + $0xc] sm:$0xf]
      %v616 = vunpack.c.l.b16 %v608
      %v617 = vunpack.c.l.b16 %v609
      %v618 = vunpack.c.l.b16 %v610
      %v619 = vunpack.c.l.b16 %v611
      %v620 = vpack.c.b16 %v617, %v616
      %v621 = vpack.c.b16 %v619, %v618
      %622 = vrot.lane.b32.xlu0 %v382, 126
      %v623 = vpop.permute.xlu0 %622
      %v626 = vsel %vm342, %v620, 0
      %v629 = vsel %vm342, %v621, 0
      %631 = vmatpush.bf16.msra.mxu0 0
      %632 = vmatpush.bf16.msra.mxu0 0
      %633 = vmatpush.bf16.msra.mxu0 0
      %634 = vmatpush.bf16.msra.mxu0 0
      %635 = vmatpush.bf16.msra.mxu0 0
      %636 = vmatpush.bf16.msra.mxu0 0
      %637 = vmatpush.bf16.msra.mxu0 0
      %638 = vmatpush.bf16.msra.mxu0 %v623
      %639 = vmatmul.bf16.gmra.mxu0 %v626
      %v640 = vpop.f32.mrf.mxu0
      %v641 = vadd.f32 0.0, %v640
      %v642 = vpop.f32.mrf.mxu0
      %v643 = vadd.f32 0.0, %v642
      %644 = vmatmul.bf16.gmra.mxu0 %v629
      %v645 = vpop.f32.mrf.mxu0
      %v646 = vadd.f32 0.0, %v645
      %v647 = vpop.f32.mrf.mxu0
      %v648 = vadd.f32 0.0, %v647
      %649 = vdwg.mxu0
      %v650 = vadd.f32 %v603, %v641
      %v651 = vadd.f32 %v604, %v643
      %v652 = vadd.f32 %v605, %v646
      %v653 = vadd.f32 %v606, %v648
      %s654 = scalar_lea.vmem %s4, 112
      %v655 = vld [vmem:[%s654] sm:$0xf]
      %v656 = vld [vmem:[%s654 + $0x4] sm:$0xf]
      %v657 = vld [vmem:[%s654 + $0x8] sm:$0xf]
      %v658 = vld [vmem:[%s654 + $0xc] sm:$0xf]
      %v663 = vunpack.c.l.b16 %v655
      %v664 = vunpack.c.l.b16 %v656
      %v665 = vunpack.c.l.b16 %v657
      %v666 = vunpack.c.l.b16 %v658
      %v667 = vpack.c.b16 %v664, %v663
      %v668 = vpack.c.b16 %v666, %v665
      %669 = vrot.lane.b32.xlu0 %v340, 126
      %v670 = vpop.permute.xlu0 %669
      %v673 = vsel %vm342, %v667, 0
      %v676 = vsel %vm342, %v668, 0
      %678 = vmatpush.bf16.msra.mxu0 0
      %679 = vmatpush.bf16.msra.mxu0 0
      %680 = vmatpush.bf16.msra.mxu0 0
      %681 = vmatpush.bf16.msra.mxu0 0
      %682 = vmatpush.bf16.msra.mxu0 0
      %683 = vmatpush.bf16.msra.mxu0 0
      %684 = vmatpush.bf16.msra.mxu0 0
      %685 = vmatpush.bf16.msra.mxu0 %v670
      %686 = vmatmul.bf16.gmra.mxu0 %v673
      %v687 = vpop.f32.mrf.mxu0
      %v688 = vadd.f32 0.0, %v687
      %v689 = vpop.f32.mrf.mxu0
      %v690 = vadd.f32 0.0, %v689
      %691 = vmatmul.bf16.gmra.mxu0 %v676
      %v692 = vpop.f32.mrf.mxu0
      %v693 = vadd.f32 0.0, %v692
      %v694 = vpop.f32.mrf.mxu0
      %v695 = vadd.f32 0.0, %v694
      %696 = vdwg.mxu0
      %v697 = vadd.f32 %v650, %v688
      %v698 = vadd.f32 %v651, %v690
      %v699 = vadd.f32 %v652, %v693
      %v700 = vadd.f32 %v653, %v695
      %s701 = scalar_lea.vmem %s4, 128
      %v702 = vld [vmem:[%s701] sm:$0xf]
      %v703 = vld [vmem:[%s701 + $0x4] sm:$0xf]
      %v704 = vld [vmem:[%s701 + $0x8] sm:$0xf]
      %v705 = vld [vmem:[%s701 + $0xc] sm:$0xf]
      %v710 = vunpack.c.l.b16 %v702
      %v711 = vunpack.c.l.b16 %v703
      %v712 = vunpack.c.l.b16 %v704
      %v713 = vunpack.c.l.b16 %v705
      %v714 = vpack.c.b16 %v711, %v710
      %v715 = vpack.c.b16 %v713, %v712
      %716 = vrot.lane.b32.xlu0 %v382, 125
      %v717 = vpop.permute.xlu0 %716
      %v720 = vsel %vm342, %v714, 0
      %v723 = vsel %vm342, %v715, 0
      %725 = vmatpush.bf16.msra.mxu0 0
      %726 = vmatpush.bf16.msra.mxu0 0
      %727 = vmatpush.bf16.msra.mxu0 0
      %728 = vmatpush.bf16.msra.mxu0 0
      %729 = vmatpush.bf16.msra.mxu0 0
      %730 = vmatpush.bf16.msra.mxu0 0
      %731 = vmatpush.bf16.msra.mxu0 0
      %732 = vmatpush.bf16.msra.mxu0 %v717
      %733 = vmatmul.bf16.gmra.mxu0 %v720
      %v734 = vpop.f32.mrf.mxu0
      %v735 = vadd.f32 0.0, %v734
      %v736 = vpop.f32.mrf.mxu0
      %v737 = vadd.f32 0.0, %v736
      %738 = vmatmul.bf16.gmra.mxu0 %v723
      %v739 = vpop.f32.mrf.mxu0
      %v740 = vadd.f32 0.0, %v739
      %v741 = vpop.f32.mrf.mxu0
      %v742 = vadd.f32 0.0, %v741
      %743 = vdwg.mxu0
      %v744 = vadd.f32 %v697, %v735
      %v745 = vadd.f32 %v698, %v737
      %v746 = vadd.f32 %v699, %v740
      %v747 = vadd.f32 %v700, %v742
      %v748 = vld [vmem:[%s5] sm:$0xff]
      %v749 = vld [vmem:[%s5 + $0x8] sm:$0xff]
      %v750 = vld [vmem:[%s5 + $0x10] sm:$0xff]
      %v751 = vld [vmem:[%s5 + $0x18] sm:$0xff]
      %753 = vset.pattern.permute.xlu0 0
      %754 = vperm.xlu0 %753, %v748
      %v755 = vpop.permute.xlu0 %754
      %758 = vset.pattern.permute.xlu0 0
      %759 = vperm.xlu0 %758, %v749
      %v760 = vpop.permute.xlu0 %759
      %763 = vset.pattern.permute.xlu0 0
      %764 = vperm.xlu0 %763, %v750
      %v765 = vpop.permute.xlu0 %764
      %768 = vset.pattern.permute.xlu0 0
      %769 = vperm.xlu0 %768, %v751
      %v770 = vpop.permute.xlu0 %769
      %v772 = vadd.f32 %v744, %v755
      %v773 = vadd.f32 %v745, %v760
      %v774 = vadd.f32 %v746, %v765
      %v775 = vadd.f32 %v747, %v770
      %vm776 = vcmp.ge.f32.partialorder %v772, 0.0
      %vm777 = vcmp.ge.f32.partialorder %v773, 0.0
      %vm778 = vcmp.ge.f32.partialorder %v774, 0.0
      %vm779 = vcmp.ge.f32.partialorder %v775, 0.0
      %v780 = vmul.f32 %v772, 0.2
      %v781 = vmul.f32 %v773, 0.2
      %v782 = vmul.f32 %v774, 0.2
      %v783 = vmul.f32 %v775, 0.2
      %v784 = vsel %vm776, %v772, %v780
      %v785 = vsel %vm777, %v773, %v781
      %v786 = vsel %vm778, %v774, %v782
      %v787 = vsel %vm779, %v775, %v783
      %v788 = vpack.c.bf16 %v784, %v784
      %v789 = vpack.c.bf16 %v785, %v785
      %v790 = vpack.c.bf16 %v786, %v786
      %v791 = vpack.c.bf16 %v787, %v787
      %vm792 = vcmask 11264
      %793 = vst.msk [vmem:[%s311] sm:$0xf] %vm792, %v788
      %794 = vst.msk [vmem:[%s311 + $0x4] sm:$0xf] %vm792, %v789
      %795 = vst.msk [vmem:[%s311 + $0x8] sm:$0xf] %vm792, %v790
      %796 = vst.msk [vmem:[%s311 + $0xc] sm:$0xf] %vm792, %v791
      %p797 = scmp.lt.s32.totalorder %s17, 1
      %s798 = scalar_select %p797, %s17, 1
      %s799 = smul.addr %s798, 4
      %s800 = smul.addr %s799, 4
      %s801 = scalar_lea.vmem %s6, %s800
      // Predicated region
      $region45: #{discriminator_forward.31} parent=43 // pred_check
        %p802 = pneg %p181
      $region46: #{discriminator_forward.31} parent=43 // pred_check_branch
        %804 = sbr.rel (%p802) target = $region48
      $region47: #{discriminator_forward.31} parent=43 // pred_region
        _
      $region48: #{discriminator_forward.31} parent=43 // pred_fallthru
        _
    $region44: #{discriminator_forward.31} parent=5 // pred_fallthru
      _
    %p805 = scmp.le.s32.totalorder 2, %s12
    // Predicated region
    $region49: #{discriminator_forward.31} parent=5 // pred_check
      %p806 = pneg %p805
    $region50: #{discriminator_forward.31} parent=5 // pred_check_branch
      %808 = sbr.rel (%p806) target = $region52
    $region51: #{discriminator_forward.31} parent=5 // pred_region
      %s809 = ssub.s32 %s12, 2
      // Predicated region
      $region53: #{discriminator_forward.31} parent=51 // pred_check
        %p810 = pneg %p187
      $region54: #{discriminator_forward.31} parent=51 // pred_check_branch
        %812 = sbr.rel (%p810) target = $region56
      $region55: #{discriminator_forward.31} parent=51 // pred_region
        %p813 = scmp.lt.s32.totalorder %s18, 1
        %s814 = scalar_select %p813, %s18, 1
        %s815 = smul.addr %s814, 4
        %s816 = smul.addr %s815, 4
        %s817 = scalar_lea.vmem %s6, %s816
      $region56: #{discriminator_forward.31} parent=51 // pred_fallthru
        _
    $region52: #{discriminator_forward.31} parent=5 // pred_fallthru
      _
  $region6: #{discriminator_forward.31} parent=0 // loop_footer
    %s16 = sadd.s32 1, %s12
  $region7: #{discriminator_forward.31} parent=0 // loop_footer_branch
    %11 = sbr.rel target = $region3
  $region8: #{discriminator_forward.31} parent=0 // loop_exit
    _

// kernel: discriminator_forward.33
$region0: #{discriminator_forward.33}
  #allocation0 [shape = 'u32[]', space=smem, size = 0x4, offset = 0x4, fixed_abs, tag = 'smem constant byte address 0x4 - core index']
  #allocation1 [shape = 'u32[72,128]{1,0:T(1,128)}', space=vmem, size = 0x9000, scoped, tag = 'internal scratch']
  #allocation2 [shape = 'f32[1,1]{1,0:T(1,128)S(1)}', space=vmem, size = 0x200, scoped, tag = 'scoped memory for discriminator_forward.33']
  %s0 = inlined_call_operand.vmem [shape: bf16[2,64,1], index: 0, kind: input, shape index: {}]
  %s1 = inlined_call_operand.vmem [shape: bf16[1,64], index: 1, kind: input, shape index: {}]
  %s2 = inlined_call_operand.<no memory space> [shape: f32[1,1], index: 2, kind: input, shape index: {}]
  %s3 = inlined_call_operand.vmem [shape: f32[2,1,1], index: 3, kind: output, shape index: {}]
  %s4 = sld [smem:[#allocation0]]
  $region45: #{discriminator_forward.33} parent=0
    _
  %s6 = ssub.s32 1, %s4
  %s7 = scalar_select 0, %s6, %s4
  %v8 = vstv %s2
  %9 = vst [vmem:[#allocation2] sm:$0x1] %v8
  loop: start=0, step=1, limit=4
  $region2: #{discriminator_forward.33} parent=0 // loop_pre_header
    _
  $region3: #{discriminator_forward.33} parent=0 // loop_header
    %s11 = sphi 0, %s15
    %p12 = scmp.ge.s32.totalorder %s11, 4
    %s21 = sphi 0, %s23
    %s24 = sphi 0, %s21
    %s25 = sphi 0, %s24
    %s41 = sphi 0, %s25
    %s45 = sphi 0, %s45
    %s47 = sphi 0, %s45
    %s48 = sphi 0, %s47
    %s62 = sphi 0, %s48
    %s66 = sphi 0, %s66
    %s68 = sphi 0, %s66
    %s69 = sphi 0, %s68
    %s83 = sphi 0, %s69
    %s89 = sphi 0, %s91
    %s92 = sphi 0, %s89
    %s93 = sphi 0, %s92
    %s109 = sphi 0, %s93
  $region4: #{discriminator_forward.33} parent=0 // loop_header_branch
    %14 = sbr.rel (%p12) target = $region8
  $region5: #{discriminator_forward.33} parent=0 // loop_body
    %s16 = ssub.s32 %s11, 1
    %s17 = ssub.s32 %s11, 2
    %s18 = sadd.s32 %s11, 1
    %s19 = ssub.s32 %s11, %s18
    %p20 = scmp.eq.s32.totalorder %s19, 0
    %s22 = sadd.s32 %s21, 1
    %s23 = scalar_select %p20, %s21, %s22
    %p26 = pneg %p20
    %p27 = scmp.eq.s32.totalorder %s11, 1
    %p28 = por %p26, %p27
    %p29 = scmp.ne.s32.totalorder %s21, %s24
    %p30 = scmp.eq.s32.totalorder %s11, 0
    %p31 = por %p29, %p30
    %p32 = scmp.ne.s32.totalorder %s21, %s24
    %p33 = scmp.eq.s32.totalorder %s16, 1
    %p34 = por %p32, %p33
    %p35 = scmp.ne.s32.totalorder %s24, %s25
    %p36 = scmp.eq.s32.totalorder %s16, 0
    %p37 = por %p35, %p36
    %p38 = scmp.ne.s32.totalorder %s24, %s25
    %p39 = scmp.eq.s32.totalorder %s17, 1
    %p40 = por %p38, %p39
    %p42 = scmp.ne.s32.totalorder %s25, %s41
    %p43 = scmp.eq.s32.totalorder %s17, 0
    %p44 = por %p42, %p43
    %s46 = sadd.s32 %s45, 1
    %p49 = scmp.eq.s32.totalorder %s11, 1
    %p50 = scmp.ne.s32.totalorder %s45, %s47
    %p51 = scmp.eq.s32.totalorder %s11, 0
    %p52 = por %p50, %p51
    %p53 = scmp.ne.s32.totalorder %s45, %s47
    %p54 = scmp.eq.s32.totalorder %s16, 1
    %p55 = por %p53, %p54
    %p56 = scmp.ne.s32.totalorder %s47, %s48
    %p57 = scmp.eq.s32.totalorder %s16, 0
    %p58 = por %p56, %p57
    %p59 = scmp.ne.s32.totalorder %s47, %s48
    %p60 = scmp.eq.s32.totalorder %s17, 1
    %p61 = por %p59, %p60
    %p63 = scmp.ne.s32.totalorder %s48, %s62
    %p64 = scmp.eq.s32.totalorder %s17, 0
    %p65 = por %p63, %p64
    %s67 = sadd.s32 %s66, 1
    %p70 = scmp.eq.s32.totalorder %s11, 1
    %p71 = scmp.ne.s32.totalorder %s66, %s68
    %p72 = scmp.eq.s32.totalorder %s11, 0
    %p73 = por %p71, %p72
    %p74 = scmp.ne.s32.totalorder %s66, %s68
    %p75 = scmp.eq.s32.totalorder %s16, 1
    %p76 = por %p74, %p75
    %p77 = scmp.ne.s32.totalorder %s68, %s69
    %p78 = scmp.eq.s32.totalorder %s16, 0
    %p79 = por %p77, %p78
    %p80 = scmp.ne.s32.totalorder %s68, %s69
    %p81 = scmp.eq.s32.totalorder %s17, 1
    %p82 = por %p80, %p81
    %p84 = scmp.ne.s32.totalorder %s69, %s83
    %p85 = scmp.eq.s32.totalorder %s17, 0
    %p86 = por %p84, %p85
    %s87 = ssub.s32 %s11, %s18
    %p88 = scmp.eq.s32.totalorder %s87, 0
    %s90 = sadd.s32 %s89, 1
    %s91 = scalar_select %p88, %s89, %s90
    %p94 = pneg %p88
    %p95 = scmp.eq.s32.totalorder %s11, 1
    %p96 = por %p94, %p95
    %p97 = scmp.ne.s32.totalorder %s89, %s92
    %p98 = scmp.eq.s32.totalorder %s11, 0
    %p99 = por %p97, %p98
    %p100 = scmp.ne.s32.totalorder %s89, %s92
    %p101 = scmp.eq.s32.totalorder %s16, 1
    %p102 = por %p100, %p101
    %p103 = scmp.ne.s32.totalorder %s92, %s93
    %p104 = scmp.eq.s32.totalorder %s16, 0
    %p105 = por %p103, %p104
    %p106 = scmp.ne.s32.totalorder %s92, %s93
    %p107 = scmp.eq.s32.totalorder %s17, 1
    %p108 = por %p106, %p107
    %p110 = scmp.ne.s32.totalorder %s93, %s109
    %p111 = scmp.eq.s32.totalorder %s17, 0
    %p112 = por %p110, %p111
    %p113 = scmp.le.s32.totalorder 1, %s11
    %p114 = scmp.lt.s32.totalorder %s11, 3
    %p115 = pnand %p113, %p114
    %p116 = pneg %p115
    // Predicated region
    $region9: #{discriminator_forward.33} parent=5 // pred_check
      _
    $region10: #{discriminator_forward.33} parent=5 // pred_check_branch
      %118 = sbr.rel (%p115) target = $region12
    $region11: #{discriminator_forward.33} parent=5 // pred_region
      %s119 = ssub.s32 %s11, 1
      // Predicated region
      $region13: #{discriminator_forward.33} parent=11 // pred_check
        %p120 = pneg %p58
      $region14: #{discriminator_forward.33} parent=11 // pred_check_branch
        %122 = sbr.rel (%p120) target = $region16
      $region15: #{discriminator_forward.33} parent=11 // pred_region
        _
      $region16: #{discriminator_forward.33} parent=11 // pred_fallthru
        _
      // Predicated region
      $region17: #{discriminator_forward.33} parent=11 // pred_check
        %p123 = pneg %p79
      $region18: #{discriminator_forward.33} parent=11 // pred_check_branch
        %125 = sbr.rel (%p123) target = $region20
      $region19: #{discriminator_forward.33} parent=11 // pred_region
        _
      $region20: #{discriminator_forward.33} parent=11 // pred_fallthru
        _
    $region12: #{discriminator_forward.33} parent=5 // pred_fallthru
      _
    %p126 = scmp.lt.s32.totalorder %s11, 2
    // Predicated region
    $region21: #{discriminator_forward.33} parent=5 // pred_check
      %p127 = pneg %p126
    $region22: #{discriminator_forward.33} parent=5 // pred_check_branch
      %129 = sbr.rel (%p127) target = $region24
    $region23: #{discriminator_forward.33} parent=5 // pred_region
      // Predicated region
      $region25: #{discriminator_forward.33} parent=23 // pred_check
        %p130 = pneg %p31
      $region26: #{discriminator_forward.33} parent=23 // pred_check_branch
        %132 = sbr.rel (%p130) target = $region28
      $region27: #{discriminator_forward.33} parent=23 // pred_region
        %p133 = scmp.lt.s32.totalorder %s11, 1
        %s134 = scalar_select %p133, %s11, 1
        %s135 = smul.addr %s134, 8
        %s136 = smul.addr %s135, 4
        %s137 = scalar_lea.vmem %s0, %s136
      $region28: #{discriminator_forward.33} parent=23 // pred_fallthru
        _
    $region24: #{discriminator_forward.33} parent=5 // pred_fallthru
      _
    %p138 = scmp.le.s32.totalorder 1, %s11
    %p139 = scmp.lt.s32.totalorder %s11, 3
    %p140 = pnand %p138, %p139
    %p141 = pneg %p140
    // Predicated region
    $region29: #{discriminator_forward.33} parent=5 // pred_check
      _
    $region30: #{discriminator_forward.33} parent=5 // pred_check_branch
      %143 = sbr.rel (%p140) target = $region32
    $region31: #{discriminator_forward.33} parent=5 // pred_region
      %s144 = ssub.s32 %s11, 1
      %p145 = scmp.lt.s32.totalorder %s16, 1
      %s146 = scalar_select %p145, %s16, 1
      %s147 = smul.addr %s146, 8
      %s148 = smul.addr %s147, 4
      %s149 = scalar_lea.vmem %s0, %s148
      %p150 = pneg %p37
      %p151 = pneg %p34
      %p152 = pneg %p58
      %p153 = pneg %p55
      %p154 = pneg %p79
      %p155 = pneg %p76
      %p156 = pneg %p105
      %p157 = pneg %p102
      %p158 = scmp.lt.s32.totalorder %s16, 1
      %s159 = scalar_select %p158, %s16, 1
      %s160 = scalar_lea.vmem %s3, %s159
      %p161 = scmp.lt.s32.totalorder %s16, 1
      %s162 = scalar_select %p161, %s16, 1
      %s163 = smul.addr %s162, 8
      %s164 = smul.addr %s163, 4
      %s165 = scalar_lea.vmem %s0, %s164
      %p166 = scmp.lt.s32.totalorder %s16, 1
      %s167 = scalar_select %p166, %s16, 1
      %s168 = scalar_lea.vmem %s3, %s167
      %v170 = vld [vmem:[%s1] sm:$0x1]
      %v171 = vld [vmem:[%s165] sm:$0xf]
      %v172 = vld [vmem:[%s165 + $0x4] sm:$0xf]
      %v173 = vld [vmem:[%s165 + $0x8] sm:$0xf]
      %v174 = vld [vmem:[%s165 + $0xc] sm:$0xf]
      %v175 = vld [vmem:[%s165 + $0x10] sm:$0xf]
      %v176 = vld [vmem:[%s165 + $0x14] sm:$0xf]
      %v177 = vld [vmem:[%s165 + $0x18] sm:$0xf]
      %v178 = vld [vmem:[%s165 + $0x1c] sm:$0xf]
      %v179 = vld [vmem:[#allocation2] sm:$0x1]
      %v188 = vunpack.c.l.b16 %v171
      %v189 = vunpack.c.l.b16 %v172
      %v190 = vunpack.c.l.b16 %v173
      %v191 = vunpack.c.l.b16 %v174
      %v192 = vunpack.c.l.b16 %v175
      %v193 = vunpack.c.l.b16 %v176
      %v194 = vunpack.c.l.b16 %v177
      %v195 = vunpack.c.l.b16 %v178
      %v196 = vpack.c.b16 %v189, %v188
      %v197 = vpack.c.b16 %v191, %v190
      %v198 = vpack.c.b16 %v193, %v192
      %v199 = vpack.c.b16 %v195, %v194
      %vm204 = vcmask 523264
      %v206 = vsel %vm204, %v170, 0
      %208 = vmatpush.bf16.msra.mxu0 0
      %209 = vmatpush.bf16.msra.mxu0 0
      %210 = vmatpush.bf16.msra.mxu0 0
      %211 = vmatpush.bf16.msra.mxu0 0
      %212 = vmatpush.bf16.msra.mxu0 %v199
      %213 = vmatpush.bf16.msra.mxu0 %v198
      %214 = vmatpush.bf16.msra.mxu0 %v197
      %215 = vmatpush.bf16.msra.mxu0 %v196
      %216 = vmatmul.bf16.gmra.mxu0 %v206
      %v217 = vpop.f32.mrf.mxu0
      %v218 = vadd.f32 %v179, %v217
      %v219 = vpop.f32.mrf.mxu0
      %220 = vdwg.mxu0
      %vm221 = vcmask 0
      %222 = vst.msk [vmem:[%s168] sm:$0x1] %vm221, %v218
      %p223 = scmp.lt.s32.totalorder %s16, 1
      %s224 = scalar_select %p223, %s16, 1
      %s225 = scalar_lea.vmem %s3, %s224
      // Predicated region
      $region33: #{discriminator_forward.33} parent=31 // pred_check
        %p226 = pneg %p102
      $region34: #{discriminator_forward.33} parent=31 // pred_check_branch
        %228 = sbr.rel (%p226) target = $region36
      $region35: #{discriminator_forward.33} parent=31 // pred_region
        _
      $region36: #{discriminator_forward.33} parent=31 // pred_fallthru
        _
    $region32: #{discriminator_forward.33} parent=5 // pred_fallthru
      _
    %p229 = scmp.le.s32.totalorder 2, %s11
    // Predicated region
    $region37: #{discriminator_forward.33} parent=5 // pred_check
      %p230 = pneg %p229
    $region38: #{discriminator_forward.33} parent=5 // pred_check_branch
      %232 = sbr.rel (%p230) target = $region40
    $region39: #{discriminator_forward.33} parent=5 // pred_region
      %s233 = ssub.s32 %s11, 2
      // Predicated region
      $region41: #{discriminator_forward.33} parent=39 // pred_check
        %p234 = pneg %p108
      $region42: #{discriminator_forward.33} parent=39 // pred_check_branch
        %236 = sbr.rel (%p234) target = $region44
      $region43: #{discriminator_forward.33} parent=39 // pred_region
        %p237 = scmp.lt.s32.totalorder %s17, 1
        %s238 = scalar_select %p237, %s17, 1
        %s239 = scalar_lea.vmem %s3, %s238
      $region44: #{discriminator_forward.33} parent=39 // pred_fallthru
        _
    $region40: #{discriminator_forward.33} parent=5 // pred_fallthru
      _
  $region6: #{discriminator_forward.33} parent=0 // loop_footer
    %s15 = sadd.s32 1, %s11
  $region7: #{discriminator_forward.33} parent=0 // loop_footer_branch
    %10 = sbr.rel target = $region3
  $region8: #{discriminator_forward.33} parent=0 // loop_exit
    _

// kernel: discriminator_forward.32
$region0: #{discriminator_forward.32}
  #allocation0 [shape = 'u32[]', space=smem, size = 0x4, offset = 0x4, fixed_abs, tag = 'smem constant byte address 0x4 - core index']
  #allocation1 [shape = 'u32[72,128]{1,0:T(1,128)}', space=vmem, size = 0x9000, scoped, tag = 'internal scratch']
  %s0 = inlined_call_operand.vmem [shape: bf16[2,32,5], index: 0, kind: input, shape index: {}]
  %s1 = inlined_call_operand.vmem [shape: bf16[2,32,5], index: 1, kind: input, shape index: {}]
  %s2 = inlined_call_operand.vmem [shape: bf16[2,32,5], index: 2, kind: input, shape index: {}]
  %s3 = inlined_call_operand.vmem [shape: bf16[2,32,5], index: 3, kind: input, shape index: {}]
  %s4 = inlined_call_operand.vmem [shape: bf16[9,64,32], index: 4, kind: input, shape index: {}]
  %s5 = inlined_call_operand.vmem [shape: f32[64,1], index: 5, kind: input, shape index: {}]
  %s6 = inlined_call_operand.vmem [shape: bf16[2,64,2], index: 6, kind: output, shape index: {}]
  %s7 = sld [smem:[#allocation0]]
  $region57: #{discriminator_forward.32} parent=0
    _
  %s9 = ssub.s32 1, %s7
  %s10 = scalar_select 0, %s9, %s7
  loop: start=0, step=1, limit=4
  $region2: #{discriminator_forward.32} parent=0 // loop_pre_header
    _
  $region3: #{discriminator_forward.32} parent=0 // loop_header
    %s12 = sphi 0, %s16
    %p13 = scmp.ge.s32.totalorder %s12, 4
    %s22 = sphi 0, %s24
    %s25 = sphi 0, %s22
    %s26 = sphi 0, %s25
    %s42 = sphi 0, %s26
    %s48 = sphi 0, %s50
    %s51 = sphi 0, %s48
    %s52 = sphi 0, %s51
    %s68 = sphi 0, %s52
    %s74 = sphi 0, %s76
    %s77 = sphi 0, %s74
    %s78 = sphi 0, %s77
    %s94 = sphi 0, %s78
    %s100 = sphi 0, %s102
    %s103 = sphi 0, %s100
    %s104 = sphi 0, %s103
    %s120 = sphi 0, %s104
    %s124 = sphi 0, %s124
    %s126 = sphi 0, %s124
    %s127 = sphi 0, %s126
    %s141 = sphi 0, %s127
    %s145 = sphi 0, %s145
    %s147 = sphi 0, %s145
    %s148 = sphi 0, %s147
    %s162 = sphi 0, %s148
    %s168 = sphi 0, %s170
    %s171 = sphi 0, %s168
    %s172 = sphi 0, %s171
    %s188 = sphi 0, %s172
  $region4: #{discriminator_forward.32} parent=0 // loop_header_branch
    %15 = sbr.rel (%p13) target = $region8
  $region5: #{discriminator_forward.32} parent=0 // loop_body
    %s17 = ssub.s32 %s12, 1
    %s18 = ssub.s32 %s12, 2
    %s19 = sadd.s32 %s12, 1
    %s20 = ssub.s32 %s12, %s19
    %p21 = scmp.eq.s32.totalorder %s20, 0
    %s23 = sadd.s32 %s22, 1
    %s24 = scalar_select %p21, %s22, %s23
    %p27 = pneg %p21
    %p28 = scmp.eq.s32.totalorder %s12, 1
    %p29 = por %p27, %p28
    %p30 = scmp.ne.s32.totalorder %s22, %s25
    %p31 = scmp.eq.s32.totalorder %s12, 0
    %p32 = por %p30, %p31
    %p33 = scmp.ne.s32.totalorder %s22, %s25
    %p34 = scmp.eq.s32.totalorder %s17, 1
    %p35 = por %p33, %p34
    %p36 = scmp.ne.s32.totalorder %s25, %s26
    %p37 = scmp.eq.s32.totalorder %s17, 0
    %p38 = por %p36, %p37
    %p39 = scmp.ne.s32.totalorder %s25, %s26
    %p40 = scmp.eq.s32.totalorder %s18, 1
    %p41 = por %p39, %p40
    %p43 = scmp.ne.s32.totalorder %s26, %s42
    %p44 = scmp.eq.s32.totalorder %s18, 0
    %p45 = por %p43, %p44
    %s46 = ssub.s32 %s12, %s19
    %p47 = scmp.eq.s32.totalorder %s46, 0
    %s49 = sadd.s32 %s48, 1
    %s50 = scalar_select %p47, %s48, %s49
    %p53 = pneg %p47
    %p54 = scmp.eq.s32.totalorder %s12, 1
    %p55 = por %p53, %p54
    %p56 = scmp.ne.s32.totalorder %s48, %s51
    %p57 = scmp.eq.s32.totalorder %s12, 0
    %p58 = por %p56, %p57
    %p59 = scmp.ne.s32.totalorder %s48, %s51
    %p60 = scmp.eq.s32.totalorder %s17, 1
    %p61 = por %p59, %p60
    %p62 = scmp.ne.s32.totalorder %s51, %s52
    %p63 = scmp.eq.s32.totalorder %s17, 0
    %p64 = por %p62, %p63
    %p65 = scmp.ne.s32.totalorder %s51, %s52
    %p66 = scmp.eq.s32.totalorder %s18, 1
    %p67 = por %p65, %p66
    %p69 = scmp.ne.s32.totalorder %s52, %s68
    %p70 = scmp.eq.s32.totalorder %s18, 0
    %p71 = por %p69, %p70
    %s72 = ssub.s32 %s12, %s19
    %p73 = scmp.eq.s32.totalorder %s72, 0
    %s75 = sadd.s32 %s74, 1
    %s76 = scalar_select %p73, %s74, %s75
    %p79 = pneg %p73
    %p80 = scmp.eq.s32.totalorder %s12, 1
    %p81 = por %p79, %p80
    %p82 = scmp.ne.s32.totalorder %s74, %s77
    %p83 = scmp.eq.s32.totalorder %s12, 0
    %p84 = por %p82, %p83
    %p85 = scmp.ne.s32.totalorder %s74, %s77
    %p86 = scmp.eq.s32.totalorder %s17, 1
    %p87 = por %p85, %p86
    %p88 = scmp.ne.s32.totalorder %s77, %s78
    %p89 = scmp.eq.s32.totalorder %s17, 0
    %p90 = por %p88, %p89
    %p91 = scmp.ne.s32.totalorder %s77, %s78
    %p92 = scmp.eq.s32.totalorder %s18, 1
    %p93 = por %p91, %p92
    %p95 = scmp.ne.s32.totalorder %s78, %s94
    %p96 = scmp.eq.s32.totalorder %s18, 0
    %p97 = por %p95, %p96
    %s98 = ssub.s32 %s12, %s19
    %p99 = scmp.eq.s32.totalorder %s98, 0
    %s101 = sadd.s32 %s100, 1
    %s102 = scalar_select %p99, %s100, %s101
    %p105 = pneg %p99
    %p106 = scmp.eq.s32.totalorder %s12, 1
    %p107 = por %p105, %p106
    %p108 = scmp.ne.s32.totalorder %s100, %s103
    %p109 = scmp.eq.s32.totalorder %s12, 0
    %p110 = por %p108, %p109
    %p111 = scmp.ne.s32.totalorder %s100, %s103
    %p112 = scmp.eq.s32.totalorder %s17, 1
    %p113 = por %p111, %p112
    %p114 = scmp.ne.s32.totalorder %s103, %s104
    %p115 = scmp.eq.s32.totalorder %s17, 0
    %p116 = por %p114, %p115
    %p117 = scmp.ne.s32.totalorder %s103, %s104
    %p118 = scmp.eq.s32.totalorder %s18, 1
    %p119 = por %p117, %p118
    %p121 = scmp.ne.s32.totalorder %s104, %s120
    %p122 = scmp.eq.s32.totalorder %s18, 0
    %p123 = por %p121, %p122
    %s125 = sadd.s32 %s124, 1
    %p128 = scmp.eq.s32.totalorder %s12, 1
    %p129 = scmp.ne.s32.totalorder %s124, %s126
    %p130 = scmp.eq.s32.totalorder %s12, 0
    %p131 = por %p129, %p130
    %p132 = scmp.ne.s32.totalorder %s124, %s126
    %p133 = scmp.eq.s32.totalorder %s17, 1
    %p134 = por %p132, %p133
    %p135 = scmp.ne.s32.totalorder %s126, %s127
    %p136 = scmp.eq.s32.totalorder %s17, 0
    %p137 = por %p135, %p136
    %p138 = scmp.ne.s32.totalorder %s126, %s127
    %p139 = scmp.eq.s32.totalorder %s18, 1
    %p140 = por %p138, %p139
    %p142 = scmp.ne.s32.totalorder %s127, %s141
    %p143 = scmp.eq.s32.totalorder %s18, 0
    %p144 = por %p142, %p143
    %s146 = sadd.s32 %s145, 1
    %p149 = scmp.eq.s32.totalorder %s12, 1
    %p150 = scmp.ne.s32.totalorder %s145, %s147
    %p151 = scmp.eq.s32.totalorder %s12, 0
    %p152 = por %p150, %p151
    %p153 = scmp.ne.s32.totalorder %s145, %s147
    %p154 = scmp.eq.s32.totalorder %s17, 1
    %p155 = por %p153, %p154
    %p156 = scmp.ne.s32.totalorder %s147, %s148
    %p157 = scmp.eq.s32.totalorder %s17, 0
    %p158 = por %p156, %p157
    %p159 = scmp.ne.s32.totalorder %s147, %s148
    %p160 = scmp.eq.s32.totalorder %s18, 1
    %p161 = por %p159, %p160
    %p163 = scmp.ne.s32.totalorder %s148, %s162
    %p164 = scmp.eq.s32.totalorder %s18, 0
    %p165 = por %p163, %p164
    %s166 = ssub.s32 %s12, %s19
    %p167 = scmp.eq.s32.totalorder %s166, 0
    %s169 = sadd.s32 %s168, 1
    %s170 = scalar_select %p167, %s168, %s169
    %p173 = pneg %p167
    %p174 = scmp.eq.s32.totalorder %s12, 1
    %p175 = por %p173, %p174
    %p176 = scmp.ne.s32.totalorder %s168, %s171
    %p177 = scmp.eq.s32.totalorder %s12, 0
    %p178 = por %p176, %p177
    %p179 = scmp.ne.s32.totalorder %s168, %s171
    %p180 = scmp.eq.s32.totalorder %s17, 1
    %p181 = por %p179, %p180
    %p182 = scmp.ne.s32.totalorder %s171, %s172
    %p183 = scmp.eq.s32.totalorder %s17, 0
    %p184 = por %p182, %p183
    %p185 = scmp.ne.s32.totalorder %s171, %s172
    %p186 = scmp.eq.s32.totalorder %s18, 1
    %p187 = por %p185, %p186
    %p189 = scmp.ne.s32.totalorder %s172, %s188
    %p190 = scmp.eq.s32.totalorder %s18, 0
    %p191 = por %p189, %p190
    %p192 = scmp.le.s32.totalorder 1, %s12
    %p193 = scmp.lt.s32.totalorder %s12, 3
    %p194 = pnand %p192, %p193
    %p195 = pneg %p194
    // Predicated region
    $region9: #{discriminator_forward.32} parent=5 // pred_check
      _
    $region10: #{discriminator_forward.32} parent=5 // pred_check_branch
      %197 = sbr.rel (%p194) target = $region12
    $region11: #{discriminator_forward.32} parent=5 // pred_region
      %s198 = ssub.s32 %s12, 1
      // Predicated region
      $region13: #{discriminator_forward.32} parent=11 // pred_check
        %p199 = pneg %p137
      $region14: #{discriminator_forward.32} parent=11 // pred_check_branch
        %201 = sbr.rel (%p199) target = $region16
      $region15: #{discriminator_forward.32} parent=11 // pred_region
        _
      $region16: #{discriminator_forward.32} parent=11 // pred_fallthru
        _
      // Predicated region
      $region17: #{discriminator_forward.32} parent=11 // pred_check
        %p202 = pneg %p158
      $region18: #{discriminator_forward.32} parent=11 // pred_check_branch
        %204 = sbr.rel (%p202) target = $region20
      $region19: #{discriminator_forward.32} parent=11 // pred_region
        _
      $region20: #{discriminator_forward.32} parent=11 // pred_fallthru
        _
    $region12: #{discriminator_forward.32} parent=5 // pred_fallthru
      _
    %p205 = scmp.lt.s32.totalorder %s12, 2
    // Predicated region
    $region21: #{discriminator_forward.32} parent=5 // pred_check
      %p206 = pneg %p205
    $region22: #{discriminator_forward.32} parent=5 // pred_check_branch
      %208 = sbr.rel (%p206) target = $region24
    $region23: #{discriminator_forward.32} parent=5 // pred_region
      // Predicated region
      $region25: #{discriminator_forward.32} parent=23 // pred_check
        %p209 = pneg %p32
      $region26: #{discriminator_forward.32} parent=23 // pred_check_branch
        %211 = sbr.rel (%p209) target = $region28
      $region27: #{discriminator_forward.32} parent=23 // pred_region
        %p212 = scmp.lt.s32.totalorder %s12, 1
        %s213 = scalar_select %p212, %s12, 1
        %s214 = smul.addr %s213, 4
        %s215 = smul.addr %s214, 4
        %s216 = scalar_lea.vmem %s0, %s215
      $region28: #{discriminator_forward.32} parent=23 // pred_fallthru
        _
      // Predicated region
      $region29: #{discriminator_forward.32} parent=23 // pred_check
        %p217 = pneg %p58
      $region30: #{discriminator_forward.32} parent=23 // pred_check_branch
        %219 = sbr.rel (%p217) target = $region32
      $region31: #{discriminator_forward.32} parent=23 // pred_region
        %p220 = scmp.lt.s32.totalorder %s12, 1
        %s221 = scalar_select %p220, %s12, 1
        %s222 = smul.addr %s221, 4
        %s223 = smul.addr %s222, 4
        %s224 = scalar_lea.vmem %s1, %s223
      $region32: #{discriminator_forward.32} parent=23 // pred_fallthru
        _
      // Predicated region
      $region33: #{discriminator_forward.32} parent=23 // pred_check
        %p225 = pneg %p84
      $region34: #{discriminator_forward.32} parent=23 // pred_check_branch
        %227 = sbr.rel (%p225) target = $region36
      $region35: #{discriminator_forward.32} parent=23 // pred_region
        %p228 = scmp.lt.s32.totalorder %s12, 1
        %s229 = scalar_select %p228, %s12, 1
        %s230 = smul.addr %s229, 4
        %s231 = smul.addr %s230, 4
        %s232 = scalar_lea.vmem %s2, %s231
      $region36: #{discriminator_forward.32} parent=23 // pred_fallthru
        _
      // Predicated region
      $region37: #{discriminator_forward.32} parent=23 // pred_check
        %p233 = pneg %p110
      $region38: #{discriminator_forward.32} parent=23 // pred_check_branch
        %235 = sbr.rel (%p233) target = $region40
      $region39: #{discriminator_forward.32} parent=23 // pred_region
        %p236 = scmp.lt.s32.totalorder %s12, 1
        %s237 = scalar_select %p236, %s12, 1
        %s238 = smul.addr %s237, 4
        %s239 = smul.addr %s238, 4
        %s240 = scalar_lea.vmem %s3, %s239
      $region40: #{discriminator_forward.32} parent=23 // pred_fallthru
        _
    $region24: #{discriminator_forward.32} parent=5 // pred_fallthru
      _
    %p241 = scmp.le.s32.totalorder 1, %s12
    %p242 = scmp.lt.s32.totalorder %s12, 3
    %p243 = pnand %p241, %p242
    %p244 = pneg %p243
    // Predicated region
    $region41: #{discriminator_forward.32} parent=5 // pred_check
      _
    $region42: #{discriminator_forward.32} parent=5 // pred_check_branch
      %246 = sbr.rel (%p243) target = $region44
    $region43: #{discriminator_forward.32} parent=5 // pred_region
      %s247 = ssub.s32 %s12, 1
      %p248 = scmp.lt.s32.totalorder %s17, 1
      %s249 = scalar_select %p248, %s17, 1
      %s250 = smul.addr %s249, 4
      %s251 = smul.addr %s250, 4
      %s252 = scalar_lea.vmem %s0, %s251
      %p253 = pneg %p38
      %p254 = pneg %p35
      %p255 = scmp.lt.s32.totalorder %s17, 1
      %s256 = scalar_select %p255, %s17, 1
      %s257 = smul.addr %s256, 4
      %s258 = smul.addr %s257, 4
      %s259 = scalar_lea.vmem %s1, %s258
      %p260 = pneg %p64
      %p261 = pneg %p61
      %p262 = scmp.lt.s32.totalorder %s17, 1
      %s263 = scalar_select %p262, %s17, 1
      %s264 = smul.addr %s263, 4
      %s265 = smul.addr %s264, 4
      %s266 = scalar_lea.vmem %s2, %s265
      %p267 = pneg %p90
      %p268 = pneg %p87
      %p269 = scmp.lt.s32.totalorder %s17, 1
      %s270 = scalar_select %p269, %s17, 1
      %s271 = smul.addr %s270, 4
      %s272 = smul.addr %s271, 4
      %s273 = scalar_lea.vmem %s3, %s272
      %p274 = pneg %p116
      %p275 = pneg %p113
      %p276 = pneg %p137
      %p277 = pneg %p134
      %p278 = pneg %p158
      %p279 = pneg %p155
      %p280 = pneg %p184
      %p281 = pneg %p181
      %p282 = scmp.lt.s32.totalorder %s17, 1
      %s283 = scalar_select %p282, %s17, 1
      %s284 = smul.addr %s283, 8
      %s285 = smul.addr %s284, 4
      %s286 = scalar_lea.vmem %s6, %s285
      %p287 = scmp.lt.s32.totalorder %s17, 1
      %s288 = scalar_select %p287, %s17, 1
      %s289 = smul.addr %s288, 4
      %s290 = smul.addr %s289, 4
      %s291 = scalar_lea.vmem %s0, %s290
      %p292 = scmp.lt.s32.totalorder %s17, 1
      %s293 = scalar_select %p292, %s17, 1
      %s294 = smul.addr %s293, 4
      %s295 = smul.addr %s294, 4
      %s296 = scalar_lea.vmem %s1, %s295
      %p297 = scmp.lt.s32.totalorder %s17, 1
      %s298 = scalar_select %p297, %s17, 1
      %s299 = smul.addr %s298, 4
      %s300 = smul.addr %s299, 4
      %s301 = scalar_lea.vmem %s2, %s300
      %p302 = scmp.lt.s32.totalorder %s17, 1
      %s303 = scalar_select %p302, %s17, 1
      %s304 = smul.addr %s303, 4
      %s305 = smul.addr %s304, 4
      %s306 = scalar_lea.vmem %s3, %s305
      %p307 = scmp.lt.s32.totalorder %s17, 1
      %s308 = scalar_select %p307, %s17, 1
      %s309 = smul.addr %s308, 8
      %s310 = smul.addr %s309, 4
      %s311 = scalar_lea.vmem %s6, %s310
      %v313 = vld [vmem:[%s291] sm:$0xf]
      %v314 = vld [vmem:[%s291 + $0x4] sm:$0xf]
      %v315 = vld [vmem:[%s291 + $0x8] sm:$0xf]
      %v316 = vld [vmem:[%s291 + $0xc] sm:$0xf]
      %v317 = vld [vmem:[%s4] sm:$0xf]
      %v318 = vld [vmem:[%s4 + $0x4] sm:$0xf]
      %v319 = vld [vmem:[%s4 + $0x8] sm:$0xf]
      %v320 = vld [vmem:[%s4 + $0xc] sm:$0xf]
      %v321 = vld [vmem:[%s4 + $0x10] sm:$0xf]
      %v322 = vld [vmem:[%s4 + $0x14] sm:$0xf]
      %v323 = vld [vmem:[%s4 + $0x18] sm:$0xf]
      %v324 = vld [vmem:[%s4 + $0x1c] sm:$0xf]
      %v325 = vld [vmem:[%s296] sm:$0xf]
      %v326 = vld [vmem:[%s296 + $0x4] sm:$0xf]
      %v327 = vld [vmem:[%s296 + $0x8] sm:$0xf]
      %v328 = vld [vmem:[%s296 + $0xc] sm:$0xf]
      %s329 = scalar_lea.vmem %s4, 32
      %v330 = vld [vmem:[%s329] sm:$0xf]
      %v331 = vld [vmem:[%s329 + $0x4] sm:$0xf]
      %v332 = vld [vmem:[%s329 + $0x8] sm:$0xf]
      %v333 = vld [vmem:[%s329 + $0xc] sm:$0xf]
      %v334 = vld [vmem:[%s329 + $0x10] sm:$0xf]
      %v335 = vld [vmem:[%s329 + $0x14] sm:$0xf]
      %v336 = vld [vmem:[%s329 + $0x18] sm:$0xf]
      %v337 = vld [vmem:[%s329 + $0x1c] sm:$0xf]
      %v346 = vunpack.c.l.b16 %v330
      %v347 = vunpack.c.l.b16 %v331
      %v348 = vunpack.c.l.b16 %v332
      %v349 = vunpack.c.l.b16 %v333
      %v350 = vunpack.c.l.b16 %v334
      %v351 = vunpack.c.l.b16 %v335
      %v352 = vunpack.c.l.b16 %v336
      %v353 = vunpack.c.l.b16 %v337
      %v354 = vpack.c.b16 %v347, %v346
      %v355 = vpack.c.b16 %v349, %v348
      %v356 = vpack.c.b16 %v351, %v350
      %v357 = vpack.c.b16 %v353, %v352
      %v362 = vunpack.c.l.b16 %v325
      %v363 = vunpack.c.l.b16 %v326
      %v364 = vunpack.c.l.b16 %v327
      %v365 = vunpack.c.l.b16 %v328
      %v366 = vpack.c.b16 %v363, %v362
      %v367 = vpack.c.b16 %v365, %v364
      %vm370 = vcmask 261120
      %v372 = vsel %vm370, %v354, 0
      %v375 = vsel %vm370, %v355, 0
      %v378 = vsel %vm370, %v356, 0
      %v381 = vsel %vm370, %v357, 0
      %383 = vmatpush.bf16.msra.mxu0 0
      %384 = vmatpush.bf16.msra.mxu0 0
      %385 = vmatpush.bf16.msra.mxu0 0
      %386 = vmatpush.bf16.msra.mxu0 0
      %387 = vmatpush.bf16.msra.mxu0 0
      %388 = vmatpush.bf16.msra.mxu0 0
      %389 = vmatpush.bf16.msra.mxu0 %v367
      %390 = vmatpush.bf16.msra.mxu0 %v366
      %391 = vmatmul.bf16.gmra.mxu0 %v372
      %v392 = vpop.f32.mrf.mxu0
      %v393 = vadd.f32 0.0, %v392
      %v394 = vpop.f32.mrf.mxu0
      %v395 = vadd.f32 0.0, %v394
      %396 = vmatmul.bf16.gmra.mxu0 %v375
      %v397 = vpop.f32.mrf.mxu0
      %v398 = vadd.f32 0.0, %v397
      %v399 = vpop.f32.mrf.mxu0
      %v400 = vadd.f32 0.0, %v399
      %401 = vmatmul.bf16.gmra.mxu0 %v378
      %v402 = vpop.f32.mrf.mxu0
      %v403 = vadd.f32 0.0, %v402
      %v404 = vpop.f32.mrf.mxu0
      %v405 = vadd.f32 0.0, %v404
      %406 = vmatmul.bf16.gmra.mxu0 %v381
      %v407 = vpop.f32.mrf.mxu0
      %v408 = vadd.f32 0.0, %v407
      %v409 = vpop.f32.mrf.mxu0
      %v410 = vadd.f32 0.0, %v409
      %411 = vdwg.mxu0
      %v420 = vunpack.c.l.b16 %v317
      %v421 = vunpack.c.l.b16 %v318
      %v422 = vunpack.c.l.b16 %v319
      %v423 = vunpack.c.l.b16 %v320
      %v424 = vunpack.c.l.b16 %v321
      %v425 = vunpack.c.l.b16 %v322
      %v426 = vunpack.c.l.b16 %v323
      %v427 = vunpack.c.l.b16 %v324
      %v428 = vpack.c.b16 %v421, %v420
      %v429 = vpack.c.b16 %v423, %v422
      %v430 = vpack.c.b16 %v425, %v424
      %v431 = vpack.c.b16 %v427, %v426
      %v436 = vunpack.c.l.b16 %v313
      %v437 = vunpack.c.l.b16 %v314
      %v438 = vunpack.c.l.b16 %v315
      %v439 = vunpack.c.l.b16 %v316
      %v440 = vpack.c.b16 %v437, %v436
      %v441 = vpack.c.b16 %v439, %v438
      %v445 = vsel %vm370, %v428, 0
      %v448 = vsel %vm370, %v429, 0
      %v451 = vsel %vm370, %v430, 0
      %v454 = vsel %vm370, %v431, 0
      %456 = vmatpush.bf16.msra.mxu0 0
      %457 = vmatpush.bf16.msra.mxu0 0
      %458 = vmatpush.bf16.msra.mxu0 0
      %459 = vmatpush.bf16.msra.mxu0 0
      %460 = vmatpush.bf16.msra.mxu0 0
      %461 = vmatpush.bf16.msra.mxu0 0
      %462 = vmatpush.bf16.msra.mxu0 %v441
      %463 = vmatpush.bf16.msra.mxu0 %v440
      %464 = vmatmul.bf16.gmra.mxu0 %v445
      %v465 = vpop.f32.mrf.mxu0
      %v466 = vadd.f32 %v393, %v465
      %v467 = vpop.f32.mrf.mxu0
      %v468 = vadd.f32 %v395, %v467
      %469 = vmatmul.bf16.gmra.mxu0 %v448
      %v470 = vpop.f32.mrf.mxu0
      %v471 = vadd.f32 %v398, %v470
      %v472 = vpop.f32.mrf.mxu0
      %v473 = vadd.f32 %v400, %v472
      %474 = vmatmul.bf16.gmra.mxu0 %v451
      %v475 = vpop.f32.mrf.mxu0
      %v476 = vadd.f32 %v403, %v475
      %v477 = vpop.f32.mrf.mxu0
      %v478 = vadd.f32 %v405, %v477
      %479 = vmatmul.bf16.gmra.mxu0 %v454
      %v480 = vpop.f32.mrf.mxu0
      %v481 = vadd.f32 %v408, %v480
      %v482 = vpop.f32.mrf.mxu0
      %v483 = vadd.f32 %v410, %v482
      %484 = vdwg.mxu0
      %s485 = scalar_lea.vmem %s4, 64
      %v486 = vld [vmem:[%s485] sm:$0xf]
      %v487 = vld [vmem:[%s485 + $0x4] sm:$0xf]
      %v488 = vld [vmem:[%s485 + $0x8] sm:$0xf]
      %v489 = vld [vmem:[%s485 + $0xc] sm:$0xf]
      %v490 = vld [vmem:[%s485 + $0x10] sm:$0xf]
      %v491 = vld [vmem:[%s485 + $0x14] sm:$0xf]
      %v492 = vld [vmem:[%s485 + $0x18] sm:$0xf]
      %v493 = vld [vmem:[%s485 + $0x1c] sm:$0xf]
      %v502 = vunpack.c.l.b16 %v486
      %v503 = vunpack.c.l.b16 %v487
      %v504 = vunpack.c.l.b16 %v488
      %v505 = vunpack.c.l.b16 %v489
      %v506 = vunpack.c.l.b16 %v490
      %v507 = vunpack.c.l.b16 %v491
      %v508 = vunpack.c.l.b16 %v492
      %v509 = vunpack.c.l.b16 %v493
      %v510 = vpack.c.b16 %v503, %v502
      %v511 = vpack.c.b16 %v505, %v504
      %v512 = vpack.c.b16 %v507, %v506
      %v513 = vpack.c.b16 %v509, %v508
      %514 = vrot.lane.b32.xlu0 %v440, 127
      %v515 = vpop.permute.xlu0 %514
      %516 = vrot.lane.b32.xlu0 %v441, 127
      %v517 = vpop.permute.xlu0 %516
      %v521 = vsel %vm370, %v510, 0
      %v524 = vsel %vm370, %v511, 0
      %v527 = vsel %vm370, %v512, 0
      %v530 = vsel %vm370, %v513, 0
      %532 = vmatpush.bf16.msra.mxu0 0
      %533 = vmatpush.bf16.msra.mxu0 0
      %534 = vmatpush.bf16.msra.mxu0 0
      %535 = vmatpush.bf16.msra.mxu0 0
      %536 = vmatpush.bf16.msra.mxu0 0
      %537 = vmatpush.bf16.msra.mxu0 0
      %538 = vmatpush.bf16.msra.mxu0 %v517
      %539 = vmatpush.bf16.msra.mxu0 %v515
      %540 = vmatmul.bf16.gmra.mxu0 %v521
      %v541 = vpop.f32.mrf.mxu0
      %v542 = vadd.f32 0.0, %v541
      %v543 = vpop.f32.mrf.mxu0
      %v544 = vadd.f32 0.0, %v543
      %545 = vmatmul.bf16.gmra.mxu0 %v524
      %v546 = vpop.f32.mrf.mxu0
      %v547 = vadd.f32 0.0, %v546
      %v548 = vpop.f32.mrf.mxu0
      %v549 = vadd.f32 0.0, %v548
      %550 = vmatmul.bf16.gmra.mxu0 %v527
      %v551 = vpop.f32.mrf.mxu0
      %v552 = vadd.f32 0.0, %v551
      %v553 = vpop.f32.mrf.mxu0
      %v554 = vadd.f32 0.0, %v553
      %555 = vmatmul.bf16.gmra.mxu0 %v530
      %v556 = vpop.f32.mrf.mxu0
      %v557 = vadd.f32 0.0, %v556
      %v558 = vpop.f32.mrf.mxu0
      %v559 = vadd.f32 0.0, %v558
      %560 = vdwg.mxu0
      %v561 = vadd.f32 %v466, %v542
      %v562 = vadd.f32 %v468, %v544
      %v563 = vadd.f32 %v471, %v547
      %v564 = vadd.f32 %v473, %v549
      %v565 = vadd.f32 %v476, %v552
      %v566 = vadd.f32 %v478, %v554
      %v567 = vadd.f32 %v481, %v557
      %v568 = vadd.f32 %v483, %v559
      %v569 = vld [vmem:[%s301] sm:$0xf]
      %v570 = vld [vmem:[%s301 + $0x4] sm:$0xf]
      %v571 = vld [vmem:[%s301 + $0x8] sm:$0xf]
      %v572 = vld [vmem:[%s301 + $0xc] sm:$0xf]
      %s573 = scalar_lea.vmem %s4, 96
      %v574 = vld [vmem:[%s573] sm:$0xf]
      %v575 = vld [vmem:[%s573 + $0x4] sm:$0xf]
      %v576 = vld [vmem:[%s573 + $0x8] sm:$0xf]
      %v577 = vld [vmem:[%s573 + $0xc] sm:$0xf]
      %v578 = vld [vmem:[%s573 + $0x10] sm:$0xf]
      %v579 = vld [vmem:[%s573 + $0x14] sm:$0xf]
      %v580 = vld [vmem:[%s573 + $0x18] sm:$0xf]
      %v581 = vld [vmem:[%s573 + $0x1c] sm:$0xf]
      %v590 = vunpack.c.l.b16 %v574
      %v591 = vunpack.c.l.b16 %v575
      %v592 = vunpack.c.l.b16 %v576
      %v593 = vunpack.c.l.b16 %v577
      %v594 = vunpack.c.l.b16 %v578
      %v595 = vunpack.c.l.b16 %v579
      %v596 = vunpack.c.l.b16 %v580
      %v597 = vunpack.c.l.b16 %v581
      %v598 = vpack.c.b16 %v591, %v590
      %v599 = vpack.c.b16 %v593, %v592
      %v600 = vpack.c.b16 %v595, %v594
      %v601 = vpack.c.b16 %v597, %v596
      %v606 = vunpack.c.l.b16 %v569
      %v607 = vunpack.c.l.b16 %v570
      %v608 = vunpack.c.l.b16 %v571
      %v609 = vunpack.c.l.b16 %v572
      %v610 = vpack.c.b16 %v607, %v606
      %v611 = vpack.c.b16 %v609, %v608
      %v615 = vsel %vm370, %v598, 0
      %v618 = vsel %vm370, %v599, 0
      %v621 = vsel %vm370, %v600, 0
      %v624 = vsel %vm370, %v601, 0
      %626 = vmatpush.bf16.msra.mxu0 0
      %627 = vmatpush.bf16.msra.mxu0 0
      %628 = vmatpush.bf16.msra.mxu0 0
      %629 = vmatpush.bf16.msra.mxu0 0
      %630 = vmatpush.bf16.msra.mxu0 0
      %631 = vmatpush.bf16.msra.mxu0 0
      %632 = vmatpush.bf16.msra.mxu0 %v611
      %633 = vmatpush.bf16.msra.mxu0 %v610
      %634 = vmatmul.bf16.gmra.mxu0 %v615
      %v635 = vpop.f32.mrf.mxu0
      %v636 = vadd.f32 0.0, %v635
      %v637 = vpop.f32.mrf.mxu0
      %v638 = vadd.f32 0.0, %v637
      %639 = vmatmul.bf16.gmra.mxu0 %v618
      %v640 = vpop.f32.mrf.mxu0
      %v641 = vadd.f32 0.0, %v640
      %v642 = vpop.f32.mrf.mxu0
      %v643 = vadd.f32 0.0, %v642
      %644 = vmatmul.bf16.gmra.mxu0 %v621
      %v645 = vpop.f32.mrf.mxu0
      %v646 = vadd.f32 0.0, %v645
      %v647 = vpop.f32.mrf.mxu0
      %v648 = vadd.f32 0.0, %v647
      %649 = vmatmul.bf16.gmra.mxu0 %v624
      %v650 = vpop.f32.mrf.mxu0
      %v651 = vadd.f32 0.0, %v650
      %v652 = vpop.f32.mrf.mxu0
      %v653 = vadd.f32 0.0, %v652
      %654 = vdwg.mxu0
      %v655 = vadd.f32 %v561, %v636
      %v656 = vadd.f32 %v562, %v638
      %v657 = vadd.f32 %v563, %v641
      %v658 = vadd.f32 %v564, %v643
      %v659 = vadd.f32 %v565, %v646
      %v660 = vadd.f32 %v566, %v648
      %v661 = vadd.f32 %v567, %v651
      %v662 = vadd.f32 %v568, %v653
      %v663 = vld [vmem:[%s306] sm:$0xf]
      %v664 = vld [vmem:[%s306 + $0x4] sm:$0xf]
      %v665 = vld [vmem:[%s306 + $0x8] sm:$0xf]
      %v666 = vld [vmem:[%s306 + $0xc] sm:$0xf]
      %s667 = scalar_lea.vmem %s4, 128
      %v668 = vld [vmem:[%s667] sm:$0xf]
      %v669 = vld [vmem:[%s667 + $0x4] sm:$0xf]
      %v670 = vld [vmem:[%s667 + $0x8] sm:$0xf]
      %v671 = vld [vmem:[%s667 + $0xc] sm:$0xf]
      %v672 = vld [vmem:[%s667 + $0x10] sm:$0xf]
      %v673 = vld [vmem:[%s667 + $0x14] sm:$0xf]
      %v674 = vld [vmem:[%s667 + $0x18] sm:$0xf]
      %v675 = vld [vmem:[%s667 + $0x1c] sm:$0xf]
      %v684 = vunpack.c.l.b16 %v668
      %v685 = vunpack.c.l.b16 %v669
      %v686 = vunpack.c.l.b16 %v670
      %v687 = vunpack.c.l.b16 %v671
      %v688 = vunpack.c.l.b16 %v672
      %v689 = vunpack.c.l.b16 %v673
      %v690 = vunpack.c.l.b16 %v674
      %v691 = vunpack.c.l.b16 %v675
      %v692 = vpack.c.b16 %v685, %v684
      %v693 = vpack.c.b16 %v687, %v686
      %v694 = vpack.c.b16 %v689, %v688
      %v695 = vpack.c.b16 %v691, %v690
      %v700 = vunpack.c.l.b16 %v663
      %v701 = vunpack.c.l.b16 %v664
      %v702 = vunpack.c.l.b16 %v665
      %v703 = vunpack.c.l.b16 %v666
      %v704 = vpack.c.b16 %v701, %v700
      %v705 = vpack.c.b16 %v703, %v702
      %v709 = vsel %vm370, %v692, 0
      %v712 = vsel %vm370, %v693, 0
      %v715 = vsel %vm370, %v694, 0
      %v718 = vsel %vm370, %v695, 0
      %720 = vmatpush.bf16.msra.mxu0 0
      %721 = vmatpush.bf16.msra.mxu0 0
      %722 = vmatpush.bf16.msra.mxu0 0
      %723 = vmatpush.bf16.msra.mxu0 0
      %724 = vmatpush.bf16.msra.mxu0 0
      %725 = vmatpush.bf16.msra.mxu0 0
      %726 = vmatpush.bf16.msra.mxu0 %v705
      %727 = vmatpush.bf16.msra.mxu0 %v704
      %728 = vmatmul.bf16.gmra.mxu0 %v709
      %v729 = vpop.f32.mrf.mxu0
      %v730 = vadd.f32 0.0, %v729
      %v731 = vpop.f32.mrf.mxu0
      %v732 = vadd.f32 0.0, %v731
      %733 = vmatmul.bf16.gmra.mxu0 %v712
      %v734 = vpop.f32.mrf.mxu0
      %v735 = vadd.f32 0.0, %v734
      %v736 = vpop.f32.mrf.mxu0
      %v737 = vadd.f32 0.0, %v736
      %738 = vmatmul.bf16.gmra.mxu0 %v715
      %v739 = vpop.f32.mrf.mxu0
      %v740 = vadd.f32 0.0, %v739
      %v741 = vpop.f32.mrf.mxu0
      %v742 = vadd.f32 0.0, %v741
      %743 = vmatmul.bf16.gmra.mxu0 %v718
      %v744 = vpop.f32.mrf.mxu0
      %v745 = vadd.f32 0.0, %v744
      %v746 = vpop.f32.mrf.mxu0
      %v747 = vadd.f32 0.0, %v746
      %748 = vdwg.mxu0
      %v749 = vadd.f32 %v655, %v730
      %v750 = vadd.f32 %v656, %v732
      %v751 = vadd.f32 %v657, %v735
      %v752 = vadd.f32 %v658, %v737
      %v753 = vadd.f32 %v659, %v740
      %v754 = vadd.f32 %v660, %v742
      %v755 = vadd.f32 %v661, %v745
      %v756 = vadd.f32 %v662, %v747
      %s757 = scalar_lea.vmem %s4, 160
      %v758 = vld [vmem:[%s757] sm:$0xf]
      %v759 = vld [vmem:[%s757 + $0x4] sm:$0xf]
      %v760 = vld [vmem:[%s757 + $0x8] sm:$0xf]
      %v761 = vld [vmem:[%s757 + $0xc] sm:$0xf]
      %v762 = vld [vmem:[%s757 + $0x10] sm:$0xf]
      %v763 = vld [vmem:[%s757 + $0x14] sm:$0xf]
      %v764 = vld [vmem:[%s757 + $0x18] sm:$0xf]
      %v765 = vld [vmem:[%s757 + $0x1c] sm:$0xf]
      %v774 = vunpack.c.l.b16 %v758
      %v775 = vunpack.c.l.b16 %v759
      %v776 = vunpack.c.l.b16 %v760
      %v777 = vunpack.c.l.b16 %v761
      %v778 = vunpack.c.l.b16 %v762
      %v779 = vunpack.c.l.b16 %v763
      %v780 = vunpack.c.l.b16 %v764
      %v781 = vunpack.c.l.b16 %v765
      %v782 = vpack.c.b16 %v775, %v774
      %v783 = vpack.c.b16 %v777, %v776
      %v784 = vpack.c.b16 %v779, %v778
      %v785 = vpack.c.b16 %v781, %v780
      %786 = vrot.lane.b32.xlu0 %v610, 127
      %v787 = vpop.permute.xlu0 %786
      %788 = vrot.lane.b32.xlu0 %v611, 127
      %v789 = vpop.permute.xlu0 %788
      %v793 = vsel %vm370, %v782, 0
      %v796 = vsel %vm370, %v783, 0
      %v799 = vsel %vm370, %v784, 0
      %v802 = vsel %vm370, %v785, 0
      %804 = vmatpush.bf16.msra.mxu0 0
      %805 = vmatpush.bf16.msra.mxu0 0
      %806 = vmatpush.bf16.msra.mxu0 0
      %807 = vmatpush.bf16.msra.mxu0 0
      %808 = vmatpush.bf16.msra.mxu0 0
      %809 = vmatpush.bf16.msra.mxu0 0
      %810 = vmatpush.bf16.msra.mxu0 %v789
      %811 = vmatpush.bf16.msra.mxu0 %v787
      %812 = vmatmul.bf16.gmra.mxu0 %v793
      %v813 = vpop.f32.mrf.mxu0
      %v814 = vadd.f32 0.0, %v813
      %v815 = vpop.f32.mrf.mxu0
      %v816 = vadd.f32 0.0, %v815
      %817 = vmatmul.bf16.gmra.mxu0 %v796
      %v818 = vpop.f32.mrf.mxu0
      %v819 = vadd.f32 0.0, %v818
      %v820 = vpop.f32.mrf.mxu0
      %v821 = vadd.f32 0.0, %v820
      %822 = vmatmul.bf16.gmra.mxu0 %v799
      %v823 = vpop.f32.mrf.mxu0
      %v824 = vadd.f32 0.0, %v823
      %v825 = vpop.f32.mrf.mxu0
      %v826 = vadd.f32 0.0, %v825
      %827 = vmatmul.bf16.gmra.mxu0 %v802
      %v828 = vpop.f32.mrf.mxu0
      %v829 = vadd.f32 0.0, %v828
      %v830 = vpop.f32.mrf.mxu0
      %v831 = vadd.f32 0.0, %v830
      %832 = vdwg.mxu0
      %v833 = vadd.f32 %v749, %v814
      %v834 = vadd.f32 %v750, %v816
      %v835 = vadd.f32 %v751, %v819
      %v836 = vadd.f32 %v752, %v821
      %v837 = vadd.f32 %v753, %v824
      %v838 = vadd.f32 %v754, %v826
      %v839 = vadd.f32 %v755, %v829
      %v840 = vadd.f32 %v756, %v831
      %s841 = scalar_lea.vmem %s4, 192
      %v842 = vld [vmem:[%s841] sm:$0xf]
      %v843 = vld [vmem:[%s841 + $0x4] sm:$0xf]
      %v844 = vld [vmem:[%s841 + $0x8] sm:$0xf]
      %v845 = vld [vmem:[%s841 + $0xc] sm:$0xf]
      %v846 = vld [vmem:[%s841 + $0x10] sm:$0xf]
      %v847 = vld [vmem:[%s841 + $0x14] sm:$0xf]
      %v848 = vld [vmem:[%s841 + $0x18] sm:$0xf]
      %v849 = vld [vmem:[%s841 + $0x1c] sm:$0xf]
      %v858 = vunpack.c.l.b16 %v842
      %v859 = vunpack.c.l.b16 %v843
      %v860 = vunpack.c.l.b16 %v844
      %v861 = vunpack.c.l.b16 %v845
      %v862 = vunpack.c.l.b16 %v846
      %v863 = vunpack.c.l.b16 %v847
      %v864 = vunpack.c.l.b16 %v848
      %v865 = vunpack.c.l.b16 %v849
      %v866 = vpack.c.b16 %v859, %v858
      %v867 = vpack.c.b16 %v861, %v860
      %v868 = vpack.c.b16 %v863, %v862
      %v869 = vpack.c.b16 %v865, %v864
      %870 = vrot.lane.b32.xlu0 %v440, 126
      %v871 = vpop.permute.xlu0 %870
      %872 = vrot.lane.b32.xlu0 %v441, 126
      %v873 = vpop.permute.xlu0 %872
      %v877 = vsel %vm370, %v866, 0
      %v880 = vsel %vm370, %v867, 0
      %v883 = vsel %vm370, %v868, 0
      %v886 = vsel %vm370, %v869, 0
      %888 = vmatpush.bf16.msra.mxu0 0
      %889 = vmatpush.bf16.msra.mxu0 0
      %890 = vmatpush.bf16.msra.mxu0 0
      %891 = vmatpush.bf16.msra.mxu0 0
      %892 = vmatpush.bf16.msra.mxu0 0
      %893 = vmatpush.bf16.msra.mxu0 0
      %894 = vmatpush.bf16.msra.mxu0 %v873
      %895 = vmatpush.bf16.msra.mxu0 %v871
      %896 = vmatmul.bf16.gmra.mxu0 %v877
      %v897 = vpop.f32.mrf.mxu0
      %v898 = vadd.f32 0.0, %v897
      %v899 = vpop.f32.mrf.mxu0
      %v900 = vadd.f32 0.0, %v899
      %901 = vmatmul.bf16.gmra.mxu0 %v880
      %v902 = vpop.f32.mrf.mxu0
      %v903 = vadd.f32 0.0, %v902
      %v904 = vpop.f32.mrf.mxu0
      %v905 = vadd.f32 0.0, %v904
      %906 = vmatmul.bf16.gmra.mxu0 %v883
      %v907 = vpop.f32.mrf.mxu0
      %v908 = vadd.f32 0.0, %v907
      %v909 = vpop.f32.mrf.mxu0
      %v910 = vadd.f32 0.0, %v909
      %911 = vmatmul.bf16.gmra.mxu0 %v886
      %v912 = vpop.f32.mrf.mxu0
      %v913 = vadd.f32 0.0, %v912
      %v914 = vpop.f32.mrf.mxu0
      %v915 = vadd.f32 0.0, %v914
      %916 = vdwg.mxu0
      %v917 = vadd.f32 %v833, %v898
      %v918 = vadd.f32 %v834, %v900
      %v919 = vadd.f32 %v835, %v903
      %v920 = vadd.f32 %v836, %v905
      %v921 = vadd.f32 %v837, %v908
      %v922 = vadd.f32 %v838, %v910
      %v923 = vadd.f32 %v839, %v913
      %v924 = vadd.f32 %v840, %v915
      %s925 = scalar_lea.vmem %s4, 224
      %v926 = vld [vmem:[%s925] sm:$0xf]
      %v927 = vld [vmem:[%s925 + $0x4] sm:$0xf]
      %v928 = vld [vmem:[%s925 + $0x8] sm:$0xf]
      %v929 = vld [vmem:[%s925 + $0xc] sm:$0xf]
      %v930 = vld [vmem:[%s925 + $0x10] sm:$0xf]
      %v931 = vld [vmem:[%s925 + $0x14] sm:$0xf]
      %v932 = vld [vmem:[%s925 + $0x18] sm:$0xf]
      %v933 = vld [vmem:[%s925 + $0x1c] sm:$0xf]
      %v942 = vunpack.c.l.b16 %v926
      %v943 = vunpack.c.l.b16 %v927
      %v944 = vunpack.c.l.b16 %v928
      %v945 = vunpack.c.l.b16 %v929
      %v946 = vunpack.c.l.b16 %v930
      %v947 = vunpack.c.l.b16 %v931
      %v948 = vunpack.c.l.b16 %v932
      %v949 = vunpack.c.l.b16 %v933
      %v950 = vpack.c.b16 %v943, %v942
      %v951 = vpack.c.b16 %v945, %v944
      %v952 = vpack.c.b16 %v947, %v946
      %v953 = vpack.c.b16 %v949, %v948
      %954 = vrot.lane.b32.xlu0 %v366, 126
      %v955 = vpop.permute.xlu0 %954
      %956 = vrot.lane.b32.xlu0 %v367, 126
      %v957 = vpop.permute.xlu0 %956
      %v961 = vsel %vm370, %v950, 0
      %v964 = vsel %vm370, %v951, 0
      %v967 = vsel %vm370, %v952, 0
      %v970 = vsel %vm370, %v953, 0
      %972 = vmatpush.bf16.msra.mxu0 0
      %973 = vmatpush.bf16.msra.mxu0 0
      %974 = vmatpush.bf16.msra.mxu0 0
      %975 = vmatpush.bf16.msra.mxu0 0
      %976 = vmatpush.bf16.msra.mxu0 0
      %977 = vmatpush.bf16.msra.mxu0 0
      %978 = vmatpush.bf16.msra.mxu0 %v957
      %979 = vmatpush.bf16.msra.mxu0 %v955
      %980 = vmatmul.bf16.gmra.mxu0 %v961
      %v981 = vpop.f32.mrf.mxu0
      %v982 = vadd.f32 0.0, %v981
      %v983 = vpop.f32.mrf.mxu0
      %v984 = vadd.f32 0.0, %v983
      %985 = vmatmul.bf16.gmra.mxu0 %v964
      %v986 = vpop.f32.mrf.mxu0
      %v987 = vadd.f32 0.0, %v986
      %v988 = vpop.f32.mrf.mxu0
      %v989 = vadd.f32 0.0, %v988
      %990 = vmatmul.bf16.gmra.mxu0 %v967
      %v991 = vpop.f32.mrf.mxu0
      %v992 = vadd.f32 0.0, %v991
      %v993 = vpop.f32.mrf.mxu0
      %v994 = vadd.f32 0.0, %v993
      %995 = vmatmul.bf16.gmra.mxu0 %v970
      %v996 = vpop.f32.mrf.mxu0
      %v997 = vadd.f32 0.0, %v996
      %v998 = vpop.f32.mrf.mxu0
      %v999 = vadd.f32 0.0, %v998
      %1000 = vdwg.mxu0
      %v1001 = vadd.f32 %v917, %v982
      %v1002 = vadd.f32 %v918, %v984
      %v1003 = vadd.f32 %v919, %v987
      %v1004 = vadd.f32 %v920, %v989
      %v1005 = vadd.f32 %v921, %v992
      %v1006 = vadd.f32 %v922, %v994
      %v1007 = vadd.f32 %v923, %v997
      %v1008 = vadd.f32 %v924, %v999
      %s1009 = scalar_lea.vmem %s4, 256
      %v1010 = vld [vmem:[%s1009] sm:$0xf]
      %v1011 = vld [vmem:[%s1009 + $0x4] sm:$0xf]
      %v1012 = vld [vmem:[%s1009 + $0x8] sm:$0xf]
      %v1013 = vld [vmem:[%s1009 + $0xc] sm:$0xf]
      %v1014 = vld [vmem:[%s1009 + $0x10] sm:$0xf]
      %v1015 = vld [vmem:[%s1009 + $0x14] sm:$0xf]
      %v1016 = vld [vmem:[%s1009 + $0x18] sm:$0xf]
      %v1017 = vld [vmem:[%s1009 + $0x1c] sm:$0xf]
      %v1026 = vunpack.c.l.b16 %v1010
      %v1027 = vunpack.c.l.b16 %v1011
      %v1028 = vunpack.c.l.b16 %v1012
      %v1029 = vunpack.c.l.b16 %v1013
      %v1030 = vunpack.c.l.b16 %v1014
      %v1031 = vunpack.c.l.b16 %v1015
      %v1032 = vunpack.c.l.b16 %v1016
      %v1033 = vunpack.c.l.b16 %v1017
      %v1034 = vpack.c.b16 %v1027, %v1026
      %v1035 = vpack.c.b16 %v1029, %v1028
      %v1036 = vpack.c.b16 %v1031, %v1030
      %v1037 = vpack.c.b16 %v1033, %v1032
      %1038 = vrot.lane.b32.xlu0 %v440, 125
      %v1039 = vpop.permute.xlu0 %1038
      %1040 = vrot.lane.b32.xlu0 %v441, 125
      %v1041 = vpop.permute.xlu0 %1040
      %v1045 = vsel %vm370, %v1034, 0
      %v1048 = vsel %vm370, %v1035, 0
      %v1051 = vsel %vm370, %v1036, 0
      %v1054 = vsel %vm370, %v1037, 0
      %1056 = vmatpush.bf16.msra.mxu0 0
      %1057 = vmatpush.bf16.msra.mxu0 0
      %1058 = vmatpush.bf16.msra.mxu0 0
      %1059 = vmatpush.bf16.msra.mxu0 0
      %1060 = vmatpush.bf16.msra.mxu0 0
      %1061 = vmatpush.bf16.msra.mxu0 0
      %1062 = vmatpush.bf16.msra.mxu0 %v1041
      %1063 = vmatpush.bf16.msra.mxu0 %v1039
      %1064 = vmatmul.bf16.gmra.mxu0 %v1045
      %v1065 = vpop.f32.mrf.mxu0
      %v1066 = vadd.f32 0.0, %v1065
      %v1067 = vpop.f32.mrf.mxu0
      %v1068 = vadd.f32 0.0, %v1067
      %1069 = vmatmul.bf16.gmra.mxu0 %v1048
      %v1070 = vpop.f32.mrf.mxu0
      %v1071 = vadd.f32 0.0, %v1070
      %v1072 = vpop.f32.mrf.mxu0
      %v1073 = vadd.f32 0.0, %v1072
      %1074 = vmatmul.bf16.gmra.mxu0 %v1051
      %v1075 = vpop.f32.mrf.mxu0
      %v1076 = vadd.f32 0.0, %v1075
      %v1077 = vpop.f32.mrf.mxu0
      %v1078 = vadd.f32 0.0, %v1077
      %1079 = vmatmul.bf16.gmra.mxu0 %v1054
      %v1080 = vpop.f32.mrf.mxu0
      %v1081 = vadd.f32 0.0, %v1080
      %v1082 = vpop.f32.mrf.mxu0
      %v1083 = vadd.f32 0.0, %v1082
      %1084 = vdwg.mxu0
      %v1085 = vadd.f32 %v1001, %v1066
      %v1086 = vadd.f32 %v1002, %v1068
      %v1087 = vadd.f32 %v1003, %v1071
      %v1088 = vadd.f32 %v1004, %v1073
      %v1089 = vadd.f32 %v1005, %v1076
      %v1090 = vadd.f32 %v1006, %v1078
      %v1091 = vadd.f32 %v1007, %v1081
      %v1092 = vadd.f32 %v1008, %v1083
      %v1093 = vld [vmem:[%s5] sm:$0xff]
      %v1094 = vld [vmem:[%s5 + $0x8] sm:$0xff]
      %v1095 = vld [vmem:[%s5 + $0x10] sm:$0xff]
      %v1096 = vld [vmem:[%s5 + $0x18] sm:$0xff]
      %v1097 = vld [vmem:[%s5 + $0x20] sm:$0xff]
      %v1098 = vld [vmem:[%s5 + $0x28] sm:$0xff]
      %v1099 = vld [vmem:[%s5 + $0x30] sm:$0xff]
      %v1100 = vld [vmem:[%s5 + $0x38] sm:$0xff]
      %1102 = vset.pattern.permute.xlu0 0
      %1103 = vperm.xlu0 %1102, %v1093
      %v1104 = vpop.permute.xlu0 %1103
      %1107 = vset.pattern.permute.xlu0 0
      %1108 = vperm.xlu0 %1107, %v1094
      %v1109 = vpop.permute.xlu0 %1108
      %1112 = vset.pattern.permute.xlu0 0
      %1113 = vperm.xlu0 %1112, %v1095
      %v1114 = vpop.permute.xlu0 %1113
      %1117 = vset.pattern.permute.xlu0 0
      %1118 = vperm.xlu0 %1117, %v1096
      %v1119 = vpop.permute.xlu0 %1118
      %1122 = vset.pattern.permute.xlu0 0
      %1123 = vperm.xlu0 %1122, %v1097
      %v1124 = vpop.permute.xlu0 %1123
      %1127 = vset.pattern.permute.xlu0 0
      %1128 = vperm.xlu0 %1127, %v1098
      %v1129 = vpop.permute.xlu0 %1128
      %1132 = vset.pattern.permute.xlu0 0
      %1133 = vperm.xlu0 %1132, %v1099
      %v1134 = vpop.permute.xlu0 %1133
      %1137 = vset.pattern.permute.xlu0 0
      %1138 = vperm.xlu0 %1137, %v1100
      %v1139 = vpop.permute.xlu0 %1138
      %v1141 = vadd.f32 %v1085, %v1104
      %v1142 = vadd.f32 %v1086, %v1109
      %v1143 = vadd.f32 %v1087, %v1114
      %v1144 = vadd.f32 %v1088, %v1119
      %v1145 = vadd.f32 %v1089, %v1124
      %v1146 = vadd.f32 %v1090, %v1129
      %v1147 = vadd.f32 %v1091, %v1134
      %v1148 = vadd.f32 %v1092, %v1139
      %vm1149 = vcmp.ge.f32.partialorder %v1141, 0.0
      %vm1150 = vcmp.ge.f32.partialorder %v1142, 0.0
      %vm1151 = vcmp.ge.f32.partialorder %v1143, 0.0
      %vm1152 = vcmp.ge.f32.partialorder %v1144, 0.0
      %vm1153 = vcmp.ge.f32.partialorder %v1145, 0.0
      %vm1154 = vcmp.ge.f32.partialorder %v1146, 0.0
      %vm1155 = vcmp.ge.f32.partialorder %v1147, 0.0
      %vm1156 = vcmp.ge.f32.partialorder %v1148, 0.0
      %v1157 = vmul.f32 %v1141, 0.2
      %v1158 = vmul.f32 %v1142, 0.2
      %v1159 = vmul.f32 %v1143, 0.2
      %v1160 = vmul.f32 %v1144, 0.2
      %v1161 = vmul.f32 %v1145, 0.2
      %v1162 = vmul.f32 %v1146, 0.2
      %v1163 = vmul.f32 %v1147, 0.2
      %v1164 = vmul.f32 %v1148, 0.2
      %v1165 = vsel %vm1149, %v1141, %v1157
      %v1166 = vsel %vm1150, %v1142, %v1158
      %v1167 = vsel %vm1151, %v1143, %v1159
      %v1168 = vsel %vm1152, %v1144, %v1160
      %v1169 = vsel %vm1153, %v1145, %v1161
      %v1170 = vsel %vm1154, %v1146, %v1162
      %v1171 = vsel %vm1155, %v1147, %v1163
      %v1172 = vsel %vm1156, %v1148, %v1164
      %v1173 = vpack.c.bf16 %v1165, %v1165
      %v1174 = vpack.c.bf16 %v1166, %v1166
      %v1175 = vpack.c.bf16 %v1167, %v1167
      %v1176 = vpack.c.bf16 %v1168, %v1168
      %v1177 = vpack.c.bf16 %v1169, %v1169
      %v1178 = vpack.c.bf16 %v1170, %v1170
      %v1179 = vpack.c.bf16 %v1171, %v1171
      %v1180 = vpack.c.bf16 %v1172, %v1172
      %vm1181 = vcmask 11264
      %1182 = vst.msk [vmem:[%s311] sm:$0xf] %vm1181, %v1173
      %1183 = vst.msk [vmem:[%s311 + $0x4] sm:$0xf] %vm1181, %v1174
      %1184 = vst.msk [vmem:[%s311 + $0x8] sm:$0xf] %vm1181, %v1175
      %1185 = vst.msk [vmem:[%s311 + $0xc] sm:$0xf] %vm1181, %v1176
      %1186 = vst.msk [vmem:[%s311 + $0x10] sm:$0xf] %vm1181, %v1177
      %1187 = vst.msk [vmem:[%s311 + $0x14] sm:$0xf] %vm1181, %v1178
      %1188 = vst.msk [vmem:[%s311 + $0x18] sm:$0xf] %vm1181, %v1179
      %1189 = vst.msk [vmem:[%s311 + $0x1c] sm:$0xf] %vm1181, %v1180
      %p1190 = scmp.lt.s32.totalorder %s17, 1
      %s1191 = scalar_select %p1190, %s17, 1
      %s1192 = smul.addr %s1191, 8
      %s1193 = smul.addr %s1192, 4
      %s1194 = scalar_lea.vmem %s6, %s1193
      // Predicated region
      $region45: #{discriminator_forward.32} parent=43 // pred_check
        %p1195 = pneg %p181
      $region46: #{discriminator_forward.32} parent=43 // pred_check_branch
        %1197 = sbr.rel (%p1195) target = $region48
      $region47: #{discriminator_forward.32} parent=43 // pred_region
        _
      $region48: #{discriminator_forward.32} parent=43 // pred_fallthru
        _
    $region44: #{discriminator_forward.32} parent=5 // pred_fallthru
      _
    %p1198 = scmp.le.s32.totalorder 2, %s12
    // Predicated region
    $region49: #{discriminator_forward.32} parent=5 // pred_check
      %p1199 = pneg %p1198
    $region50: #{discriminator_forward.32} parent=5 // pred_check_branch
      %1201 = sbr.rel (%p1199) target = $region52
    $region51: #{discriminator_forward.32} parent=5 // pred_region
      %s1202 = ssub.s32 %s12, 2
      // Predicated region
      $region53: #{discriminator_forward.32} parent=51 // pred_check
        %p1203 = pneg %p187
      $region54: #{discriminator_forward.32} parent=51 // pred_check_branch
        %1205 = sbr.rel (%p1203) target = $region56
      $region55: #{discriminator_forward.32} parent=51 // pred_region
        %p1206 = scmp.lt.s32.totalorder %s18, 1
        %s1207 = scalar_select %p1206, %s18, 1
        %s1208 = smul.addr %s1207, 8
        %s1209 = smul.addr %s1208, 4
        %s1210 = scalar_lea.vmem %s6, %s1209
      $region56: #{discriminator_forward.32} parent=51 // pred_fallthru
        _
    $region52: #{discriminator_forward.32} parent=5 // pred_fallthru
      _
  $region6: #{discriminator_forward.32} parent=0 // loop_footer
    %s16 = sadd.s32 1, %s12
  $region7: #{discriminator_forward.32} parent=0 // loop_footer_branch
    %11 = sbr.rel target = $region3
  $region8: #{discriminator_forward.32} parent=0 // loop_exit
    _

// kernel: discriminator_forward.23
$region0: #{discriminator_forward.23}
  #allocation0 [shape = 'u32[]', space=smem, size = 0x4, offset = 0x4, fixed_abs, tag = 'smem constant byte address 0x4 - core index']
  #allocation1 [shape = 'u32[72,128]{1,0:T(1,128)}', space=vmem, size = 0x9000, scoped, tag = 'internal scratch']
  %s0 = inlined_call_operand.vmem [shape: bf16[2,3,26], index: 0, kind: input, shape index: {}]
  %s1 = inlined_call_operand.vmem [shape: bf16[2,3,26], index: 1, kind: input, shape index: {}]
  %s2 = inlined_call_operand.vmem [shape: bf16[2,3,26], index: 2, kind: input, shape index: {}]
  %s3 = inlined_call_operand.vmem [shape: bf16[2,3,26], index: 3, kind: input, shape index: {}]
  %s4 = inlined_call_operand.vmem [shape: bf16[9,8,3], index: 4, kind: input, shape index: {}]
  %s5 = inlined_call_operand.vmem [shape: f32[8,1], index: 5, kind: input, shape index: {}]
  %s6 = inlined_call_operand.vmem [shape: bf16[2,8,20], index: 6, kind: output, shape index: {}]
  %s7 = sld [smem:[#allocation0]]
  $region57: #{discriminator_forward.23} parent=0
    _
  %s9 = ssub.s32 1, %s7
  %s10 = scalar_select 0, %s9, %s7
  loop: start=0, step=1, limit=4
  $region2: #{discriminator_forward.23} parent=0 // loop_pre_header
    _
  $region3: #{discriminator_forward.23} parent=0 // loop_header
    %s12 = sphi 0, %s16
    %p13 = scmp.ge.s32.totalorder %s12, 4
    %s22 = sphi 0, %s24
    %s25 = sphi 0, %s22
    %s26 = sphi 0, %s25
    %s42 = sphi 0, %s26
    %s48 = sphi 0, %s50
    %s51 = sphi 0, %s48
    %s52 = sphi 0, %s51
    %s68 = sphi 0, %s52
    %s74 = sphi 0, %s76
    %s77 = sphi 0, %s74
    %s78 = sphi 0, %s77
    %s94 = sphi 0, %s78
    %s100 = sphi 0, %s102
    %s103 = sphi 0, %s100
    %s104 = sphi 0, %s103
    %s120 = sphi 0, %s104
    %s124 = sphi 0, %s124
    %s126 = sphi 0, %s124
    %s127 = sphi 0, %s126
    %s141 = sphi 0, %s127
    %s145 = sphi 0, %s145
    %s147 = sphi 0, %s145
    %s148 = sphi 0, %s147
    %s162 = sphi 0, %s148
    %s168 = sphi 0, %s170
    %s171 = sphi 0, %s168
    %s172 = sphi 0, %s171
    %s188 = sphi 0, %s172
  $region4: #{discriminator_forward.23} parent=0 // loop_header_branch
    %15 = sbr.rel (%p13) target = $region8
  $region5: #{discriminator_forward.23} parent=0 // loop_body
    %s17 = ssub.s32 %s12, 1
    %s18 = ssub.s32 %s12, 2
    %s19 = sadd.s32 %s12, 1
    %s20 = ssub.s32 %s12, %s19
    %p21 = scmp.eq.s32.totalorder %s20, 0
    %s23 = sadd.s32 %s22, 1
    %s24 = scalar_select %p21, %s22, %s23
    %p27 = pneg %p21
    %p28 = scmp.eq.s32.totalorder %s12, 1
    %p29 = por %p27, %p28
    %p30 = scmp.ne.s32.totalorder %s22, %s25
    %p31 = scmp.eq.s32.totalorder %s12, 0
    %p32 = por %p30, %p31
    %p33 = scmp.ne.s32.totalorder %s22, %s25
    %p34 = scmp.eq.s32.totalorder %s17, 1
    %p35 = por %p33, %p34
    %p36 = scmp.ne.s32.totalorder %s25, %s26
    %p37 = scmp.eq.s32.totalorder %s17, 0
    %p38 = por %p36, %p37
    %p39 = scmp.ne.s32.totalorder %s25, %s26
    %p40 = scmp.eq.s32.totalorder %s18, 1
    %p41 = por %p39, %p40
    %p43 = scmp.ne.s32.totalorder %s26, %s42
    %p44 = scmp.eq.s32.totalorder %s18, 0
    %p45 = por %p43, %p44
    %s46 = ssub.s32 %s12, %s19
    %p47 = scmp.eq.s32.totalorder %s46, 0
    %s49 = sadd.s32 %s48, 1
    %s50 = scalar_select %p47, %s48, %s49
    %p53 = pneg %p47
    %p54 = scmp.eq.s32.totalorder %s12, 1
    %p55 = por %p53, %p54
    %p56 = scmp.ne.s32.totalorder %s48, %s51
    %p57 = scmp.eq.s32.totalorder %s12, 0
    %p58 = por %p56, %p57
    %p59 = scmp.ne.s32.totalorder %s48, %s51
    %p60 = scmp.eq.s32.totalorder %s17, 1
    %p61 = por %p59, %p60
    %p62 = scmp.ne.s32.totalorder %s51, %s52
    %p63 = scmp.eq.s32.totalorder %s17, 0
    %p64 = por %p62, %p63
    %p65 = scmp.ne.s32.totalorder %s51, %s52
    %p66 = scmp.eq.s32.totalorder %s18, 1
    %p67 = por %p65, %p66
    %p69 = scmp.ne.s32.totalorder %s52, %s68
    %p70 = scmp.eq.s32.totalorder %s18, 0
    %p71 = por %p69, %p70
    %s72 = ssub.s32 %s12, %s19
    %p73 = scmp.eq.s32.totalorder %s72, 0
    %s75 = sadd.s32 %s74, 1
    %s76 = scalar_select %p73, %s74, %s75
    %p79 = pneg %p73
    %p80 = scmp.eq.s32.totalorder %s12, 1
    %p81 = por %p79, %p80
    %p82 = scmp.ne.s32.totalorder %s74, %s77
    %p83 = scmp.eq.s32.totalorder %s12, 0
    %p84 = por %p82, %p83
    %p85 = scmp.ne.s32.totalorder %s74, %s77
    %p86 = scmp.eq.s32.totalorder %s17, 1
    %p87 = por %p85, %p86
    %p88 = scmp.ne.s32.totalorder %s77, %s78
    %p89 = scmp.eq.s32.totalorder %s17, 0
    %p90 = por %p88, %p89
    %p91 = scmp.ne.s32.totalorder %s77, %s78
    %p92 = scmp.eq.s32.totalorder %s18, 1
    %p93 = por %p91, %p92
    %p95 = scmp.ne.s32.totalorder %s78, %s94
    %p96 = scmp.eq.s32.totalorder %s18, 0
    %p97 = por %p95, %p96
    %s98 = ssub.s32 %s12, %s19
    %p99 = scmp.eq.s32.totalorder %s98, 0
    %s101 = sadd.s32 %s100, 1
    %s102 = scalar_select %p99, %s100, %s101
    %p105 = pneg %p99
    %p106 = scmp.eq.s32.totalorder %s12, 1
    %p107 = por %p105, %p106
    %p108 = scmp.ne.s32.totalorder %s100, %s103
    %p109 = scmp.eq.s32.totalorder %s12, 0
    %p110 = por %p108, %p109
    %p111 = scmp.ne.s32.totalorder %s100, %s103
    %p112 = scmp.eq.s32.totalorder %s17, 1
    %p113 = por %p111, %p112
    %p114 = scmp.ne.s32.totalorder %s103, %s104
    %p115 = scmp.eq.s32.totalorder %s17, 0
    %p116 = por %p114, %p115
    %p117 = scmp.ne.s32.totalorder %s103, %s104
    %p118 = scmp.eq.s32.totalorder %s18, 1
    %p119 = por %p117, %p118
    %p121 = scmp.ne.s32.totalorder %s104, %s120
    %p122 = scmp.eq.s32.totalorder %s18, 0
    %p123 = por %p121, %p122
    %s125 = sadd.s32 %s124, 1
    %p128 = scmp.eq.s32.totalorder %s12, 1
    %p129 = scmp.ne.s32.totalorder %s124, %s126
    %p130 = scmp.eq.s32.totalorder %s12, 0
    %p131 = por %p129, %p130
    %p132 = scmp.ne.s32.totalorder %s124, %s126
    %p133 = scmp.eq.s32.totalorder %s17, 1
    %p134 = por %p132, %p133
    %p135 = scmp.ne.s32.totalorder %s126, %s127
    %p136 = scmp.eq.s32.totalorder %s17, 0
    %p137 = por %p135, %p136
    %p138 = scmp.ne.s32.totalorder %s126, %s127
    %p139 = scmp.eq.s32.totalorder %s18, 1
    %p140 = por %p138, %p139
    %p142 = scmp.ne.s32.totalorder %s127, %s141
    %p143 = scmp.eq.s32.totalorder %s18, 0
    %p144 = por %p142, %p143
    %s146 = sadd.s32 %s145, 1
    %p149 = scmp.eq.s32.totalorder %s12, 1
    %p150 = scmp.ne.s32.totalorder %s145, %s147
    %p151 = scmp.eq.s32.totalorder %s12, 0
    %p152 = por %p150, %p151
    %p153 = scmp.ne.s32.totalorder %s145, %s147
    %p154 = scmp.eq.s32.totalorder %s17, 1
    %p155 = por %p153, %p154
    %p156 = scmp.ne.s32.totalorder %s147, %s148
    %p157 = scmp.eq.s32.totalorder %s17, 0
    %p158 = por %p156, %p157
    %p159 = scmp.ne.s32.totalorder %s147, %s148
    %p160 = scmp.eq.s32.totalorder %s18, 1
    %p161 = por %p159, %p160
    %p163 = scmp.ne.s32.totalorder %s148, %s162
    %p164 = scmp.eq.s32.totalorder %s18, 0
    %p165 = por %p163, %p164
    %s166 = ssub.s32 %s12, %s19
    %p167 = scmp.eq.s32.totalorder %s166, 0
    %s169 = sadd.s32 %s168, 1
    %s170 = scalar_select %p167, %s168, %s169
    %p173 = pneg %p167
    %p174 = scmp.eq.s32.totalorder %s12, 1
    %p175 = por %p173, %p174
    %p176 = scmp.ne.s32.totalorder %s168, %s171
    %p177 = scmp.eq.s32.totalorder %s12, 0
    %p178 = por %p176, %p177
    %p179 = scmp.ne.s32.totalorder %s168, %s171
    %p180 = scmp.eq.s32.totalorder %s17, 1
    %p181 = por %p179, %p180
    %p182 = scmp.ne.s32.totalorder %s171, %s172
    %p183 = scmp.eq.s32.totalorder %s17, 0
    %p184 = por %p182, %p183
    %p185 = scmp.ne.s32.totalorder %s171, %s172
    %p186 = scmp.eq.s32.totalorder %s18, 1
    %p187 = por %p185, %p186
    %p189 = scmp.ne.s32.totalorder %s172, %s188
    %p190 = scmp.eq.s32.totalorder %s18, 0
    %p191 = por %p189, %p190
    %p192 = scmp.le.s32.totalorder 1, %s12
    %p193 = scmp.lt.s32.totalorder %s12, 3
    %p194 = pnand %p192, %p193
    %p195 = pneg %p194
    // Predicated region
    $region9: #{discriminator_forward.23} parent=5 // pred_check
      _
    $region10: #{discriminator_forward.23} parent=5 // pred_check_branch
      %197 = sbr.rel (%p194) target = $region12
    $region11: #{discriminator_forward.23} parent=5 // pred_region
      %s198 = ssub.s32 %s12, 1
      // Predicated region
      $region13: #{discriminator_forward.23} parent=11 // pred_check
        %p199 = pneg %p137
      $region14: #{discriminator_forward.23} parent=11 // pred_check_branch
        %201 = sbr.rel (%p199) target = $region16
      $region15: #{discriminator_forward.23} parent=11 // pred_region
        _
      $region16: #{discriminator_forward.23} parent=11 // pred_fallthru
        _
      // Predicated region
      $region17: #{discriminator_forward.23} parent=11 // pred_check
        %p202 = pneg %p158
      $region18: #{discriminator_forward.23} parent=11 // pred_check_branch
        %204 = sbr.rel (%p202) target = $region20
      $region19: #{discriminator_forward.23} parent=11 // pred_region
        _
      $region20: #{discriminator_forward.23} parent=11 // pred_fallthru
        _
    $region12: #{discriminator_forward.23} parent=5 // pred_fallthru
      _
    %p205 = scmp.lt.s32.totalorder %s12, 2
    // Predicated region
    $region21: #{discriminator_forward.23} parent=5 // pred_check
      %p206 = pneg %p205
    $region22: #{discriminator_forward.23} parent=5 // pred_check_branch
      %208 = sbr.rel (%p206) target = $region24
    $region23: #{discriminator_forward.23} parent=5 // pred_region
      // Predicated region
      $region25: #{discriminator_forward.23} parent=23 // pred_check
        %p209 = pneg %p32
      $region26: #{discriminator_forward.23} parent=23 // pred_check_branch
        %211 = sbr.rel (%p209) target = $region28
      $region27: #{discriminator_forward.23} parent=23 // pred_region
        %p212 = scmp.lt.s32.totalorder %s12, 1
        %s213 = scalar_select %p212, %s12, 1
        %s214 = smul.addr %s213, 2
        %s215 = scalar_lea.vmem %s0, %s214
      $region28: #{discriminator_forward.23} parent=23 // pred_fallthru
        _
      // Predicated region
      $region29: #{discriminator_forward.23} parent=23 // pred_check
        %p216 = pneg %p58
      $region30: #{discriminator_forward.23} parent=23 // pred_check_branch
        %218 = sbr.rel (%p216) target = $region32
      $region31: #{discriminator_forward.23} parent=23 // pred_region
        %p219 = scmp.lt.s32.totalorder %s12, 1
        %s220 = scalar_select %p219, %s12, 1
        %s221 = smul.addr %s220, 2
        %s222 = scalar_lea.vmem %s1, %s221
      $region32: #{discriminator_forward.23} parent=23 // pred_fallthru
        _
      // Predicated region
      $region33: #{discriminator_forward.23} parent=23 // pred_check
        %p223 = pneg %p84
      $region34: #{discriminator_forward.23} parent=23 // pred_check_branch
        %225 = sbr.rel (%p223) target = $region36
      $region35: #{discriminator_forward.23} parent=23 // pred_region
        %p226 = scmp.lt.s32.totalorder %s12, 1
        %s227 = scalar_select %p226, %s12, 1
        %s228 = smul.addr %s227, 2
        %s229 = scalar_lea.vmem %s2, %s228
      $region36: #{discriminator_forward.23} parent=23 // pred_fallthru
        _
      // Predicated region
      $region37: #{discriminator_forward.23} parent=23 // pred_check
        %p230 = pneg %p110
      $region38: #{discriminator_forward.23} parent=23 // pred_check_branch
        %232 = sbr.rel (%p230) target = $region40
      $region39: #{discriminator_forward.23} parent=23 // pred_region
        %p233 = scmp.lt.s32.totalorder %s12, 1
        %s234 = scalar_select %p233, %s12, 1
        %s235 = smul.addr %s234, 2
        %s236 = scalar_lea.vmem %s3, %s235
      $region40: #{discriminator_forward.23} parent=23 // pred_fallthru
        _
    $region24: #{discriminator_forward.23} parent=5 // pred_fallthru
      _
    %p237 = scmp.le.s32.totalorder 1, %s12
    %p238 = scmp.lt.s32.totalorder %s12, 3
    %p239 = pnand %p237, %p238
    %p240 = pneg %p239
    // Predicated region
    $region41: #{discriminator_forward.23} parent=5 // pred_check
      _
    $region42: #{discriminator_forward.23} parent=5 // pred_check_branch
      %242 = sbr.rel (%p239) target = $region44
    $region43: #{discriminator_forward.23} parent=5 // pred_region
      %s243 = ssub.s32 %s12, 1
      %p244 = scmp.lt.s32.totalorder %s17, 1
      %s245 = scalar_select %p244, %s17, 1
      %s246 = smul.addr %s245, 2
      %s247 = scalar_lea.vmem %s0, %s246
      %p248 = pneg %p38
      %p249 = pneg %p35
      %p250 = scmp.lt.s32.totalorder %s17, 1
      %s251 = scalar_select %p250, %s17, 1
      %s252 = smul.addr %s251, 2
      %s253 = scalar_lea.vmem %s1, %s252
      %p254 = pneg %p64
      %p255 = pneg %p61
      %p256 = scmp.lt.s32.totalorder %s17, 1
      %s257 = scalar_select %p256, %s17, 1
      %s258 = smul.addr %s257, 2
      %s259 = scalar_lea.vmem %s2, %s258
      %p260 = pneg %p90
      %p261 = pneg %p87
      %p262 = scmp.lt.s32.totalorder %s17, 1
      %s263 = scalar_select %p262, %s17, 1
      %s264 = smul.addr %s263, 2
      %s265 = scalar_lea.vmem %s3, %s264
      %p266 = pneg %p116
      %p267 = pneg %p113
      %p268 = pneg %p137
      %p269 = pneg %p134
      %p270 = pneg %p158
      %p271 = pneg %p155
      %p272 = pneg %p184
      %p273 = pneg %p181
      %p274 = scmp.lt.s32.totalorder %s17, 1
      %s275 = scalar_select %p274, %s17, 1
      %s276 = smul.addr %s275, 4
      %s277 = scalar_lea.vmem %s6, %s276
      %p278 = scmp.lt.s32.totalorder %s17, 1
      %s279 = scalar_select %p278, %s17, 1
      %s280 = smul.addr %s279, 2
      %s281 = scalar_lea.vmem %s0, %s280
      %p282 = scmp.lt.s32.totalorder %s17, 1
      %s283 = scalar_select %p282, %s17, 1
      %s284 = smul.addr %s283, 2
      %s285 = scalar_lea.vmem %s1, %s284
      %p286 = scmp.lt.s32.totalorder %s17, 1
      %s287 = scalar_select %p286, %s17, 1
      %s288 = smul.addr %s287, 2
      %s289 = scalar_lea.vmem %s2, %s288
      %p290 = scmp.lt.s32.totalorder %s17, 1
      %s291 = scalar_select %p290, %s17, 1
      %s292 = smul.addr %s291, 2
      %s293 = scalar_lea.vmem %s3, %s292
      %p294 = scmp.lt.s32.totalorder %s17, 1
      %s295 = scalar_select %p294, %s17, 1
      %s296 = smul.addr %s295, 4
      %s297 = scalar_lea.vmem %s6, %s296
      %v299 = vld [vmem:[%s281] sm:$0x3]
      %v300 = vld [vmem:[%s4] sm:$0xf]
      %v301 = vld [vmem:[%s285] sm:$0x3]
      %s302 = scalar_lea.vmem %s4, 4
      %v303 = vld [vmem:[%s302] sm:$0xf]
      %vm304 = vcmask 23552
      %v306 = vsel %vm304, %v303, 0
      %vm308 = vcmask 1040384
      %vm309 = vcmask 1041408
      %v310 = vsel %vm308, 4294967295, 65535
      %v311 = vsel %vm309, %v310, 0
      %v313 = vand.u32 %v301, %v311
      %315 = vmatpush.bf16.msra.mxu0 0
      %316 = vmatpush.bf16.msra.mxu0 0
      %317 = vmatpush.bf16.msra.mxu0 0
      %318 = vmatpush.bf16.msra.mxu0 0
      %319 = vmatpush.bf16.msra.mxu0 0
      %320 = vmatpush.bf16.msra.mxu0 0
      %321 = vmatpush.bf16.msra.mxu0 0
      %322 = vmatpush.bf16.msra.mxu0 %v313
      %323 = vmatmul.bf16.gmra.mxu0 %v306
      %v324 = vpop.f32.mrf.mxu0
      %v325 = vadd.f32 0.0, %v324
      %v326 = vpop.f32.mrf.mxu0
      %327 = vdwg.mxu0
      %v329 = vsel %vm304, %v300, 0
      %v332 = vand.u32 %v299, %v311
      %334 = vmatpush.bf16.msra.mxu0 0
      %335 = vmatpush.bf16.msra.mxu0 0
      %336 = vmatpush.bf16.msra.mxu0 0
      %337 = vmatpush.bf16.msra.mxu0 0
      %338 = vmatpush.bf16.msra.mxu0 0
      %339 = vmatpush.bf16.msra.mxu0 0
      %340 = vmatpush.bf16.msra.mxu0 0
      %341 = vmatpush.bf16.msra.mxu0 %v332
      %342 = vmatmul.bf16.gmra.mxu0 %v329
      %v343 = vpop.f32.mrf.mxu0
      %v344 = vadd.f32 %v325, %v343
      %v345 = vpop.f32.mrf.mxu0
      %346 = vdwg.mxu0
      %s347 = scalar_lea.vmem %s4, 8
      %v348 = vld [vmem:[%s347] sm:$0xf]
      %349 = vst [vmem:[#allocation1] ss:$4 sm:$0xff] %v299
      %v350 = vld.sshfl [vmem:[#allocation1] sm:$0xff pattern:$0x73625140]
      %352 = vrot.lane.b32.xlu0 %v350, 127
      %v353 = vpop.permute.xlu0 %352
      %v355 = vsel %vm304, %v348, 0
      %v358 = vand.u32 %v353, %v311
      %360 = vmatpush.bf16.msra.mxu0 0
      %361 = vmatpush.bf16.msra.mxu0 0
      %362 = vmatpush.bf16.msra.mxu0 0
      %363 = vmatpush.bf16.msra.mxu0 0
      %364 = vmatpush.bf16.msra.mxu0 0
      %365 = vmatpush.bf16.msra.mxu0 0
      %366 = vmatpush.bf16.msra.mxu0 0
      %367 = vmatpush.bf16.msra.mxu0 %v358
      %368 = vmatmul.bf16.gmra.mxu0 %v355
      %v369 = vpop.f32.mrf.mxu0
      %v370 = vadd.f32 0.0, %v369
      %v371 = vpop.f32.mrf.mxu0
      %372 = vdwg.mxu0
      %v373 = vadd.f32 %v344, %v370
      %v374 = vld [vmem:[%s289] sm:$0x3]
      %s375 = scalar_lea.vmem %s4, 12
      %v376 = vld [vmem:[%s375] sm:$0xf]
      %v378 = vsel %vm304, %v376, 0
      %v381 = vand.u32 %v374, %v311
      %383 = vmatpush.bf16.msra.mxu0 0
      %384 = vmatpush.bf16.msra.mxu0 0
      %385 = vmatpush.bf16.msra.mxu0 0
      %386 = vmatpush.bf16.msra.mxu0 0
      %387 = vmatpush.bf16.msra.mxu0 0
      %388 = vmatpush.bf16.msra.mxu0 0
      %389 = vmatpush.bf16.msra.mxu0 0
      %390 = vmatpush.bf16.msra.mxu0 %v381
      %391 = vmatmul.bf16.gmra.mxu0 %v378
      %v392 = vpop.f32.mrf.mxu0
      %v393 = vadd.f32 0.0, %v392
      %v394 = vpop.f32.mrf.mxu0
      %395 = vdwg.mxu0
      %v396 = vadd.f32 %v373, %v393
      %v397 = vld [vmem:[%s293] sm:$0x3]
      %s398 = scalar_lea.vmem %s4, 16
      %v399 = vld [vmem:[%s398] sm:$0xf]
      %v401 = vsel %vm304, %v399, 0
      %v404 = vand.u32 %v397, %v311
      %406 = vmatpush.bf16.msra.mxu0 0
      %407 = vmatpush.bf16.msra.mxu0 0
      %408 = vmatpush.bf16.msra.mxu0 0
      %409 = vmatpush.bf16.msra.mxu0 0
      %410 = vmatpush.bf16.msra.mxu0 0
      %411 = vmatpush.bf16.msra.mxu0 0
      %412 = vmatpush.bf16.msra.mxu0 0
      %413 = vmatpush.bf16.msra.mxu0 %v404
      %414 = vmatmul.bf16.gmra.mxu0 %v401
      %v415 = vpop.f32.mrf.mxu0
      %v416 = vadd.f32 0.0, %v415
      %v417 = vpop.f32.mrf.mxu0
      %418 = vdwg.mxu0
      %v419 = vadd.f32 %v396, %v416
      %s420 = scalar_lea.vmem %s4, 20
      %v421 = vld [vmem:[%s420] sm:$0xf]
      %422 = vst [vmem:[#allocation1] ss:$4 sm:$0xff] %v374
      %v423 = vld.sshfl [vmem:[#allocation1] sm:$0xff pattern:$0x73625140]
      %425 = vrot.lane.b32.xlu0 %v423, 127
      %v426 = vpop.permute.xlu0 %425
      %v428 = vsel %vm304, %v421, 0
      %v431 = vand.u32 %v426, %v311
      %433 = vmatpush.bf16.msra.mxu0 0
      %434 = vmatpush.bf16.msra.mxu0 0
      %435 = vmatpush.bf16.msra.mxu0 0
      %436 = vmatpush.bf16.msra.mxu0 0
      %437 = vmatpush.bf16.msra.mxu0 0
      %438 = vmatpush.bf16.msra.mxu0 0
      %439 = vmatpush.bf16.msra.mxu0 0
      %440 = vmatpush.bf16.msra.mxu0 %v431
      %441 = vmatmul.bf16.gmra.mxu0 %v428
      %v442 = vpop.f32.mrf.mxu0
      %v443 = vadd.f32 0.0, %v442
      %v444 = vpop.f32.mrf.mxu0
      %445 = vdwg.mxu0
      %v446 = vadd.f32 %v419, %v443
      %v447 = vld [vmem:[%s281] sm:$0x3]
      %s448 = scalar_lea.vmem %s4, 24
      %v449 = vld [vmem:[%s448] sm:$0xf]
      %451 = vst [vmem:[#allocation1] ss:$4 sm:$0xff] %v447
      %v452 = vld.sshfl [vmem:[#allocation1] sm:$0xff pattern:$0x73625140]
      %454 = vrot.lane.b32.xlu0 %v452, 123
      %v455 = vpop.permute.xlu0 %454
      %v457 = vsel %vm304, %v449, 0
      %v460 = vand.u32 %v455, %v311
      %462 = vmatpush.bf16.msra.mxu0 0
      %463 = vmatpush.bf16.msra.mxu0 0
      %464 = vmatpush.bf16.msra.mxu0 0
      %465 = vmatpush.bf16.msra.mxu0 0
      %466 = vmatpush.bf16.msra.mxu0 0
      %467 = vmatpush.bf16.msra.mxu0 0
      %468 = vmatpush.bf16.msra.mxu0 0
      %469 = vmatpush.bf16.msra.mxu0 %v460
      %470 = vmatmul.bf16.gmra.mxu0 %v457
      %v471 = vpop.f32.mrf.mxu0
      %v472 = vadd.f32 0.0, %v471
      %v473 = vpop.f32.mrf.mxu0
      %474 = vdwg.mxu0
      %v475 = vadd.f32 %v446, %v472
      %v476 = vld [vmem:[%s285] sm:$0x3]
      %s477 = scalar_lea.vmem %s4, 28
      %v478 = vld [vmem:[%s477] sm:$0xf]
      %480 = vst [vmem:[#allocation1] ss:$4 sm:$0xff] %v476
      %v481 = vld.sshfl [vmem:[#allocation1] sm:$0xff pattern:$0x73625140]
      %483 = vrot.lane.b32.xlu0 %v481, 123
      %v484 = vpop.permute.xlu0 %483
      %v486 = vsel %vm304, %v478, 0
      %v489 = vand.u32 %v484, %v311
      %491 = vmatpush.bf16.msra.mxu0 0
      %492 = vmatpush.bf16.msra.mxu0 0
      %493 = vmatpush.bf16.msra.mxu0 0
      %494 = vmatpush.bf16.msra.mxu0 0
      %495 = vmatpush.bf16.msra.mxu0 0
      %496 = vmatpush.bf16.msra.mxu0 0
      %497 = vmatpush.bf16.msra.mxu0 0
      %498 = vmatpush.bf16.msra.mxu0 %v489
      %499 = vmatmul.bf16.gmra.mxu0 %v486
      %v500 = vpop.f32.mrf.mxu0
      %v501 = vadd.f32 0.0, %v500
      %v502 = vpop.f32.mrf.mxu0
      %503 = vdwg.mxu0
      %v504 = vadd.f32 %v475, %v501
      %v505 = vld [vmem:[%s281] sm:$0x3]
      %s506 = scalar_lea.vmem %s4, 32
      %v507 = vld [vmem:[%s506] sm:$0xf]
      %509 = vst [vmem:[#allocation1] ss:$4 sm:$0xff] %v505
      %v510 = vld.sshfl [vmem:[#allocation1] sm:$0xff pattern:$0x73625140]
      %512 = vrot.lane.b32.xlu0 %v510, 122
      %v513 = vpop.permute.xlu0 %512
      %v515 = vsel %vm304, %v507, 0
      %v518 = vand.u32 %v513, %v311
      %520 = vmatpush.bf16.msra.mxu0 0
      %521 = vmatpush.bf16.msra.mxu0 0
      %522 = vmatpush.bf16.msra.mxu0 0
      %523 = vmatpush.bf16.msra.mxu0 0
      %524 = vmatpush.bf16.msra.mxu0 0
      %525 = vmatpush.bf16.msra.mxu0 0
      %526 = vmatpush.bf16.msra.mxu0 0
      %527 = vmatpush.bf16.msra.mxu0 %v518
      %528 = vmatmul.bf16.gmra.mxu0 %v515
      %v529 = vpop.f32.mrf.mxu0
      %v530 = vadd.f32 0.0, %v529
      %v531 = vpop.f32.mrf.mxu0
      %532 = vdwg.mxu0
      %v533 = vadd.f32 %v504, %v530
      %v534 = vld [vmem:[%s5] sm:$0xff]
      %536 = vset.pattern.permute.xlu0 0
      %537 = vperm.xlu0 %536, %v534
      %v538 = vpop.permute.xlu0 %537
      %v540 = vadd.f32 %v533, %v538
      %vm541 = vcmp.ge.f32.partialorder %v540, 0.0
      %v542 = vmul.f32 %v540, 0.2
      %v543 = vsel %vm541, %v540, %v542
      %v544 = vpack.c.bf16 %v543, %v543
      %vm545 = vcmask 158720
      %546 = vst.msk [vmem:[%s297] sm:$0xf] %vm545, %v544
      %p547 = scmp.lt.s32.totalorder %s17, 1
      %s548 = scalar_select %p547, %s17, 1
      %s549 = smul.addr %s548, 4
      %s550 = scalar_lea.vmem %s6, %s549
      // Predicated region
      $region45: #{discriminator_forward.23} parent=43 // pred_check
        %p551 = pneg %p181
      $region46: #{discriminator_forward.23} parent=43 // pred_check_branch
        %553 = sbr.rel (%p551) target = $region48
      $region47: #{discriminator_forward.23} parent=43 // pred_region
        _
      $region48: #{discriminator_forward.23} parent=43 // pred_fallthru
        _
    $region44: #{discriminator_forward.23} parent=5 // pred_fallthru
      _
    %p554 = scmp.le.s32.totalorder 2, %s12
    // Predicated region
    $region49: #{discriminator_forward.23} parent=5 // pred_check
      %p555 = pneg %p554
    $region50: #{discriminator_forward.23} parent=5 // pred_check_branch
      %557 = sbr.rel (%p555) target = $region52
    $region51: #{discriminator_forward.23} parent=5 // pred_region
      %s558 = ssub.s32 %s12, 2
      // Predicated region
      $region53: #{discriminator_forward.23} parent=51 // pred_check
        %p559 = pneg %p187
      $region54: #{discriminator_forward.23} parent=51 // pred_check_branch
        %561 = sbr.rel (%p559) target = $region56
      $region55: #{discriminator_forward.23} parent=51 // pred_region
        %p562 = scmp.lt.s32.totalorder %s18, 1
        %s563 = scalar_select %p562, %s18, 1
        %s564 = smul.addr %s563, 4
        %s565 = scalar_lea.vmem %s6, %s564
      $region56: #{discriminator_forward.23} parent=51 // pred_fallthru
        _
    $region52: #{discriminator_forward.23} parent=5 // pred_fallthru
      _
  $region6: #{discriminator_forward.23} parent=0 // loop_footer
    %s16 = sadd.s32 1, %s12
  $region7: #{discriminator_forward.23} parent=0 // loop_footer_branch
    %11 = sbr.rel target = $region3
  $region8: #{discriminator_forward.23} parent=0 // loop_exit
    _

// kernel: discriminator_forward.24
$region0: #{discriminator_forward.24}
  #allocation0 [shape = 'u32[]', space=smem, size = 0x4, offset = 0x4, fixed_abs, tag = 'smem constant byte address 0x4 - core index']
  #allocation1 [shape = 'u32[72,128]{1,0:T(1,128)}', space=vmem, size = 0x9000, scoped, tag = 'internal scratch']
  %s0 = inlined_call_operand.vmem [shape: bf16[2,8,10], index: 0, kind: input, shape index: {}]
  %s1 = inlined_call_operand.vmem [shape: bf16[2,8,10], index: 1, kind: input, shape index: {}]
  %s2 = inlined_call_operand.vmem [shape: bf16[2,8,10], index: 2, kind: input, shape index: {}]
  %s3 = inlined_call_operand.vmem [shape: bf16[2,8,10], index: 3, kind: input, shape index: {}]
  %s4 = inlined_call_operand.vmem [shape: bf16[9,16,8], index: 4, kind: input, shape index: {}]
  %s5 = inlined_call_operand.vmem [shape: f32[16,1], index: 5, kind: input, shape index: {}]
  %s6 = inlined_call_operand.vmem [shape: bf16[2,16,6], index: 6, kind: output, shape index: {}]
  %s7 = sld [smem:[#allocation0]]
  $region57: #{discriminator_forward.24} parent=0
    _
  %s9 = ssub.s32 1, %s7
  %s10 = scalar_select 0, %s9, %s7
  loop: start=0, step=1, limit=4
  $region2: #{discriminator_forward.24} parent=0 // loop_pre_header
    _
  $region3: #{discriminator_forward.24} parent=0 // loop_header
    %s12 = sphi 0, %s16
    %p13 = scmp.ge.s32.totalorder %s12, 4
    %s22 = sphi 0, %s24
    %s25 = sphi 0, %s22
    %s26 = sphi 0, %s25
    %s42 = sphi 0, %s26
    %s48 = sphi 0, %s50
    %s51 = sphi 0, %s48
    %s52 = sphi 0, %s51
    %s68 = sphi 0, %s52
    %s74 = sphi 0, %s76
    %s77 = sphi 0, %s74
    %s78 = sphi 0, %s77
    %s94 = sphi 0, %s78
    %s100 = sphi 0, %s102
    %s103 = sphi 0, %s100
    %s104 = sphi 0, %s103
    %s120 = sphi 0, %s104
    %s124 = sphi 0, %s124
    %s126 = sphi 0, %s124
    %s127 = sphi 0, %s126
    %s141 = sphi 0, %s127
    %s145 = sphi 0, %s145
    %s147 = sphi 0, %s145
    %s148 = sphi 0, %s147
    %s162 = sphi 0, %s148
    %s168 = sphi 0, %s170
    %s171 = sphi 0, %s168
    %s172 = sphi 0, %s171
    %s188 = sphi 0, %s172
  $region4: #{discriminator_forward.24} parent=0 // loop_header_branch
    %15 = sbr.rel (%p13) target = $region8
  $region5: #{discriminator_forward.24} parent=0 // loop_body
    %s17 = ssub.s32 %s12, 1
    %s18 = ssub.s32 %s12, 2
    %s19 = sadd.s32 %s12, 1
    %s20 = ssub.s32 %s12, %s19
    %p21 = scmp.eq.s32.totalorder %s20, 0
    %s23 = sadd.s32 %s22, 1
    %s24 = scalar_select %p21, %s22, %s23
    %p27 = pneg %p21
    %p28 = scmp.eq.s32.totalorder %s12, 1
    %p29 = por %p27, %p28
    %p30 = scmp.ne.s32.totalorder %s22, %s25
    %p31 = scmp.eq.s32.totalorder %s12, 0
    %p32 = por %p30, %p31
    %p33 = scmp.ne.s32.totalorder %s22, %s25
    %p34 = scmp.eq.s32.totalorder %s17, 1
    %p35 = por %p33, %p34
    %p36 = scmp.ne.s32.totalorder %s25, %s26
    %p37 = scmp.eq.s32.totalorder %s17, 0
    %p38 = por %p36, %p37
    %p39 = scmp.ne.s32.totalorder %s25, %s26
    %p40 = scmp.eq.s32.totalorder %s18, 1
    %p41 = por %p39, %p40
    %p43 = scmp.ne.s32.totalorder %s26, %s42
    %p44 = scmp.eq.s32.totalorder %s18, 0
    %p45 = por %p43, %p44
    %s46 = ssub.s32 %s12, %s19
    %p47 = scmp.eq.s32.totalorder %s46, 0
    %s49 = sadd.s32 %s48, 1
    %s50 = scalar_select %p47, %s48, %s49
    %p53 = pneg %p47
    %p54 = scmp.eq.s32.totalorder %s12, 1
    %p55 = por %p53, %p54
    %p56 = scmp.ne.s32.totalorder %s48, %s51
    %p57 = scmp.eq.s32.totalorder %s12, 0
    %p58 = por %p56, %p57
    %p59 = scmp.ne.s32.totalorder %s48, %s51
    %p60 = scmp.eq.s32.totalorder %s17, 1
    %p61 = por %p59, %p60
    %p62 = scmp.ne.s32.totalorder %s51, %s52
    %p63 = scmp.eq.s32.totalorder %s17, 0
    %p64 = por %p62, %p63
    %p65 = scmp.ne.s32.totalorder %s51, %s52
    %p66 = scmp.eq.s32.totalorder %s18, 1
    %p67 = por %p65, %p66
    %p69 = scmp.ne.s32.totalorder %s52, %s68
    %p70 = scmp.eq.s32.totalorder %s18, 0
    %p71 = por %p69, %p70
    %s72 = ssub.s32 %s12, %s19
    %p73 = scmp.eq.s32.totalorder %s72, 0
    %s75 = sadd.s32 %s74, 1
    %s76 = scalar_select %p73, %s74, %s75
    %p79 = pneg %p73
    %p80 = scmp.eq.s32.totalorder %s12, 1
    %p81 = por %p79, %p80
    %p82 = scmp.ne.s32.totalorder %s74, %s77
    %p83 = scmp.eq.s32.totalorder %s12, 0
    %p84 = por %p82, %p83
    %p85 = scmp.ne.s32.totalorder %s74, %s77
    %p86 = scmp.eq.s32.totalorder %s17, 1
    %p87 = por %p85, %p86
    %p88 = scmp.ne.s32.totalorder %s77, %s78
    %p89 = scmp.eq.s32.totalorder %s17, 0
    %p90 = por %p88, %p89
    %p91 = scmp.ne.s32.totalorder %s77, %s78
    %p92 = scmp.eq.s32.totalorder %s18, 1
    %p93 = por %p91, %p92
    %p95 = scmp.ne.s32.totalorder %s78, %s94
    %p96 = scmp.eq.s32.totalorder %s18, 0
    %p97 = por %p95, %p96
    %s98 = ssub.s32 %s12, %s19
    %p99 = scmp.eq.s32.totalorder %s98, 0
    %s101 = sadd.s32 %s100, 1
    %s102 = scalar_select %p99, %s100, %s101
    %p105 = pneg %p99
    %p106 = scmp.eq.s32.totalorder %s12, 1
    %p107 = por %p105, %p106
    %p108 = scmp.ne.s32.totalorder %s100, %s103
    %p109 = scmp.eq.s32.totalorder %s12, 0
    %p110 = por %p108, %p109
    %p111 = scmp.ne.s32.totalorder %s100, %s103
    %p112 = scmp.eq.s32.totalorder %s17, 1
    %p113 = por %p111, %p112
    %p114 = scmp.ne.s32.totalorder %s103, %s104
    %p115 = scmp.eq.s32.totalorder %s17, 0
    %p116 = por %p114, %p115
    %p117 = scmp.ne.s32.totalorder %s103, %s104
    %p118 = scmp.eq.s32.totalorder %s18, 1
    %p119 = por %p117, %p118
    %p121 = scmp.ne.s32.totalorder %s104, %s120
    %p122 = scmp.eq.s32.totalorder %s18, 0
    %p123 = por %p121, %p122
    %s125 = sadd.s32 %s124, 1
    %p128 = scmp.eq.s32.totalorder %s12, 1
    %p129 = scmp.ne.s32.totalorder %s124, %s126
    %p130 = scmp.eq.s32.totalorder %s12, 0
    %p131 = por %p129, %p130
    %p132 = scmp.ne.s32.totalorder %s124, %s126
    %p133 = scmp.eq.s32.totalorder %s17, 1
    %p134 = por %p132, %p133
    %p135 = scmp.ne.s32.totalorder %s126, %s127
    %p136 = scmp.eq.s32.totalorder %s17, 0
    %p137 = por %p135, %p136
    %p138 = scmp.ne.s32.totalorder %s126, %s127
    %p139 = scmp.eq.s32.totalorder %s18, 1
    %p140 = por %p138, %p139
    %p142 = scmp.ne.s32.totalorder %s127, %s141
    %p143 = scmp.eq.s32.totalorder %s18, 0
    %p144 = por %p142, %p143
    %s146 = sadd.s32 %s145, 1
    %p149 = scmp.eq.s32.totalorder %s12, 1
    %p150 = scmp.ne.s32.totalorder %s145, %s147
    %p151 = scmp.eq.s32.totalorder %s12, 0
    %p152 = por %p150, %p151
    %p153 = scmp.ne.s32.totalorder %s145, %s147
    %p154 = scmp.eq.s32.totalorder %s17, 1
    %p155 = por %p153, %p154
    %p156 = scmp.ne.s32.totalorder %s147, %s148
    %p157 = scmp.eq.s32.totalorder %s17, 0
    %p158 = por %p156, %p157
    %p159 = scmp.ne.s32.totalorder %s147, %s148
    %p160 = scmp.eq.s32.totalorder %s18, 1
    %p161 = por %p159, %p160
    %p163 = scmp.ne.s32.totalorder %s148, %s162
    %p164 = scmp.eq.s32.totalorder %s18, 0
    %p165 = por %p163, %p164
    %s166 = ssub.s32 %s12, %s19
    %p167 = scmp.eq.s32.totalorder %s166, 0
    %s169 = sadd.s32 %s168, 1
    %s170 = scalar_select %p167, %s168, %s169
    %p173 = pneg %p167
    %p174 = scmp.eq.s32.totalorder %s12, 1
    %p175 = por %p173, %p174
    %p176 = scmp.ne.s32.totalorder %s168, %s171
    %p177 = scmp.eq.s32.totalorder %s12, 0
    %p178 = por %p176, %p177
    %p179 = scmp.ne.s32.totalorder %s168, %s171
    %p180 = scmp.eq.s32.totalorder %s17, 1
    %p181 = por %p179, %p180
    %p182 = scmp.ne.s32.totalorder %s171, %s172
    %p183 = scmp.eq.s32.totalorder %s17, 0
    %p184 = por %p182, %p183
    %p185 = scmp.ne.s32.totalorder %s171, %s172
    %p186 = scmp.eq.s32.totalorder %s18, 1
    %p187 = por %p185, %p186
    %p189 = scmp.ne.s32.totalorder %s172, %s188
    %p190 = scmp.eq.s32.totalorder %s18, 0
    %p191 = por %p189, %p190
    %p192 = scmp.le.s32.totalorder 1, %s12
    %p193 = scmp.lt.s32.totalorder %s12, 3
    %p194 = pnand %p192, %p193
    %p195 = pneg %p194
    // Predicated region
    $region9: #{discriminator_forward.24} parent=5 // pred_check
      _
    $region10: #{discriminator_forward.24} parent=5 // pred_check_branch
      %197 = sbr.rel (%p194) target = $region12
    $region11: #{discriminator_forward.24} parent=5 // pred_region
      %s198 = ssub.s32 %s12, 1
      // Predicated region
      $region13: #{discriminator_forward.24} parent=11 // pred_check
        %p199 = pneg %p137
      $region14: #{discriminator_forward.24} parent=11 // pred_check_branch
        %201 = sbr.rel (%p199) target = $region16
      $region15: #{discriminator_forward.24} parent=11 // pred_region
        _
      $region16: #{discriminator_forward.24} parent=11 // pred_fallthru
        _
      // Predicated region
      $region17: #{discriminator_forward.24} parent=11 // pred_check
        %p202 = pneg %p158
      $region18: #{discriminator_forward.24} parent=11 // pred_check_branch
        %204 = sbr.rel (%p202) target = $region20
      $region19: #{discriminator_forward.24} parent=11 // pred_region
        _
      $region20: #{discriminator_forward.24} parent=11 // pred_fallthru
        _
    $region12: #{discriminator_forward.24} parent=5 // pred_fallthru
      _
    %p205 = scmp.lt.s32.totalorder %s12, 2
    // Predicated region
    $region21: #{discriminator_forward.24} parent=5 // pred_check
      %p206 = pneg %p205
    $region22: #{discriminator_forward.24} parent=5 // pred_check_branch
      %208 = sbr.rel (%p206) target = $region24
    $region23: #{discriminator_forward.24} parent=5 // pred_region
      // Predicated region
      $region25: #{discriminator_forward.24} parent=23 // pred_check
        %p209 = pneg %p32
      $region26: #{discriminator_forward.24} parent=23 // pred_check_branch
        %211 = sbr.rel (%p209) target = $region28
      $region27: #{discriminator_forward.24} parent=23 // pred_region
        %p212 = scmp.lt.s32.totalorder %s12, 1
        %s213 = scalar_select %p212, %s12, 1
        %s214 = smul.addr %s213, 4
        %s215 = scalar_lea.vmem %s0, %s214
      $region28: #{discriminator_forward.24} parent=23 // pred_fallthru
        _
      // Predicated region
      $region29: #{discriminator_forward.24} parent=23 // pred_check
        %p216 = pneg %p58
      $region30: #{discriminator_forward.24} parent=23 // pred_check_branch
        %218 = sbr.rel (%p216) target = $region32
      $region31: #{discriminator_forward.24} parent=23 // pred_region
        %p219 = scmp.lt.s32.totalorder %s12, 1
        %s220 = scalar_select %p219, %s12, 1
        %s221 = smul.addr %s220, 4
        %s222 = scalar_lea.vmem %s1, %s221
      $region32: #{discriminator_forward.24} parent=23 // pred_fallthru
        _
      // Predicated region
      $region33: #{discriminator_forward.24} parent=23 // pred_check
        %p223 = pneg %p84
      $region34: #{discriminator_forward.24} parent=23 // pred_check_branch
        %225 = sbr.rel (%p223) target = $region36
      $region35: #{discriminator_forward.24} parent=23 // pred_region
        %p226 = scmp.lt.s32.totalorder %s12, 1
        %s227 = scalar_select %p226, %s12, 1
        %s228 = smul.addr %s227, 4
        %s229 = scalar_lea.vmem %s2, %s228
      $region36: #{discriminator_forward.24} parent=23 // pred_fallthru
        _
      // Predicated region
      $region37: #{discriminator_forward.24} parent=23 // pred_check
        %p230 = pneg %p110
      $region38: #{discriminator_forward.24} parent=23 // pred_check_branch
        %232 = sbr.rel (%p230) target = $region40
      $region39: #{discriminator_forward.24} parent=23 // pred_region
        %p233 = scmp.lt.s32.totalorder %s12, 1
        %s234 = scalar_select %p233, %s12, 1
        %s235 = smul.addr %s234, 4
        %s236 = scalar_lea.vmem %s3, %s235
      $region40: #{discriminator_forward.24} parent=23 // pred_fallthru
        _
    $region24: #{discriminator_forward.24} parent=5 // pred_fallthru
      _
    %p237 = scmp.le.s32.totalorder 1, %s12
    %p238 = scmp.lt.s32.totalorder %s12, 3
    %p239 = pnand %p237, %p238
    %p240 = pneg %p239
    // Predicated region
    $region41: #{discriminator_forward.24} parent=5 // pred_check
      _
    $region42: #{discriminator_forward.24} parent=5 // pred_check_branch
      %242 = sbr.rel (%p239) target = $region44
    $region43: #{discriminator_forward.24} parent=5 // pred_region
      %s243 = ssub.s32 %s12, 1
      %p244 = scmp.lt.s32.totalorder %s17, 1
      %s245 = scalar_select %p244, %s17, 1
      %s246 = smul.addr %s245, 4
      %s247 = scalar_lea.vmem %s0, %s246
      %p248 = pneg %p38
      %p249 = pneg %p35
      %p250 = scmp.lt.s32.totalorder %s17, 1
      %s251 = scalar_select %p250, %s17, 1
      %s252 = smul.addr %s251, 4
      %s253 = scalar_lea.vmem %s1, %s252
      %p254 = pneg %p64
      %p255 = pneg %p61
      %p256 = scmp.lt.s32.totalorder %s17, 1
      %s257 = scalar_select %p256, %s17, 1
      %s258 = smul.addr %s257, 4
      %s259 = scalar_lea.vmem %s2, %s258
      %p260 = pneg %p90
      %p261 = pneg %p87
      %p262 = scmp.lt.s32.totalorder %s17, 1
      %s263 = scalar_select %p262, %s17, 1
      %s264 = smul.addr %s263, 4
      %s265 = scalar_lea.vmem %s3, %s264
      %p266 = pneg %p116
      %p267 = pneg %p113
      %p268 = pneg %p137
      %p269 = pneg %p134
      %p270 = pneg %p158
      %p271 = pneg %p155
      %p272 = pneg %p184
      %p273 = pneg %p181
      %p274 = scmp.lt.s32.totalorder %s17, 1
      %s275 = scalar_select %p274, %s17, 1
      %s276 = smul.addr %s275, 2
      %s277 = smul.addr %s276, 4
      %s278 = scalar_lea.vmem %s6, %s277
      %p279 = scmp.lt.s32.totalorder %s17, 1
      %s280 = scalar_select %p279, %s17, 1
      %s281 = smul.addr %s280, 4
      %s282 = scalar_lea.vmem %s0, %s281
      %p283 = scmp.lt.s32.totalorder %s17, 1
      %s284 = scalar_select %p283, %s17, 1
      %s285 = smul.addr %s284, 4
      %s286 = scalar_lea.vmem %s1, %s285
      %p287 = scmp.lt.s32.totalorder %s17, 1
      %s288 = scalar_select %p287, %s17, 1
      %s289 = smul.addr %s288, 4
      %s290 = scalar_lea.vmem %s2, %s289
      %p291 = scmp.lt.s32.totalorder %s17, 1
      %s292 = scalar_select %p291, %s17, 1
      %s293 = smul.addr %s292, 4
      %s294 = scalar_lea.vmem %s3, %s293
      %p295 = scmp.lt.s32.totalorder %s17, 1
      %s296 = scalar_select %p295, %s17, 1
      %s297 = smul.addr %s296, 2
      %s298 = smul.addr %s297, 4
      %s299 = scalar_lea.vmem %s6, %s298
      %v301 = vld [vmem:[%s282] sm:$0xf]
      %v302 = vld [vmem:[%s4] sm:$0xf]
      %v303 = vld [vmem:[%s4 + $0x4] sm:$0xf]
      %v304 = vld [vmem:[%s286] sm:$0xf]
      %s305 = scalar_lea.vmem %s4, 8
      %v306 = vld [vmem:[%s305] sm:$0xf]
      %v307 = vld [vmem:[%s305 + $0x4] sm:$0xf]
      %v310 = vunpack.c.l.b16 %v306
      %v311 = vunpack.c.l.b16 %v307
      %v312 = vpack.c.b16 %v311, %v310
      %vm313 = vcmask 64512
      %v315 = vsel %vm313, %v312, 0
      %vm317 = vcmask 1043456
      %v319 = vsel %vm317, %v304, 0
      %321 = vmatpush.bf16.msra.mxu0 0
      %322 = vmatpush.bf16.msra.mxu0 0
      %323 = vmatpush.bf16.msra.mxu0 0
      %324 = vmatpush.bf16.msra.mxu0 0
      %325 = vmatpush.bf16.msra.mxu0 0
      %326 = vmatpush.bf16.msra.mxu0 0
      %327 = vmatpush.bf16.msra.mxu0 0
      %328 = vmatpush.bf16.msra.mxu0 %v319
      %329 = vmatmul.bf16.gmra.mxu0 %v315
      %v330 = vpop.f32.mrf.mxu0
      %v331 = vadd.f32 0.0, %v330
      %v332 = vpop.f32.mrf.mxu0
      %v333 = vadd.f32 0.0, %v332
      %334 = vdwg.mxu0
      %v337 = vunpack.c.l.b16 %v302
      %v338 = vunpack.c.l.b16 %v303
      %v339 = vpack.c.b16 %v338, %v337
      %v341 = vsel %vm313, %v339, 0
      %v344 = vsel %vm317, %v301, 0
      %346 = vmatpush.bf16.msra.mxu0 0
      %347 = vmatpush.bf16.msra.mxu0 0
      %348 = vmatpush.bf16.msra.mxu0 0
      %349 = vmatpush.bf16.msra.mxu0 0
      %350 = vmatpush.bf16.msra.mxu0 0
      %351 = vmatpush.bf16.msra.mxu0 0
      %352 = vmatpush.bf16.msra.mxu0 0
      %353 = vmatpush.bf16.msra.mxu0 %v344
      %354 = vmatmul.bf16.gmra.mxu0 %v341
      %v355 = vpop.f32.mrf.mxu0
      %v356 = vadd.f32 %v331, %v355
      %v357 = vpop.f32.mrf.mxu0
      %v358 = vadd.f32 %v333, %v357
      %359 = vdwg.mxu0
      %s360 = scalar_lea.vmem %s4, 16
      %v361 = vld [vmem:[%s360] sm:$0xf]
      %v362 = vld [vmem:[%s360 + $0x4] sm:$0xf]
      %v365 = vunpack.c.l.b16 %v361
      %v366 = vunpack.c.l.b16 %v362
      %v367 = vpack.c.b16 %v366, %v365
      %v369 = vunpack.c.l.b16 %v301
      %v370 = vpack.c.b16 %v369, %v369
      %371 = vrot.lane.b32.xlu0 %v370, 127
      %v372 = vpop.permute.xlu0 %371
      %v374 = vsel %vm313, %v367, 0
      %v377 = vsel %vm317, %v372, 0
      %379 = vmatpush.bf16.msra.mxu0 0
      %380 = vmatpush.bf16.msra.mxu0 0
      %381 = vmatpush.bf16.msra.mxu0 0
      %382 = vmatpush.bf16.msra.mxu0 0
      %383 = vmatpush.bf16.msra.mxu0 0
      %384 = vmatpush.bf16.msra.mxu0 0
      %385 = vmatpush.bf16.msra.mxu0 0
      %386 = vmatpush.bf16.msra.mxu0 %v377
      %387 = vmatmul.bf16.gmra.mxu0 %v374
      %v388 = vpop.f32.mrf.mxu0
      %v389 = vadd.f32 0.0, %v388
      %v390 = vpop.f32.mrf.mxu0
      %v391 = vadd.f32 0.0, %v390
      %392 = vdwg.mxu0
      %v393 = vadd.f32 %v356, %v389
      %v394 = vadd.f32 %v358, %v391
      %v395 = vld [vmem:[%s290] sm:$0xf]
      %s396 = scalar_lea.vmem %s4, 24
      %v397 = vld [vmem:[%s396] sm:$0xf]
      %v398 = vld [vmem:[%s396 + $0x4] sm:$0xf]
      %v401 = vunpack.c.l.b16 %v397
      %v402 = vunpack.c.l.b16 %v398
      %v403 = vpack.c.b16 %v402, %v401
      %v405 = vsel %vm313, %v403, 0
      %v408 = vsel %vm317, %v395, 0
      %410 = vmatpush.bf16.msra.mxu0 0
      %411 = vmatpush.bf16.msra.mxu0 0
      %412 = vmatpush.bf16.msra.mxu0 0
      %413 = vmatpush.bf16.msra.mxu0 0
      %414 = vmatpush.bf16.msra.mxu0 0
      %415 = vmatpush.bf16.msra.mxu0 0
      %416 = vmatpush.bf16.msra.mxu0 0
      %417 = vmatpush.bf16.msra.mxu0 %v408
      %418 = vmatmul.bf16.gmra.mxu0 %v405
      %v419 = vpop.f32.mrf.mxu0
      %v420 = vadd.f32 0.0, %v419
      %v421 = vpop.f32.mrf.mxu0
      %v422 = vadd.f32 0.0, %v421
      %423 = vdwg.mxu0
      %v424 = vadd.f32 %v393, %v420
      %v425 = vadd.f32 %v394, %v422
      %v426 = vld [vmem:[%s294] sm:$0xf]
      %s427 = scalar_lea.vmem %s4, 32
      %v428 = vld [vmem:[%s427] sm:$0xf]
      %v429 = vld [vmem:[%s427 + $0x4] sm:$0xf]
      %v432 = vunpack.c.l.b16 %v428
      %v433 = vunpack.c.l.b16 %v429
      %v434 = vpack.c.b16 %v433, %v432
      %v436 = vsel %vm313, %v434, 0
      %v439 = vsel %vm317, %v426, 0
      %441 = vmatpush.bf16.msra.mxu0 0
      %442 = vmatpush.bf16.msra.mxu0 0
      %443 = vmatpush.bf16.msra.mxu0 0
      %444 = vmatpush.bf16.msra.mxu0 0
      %445 = vmatpush.bf16.msra.mxu0 0
      %446 = vmatpush.bf16.msra.mxu0 0
      %447 = vmatpush.bf16.msra.mxu0 0
      %448 = vmatpush.bf16.msra.mxu0 %v439
      %449 = vmatmul.bf16.gmra.mxu0 %v436
      %v450 = vpop.f32.mrf.mxu0
      %v451 = vadd.f32 0.0, %v450
      %v452 = vpop.f32.mrf.mxu0
      %v453 = vadd.f32 0.0, %v452
      %454 = vdwg.mxu0
      %v455 = vadd.f32 %v424, %v451
      %v456 = vadd.f32 %v425, %v453
      %s457 = scalar_lea.vmem %s4, 40
      %v458 = vld [vmem:[%s457] sm:$0xf]
      %v459 = vld [vmem:[%s457 + $0x4] sm:$0xf]
      %v462 = vunpack.c.l.b16 %v458
      %v463 = vunpack.c.l.b16 %v459
      %v464 = vpack.c.b16 %v463, %v462
      %v466 = vunpack.c.l.b16 %v395
      %v467 = vpack.c.b16 %v466, %v466
      %468 = vrot.lane.b32.xlu0 %v467, 127
      %v469 = vpop.permute.xlu0 %468
      %v471 = vsel %vm313, %v464, 0
      %v474 = vsel %vm317, %v469, 0
      %476 = vmatpush.bf16.msra.mxu0 0
      %477 = vmatpush.bf16.msra.mxu0 0
      %478 = vmatpush.bf16.msra.mxu0 0
      %479 = vmatpush.bf16.msra.mxu0 0
      %480 = vmatpush.bf16.msra.mxu0 0
      %481 = vmatpush.bf16.msra.mxu0 0
      %482 = vmatpush.bf16.msra.mxu0 0
      %483 = vmatpush.bf16.msra.mxu0 %v474
      %484 = vmatmul.bf16.gmra.mxu0 %v471
      %v485 = vpop.f32.mrf.mxu0
      %v486 = vadd.f32 0.0, %v485
      %v487 = vpop.f32.mrf.mxu0
      %v488 = vadd.f32 0.0, %v487
      %489 = vdwg.mxu0
      %v490 = vadd.f32 %v455, %v486
      %v491 = vadd.f32 %v456, %v488
      %s492 = scalar_lea.vmem %s4, 48
      %v493 = vld [vmem:[%s492] sm:$0xf]
      %v494 = vld [vmem:[%s492 + $0x4] sm:$0xf]
      %v497 = vunpack.c.l.b16 %v493
      %v498 = vunpack.c.l.b16 %v494
      %v499 = vpack.c.b16 %v498, %v497
      %500 = vrot.lane.b32.xlu0 %v370, 125
      %v501 = vpop.permute.xlu0 %500
      %v503 = vsel %vm313, %v499, 0
      %v506 = vsel %vm317, %v501, 0
      %508 = vmatpush.bf16.msra.mxu0 0
      %509 = vmatpush.bf16.msra.mxu0 0
      %510 = vmatpush.bf16.msra.mxu0 0
      %511 = vmatpush.bf16.msra.mxu0 0
      %512 = vmatpush.bf16.msra.mxu0 0
      %513 = vmatpush.bf16.msra.mxu0 0
      %514 = vmatpush.bf16.msra.mxu0 0
      %515 = vmatpush.bf16.msra.mxu0 %v506
      %516 = vmatmul.bf16.gmra.mxu0 %v503
      %v517 = vpop.f32.mrf.mxu0
      %v518 = vadd.f32 0.0, %v517
      %v519 = vpop.f32.mrf.mxu0
      %v520 = vadd.f32 0.0, %v519
      %521 = vdwg.mxu0
      %v522 = vadd.f32 %v490, %v518
      %v523 = vadd.f32 %v491, %v520
      %s524 = scalar_lea.vmem %s4, 56
      %v525 = vld [vmem:[%s524] sm:$0xf]
      %v526 = vld [vmem:[%s524 + $0x4] sm:$0xf]
      %v529 = vunpack.c.l.b16 %v525
      %v530 = vunpack.c.l.b16 %v526
      %v531 = vpack.c.b16 %v530, %v529
      %v533 = vunpack.c.l.b16 %v304
      %v534 = vpack.c.b16 %v533, %v533
      %535 = vrot.lane.b32.xlu0 %v534, 125
      %v536 = vpop.permute.xlu0 %535
      %v538 = vsel %vm313, %v531, 0
      %v541 = vsel %vm317, %v536, 0
      %543 = vmatpush.bf16.msra.mxu0 0
      %544 = vmatpush.bf16.msra.mxu0 0
      %545 = vmatpush.bf16.msra.mxu0 0
      %546 = vmatpush.bf16.msra.mxu0 0
      %547 = vmatpush.bf16.msra.mxu0 0
      %548 = vmatpush.bf16.msra.mxu0 0
      %549 = vmatpush.bf16.msra.mxu0 0
      %550 = vmatpush.bf16.msra.mxu0 %v541
      %551 = vmatmul.bf16.gmra.mxu0 %v538
      %v552 = vpop.f32.mrf.mxu0
      %v553 = vadd.f32 0.0, %v552
      %v554 = vpop.f32.mrf.mxu0
      %v555 = vadd.f32 0.0, %v554
      %556 = vdwg.mxu0
      %v557 = vadd.f32 %v522, %v553
      %v558 = vadd.f32 %v523, %v555
      %s559 = scalar_lea.vmem %s4, 64
      %v560 = vld [vmem:[%s559] sm:$0xf]
      %v561 = vld [vmem:[%s559 + $0x4] sm:$0xf]
      %v564 = vunpack.c.l.b16 %v560
      %v565 = vunpack.c.l.b16 %v561
      %v566 = vpack.c.b16 %v565, %v564
      %567 = vrot.lane.b32.xlu0 %v370, 124
      %v568 = vpop.permute.xlu0 %567
      %v570 = vsel %vm313, %v566, 0
      %v573 = vsel %vm317, %v568, 0
      %575 = vmatpush.bf16.msra.mxu0 0
      %576 = vmatpush.bf16.msra.mxu0 0
      %577 = vmatpush.bf16.msra.mxu0 0
      %578 = vmatpush.bf16.msra.mxu0 0
      %579 = vmatpush.bf16.msra.mxu0 0
      %580 = vmatpush.bf16.msra.mxu0 0
      %581 = vmatpush.bf16.msra.mxu0 0
      %582 = vmatpush.bf16.msra.mxu0 %v573
      %583 = vmatmul.bf16.gmra.mxu0 %v570
      %v584 = vpop.f32.mrf.mxu0
      %v585 = vadd.f32 0.0, %v584
      %v586 = vpop.f32.mrf.mxu0
      %v587 = vadd.f32 0.0, %v586
      %588 = vdwg.mxu0
      %v589 = vadd.f32 %v557, %v585
      %v590 = vadd.f32 %v558, %v587
      %v591 = vld [vmem:[%s5] sm:$0xff]
      %v592 = vld [vmem:[%s5 + $0x8] sm:$0xff]
      %594 = vset.pattern.permute.xlu0 0
      %595 = vperm.xlu0 %594, %v591
      %v596 = vpop.permute.xlu0 %595
      %599 = vset.pattern.permute.xlu0 0
      %600 = vperm.xlu0 %599, %v592
      %v601 = vpop.permute.xlu0 %600
      %v603 = vadd.f32 %v589, %v596
      %v604 = vadd.f32 %v590, %v601
      %vm605 = vcmp.ge.f32.partialorder %v603, 0.0
      %vm606 = vcmp.ge.f32.partialorder %v604, 0.0
      %v607 = vmul.f32 %v603, 0.2
      %v608 = vmul.f32 %v604, 0.2
      %v609 = vsel %vm605, %v603, %v607
      %v610 = vsel %vm606, %v604, %v608
      %v611 = vpack.c.bf16 %v609, %v609
      %v612 = vpack.c.bf16 %v610, %v610
      %vm613 = vcmask 44032
      %614 = vst.msk [vmem:[%s299] sm:$0xf] %vm613, %v611
      %615 = vst.msk [vmem:[%s299 + $0x4] sm:$0xf] %vm613, %v612
      %p616 = scmp.lt.s32.totalorder %s17, 1
      %s617 = scalar_select %p616, %s17, 1
      %s618 = smul.addr %s617, 2
      %s619 = smul.addr %s618, 4
      %s620 = scalar_lea.vmem %s6, %s619
      // Predicated region
      $region45: #{discriminator_forward.24} parent=43 // pred_check
        %p621 = pneg %p181
      $region46: #{discriminator_forward.24} parent=43 // pred_check_branch
        %623 = sbr.rel (%p621) target = $region48
      $region47: #{discriminator_forward.24} parent=43 // pred_region
        _
      $region48: #{discriminator_forward.24} parent=43 // pred_fallthru
        _
    $region44: #{discriminator_forward.24} parent=5 // pred_fallthru
      _
    %p624 = scmp.le.s32.totalorder 2, %s12
    // Predicated region
    $region49: #{discriminator_forward.24} parent=5 // pred_check
      %p625 = pneg %p624
    $region50: #{discriminator_forward.24} parent=5 // pred_check_branch
      %627 = sbr.rel (%p625) target = $region52
    $region51: #{discriminator_forward.24} parent=5 // pred_region
      %s628 = ssub.s32 %s12, 2
      // Predicated region
      $region53: #{discriminator_forward.24} parent=51 // pred_check
        %p629 = pneg %p187
      $region54: #{discriminator_forward.24} parent=51 // pred_check_branch
        %631 = sbr.rel (%p629) target = $region56
      $region55: #{discriminator_forward.24} parent=51 // pred_region
        %p632 = scmp.lt.s32.totalorder %s18, 1
        %s633 = scalar_select %p632, %s18, 1
        %s634 = smul.addr %s633, 2
        %s635 = smul.addr %s634, 4
        %s636 = scalar_lea.vmem %s6, %s635
      $region56: #{discriminator_forward.24} parent=51 // pred_fallthru
        _
    $region52: #{discriminator_forward.24} parent=5 // pred_fallthru
      _
  $region6: #{discriminator_forward.24} parent=0 // loop_footer
    %s16 = sadd.s32 1, %s12
  $region7: #{discriminator_forward.24} parent=0 // loop_footer_branch
    %11 = sbr.rel target = $region3
  $region8: #{discriminator_forward.24} parent=0 // loop_exit
    _

// kernel: discriminator_forward.17
$region0: #{discriminator_forward.17}
  #allocation0 [shape = 'u32[]', space=smem, size = 0x4, offset = 0x4, fixed_abs, tag = 'smem constant byte address 0x4 - core index']
  #allocation1 [shape = 'u32[72,128]{1,0:T(1,128)}', space=vmem, size = 0x9000, scoped, tag = 'internal scratch']
  %s0 = inlined_call_operand.vmem [shape: bf16[2,3,82], index: 0, kind: input, shape index: {}]
  %s1 = inlined_call_operand.vmem [shape: bf16[2,3,82], index: 1, kind: input, shape index: {}]
  %s2 = inlined_call_operand.vmem [shape: bf16[2,3,82], index: 2, kind: input, shape index: {}]
  %s3 = inlined_call_operand.vmem [shape: bf16[2,3,82], index: 3, kind: input, shape index: {}]
  %s4 = inlined_call_operand.vmem [shape: bf16[9,8,3], index: 4, kind: input, shape index: {}]
  %s5 = inlined_call_operand.vmem [shape: f32[8,1], index: 5, kind: input, shape index: {}]
  %s6 = inlined_call_operand.vmem [shape: bf16[2,8,72], index: 6, kind: output, shape index: {}]
  %s7 = sld [smem:[#allocation0]]
  $region57: #{discriminator_forward.17} parent=0
    _
  %s9 = ssub.s32 1, %s7
  %s10 = scalar_select 0, %s9, %s7
  loop: start=0, step=1, limit=4
  $region2: #{discriminator_forward.17} parent=0 // loop_pre_header
    _
  $region3: #{discriminator_forward.17} parent=0 // loop_header
    %s12 = sphi 0, %s16
    %p13 = scmp.ge.s32.totalorder %s12, 4
    %s22 = sphi 0, %s24
    %s25 = sphi 0, %s22
    %s26 = sphi 0, %s25
    %s42 = sphi 0, %s26
    %s48 = sphi 0, %s50
    %s51 = sphi 0, %s48
    %s52 = sphi 0, %s51
    %s68 = sphi 0, %s52
    %s74 = sphi 0, %s76
    %s77 = sphi 0, %s74
    %s78 = sphi 0, %s77
    %s94 = sphi 0, %s78
    %s100 = sphi 0, %s102
    %s103 = sphi 0, %s100
    %s104 = sphi 0, %s103
    %s120 = sphi 0, %s104
    %s124 = sphi 0, %s124
    %s126 = sphi 0, %s124
    %s127 = sphi 0, %s126
    %s141 = sphi 0, %s127
    %s145 = sphi 0, %s145
    %s147 = sphi 0, %s145
    %s148 = sphi 0, %s147
    %s162 = sphi 0, %s148
    %s168 = sphi 0, %s170
    %s171 = sphi 0, %s168
    %s172 = sphi 0, %s171
    %s188 = sphi 0, %s172
  $region4: #{discriminator_forward.17} parent=0 // loop_header_branch
    %15 = sbr.rel (%p13) target = $region8
  $region5: #{discriminator_forward.17} parent=0 // loop_body
    %s17 = ssub.s32 %s12, 1
    %s18 = ssub.s32 %s12, 2
    %s19 = sadd.s32 %s12, 1
    %s20 = ssub.s32 %s12, %s19
    %p21 = scmp.eq.s32.totalorder %s20, 0
    %s23 = sadd.s32 %s22, 1
    %s24 = scalar_select %p21, %s22, %s23
    %p27 = pneg %p21
    %p28 = scmp.eq.s32.totalorder %s12, 1
    %p29 = por %p27, %p28
    %p30 = scmp.ne.s32.totalorder %s22, %s25
    %p31 = scmp.eq.s32.totalorder %s12, 0
    %p32 = por %p30, %p31
    %p33 = scmp.ne.s32.totalorder %s22, %s25
    %p34 = scmp.eq.s32.totalorder %s17, 1
    %p35 = por %p33, %p34
    %p36 = scmp.ne.s32.totalorder %s25, %s26
    %p37 = scmp.eq.s32.totalorder %s17, 0
    %p38 = por %p36, %p37
    %p39 = scmp.ne.s32.totalorder %s25, %s26
    %p40 = scmp.eq.s32.totalorder %s18, 1
    %p41 = por %p39, %p40
    %p43 = scmp.ne.s32.totalorder %s26, %s42
    %p44 = scmp.eq.s32.totalorder %s18, 0
    %p45 = por %p43, %p44
    %s46 = ssub.s32 %s12, %s19
    %p47 = scmp.eq.s32.totalorder %s46, 0
    %s49 = sadd.s32 %s48, 1
    %s50 = scalar_select %p47, %s48, %s49
    %p53 = pneg %p47
    %p54 = scmp.eq.s32.totalorder %s12, 1
    %p55 = por %p53, %p54
    %p56 = scmp.ne.s32.totalorder %s48, %s51
    %p57 = scmp.eq.s32.totalorder %s12, 0
    %p58 = por %p56, %p57
    %p59 = scmp.ne.s32.totalorder %s48, %s51
    %p60 = scmp.eq.s32.totalorder %s17, 1
    %p61 = por %p59, %p60
    %p62 = scmp.ne.s32.totalorder %s51, %s52
    %p63 = scmp.eq.s32.totalorder %s17, 0
    %p64 = por %p62, %p63
    %p65 = scmp.ne.s32.totalorder %s51, %s52
    %p66 = scmp.eq.s32.totalorder %s18, 1
    %p67 = por %p65, %p66
    %p69 = scmp.ne.s32.totalorder %s52, %s68
    %p70 = scmp.eq.s32.totalorder %s18, 0
    %p71 = por %p69, %p70
    %s72 = ssub.s32 %s12, %s19
    %p73 = scmp.eq.s32.totalorder %s72, 0
    %s75 = sadd.s32 %s74, 1
    %s76 = scalar_select %p73, %s74, %s75
    %p79 = pneg %p73
    %p80 = scmp.eq.s32.totalorder %s12, 1
    %p81 = por %p79, %p80
    %p82 = scmp.ne.s32.totalorder %s74, %s77
    %p83 = scmp.eq.s32.totalorder %s12, 0
    %p84 = por %p82, %p83
    %p85 = scmp.ne.s32.totalorder %s74, %s77
    %p86 = scmp.eq.s32.totalorder %s17, 1
    %p87 = por %p85, %p86
    %p88 = scmp.ne.s32.totalorder %s77, %s78
    %p89 = scmp.eq.s32.totalorder %s17, 0
    %p90 = por %p88, %p89
    %p91 = scmp.ne.s32.totalorder %s77, %s78
    %p92 = scmp.eq.s32.totalorder %s18, 1
    %p93 = por %p91, %p92
    %p95 = scmp.ne.s32.totalorder %s78, %s94
    %p96 = scmp.eq.s32.totalorder %s18, 0
    %p97 = por %p95, %p96
    %s98 = ssub.s32 %s12, %s19
    %p99 = scmp.eq.s32.totalorder %s98, 0
    %s101 = sadd.s32 %s100, 1
    %s102 = scalar_select %p99, %s100, %s101
    %p105 = pneg %p99
    %p106 = scmp.eq.s32.totalorder %s12, 1
    %p107 = por %p105, %p106
    %p108 = scmp.ne.s32.totalorder %s100, %s103
    %p109 = scmp.eq.s32.totalorder %s12, 0
    %p110 = por %p108, %p109
    %p111 = scmp.ne.s32.totalorder %s100, %s103
    %p112 = scmp.eq.s32.totalorder %s17, 1
    %p113 = por %p111, %p112
    %p114 = scmp.ne.s32.totalorder %s103, %s104
    %p115 = scmp.eq.s32.totalorder %s17, 0
    %p116 = por %p114, %p115
    %p117 = scmp.ne.s32.totalorder %s103, %s104
    %p118 = scmp.eq.s32.totalorder %s18, 1
    %p119 = por %p117, %p118
    %p121 = scmp.ne.s32.totalorder %s104, %s120
    %p122 = scmp.eq.s32.totalorder %s18, 0
    %p123 = por %p121, %p122
    %s125 = sadd.s32 %s124, 1
    %p128 = scmp.eq.s32.totalorder %s12, 1
    %p129 = scmp.ne.s32.totalorder %s124, %s126
    %p130 = scmp.eq.s32.totalorder %s12, 0
    %p131 = por %p129, %p130
    %p132 = scmp.ne.s32.totalorder %s124, %s126
    %p133 = scmp.eq.s32.totalorder %s17, 1
    %p134 = por %p132, %p133
    %p135 = scmp.ne.s32.totalorder %s126, %s127
    %p136 = scmp.eq.s32.totalorder %s17, 0
    %p137 = por %p135, %p136
    %p138 = scmp.ne.s32.totalorder %s126, %s127
    %p139 = scmp.eq.s32.totalorder %s18, 1
    %p140 = por %p138, %p139
    %p142 = scmp.ne.s32.totalorder %s127, %s141
    %p143 = scmp.eq.s32.totalorder %s18, 0
    %p144 = por %p142, %p143
    %s146 = sadd.s32 %s145, 1
    %p149 = scmp.eq.s32.totalorder %s12, 1
    %p150 = scmp.ne.s32.totalorder %s145, %s147
    %p151 = scmp.eq.s32.totalorder %s12, 0
    %p152 = por %p150, %p151
    %p153 = scmp.ne.s32.totalorder %s145, %s147
    %p154 = scmp.eq.s32.totalorder %s17, 1
    %p155 = por %p153, %p154
    %p156 = scmp.ne.s32.totalorder %s147, %s148
    %p157 = scmp.eq.s32.totalorder %s17, 0
    %p158 = por %p156, %p157
    %p159 = scmp.ne.s32.totalorder %s147, %s148
    %p160 = scmp.eq.s32.totalorder %s18, 1
    %p161 = por %p159, %p160
    %p163 = scmp.ne.s32.totalorder %s148, %s162
    %p164 = scmp.eq.s32.totalorder %s18, 0
    %p165 = por %p163, %p164
    %s166 = ssub.s32 %s12, %s19
    %p167 = scmp.eq.s32.totalorder %s166, 0
    %s169 = sadd.s32 %s168, 1
    %s170 = scalar_select %p167, %s168, %s169
    %p173 = pneg %p167
    %p174 = scmp.eq.s32.totalorder %s12, 1
    %p175 = por %p173, %p174
    %p176 = scmp.ne.s32.totalorder %s168, %s171
    %p177 = scmp.eq.s32.totalorder %s12, 0
    %p178 = por %p176, %p177
    %p179 = scmp.ne.s32.totalorder %s168, %s171
    %p180 = scmp.eq.s32.totalorder %s17, 1
    %p181 = por %p179, %p180
    %p182 = scmp.ne.s32.totalorder %s171, %s172
    %p183 = scmp.eq.s32.totalorder %s17, 0
    %p184 = por %p182, %p183
    %p185 = scmp.ne.s32.totalorder %s171, %s172
    %p186 = scmp.eq.s32.totalorder %s18, 1
    %p187 = por %p185, %p186
    %p189 = scmp.ne.s32.totalorder %s172, %s188
    %p190 = scmp.eq.s32.totalorder %s18, 0
    %p191 = por %p189, %p190
    %p192 = scmp.le.s32.totalorder 1, %s12
    %p193 = scmp.lt.s32.totalorder %s12, 3
    %p194 = pnand %p192, %p193
    %p195 = pneg %p194
    // Predicated region
    $region9: #{discriminator_forward.17} parent=5 // pred_check
      _
    $region10: #{discriminator_forward.17} parent=5 // pred_check_branch
      %197 = sbr.rel (%p194) target = $region12
    $region11: #{discriminator_forward.17} parent=5 // pred_region
      %s198 = ssub.s32 %s12, 1
      // Predicated region
      $region13: #{discriminator_forward.17} parent=11 // pred_check
        %p199 = pneg %p137
      $region14: #{discriminator_forward.17} parent=11 // pred_check_branch
        %201 = sbr.rel (%p199) target = $region16
      $region15: #{discriminator_forward.17} parent=11 // pred_region
        _
      $region16: #{discriminator_forward.17} parent=11 // pred_fallthru
        _
      // Predicated region
      $region17: #{discriminator_forward.17} parent=11 // pred_check
        %p202 = pneg %p158
      $region18: #{discriminator_forward.17} parent=11 // pred_check_branch
        %204 = sbr.rel (%p202) target = $region20
      $region19: #{discriminator_forward.17} parent=11 // pred_region
        _
      $region20: #{discriminator_forward.17} parent=11 // pred_fallthru
        _
    $region12: #{discriminator_forward.17} parent=5 // pred_fallthru
      _
    %p205 = scmp.lt.s32.totalorder %s12, 2
    // Predicated region
    $region21: #{discriminator_forward.17} parent=5 // pred_check
      %p206 = pneg %p205
    $region22: #{discriminator_forward.17} parent=5 // pred_check_branch
      %208 = sbr.rel (%p206) target = $region24
    $region23: #{discriminator_forward.17} parent=5 // pred_region
      // Predicated region
      $region25: #{discriminator_forward.17} parent=23 // pred_check
        %p209 = pneg %p32
      $region26: #{discriminator_forward.17} parent=23 // pred_check_branch
        %211 = sbr.rel (%p209) target = $region28
      $region27: #{discriminator_forward.17} parent=23 // pred_region
        %p212 = scmp.lt.s32.totalorder %s12, 1
        %s213 = scalar_select %p212, %s12, 1
        %s214 = smul.addr %s213, 2
        %s215 = scalar_lea.vmem %s0, %s214
      $region28: #{discriminator_forward.17} parent=23 // pred_fallthru
        _
      // Predicated region
      $region29: #{discriminator_forward.17} parent=23 // pred_check
        %p216 = pneg %p58
      $region30: #{discriminator_forward.17} parent=23 // pred_check_branch
        %218 = sbr.rel (%p216) target = $region32
      $region31: #{discriminator_forward.17} parent=23 // pred_region
        %p219 = scmp.lt.s32.totalorder %s12, 1
        %s220 = scalar_select %p219, %s12, 1
        %s221 = smul.addr %s220, 2
        %s222 = scalar_lea.vmem %s1, %s221
      $region32: #{discriminator_forward.17} parent=23 // pred_fallthru
        _
      // Predicated region
      $region33: #{discriminator_forward.17} parent=23 // pred_check
        %p223 = pneg %p84
      $region34: #{discriminator_forward.17} parent=23 // pred_check_branch
        %225 = sbr.rel (%p223) target = $region36
      $region35: #{discriminator_forward.17} parent=23 // pred_region
        %p226 = scmp.lt.s32.totalorder %s12, 1
        %s227 = scalar_select %p226, %s12, 1
        %s228 = smul.addr %s227, 2
        %s229 = scalar_lea.vmem %s2, %s228
      $region36: #{discriminator_forward.17} parent=23 // pred_fallthru
        _
      // Predicated region
      $region37: #{discriminator_forward.17} parent=23 // pred_check
        %p230 = pneg %p110
      $region38: #{discriminator_forward.17} parent=23 // pred_check_branch
        %232 = sbr.rel (%p230) target = $region40
      $region39: #{discriminator_forward.17} parent=23 // pred_region
        %p233 = scmp.lt.s32.totalorder %s12, 1
        %s234 = scalar_select %p233, %s12, 1
        %s235 = smul.addr %s234, 2
        %s236 = scalar_lea.vmem %s3, %s235
      $region40: #{discriminator_forward.17} parent=23 // pred_fallthru
        _
    $region24: #{discriminator_forward.17} parent=5 // pred_fallthru
      _
    %p237 = scmp.le.s32.totalorder 1, %s12
    %p238 = scmp.lt.s32.totalorder %s12, 3
    %p239 = pnand %p237, %p238
    %p240 = pneg %p239
    // Predicated region
    $region41: #{discriminator_forward.17} parent=5 // pred_check
      _
    $region42: #{discriminator_forward.17} parent=5 // pred_check_branch
      %242 = sbr.rel (%p239) target = $region44
    $region43: #{discriminator_forward.17} parent=5 // pred_region
      %s243 = ssub.s32 %s12, 1
      %p244 = scmp.lt.s32.totalorder %s17, 1
      %s245 = scalar_select %p244, %s17, 1
      %s246 = smul.addr %s245, 2
      %s247 = scalar_lea.vmem %s0, %s246
      %p248 = pneg %p38
      %p249 = pneg %p35
      %p250 = scmp.lt.s32.totalorder %s17, 1
      %s251 = scalar_select %p250, %s17, 1
      %s252 = smul.addr %s251, 2
      %s253 = scalar_lea.vmem %s1, %s252
      %p254 = pneg %p64
      %p255 = pneg %p61
      %p256 = scmp.lt.s32.totalorder %s17, 1
      %s257 = scalar_select %p256, %s17, 1
      %s258 = smul.addr %s257, 2
      %s259 = scalar_lea.vmem %s2, %s258
      %p260 = pneg %p90
      %p261 = pneg %p87
      %p262 = scmp.lt.s32.totalorder %s17, 1
      %s263 = scalar_select %p262, %s17, 1
      %s264 = smul.addr %s263, 2
      %s265 = scalar_lea.vmem %s3, %s264
      %p266 = pneg %p116
      %p267 = pneg %p113
      %p268 = pneg %p137
      %p269 = pneg %p134
      %p270 = pneg %p158
      %p271 = pneg %p155
      %p272 = pneg %p184
      %p273 = pneg %p181
      %p274 = scmp.lt.s32.totalorder %s17, 1
      %s275 = scalar_select %p274, %s17, 1
      %s276 = smul.addr %s275, 4
      %s277 = scalar_lea.vmem %s6, %s276
      %p278 = scmp.lt.s32.totalorder %s17, 1
      %s279 = scalar_select %p278, %s17, 1
      %s280 = smul.addr %s279, 2
      %s281 = scalar_lea.vmem %s0, %s280
      %p282 = scmp.lt.s32.totalorder %s17, 1
      %s283 = scalar_select %p282, %s17, 1
      %s284 = smul.addr %s283, 2
      %s285 = scalar_lea.vmem %s1, %s284
      %p286 = scmp.lt.s32.totalorder %s17, 1
      %s287 = scalar_select %p286, %s17, 1
      %s288 = smul.addr %s287, 2
      %s289 = scalar_lea.vmem %s2, %s288
      %p290 = scmp.lt.s32.totalorder %s17, 1
      %s291 = scalar_select %p290, %s17, 1
      %s292 = smul.addr %s291, 2
      %s293 = scalar_lea.vmem %s3, %s292
      %p294 = scmp.lt.s32.totalorder %s17, 1
      %s295 = scalar_select %p294, %s17, 1
      %s296 = smul.addr %s295, 4
      %s297 = scalar_lea.vmem %s6, %s296
      %v299 = vld [vmem:[%s281] sm:$0x3]
      %v300 = vld [vmem:[%s4] sm:$0xf]
      %v301 = vld [vmem:[%s285] sm:$0x3]
      %s302 = scalar_lea.vmem %s4, 4
      %v303 = vld [vmem:[%s302] sm:$0xf]
      %vm304 = vcmask 23552
      %v306 = vsel %vm304, %v303, 0
      %vm308 = vcmask 1040384
      %vm309 = vcmask 1041408
      %v310 = vsel %vm308, 4294967295, 65535
      %v311 = vsel %vm309, %v310, 0
      %v313 = vand.u32 %v301, %v311
      %315 = vmatpush.bf16.msra.mxu0 0
      %316 = vmatpush.bf16.msra.mxu0 0
      %317 = vmatpush.bf16.msra.mxu0 0
      %318 = vmatpush.bf16.msra.mxu0 0
      %319 = vmatpush.bf16.msra.mxu0 0
      %320 = vmatpush.bf16.msra.mxu0 0
      %321 = vmatpush.bf16.msra.mxu0 0
      %322 = vmatpush.bf16.msra.mxu0 %v313
      %323 = vmatmul.bf16.gmra.mxu0 %v306
      %v324 = vpop.f32.mrf.mxu0
      %v325 = vadd.f32 0.0, %v324
      %v326 = vpop.f32.mrf.mxu0
      %327 = vdwg.mxu0
      %v329 = vsel %vm304, %v300, 0
      %v332 = vand.u32 %v299, %v311
      %334 = vmatpush.bf16.msra.mxu0 0
      %335 = vmatpush.bf16.msra.mxu0 0
      %336 = vmatpush.bf16.msra.mxu0 0
      %337 = vmatpush.bf16.msra.mxu0 0
      %338 = vmatpush.bf16.msra.mxu0 0
      %339 = vmatpush.bf16.msra.mxu0 0
      %340 = vmatpush.bf16.msra.mxu0 0
      %341 = vmatpush.bf16.msra.mxu0 %v332
      %342 = vmatmul.bf16.gmra.mxu0 %v329
      %v343 = vpop.f32.mrf.mxu0
      %v344 = vadd.f32 %v325, %v343
      %v345 = vpop.f32.mrf.mxu0
      %346 = vdwg.mxu0
      %s347 = scalar_lea.vmem %s4, 8
      %v348 = vld [vmem:[%s347] sm:$0xf]
      %349 = vst [vmem:[#allocation1] ss:$4 sm:$0xff] %v299
      %v350 = vld.sshfl [vmem:[#allocation1] sm:$0xff pattern:$0x73625140]
      %352 = vrot.lane.b32.xlu0 %v350, 127
      %v353 = vpop.permute.xlu0 %352
      %v355 = vsel %vm304, %v348, 0
      %v358 = vand.u32 %v353, %v311
      %360 = vmatpush.bf16.msra.mxu0 0
      %361 = vmatpush.bf16.msra.mxu0 0
      %362 = vmatpush.bf16.msra.mxu0 0
      %363 = vmatpush.bf16.msra.mxu0 0
      %364 = vmatpush.bf16.msra.mxu0 0
      %365 = vmatpush.bf16.msra.mxu0 0
      %366 = vmatpush.bf16.msra.mxu0 0
      %367 = vmatpush.bf16.msra.mxu0 %v358
      %368 = vmatmul.bf16.gmra.mxu0 %v355
      %v369 = vpop.f32.mrf.mxu0
      %v370 = vadd.f32 0.0, %v369
      %v371 = vpop.f32.mrf.mxu0
      %372 = vdwg.mxu0
      %v373 = vadd.f32 %v344, %v370
      %v374 = vld [vmem:[%s289] sm:$0x3]
      %s375 = scalar_lea.vmem %s4, 12
      %v376 = vld [vmem:[%s375] sm:$0xf]
      %v378 = vsel %vm304, %v376, 0
      %v381 = vand.u32 %v374, %v311
      %383 = vmatpush.bf16.msra.mxu0 0
      %384 = vmatpush.bf16.msra.mxu0 0
      %385 = vmatpush.bf16.msra.mxu0 0
      %386 = vmatpush.bf16.msra.mxu0 0
      %387 = vmatpush.bf16.msra.mxu0 0
      %388 = vmatpush.bf16.msra.mxu0 0
      %389 = vmatpush.bf16.msra.mxu0 0
      %390 = vmatpush.bf16.msra.mxu0 %v381
      %391 = vmatmul.bf16.gmra.mxu0 %v378
      %v392 = vpop.f32.mrf.mxu0
      %v393 = vadd.f32 0.0, %v392
      %v394 = vpop.f32.mrf.mxu0
      %395 = vdwg.mxu0
      %v396 = vadd.f32 %v373, %v393
      %v397 = vld [vmem:[%s293] sm:$0x3]
      %s398 = scalar_lea.vmem %s4, 16
      %v399 = vld [vmem:[%s398] sm:$0xf]
      %v401 = vsel %vm304, %v399, 0
      %v404 = vand.u32 %v397, %v311
      %406 = vmatpush.bf16.msra.mxu0 0
      %407 = vmatpush.bf16.msra.mxu0 0
      %408 = vmatpush.bf16.msra.mxu0 0
      %409 = vmatpush.bf16.msra.mxu0 0
      %410 = vmatpush.bf16.msra.mxu0 0
      %411 = vmatpush.bf16.msra.mxu0 0
      %412 = vmatpush.bf16.msra.mxu0 0
      %413 = vmatpush.bf16.msra.mxu0 %v404
      %414 = vmatmul.bf16.gmra.mxu0 %v401
      %v415 = vpop.f32.mrf.mxu0
      %v416 = vadd.f32 0.0, %v415
      %v417 = vpop.f32.mrf.mxu0
      %418 = vdwg.mxu0
      %v419 = vadd.f32 %v396, %v416
      %s420 = scalar_lea.vmem %s4, 20
      %v421 = vld [vmem:[%s420] sm:$0xf]
      %422 = vst [vmem:[#allocation1] ss:$4 sm:$0xff] %v374
      %v423 = vld.sshfl [vmem:[#allocation1] sm:$0xff pattern:$0x73625140]
      %425 = vrot.lane.b32.xlu0 %v423, 127
      %v426 = vpop.permute.xlu0 %425
      %v428 = vsel %vm304, %v421, 0
      %v431 = vand.u32 %v426, %v311
      %433 = vmatpush.bf16.msra.mxu0 0
      %434 = vmatpush.bf16.msra.mxu0 0
      %435 = vmatpush.bf16.msra.mxu0 0
      %436 = vmatpush.bf16.msra.mxu0 0
      %437 = vmatpush.bf16.msra.mxu0 0
      %438 = vmatpush.bf16.msra.mxu0 0
      %439 = vmatpush.bf16.msra.mxu0 0
      %440 = vmatpush.bf16.msra.mxu0 %v431
      %441 = vmatmul.bf16.gmra.mxu0 %v428
      %v442 = vpop.f32.mrf.mxu0
      %v443 = vadd.f32 0.0, %v442
      %v444 = vpop.f32.mrf.mxu0
      %445 = vdwg.mxu0
      %v446 = vadd.f32 %v419, %v443
      %v447 = vld [vmem:[%s281] sm:$0x3]
      %s448 = scalar_lea.vmem %s4, 24
      %v449 = vld [vmem:[%s448] sm:$0xf]
      %451 = vst [vmem:[#allocation1] ss:$4 sm:$0xff] %v447
      %v452 = vld.sshfl [vmem:[#allocation1] sm:$0xff pattern:$0x73625140]
      %454 = vrot.lane.b32.xlu0 %v452, 119
      %v455 = vpop.permute.xlu0 %454
      %v457 = vsel %vm304, %v449, 0
      %v460 = vand.u32 %v455, %v311
      %462 = vmatpush.bf16.msra.mxu0 0
      %463 = vmatpush.bf16.msra.mxu0 0
      %464 = vmatpush.bf16.msra.mxu0 0
      %465 = vmatpush.bf16.msra.mxu0 0
      %466 = vmatpush.bf16.msra.mxu0 0
      %467 = vmatpush.bf16.msra.mxu0 0
      %468 = vmatpush.bf16.msra.mxu0 0
      %469 = vmatpush.bf16.msra.mxu0 %v460
      %470 = vmatmul.bf16.gmra.mxu0 %v457
      %v471 = vpop.f32.mrf.mxu0
      %v472 = vadd.f32 0.0, %v471
      %v473 = vpop.f32.mrf.mxu0
      %474 = vdwg.mxu0
      %v475 = vadd.f32 %v446, %v472
      %v476 = vld [vmem:[%s285] sm:$0x3]
      %s477 = scalar_lea.vmem %s4, 28
      %v478 = vld [vmem:[%s477] sm:$0xf]
      %480 = vst [vmem:[#allocation1] ss:$4 sm:$0xff] %v476
      %v481 = vld.sshfl [vmem:[#allocation1] sm:$0xff pattern:$0x73625140]
      %483 = vrot.lane.b32.xlu0 %v481, 119
      %v484 = vpop.permute.xlu0 %483
      %v486 = vsel %vm304, %v478, 0
      %v489 = vand.u32 %v484, %v311
      %491 = vmatpush.bf16.msra.mxu0 0
      %492 = vmatpush.bf16.msra.mxu0 0
      %493 = vmatpush.bf16.msra.mxu0 0
      %494 = vmatpush.bf16.msra.mxu0 0
      %495 = vmatpush.bf16.msra.mxu0 0
      %496 = vmatpush.bf16.msra.mxu0 0
      %497 = vmatpush.bf16.msra.mxu0 0
      %498 = vmatpush.bf16.msra.mxu0 %v489
      %499 = vmatmul.bf16.gmra.mxu0 %v486
      %v500 = vpop.f32.mrf.mxu0
      %v501 = vadd.f32 0.0, %v500
      %v502 = vpop.f32.mrf.mxu0
      %503 = vdwg.mxu0
      %v504 = vadd.f32 %v475, %v501
      %v505 = vld [vmem:[%s281] sm:$0x3]
      %s506 = scalar_lea.vmem %s4, 32
      %v507 = vld [vmem:[%s506] sm:$0xf]
      %509 = vst [vmem:[#allocation1] ss:$4 sm:$0xff] %v505
      %v510 = vld.sshfl [vmem:[#allocation1] sm:$0xff pattern:$0x73625140]
      %512 = vrot.lane.b32.xlu0 %v510, 118
      %v513 = vpop.permute.xlu0 %512
      %v515 = vsel %vm304, %v507, 0
      %v518 = vand.u32 %v513, %v311
      %520 = vmatpush.bf16.msra.mxu0 0
      %521 = vmatpush.bf16.msra.mxu0 0
      %522 = vmatpush.bf16.msra.mxu0 0
      %523 = vmatpush.bf16.msra.mxu0 0
      %524 = vmatpush.bf16.msra.mxu0 0
      %525 = vmatpush.bf16.msra.mxu0 0
      %526 = vmatpush.bf16.msra.mxu0 0
      %527 = vmatpush.bf16.msra.mxu0 %v518
      %528 = vmatmul.bf16.gmra.mxu0 %v515
      %v529 = vpop.f32.mrf.mxu0
      %v530 = vadd.f32 0.0, %v529
      %v531 = vpop.f32.mrf.mxu0
      %532 = vdwg.mxu0
      %v533 = vadd.f32 %v504, %v530
      %v534 = vld [vmem:[%s5] sm:$0xff]
      %536 = vset.pattern.permute.xlu0 0
      %537 = vperm.xlu0 %536, %v534
      %v538 = vpop.permute.xlu0 %537
      %v540 = vadd.f32 %v533, %v538
      %vm541 = vcmp.ge.f32.partialorder %v540, 0.0
      %v542 = vmul.f32 %v540, 0.2
      %v543 = vsel %vm541, %v540, %v542
      %v544 = vpack.c.bf16 %v543, %v543
      %vm545 = vcmask 584704
      %546 = vst.msk [vmem:[%s297] sm:$0xf] %vm545, %v544
      %p547 = scmp.lt.s32.totalorder %s17, 1
      %s548 = scalar_select %p547, %s17, 1
      %s549 = smul.addr %s548, 4
      %s550 = scalar_lea.vmem %s6, %s549
      // Predicated region
      $region45: #{discriminator_forward.17} parent=43 // pred_check
        %p551 = pneg %p181
      $region46: #{discriminator_forward.17} parent=43 // pred_check_branch
        %553 = sbr.rel (%p551) target = $region48
      $region47: #{discriminator_forward.17} parent=43 // pred_region
        _
      $region48: #{discriminator_forward.17} parent=43 // pred_fallthru
        _
    $region44: #{discriminator_forward.17} parent=5 // pred_fallthru
      _
    %p554 = scmp.le.s32.totalorder 2, %s12
    // Predicated region
    $region49: #{discriminator_forward.17} parent=5 // pred_check
      %p555 = pneg %p554
    $region50: #{discriminator_forward.17} parent=5 // pred_check_branch
      %557 = sbr.rel (%p555) target = $region52
    $region51: #{discriminator_forward.17} parent=5 // pred_region
      %s558 = ssub.s32 %s12, 2
      // Predicated region
      $region53: #{discriminator_forward.17} parent=51 // pred_check
        %p559 = pneg %p187
      $region54: #{discriminator_forward.17} parent=51 // pred_check_branch
        %561 = sbr.rel (%p559) target = $region56
      $region55: #{discriminator_forward.17} parent=51 // pred_region
        %p562 = scmp.lt.s32.totalorder %s18, 1
        %s563 = scalar_select %p562, %s18, 1
        %s564 = smul.addr %s563, 4
        %s565 = scalar_lea.vmem %s6, %s564
      $region56: #{discriminator_forward.17} parent=51 // pred_fallthru
        _
    $region52: #{discriminator_forward.17} parent=5 // pred_fallthru
      _
  $region6: #{discriminator_forward.17} parent=0 // loop_footer
    %s16 = sadd.s32 1, %s12
  $region7: #{discriminator_forward.17} parent=0 // loop_footer_branch
    %11 = sbr.rel target = $region3
  $region8: #{discriminator_forward.17} parent=0 // loop_exit
    _

// kernel: discriminator_forward.18
$region0: #{discriminator_forward.18}
  #allocation0 [shape = 'u32[]', space=smem, size = 0x4, offset = 0x4, fixed_abs, tag = 'smem constant byte address 0x4 - core index']
  #allocation1 [shape = 'u32[72,128]{1,0:T(1,128)}', space=vmem, size = 0x9000, scoped, tag = 'internal scratch']
  %s0 = inlined_call_operand.vmem [shape: bf16[2,8,26], index: 0, kind: input, shape index: {}]
  %s1 = inlined_call_operand.vmem [shape: bf16[2,8,26], index: 1, kind: input, shape index: {}]
  %s2 = inlined_call_operand.vmem [shape: bf16[2,8,26], index: 2, kind: input, shape index: {}]
  %s3 = inlined_call_operand.vmem [shape: bf16[2,8,26], index: 3, kind: input, shape index: {}]
  %s4 = inlined_call_operand.vmem [shape: bf16[9,16,8], index: 4, kind: input, shape index: {}]
  %s5 = inlined_call_operand.vmem [shape: f32[16,1], index: 5, kind: input, shape index: {}]
  %s6 = inlined_call_operand.vmem [shape: bf16[2,16,20], index: 6, kind: output, shape index: {}]
  %s7 = sld [smem:[#allocation0]]
  $region57: #{discriminator_forward.18} parent=0
    _
  %s9 = ssub.s32 1, %s7
  %s10 = scalar_select 0, %s9, %s7
  loop: start=0, step=1, limit=4
  $region2: #{discriminator_forward.18} parent=0 // loop_pre_header
    _
  $region3: #{discriminator_forward.18} parent=0 // loop_header
    %s12 = sphi 0, %s16
    %p13 = scmp.ge.s32.totalorder %s12, 4
    %s22 = sphi 0, %s24
    %s25 = sphi 0, %s22
    %s26 = sphi 0, %s25
    %s42 = sphi 0, %s26
    %s48 = sphi 0, %s50
    %s51 = sphi 0, %s48
    %s52 = sphi 0, %s51
    %s68 = sphi 0, %s52
    %s74 = sphi 0, %s76
    %s77 = sphi 0, %s74
    %s78 = sphi 0, %s77
    %s94 = sphi 0, %s78
    %s100 = sphi 0, %s102
    %s103 = sphi 0, %s100
    %s104 = sphi 0, %s103
    %s120 = sphi 0, %s104
    %s124 = sphi 0, %s124
    %s126 = sphi 0, %s124
    %s127 = sphi 0, %s126
    %s141 = sphi 0, %s127
    %s145 = sphi 0, %s145
    %s147 = sphi 0, %s145
    %s148 = sphi 0, %s147
    %s162 = sphi 0, %s148
    %s168 = sphi 0, %s170
    %s171 = sphi 0, %s168
    %s172 = sphi 0, %s171
    %s188 = sphi 0, %s172
  $region4: #{discriminator_forward.18} parent=0 // loop_header_branch
    %15 = sbr.rel (%p13) target = $region8
  $region5: #{discriminator_forward.18} parent=0 // loop_body
    %s17 = ssub.s32 %s12, 1
    %s18 = ssub.s32 %s12, 2
    %s19 = sadd.s32 %s12, 1
    %s20 = ssub.s32 %s12, %s19
    %p21 = scmp.eq.s32.totalorder %s20, 0
    %s23 = sadd.s32 %s22, 1
    %s24 = scalar_select %p21, %s22, %s23
    %p27 = pneg %p21
    %p28 = scmp.eq.s32.totalorder %s12, 1
    %p29 = por %p27, %p28
    %p30 = scmp.ne.s32.totalorder %s22, %s25
    %p31 = scmp.eq.s32.totalorder %s12, 0
    %p32 = por %p30, %p31
    %p33 = scmp.ne.s32.totalorder %s22, %s25
    %p34 = scmp.eq.s32.totalorder %s17, 1
    %p35 = por %p33, %p34
    %p36 = scmp.ne.s32.totalorder %s25, %s26
    %p37 = scmp.eq.s32.totalorder %s17, 0
    %p38 = por %p36, %p37
    %p39 = scmp.ne.s32.totalorder %s25, %s26
    %p40 = scmp.eq.s32.totalorder %s18, 1
    %p41 = por %p39, %p40
    %p43 = scmp.ne.s32.totalorder %s26, %s42
    %p44 = scmp.eq.s32.totalorder %s18, 0
    %p45 = por %p43, %p44
    %s46 = ssub.s32 %s12, %s19
    %p47 = scmp.eq.s32.totalorder %s46, 0
    %s49 = sadd.s32 %s48, 1
    %s50 = scalar_select %p47, %s48, %s49
    %p53 = pneg %p47
    %p54 = scmp.eq.s32.totalorder %s12, 1
    %p55 = por %p53, %p54
    %p56 = scmp.ne.s32.totalorder %s48, %s51
    %p57 = scmp.eq.s32.totalorder %s12, 0
    %p58 = por %p56, %p57
    %p59 = scmp.ne.s32.totalorder %s48, %s51
    %p60 = scmp.eq.s32.totalorder %s17, 1
    %p61 = por %p59, %p60
    %p62 = scmp.ne.s32.totalorder %s51, %s52
    %p63 = scmp.eq.s32.totalorder %s17, 0
    %p64 = por %p62, %p63
    %p65 = scmp.ne.s32.totalorder %s51, %s52
    %p66 = scmp.eq.s32.totalorder %s18, 1
    %p67 = por %p65, %p66
    %p69 = scmp.ne.s32.totalorder %s52, %s68
    %p70 = scmp.eq.s32.totalorder %s18, 0
    %p71 = por %p69, %p70
    %s72 = ssub.s32 %s12, %s19
    %p73 = scmp.eq.s32.totalorder %s72, 0
    %s75 = sadd.s32 %s74, 1
    %s76 = scalar_select %p73, %s74, %s75
    %p79 = pneg %p73
    %p80 = scmp.eq.s32.totalorder %s12, 1
    %p81 = por %p79, %p80
    %p82 = scmp.ne.s32.totalorder %s74, %s77
    %p83 = scmp.eq.s32.totalorder %s12, 0
    %p84 = por %p82, %p83
    %p85 = scmp.ne.s32.totalorder %s74, %s77
    %p86 = scmp.eq.s32.totalorder %s17, 1
    %p87 = por %p85, %p86
    %p88 = scmp.ne.s32.totalorder %s77, %s78
    %p89 = scmp.eq.s32.totalorder %s17, 0
    %p90 = por %p88, %p89
    %p91 = scmp.ne.s32.totalorder %s77, %s78
    %p92 = scmp.eq.s32.totalorder %s18, 1
    %p93 = por %p91, %p92
    %p95 = scmp.ne.s32.totalorder %s78, %s94
    %p96 = scmp.eq.s32.totalorder %s18, 0
    %p97 = por %p95, %p96
    %s98 = ssub.s32 %s12, %s19
    %p99 = scmp.eq.s32.totalorder %s98, 0
    %s101 = sadd.s32 %s100, 1
    %s102 = scalar_select %p99, %s100, %s101
    %p105 = pneg %p99
    %p106 = scmp.eq.s32.totalorder %s12, 1
    %p107 = por %p105, %p106
    %p108 = scmp.ne.s32.totalorder %s100, %s103
    %p109 = scmp.eq.s32.totalorder %s12, 0
    %p110 = por %p108, %p109
    %p111 = scmp.ne.s32.totalorder %s100, %s103
    %p112 = scmp.eq.s32.totalorder %s17, 1
    %p113 = por %p111, %p112
    %p114 = scmp.ne.s32.totalorder %s103, %s104
    %p115 = scmp.eq.s32.totalorder %s17, 0
    %p116 = por %p114, %p115
    %p117 = scmp.ne.s32.totalorder %s103, %s104
    %p118 = scmp.eq.s32.totalorder %s18, 1
    %p119 = por %p117, %p118
    %p121 = scmp.ne.s32.totalorder %s104, %s120
    %p122 = scmp.eq.s32.totalorder %s18, 0
    %p123 = por %p121, %p122
    %s125 = sadd.s32 %s124, 1
    %p128 = scmp.eq.s32.totalorder %s12, 1
    %p129 = scmp.ne.s32.totalorder %s124, %s126
    %p130 = scmp.eq.s32.totalorder %s12, 0
    %p131 = por %p129, %p130
    %p132 = scmp.ne.s32.totalorder %s124, %s126
    %p133 = scmp.eq.s32.totalorder %s17, 1
    %p134 = por %p132, %p133
    %p135 = scmp.ne.s32.totalorder %s126, %s127
    %p136 = scmp.eq.s32.totalorder %s17, 0
    %p137 = por %p135, %p136
    %p138 = scmp.ne.s32.totalorder %s126, %s127
    %p139 = scmp.eq.s32.totalorder %s18, 1
    %p140 = por %p138, %p139
    %p142 = scmp.ne.s32.totalorder %s127, %s141
    %p143 = scmp.eq.s32.totalorder %s18, 0
    %p144 = por %p142, %p143
    %s146 = sadd.s32 %s145, 1
    %p149 = scmp.eq.s32.totalorder %s12, 1
    %p150 = scmp.ne.s32.totalorder %s145, %s147
    %p151 = scmp.eq.s32.totalorder %s12, 0
    %p152 = por %p150, %p151
    %p153 = scmp.ne.s32.totalorder %s145, %s147
    %p154 = scmp.eq.s32.totalorder %s17, 1
    %p155 = por %p153, %p154
    %p156 = scmp.ne.s32.totalorder %s147, %s148
    %p157 = scmp.eq.s32.totalorder %s17, 0
    %p158 = por %p156, %p157
    %p159 = scmp.ne.s32.totalorder %s147, %s148
    %p160 = scmp.eq.s32.totalorder %s18, 1
    %p161 = por %p159, %p160
    %p163 = scmp.ne.s32.totalorder %s148, %s162
    %p164 = scmp.eq.s32.totalorder %s18, 0
    %p165 = por %p163, %p164
    %s166 = ssub.s32 %s12, %s19
    %p167 = scmp.eq.s32.totalorder %s166, 0
    %s169 = sadd.s32 %s168, 1
    %s170 = scalar_select %p167, %s168, %s169
    %p173 = pneg %p167
    %p174 = scmp.eq.s32.totalorder %s12, 1
    %p175 = por %p173, %p174
    %p176 = scmp.ne.s32.totalorder %s168, %s171
    %p177 = scmp.eq.s32.totalorder %s12, 0
    %p178 = por %p176, %p177
    %p179 = scmp.ne.s32.totalorder %s168, %s171
    %p180 = scmp.eq.s32.totalorder %s17, 1
    %p181 = por %p179, %p180
    %p182 = scmp.ne.s32.totalorder %s171, %s172
    %p183 = scmp.eq.s32.totalorder %s17, 0
    %p184 = por %p182, %p183
    %p185 = scmp.ne.s32.totalorder %s171, %s172
    %p186 = scmp.eq.s32.totalorder %s18, 1
    %p187 = por %p185, %p186
    %p189 = scmp.ne.s32.totalorder %s172, %s188
    %p190 = scmp.eq.s32.totalorder %s18, 0
    %p191 = por %p189, %p190
    %p192 = scmp.le.s32.totalorder 1, %s12
    %p193 = scmp.lt.s32.totalorder %s12, 3
    %p194 = pnand %p192, %p193
    %p195 = pneg %p194
    // Predicated region
    $region9: #{discriminator_forward.18} parent=5 // pred_check
      _
    $region10: #{discriminator_forward.18} parent=5 // pred_check_branch
      %197 = sbr.rel (%p194) target = $region12
    $region11: #{discriminator_forward.18} parent=5 // pred_region
      %s198 = ssub.s32 %s12, 1
      // Predicated region
      $region13: #{discriminator_forward.18} parent=11 // pred_check
        %p199 = pneg %p137
      $region14: #{discriminator_forward.18} parent=11 // pred_check_branch
        %201 = sbr.rel (%p199) target = $region16
      $region15: #{discriminator_forward.18} parent=11 // pred_region
        _
      $region16: #{discriminator_forward.18} parent=11 // pred_fallthru
        _
      // Predicated region
      $region17: #{discriminator_forward.18} parent=11 // pred_check
        %p202 = pneg %p158
      $region18: #{discriminator_forward.18} parent=11 // pred_check_branch
        %204 = sbr.rel (%p202) target = $region20
      $region19: #{discriminator_forward.18} parent=11 // pred_region
        _
      $region20: #{discriminator_forward.18} parent=11 // pred_fallthru
        _
    $region12: #{discriminator_forward.18} parent=5 // pred_fallthru
      _
    %p205 = scmp.lt.s32.totalorder %s12, 2
    // Predicated region
    $region21: #{discriminator_forward.18} parent=5 // pred_check
      %p206 = pneg %p205
    $region22: #{discriminator_forward.18} parent=5 // pred_check_branch
      %208 = sbr.rel (%p206) target = $region24
    $region23: #{discriminator_forward.18} parent=5 // pred_region
      // Predicated region
      $region25: #{discriminator_forward.18} parent=23 // pred_check
        %p209 = pneg %p32
      $region26: #{discriminator_forward.18} parent=23 // pred_check_branch
        %211 = sbr.rel (%p209) target = $region28
      $region27: #{discriminator_forward.18} parent=23 // pred_region
        %p212 = scmp.lt.s32.totalorder %s12, 1
        %s213 = scalar_select %p212, %s12, 1
        %s214 = smul.addr %s213, 4
        %s215 = scalar_lea.vmem %s0, %s214
      $region28: #{discriminator_forward.18} parent=23 // pred_fallthru
        _
      // Predicated region
      $region29: #{discriminator_forward.18} parent=23 // pred_check
        %p216 = pneg %p58
      $region30: #{discriminator_forward.18} parent=23 // pred_check_branch
        %218 = sbr.rel (%p216) target = $region32
      $region31: #{discriminator_forward.18} parent=23 // pred_region
        %p219 = scmp.lt.s32.totalorder %s12, 1
        %s220 = scalar_select %p219, %s12, 1
        %s221 = smul.addr %s220, 4
        %s222 = scalar_lea.vmem %s1, %s221
      $region32: #{discriminator_forward.18} parent=23 // pred_fallthru
        _
      // Predicated region
      $region33: #{discriminator_forward.18} parent=23 // pred_check
        %p223 = pneg %p84
      $region34: #{discriminator_forward.18} parent=23 // pred_check_branch
        %225 = sbr.rel (%p223) target = $region36
      $region35: #{discriminator_forward.18} parent=23 // pred_region
        %p226 = scmp.lt.s32.totalorder %s12, 1
        %s227 = scalar_select %p226, %s12, 1
        %s228 = smul.addr %s227, 4
        %s229 = scalar_lea.vmem %s2, %s228
      $region36: #{discriminator_forward.18} parent=23 // pred_fallthru
        _
      // Predicated region
      $region37: #{discriminator_forward.18} parent=23 // pred_check
        %p230 = pneg %p110
      $region38: #{discriminator_forward.18} parent=23 // pred_check_branch
        %232 = sbr.rel (%p230) target = $region40
      $region39: #{discriminator_forward.18} parent=23 // pred_region
        %p233 = scmp.lt.s32.totalorder %s12, 1
        %s234 = scalar_select %p233, %s12, 1
        %s235 = smul.addr %s234, 4
        %s236 = scalar_lea.vmem %s3, %s235
      $region40: #{discriminator_forward.18} parent=23 // pred_fallthru
        _
    $region24: #{discriminator_forward.18} parent=5 // pred_fallthru
      _
    %p237 = scmp.le.s32.totalorder 1, %s12
    %p238 = scmp.lt.s32.totalorder %s12, 3
    %p239 = pnand %p237, %p238
    %p240 = pneg %p239
    // Predicated region
    $region41: #{discriminator_forward.18} parent=5 // pred_check
      _
    $region42: #{discriminator_forward.18} parent=5 // pred_check_branch
      %242 = sbr.rel (%p239) target = $region44
    $region43: #{discriminator_forward.18} parent=5 // pred_region
      %s243 = ssub.s32 %s12, 1
      %p244 = scmp.lt.s32.totalorder %s17, 1
      %s245 = scalar_select %p244, %s17, 1
      %s246 = smul.addr %s245, 4
      %s247 = scalar_lea.vmem %s0, %s246
      %p248 = pneg %p38
      %p249 = pneg %p35
      %p250 = scmp.lt.s32.totalorder %s17, 1
      %s251 = scalar_select %p250, %s17, 1
      %s252 = smul.addr %s251, 4
      %s253 = scalar_lea.vmem %s1, %s252
      %p254 = pneg %p64
      %p255 = pneg %p61
      %p256 = scmp.lt.s32.totalorder %s17, 1
      %s257 = scalar_select %p256, %s17, 1
      %s258 = smul.addr %s257, 4
      %s259 = scalar_lea.vmem %s2, %s258
      %p260 = pneg %p90
      %p261 = pneg %p87
      %p262 = scmp.lt.s32.totalorder %s17, 1
      %s263 = scalar_select %p262, %s17, 1
      %s264 = smul.addr %s263, 4
      %s265 = scalar_lea.vmem %s3, %s264
      %p266 = pneg %p116
      %p267 = pneg %p113
      %p268 = pneg %p137
      %p269 = pneg %p134
      %p270 = pneg %p158
      %p271 = pneg %p155
      %p272 = pneg %p184
      %p273 = pneg %p181
      %p274 = scmp.lt.s32.totalorder %s17, 1
      %s275 = scalar_select %p274, %s17, 1
      %s276 = smul.addr %s275, 2
      %s277 = smul.addr %s276, 4
      %s278 = scalar_lea.vmem %s6, %s277
      %p279 = scmp.lt.s32.totalorder %s17, 1
      %s280 = scalar_select %p279, %s17, 1
      %s281 = smul.addr %s280, 4
      %s282 = scalar_lea.vmem %s0, %s281
      %p283 = scmp.lt.s32.totalorder %s17, 1
      %s284 = scalar_select %p283, %s17, 1
      %s285 = smul.addr %s284, 4
      %s286 = scalar_lea.vmem %s1, %s285
      %p287 = scmp.lt.s32.totalorder %s17, 1
      %s288 = scalar_select %p287, %s17, 1
      %s289 = smul.addr %s288, 4
      %s290 = scalar_lea.vmem %s2, %s289
      %p291 = scmp.lt.s32.totalorder %s17, 1
      %s292 = scalar_select %p291, %s17, 1
      %s293 = smul.addr %s292, 4
      %s294 = scalar_lea.vmem %s3, %s293
      %p295 = scmp.lt.s32.totalorder %s17, 1
      %s296 = scalar_select %p295, %s17, 1
      %s297 = smul.addr %s296, 2
      %s298 = smul.addr %s297, 4
      %s299 = scalar_lea.vmem %s6, %s298
      %v301 = vld [vmem:[%s282] sm:$0xf]
      %v302 = vld [vmem:[%s4] sm:$0xf]
      %v303 = vld [vmem:[%s4 + $0x4] sm:$0xf]
      %v304 = vld [vmem:[%s286] sm:$0xf]
      %s305 = scalar_lea.vmem %s4, 8
      %v306 = vld [vmem:[%s305] sm:$0xf]
      %v307 = vld [vmem:[%s305 + $0x4] sm:$0xf]
      %v310 = vunpack.c.l.b16 %v306
      %v311 = vunpack.c.l.b16 %v307
      %v312 = vpack.c.b16 %v311, %v310
      %vm313 = vcmask 64512
      %v315 = vsel %vm313, %v312, 0
      %vm317 = vcmask 1043456
      %v319 = vsel %vm317, %v304, 0
      %321 = vmatpush.bf16.msra.mxu0 0
      %322 = vmatpush.bf16.msra.mxu0 0
      %323 = vmatpush.bf16.msra.mxu0 0
      %324 = vmatpush.bf16.msra.mxu0 0
      %325 = vmatpush.bf16.msra.mxu0 0
      %326 = vmatpush.bf16.msra.mxu0 0
      %327 = vmatpush.bf16.msra.mxu0 0
      %328 = vmatpush.bf16.msra.mxu0 %v319
      %329 = vmatmul.bf16.gmra.mxu0 %v315
      %v330 = vpop.f32.mrf.mxu0
      %v331 = vadd.f32 0.0, %v330
      %v332 = vpop.f32.mrf.mxu0
      %v333 = vadd.f32 0.0, %v332
      %334 = vdwg.mxu0
      %v337 = vunpack.c.l.b16 %v302
      %v338 = vunpack.c.l.b16 %v303
      %v339 = vpack.c.b16 %v338, %v337
      %v341 = vsel %vm313, %v339, 0
      %v344 = vsel %vm317, %v301, 0
      %346 = vmatpush.bf16.msra.mxu0 0
      %347 = vmatpush.bf16.msra.mxu0 0
      %348 = vmatpush.bf16.msra.mxu0 0
      %349 = vmatpush.bf16.msra.mxu0 0
      %350 = vmatpush.bf16.msra.mxu0 0
      %351 = vmatpush.bf16.msra.mxu0 0
      %352 = vmatpush.bf16.msra.mxu0 0
      %353 = vmatpush.bf16.msra.mxu0 %v344
      %354 = vmatmul.bf16.gmra.mxu0 %v341
      %v355 = vpop.f32.mrf.mxu0
      %v356 = vadd.f32 %v331, %v355
      %v357 = vpop.f32.mrf.mxu0
      %v358 = vadd.f32 %v333, %v357
      %359 = vdwg.mxu0
      %s360 = scalar_lea.vmem %s4, 16
      %v361 = vld [vmem:[%s360] sm:$0xf]
      %v362 = vld [vmem:[%s360 + $0x4] sm:$0xf]
      %v365 = vunpack.c.l.b16 %v361
      %v366 = vunpack.c.l.b16 %v362
      %v367 = vpack.c.b16 %v366, %v365
      %v369 = vunpack.c.l.b16 %v301
      %v370 = vpack.c.b16 %v369, %v369
      %371 = vrot.lane.b32.xlu0 %v370, 127
      %v372 = vpop.permute.xlu0 %371
      %v374 = vsel %vm313, %v367, 0
      %v377 = vsel %vm317, %v372, 0
      %379 = vmatpush.bf16.msra.mxu0 0
      %380 = vmatpush.bf16.msra.mxu0 0
      %381 = vmatpush.bf16.msra.mxu0 0
      %382 = vmatpush.bf16.msra.mxu0 0
      %383 = vmatpush.bf16.msra.mxu0 0
      %384 = vmatpush.bf16.msra.mxu0 0
      %385 = vmatpush.bf16.msra.mxu0 0
      %386 = vmatpush.bf16.msra.mxu0 %v377
      %387 = vmatmul.bf16.gmra.mxu0 %v374
      %v388 = vpop.f32.mrf.mxu0
      %v389 = vadd.f32 0.0, %v388
      %v390 = vpop.f32.mrf.mxu0
      %v391 = vadd.f32 0.0, %v390
      %392 = vdwg.mxu0
      %v393 = vadd.f32 %v356, %v389
      %v394 = vadd.f32 %v358, %v391
      %v395 = vld [vmem:[%s290] sm:$0xf]
      %s396 = scalar_lea.vmem %s4, 24
      %v397 = vld [vmem:[%s396] sm:$0xf]
      %v398 = vld [vmem:[%s396 + $0x4] sm:$0xf]
      %v401 = vunpack.c.l.b16 %v397
      %v402 = vunpack.c.l.b16 %v398
      %v403 = vpack.c.b16 %v402, %v401
      %v405 = vsel %vm313, %v403, 0
      %v408 = vsel %vm317, %v395, 0
      %410 = vmatpush.bf16.msra.mxu0 0
      %411 = vmatpush.bf16.msra.mxu0 0
      %412 = vmatpush.bf16.msra.mxu0 0
      %413 = vmatpush.bf16.msra.mxu0 0
      %414 = vmatpush.bf16.msra.mxu0 0
      %415 = vmatpush.bf16.msra.mxu0 0
      %416 = vmatpush.bf16.msra.mxu0 0
      %417 = vmatpush.bf16.msra.mxu0 %v408
      %418 = vmatmul.bf16.gmra.mxu0 %v405
      %v419 = vpop.f32.mrf.mxu0
      %v420 = vadd.f32 0.0, %v419
      %v421 = vpop.f32.mrf.mxu0
      %v422 = vadd.f32 0.0, %v421
      %423 = vdwg.mxu0
      %v424 = vadd.f32 %v393, %v420
      %v425 = vadd.f32 %v394, %v422
      %v426 = vld [vmem:[%s294] sm:$0xf]
      %s427 = scalar_lea.vmem %s4, 32
      %v428 = vld [vmem:[%s427] sm:$0xf]
      %v429 = vld [vmem:[%s427 + $0x4] sm:$0xf]
      %v432 = vunpack.c.l.b16 %v428
      %v433 = vunpack.c.l.b16 %v429
      %v434 = vpack.c.b16 %v433, %v432
      %v436 = vsel %vm313, %v434, 0
      %v439 = vsel %vm317, %v426, 0
      %441 = vmatpush.bf16.msra.mxu0 0
      %442 = vmatpush.bf16.msra.mxu0 0
      %443 = vmatpush.bf16.msra.mxu0 0
      %444 = vmatpush.bf16.msra.mxu0 0
      %445 = vmatpush.bf16.msra.mxu0 0
      %446 = vmatpush.bf16.msra.mxu0 0
      %447 = vmatpush.bf16.msra.mxu0 0
      %448 = vmatpush.bf16.msra.mxu0 %v439
      %449 = vmatmul.bf16.gmra.mxu0 %v436
      %v450 = vpop.f32.mrf.mxu0
      %v451 = vadd.f32 0.0, %v450
      %v452 = vpop.f32.mrf.mxu0
      %v453 = vadd.f32 0.0, %v452
      %454 = vdwg.mxu0
      %v455 = vadd.f32 %v424, %v451
      %v456 = vadd.f32 %v425, %v453
      %s457 = scalar_lea.vmem %s4, 40
      %v458 = vld [vmem:[%s457] sm:$0xf]
      %v459 = vld [vmem:[%s457 + $0x4] sm:$0xf]
      %v462 = vunpack.c.l.b16 %v458
      %v463 = vunpack.c.l.b16 %v459
      %v464 = vpack.c.b16 %v463, %v462
      %v466 = vunpack.c.l.b16 %v395
      %v467 = vpack.c.b16 %v466, %v466
      %468 = vrot.lane.b32.xlu0 %v467, 127
      %v469 = vpop.permute.xlu0 %468
      %v471 = vsel %vm313, %v464, 0
      %v474 = vsel %vm317, %v469, 0
      %476 = vmatpush.bf16.msra.mxu0 0
      %477 = vmatpush.bf16.msra.mxu0 0
      %478 = vmatpush.bf16.msra.mxu0 0
      %479 = vmatpush.bf16.msra.mxu0 0
      %480 = vmatpush.bf16.msra.mxu0 0
      %481 = vmatpush.bf16.msra.mxu0 0
      %482 = vmatpush.bf16.msra.mxu0 0
      %483 = vmatpush.bf16.msra.mxu0 %v474
      %484 = vmatmul.bf16.gmra.mxu0 %v471
      %v485 = vpop.f32.mrf.mxu0
      %v486 = vadd.f32 0.0, %v485
      %v487 = vpop.f32.mrf.mxu0
      %v488 = vadd.f32 0.0, %v487
      %489 = vdwg.mxu0
      %v490 = vadd.f32 %v455, %v486
      %v491 = vadd.f32 %v456, %v488
      %s492 = scalar_lea.vmem %s4, 48
      %v493 = vld [vmem:[%s492] sm:$0xf]
      %v494 = vld [vmem:[%s492 + $0x4] sm:$0xf]
      %v497 = vunpack.c.l.b16 %v493
      %v498 = vunpack.c.l.b16 %v494
      %v499 = vpack.c.b16 %v498, %v497
      %500 = vrot.lane.b32.xlu0 %v370, 123
      %v501 = vpop.permute.xlu0 %500
      %v503 = vsel %vm313, %v499, 0
      %v506 = vsel %vm317, %v501, 0
      %508 = vmatpush.bf16.msra.mxu0 0
      %509 = vmatpush.bf16.msra.mxu0 0
      %510 = vmatpush.bf16.msra.mxu0 0
      %511 = vmatpush.bf16.msra.mxu0 0
      %512 = vmatpush.bf16.msra.mxu0 0
      %513 = vmatpush.bf16.msra.mxu0 0
      %514 = vmatpush.bf16.msra.mxu0 0
      %515 = vmatpush.bf16.msra.mxu0 %v506
      %516 = vmatmul.bf16.gmra.mxu0 %v503
      %v517 = vpop.f32.mrf.mxu0
      %v518 = vadd.f32 0.0, %v517
      %v519 = vpop.f32.mrf.mxu0
      %v520 = vadd.f32 0.0, %v519
      %521 = vdwg.mxu0
      %v522 = vadd.f32 %v490, %v518
      %v523 = vadd.f32 %v491, %v520
      %s524 = scalar_lea.vmem %s4, 56
      %v525 = vld [vmem:[%s524] sm:$0xf]
      %v526 = vld [vmem:[%s524 + $0x4] sm:$0xf]
      %v529 = vunpack.c.l.b16 %v525
      %v530 = vunpack.c.l.b16 %v526
      %v531 = vpack.c.b16 %v530, %v529
      %v533 = vunpack.c.l.b16 %v304
      %v534 = vpack.c.b16 %v533, %v533
      %535 = vrot.lane.b32.xlu0 %v534, 123
      %v536 = vpop.permute.xlu0 %535
      %v538 = vsel %vm313, %v531, 0
      %v541 = vsel %vm317, %v536, 0
      %543 = vmatpush.bf16.msra.mxu0 0
      %544 = vmatpush.bf16.msra.mxu0 0
      %545 = vmatpush.bf16.msra.mxu0 0
      %546 = vmatpush.bf16.msra.mxu0 0
      %547 = vmatpush.bf16.msra.mxu0 0
      %548 = vmatpush.bf16.msra.mxu0 0
      %549 = vmatpush.bf16.msra.mxu0 0
      %550 = vmatpush.bf16.msra.mxu0 %v541
      %551 = vmatmul.bf16.gmra.mxu0 %v538
      %v552 = vpop.f32.mrf.mxu0
      %v553 = vadd.f32 0.0, %v552
      %v554 = vpop.f32.mrf.mxu0
      %v555 = vadd.f32 0.0, %v554
      %556 = vdwg.mxu0
      %v557 = vadd.f32 %v522, %v553
      %v558 = vadd.f32 %v523, %v555
      %s559 = scalar_lea.vmem %s4, 64
      %v560 = vld [vmem:[%s559] sm:$0xf]
      %v561 = vld [vmem:[%s559 + $0x4] sm:$0xf]
      %v564 = vunpack.c.l.b16 %v560
      %v565 = vunpack.c.l.b16 %v561
      %v566 = vpack.c.b16 %v565, %v564
      %567 = vrot.lane.b32.xlu0 %v370, 122
      %v568 = vpop.permute.xlu0 %567
      %v570 = vsel %vm313, %v566, 0
      %v573 = vsel %vm317, %v568, 0
      %575 = vmatpush.bf16.msra.mxu0 0
      %576 = vmatpush.bf16.msra.mxu0 0
      %577 = vmatpush.bf16.msra.mxu0 0
      %578 = vmatpush.bf16.msra.mxu0 0
      %579 = vmatpush.bf16.msra.mxu0 0
      %580 = vmatpush.bf16.msra.mxu0 0
      %581 = vmatpush.bf16.msra.mxu0 0
      %582 = vmatpush.bf16.msra.mxu0 %v573
      %583 = vmatmul.bf16.gmra.mxu0 %v570
      %v584 = vpop.f32.mrf.mxu0
      %v585 = vadd.f32 0.0, %v584
      %v586 = vpop.f32.mrf.mxu0
      %v587 = vadd.f32 0.0, %v586
      %588 = vdwg.mxu0
      %v589 = vadd.f32 %v557, %v585
      %v590 = vadd.f32 %v558, %v587
      %v591 = vld [vmem:[%s5] sm:$0xff]
      %v592 = vld [vmem:[%s5 + $0x8] sm:$0xff]
      %594 = vset.pattern.permute.xlu0 0
      %595 = vperm.xlu0 %594, %v591
      %v596 = vpop.permute.xlu0 %595
      %599 = vset.pattern.permute.xlu0 0
      %600 = vperm.xlu0 %599, %v592
      %v601 = vpop.permute.xlu0 %600
      %v603 = vadd.f32 %v589, %v596
      %v604 = vadd.f32 %v590, %v601
      %vm605 = vcmp.ge.f32.partialorder %v603, 0.0
      %vm606 = vcmp.ge.f32.partialorder %v604, 0.0
      %v607 = vmul.f32 %v603, 0.2
      %v608 = vmul.f32 %v604, 0.2
      %v609 = vsel %vm605, %v603, %v607
      %v610 = vsel %vm606, %v604, %v608
      %v611 = vpack.c.bf16 %v609, %v609
      %v612 = vpack.c.bf16 %v610, %v610
      %vm613 = vcmask 158720
      %614 = vst.msk [vmem:[%s299] sm:$0xf] %vm613, %v611
      %615 = vst.msk [vmem:[%s299 + $0x4] sm:$0xf] %vm613, %v612
      %p616 = scmp.lt.s32.totalorder %s17, 1
      %s617 = scalar_select %p616, %s17, 1
      %s618 = smul.addr %s617, 2
      %s619 = smul.addr %s618, 4
      %s620 = scalar_lea.vmem %s6, %s619
      // Predicated region
      $region45: #{discriminator_forward.18} parent=43 // pred_check
        %p621 = pneg %p181
      $region46: #{discriminator_forward.18} parent=43 // pred_check_branch
        %623 = sbr.rel (%p621) target = $region48
      $region47: #{discriminator_forward.18} parent=43 // pred_region
        _
      $region48: #{discriminator_forward.18} parent=43 // pred_fallthru
        _
    $region44: #{discriminator_forward.18} parent=5 // pred_fallthru
      _
    %p624 = scmp.le.s32.totalorder 2, %s12
    // Predicated region
    $region49: #{discriminator_forward.18} parent=5 // pred_check
      %p625 = pneg %p624
    $region50: #{discriminator_forward.18} parent=5 // pred_check_branch
      %627 = sbr.rel (%p625) target = $region52
    $region51: #{discriminator_forward.18} parent=5 // pred_region
      %s628 = ssub.s32 %s12, 2
      // Predicated region
      $region53: #{discriminator_forward.18} parent=51 // pred_check
        %p629 = pneg %p187
      $region54: #{discriminator_forward.18} parent=51 // pred_check_branch
        %631 = sbr.rel (%p629) target = $region56
      $region55: #{discriminator_forward.18} parent=51 // pred_region
        %p632 = scmp.lt.s32.totalorder %s18, 1
        %s633 = scalar_select %p632, %s18, 1
        %s634 = smul.addr %s633, 2
        %s635 = smul.addr %s634, 4
        %s636 = scalar_lea.vmem %s6, %s635
      $region56: #{discriminator_forward.18} parent=51 // pred_fallthru
        _
    $region52: #{discriminator_forward.18} parent=5 // pred_fallthru
      _
  $region6: #{discriminator_forward.18} parent=0 // loop_footer
    %s16 = sadd.s32 1, %s12
  $region7: #{discriminator_forward.18} parent=0 // loop_footer_branch
    %11 = sbr.rel target = $region3
  $region8: #{discriminator_forward.18} parent=0 // loop_exit
    _

// kernel: discriminator_forward.19
$region0: #{discriminator_forward.19}
  #allocation0 [shape = 'u32[]', space=smem, size = 0x4, offset = 0x4, fixed_abs, tag = 'smem constant byte address 0x4 - core index']
  #allocation1 [shape = 'u32[72,128]{1,0:T(1,128)}', space=vmem, size = 0x9000, scoped, tag = 'internal scratch']
  %s0 = inlined_call_operand.vmem [shape: bf16[2,16,10], index: 0, kind: input, shape index: {}]
  %s1 = inlined_call_operand.vmem [shape: bf16[2,16,10], index: 1, kind: input, shape index: {}]
  %s2 = inlined_call_operand.vmem [shape: bf16[2,16,10], index: 2, kind: input, shape index: {}]
  %s3 = inlined_call_operand.vmem [shape: bf16[2,16,10], index: 3, kind: input, shape index: {}]
  %s4 = inlined_call_operand.vmem [shape: bf16[9,32,16], index: 4, kind: input, shape index: {}]
  %s5 = inlined_call_operand.vmem [shape: f32[32,1], index: 5, kind: input, shape index: {}]
  %s6 = inlined_call_operand.vmem [shape: bf16[2,32,6], index: 6, kind: output, shape index: {}]
  %s7 = sld [smem:[#allocation0]]
  $region57: #{discriminator_forward.19} parent=0
    _
  %s9 = ssub.s32 1, %s7
  %s10 = scalar_select 0, %s9, %s7
  loop: start=0, step=1, limit=4
  $region2: #{discriminator_forward.19} parent=0 // loop_pre_header
    _
  $region3: #{discriminator_forward.19} parent=0 // loop_header
    %s12 = sphi 0, %s16
    %p13 = scmp.ge.s32.totalorder %s12, 4
    %s22 = sphi 0, %s24
    %s25 = sphi 0, %s22
    %s26 = sphi 0, %s25
    %s42 = sphi 0, %s26
    %s48 = sphi 0, %s50
    %s51 = sphi 0, %s48
    %s52 = sphi 0, %s51
    %s68 = sphi 0, %s52
    %s74 = sphi 0, %s76
    %s77 = sphi 0, %s74
    %s78 = sphi 0, %s77
    %s94 = sphi 0, %s78
    %s100 = sphi 0, %s102
    %s103 = sphi 0, %s100
    %s104 = sphi 0, %s103
    %s120 = sphi 0, %s104
    %s124 = sphi 0, %s124
    %s126 = sphi 0, %s124
    %s127 = sphi 0, %s126
    %s141 = sphi 0, %s127
    %s145 = sphi 0, %s145
    %s147 = sphi 0, %s145
    %s148 = sphi 0, %s147
    %s162 = sphi 0, %s148
    %s168 = sphi 0, %s170
    %s171 = sphi 0, %s168
    %s172 = sphi 0, %s171
    %s188 = sphi 0, %s172
  $region4: #{discriminator_forward.19} parent=0 // loop_header_branch
    %15 = sbr.rel (%p13) target = $region8
  $region5: #{discriminator_forward.19} parent=0 // loop_body
    %s17 = ssub.s32 %s12, 1
    %s18 = ssub.s32 %s12, 2
    %s19 = sadd.s32 %s12, 1
    %s20 = ssub.s32 %s12, %s19
    %p21 = scmp.eq.s32.totalorder %s20, 0
    %s23 = sadd.s32 %s22, 1
    %s24 = scalar_select %p21, %s22, %s23
    %p27 = pneg %p21
    %p28 = scmp.eq.s32.totalorder %s12, 1
    %p29 = por %p27, %p28
    %p30 = scmp.ne.s32.totalorder %s22, %s25
    %p31 = scmp.eq.s32.totalorder %s12, 0
    %p32 = por %p30, %p31
    %p33 = scmp.ne.s32.totalorder %s22, %s25
    %p34 = scmp.eq.s32.totalorder %s17, 1
    %p35 = por %p33, %p34
    %p36 = scmp.ne.s32.totalorder %s25, %s26
    %p37 = scmp.eq.s32.totalorder %s17, 0
    %p38 = por %p36, %p37
    %p39 = scmp.ne.s32.totalorder %s25, %s26
    %p40 = scmp.eq.s32.totalorder %s18, 1
    %p41 = por %p39, %p40
    %p43 = scmp.ne.s32.totalorder %s26, %s42
    %p44 = scmp.eq.s32.totalorder %s18, 0
    %p45 = por %p43, %p44
    %s46 = ssub.s32 %s12, %s19
    %p47 = scmp.eq.s32.totalorder %s46, 0
    %s49 = sadd.s32 %s48, 1
    %s50 = scalar_select %p47, %s48, %s49
    %p53 = pneg %p47
    %p54 = scmp.eq.s32.totalorder %s12, 1
    %p55 = por %p53, %p54
    %p56 = scmp.ne.s32.totalorder %s48, %s51
    %p57 = scmp.eq.s32.totalorder %s12, 0
    %p58 = por %p56, %p57
    %p59 = scmp.ne.s32.totalorder %s48, %s51
    %p60 = scmp.eq.s32.totalorder %s17, 1
    %p61 = por %p59, %p60
    %p62 = scmp.ne.s32.totalorder %s51, %s52
    %p63 = scmp.eq.s32.totalorder %s17, 0
    %p64 = por %p62, %p63
    %p65 = scmp.ne.s32.totalorder %s51, %s52
    %p66 = scmp.eq.s32.totalorder %s18, 1
    %p67 = por %p65, %p66
    %p69 = scmp.ne.s32.totalorder %s52, %s68
    %p70 = scmp.eq.s32.totalorder %s18, 0
    %p71 = por %p69, %p70
    %s72 = ssub.s32 %s12, %s19
    %p73 = scmp.eq.s32.totalorder %s72, 0
    %s75 = sadd.s32 %s74, 1
    %s76 = scalar_select %p73, %s74, %s75
    %p79 = pneg %p73
    %p80 = scmp.eq.s32.totalorder %s12, 1
    %p81 = por %p79, %p80
    %p82 = scmp.ne.s32.totalorder %s74, %s77
    %p83 = scmp.eq.s32.totalorder %s12, 0
    %p84 = por %p82, %p83
    %p85 = scmp.ne.s32.totalorder %s74, %s77
    %p86 = scmp.eq.s32.totalorder %s17, 1
    %p87 = por %p85, %p86
    %p88 = scmp.ne.s32.totalorder %s77, %s78
    %p89 = scmp.eq.s32.totalorder %s17, 0
    %p90 = por %p88, %p89
    %p91 = scmp.ne.s32.totalorder %s77, %s78
    %p92 = scmp.eq.s32.totalorder %s18, 1
    %p93 = por %p91, %p92
    %p95 = scmp.ne.s32.totalorder %s78, %s94
    %p96 = scmp.eq.s32.totalorder %s18, 0
    %p97 = por %p95, %p96
    %s98 = ssub.s32 %s12, %s19
    %p99 = scmp.eq.s32.totalorder %s98, 0
    %s101 = sadd.s32 %s100, 1
    %s102 = scalar_select %p99, %s100, %s101
    %p105 = pneg %p99
    %p106 = scmp.eq.s32.totalorder %s12, 1
    %p107 = por %p105, %p106
    %p108 = scmp.ne.s32.totalorder %s100, %s103
    %p109 = scmp.eq.s32.totalorder %s12, 0
    %p110 = por %p108, %p109
    %p111 = scmp.ne.s32.totalorder %s100, %s103
    %p112 = scmp.eq.s32.totalorder %s17, 1
    %p113 = por %p111, %p112
    %p114 = scmp.ne.s32.totalorder %s103, %s104
    %p115 = scmp.eq.s32.totalorder %s17, 0
    %p116 = por %p114, %p115
    %p117 = scmp.ne.s32.totalorder %s103, %s104
    %p118 = scmp.eq.s32.totalorder %s18, 1
    %p119 = por %p117, %p118
    %p121 = scmp.ne.s32.totalorder %s104, %s120
    %p122 = scmp.eq.s32.totalorder %s18, 0
    %p123 = por %p121, %p122
    %s125 = sadd.s32 %s124, 1
    %p128 = scmp.eq.s32.totalorder %s12, 1
    %p129 = scmp.ne.s32.totalorder %s124, %s126
    %p130 = scmp.eq.s32.totalorder %s12, 0
    %p131 = por %p129, %p130
    %p132 = scmp.ne.s32.totalorder %s124, %s126
    %p133 = scmp.eq.s32.totalorder %s17, 1
    %p134 = por %p132, %p133
    %p135 = scmp.ne.s32.totalorder %s126, %s127
    %p136 = scmp.eq.s32.totalorder %s17, 0
    %p137 = por %p135, %p136
    %p138 = scmp.ne.s32.totalorder %s126, %s127
    %p139 = scmp.eq.s32.totalorder %s18, 1
    %p140 = por %p138, %p139
    %p142 = scmp.ne.s32.totalorder %s127, %s141
    %p143 = scmp.eq.s32.totalorder %s18, 0
    %p144 = por %p142, %p143
    %s146 = sadd.s32 %s145, 1
    %p149 = scmp.eq.s32.totalorder %s12, 1
    %p150 = scmp.ne.s32.totalorder %s145, %s147
    %p151 = scmp.eq.s32.totalorder %s12, 0
    %p152 = por %p150, %p151
    %p153 = scmp.ne.s32.totalorder %s145, %s147
    %p154 = scmp.eq.s32.totalorder %s17, 1
    %p155 = por %p153, %p154
    %p156 = scmp.ne.s32.totalorder %s147, %s148
    %p157 = scmp.eq.s32.totalorder %s17, 0
    %p158 = por %p156, %p157
    %p159 = scmp.ne.s32.totalorder %s147, %s148
    %p160 = scmp.eq.s32.totalorder %s18, 1
    %p161 = por %p159, %p160
    %p163 = scmp.ne.s32.totalorder %s148, %s162
    %p164 = scmp.eq.s32.totalorder %s18, 0
    %p165 = por %p163, %p164
    %s166 = ssub.s32 %s12, %s19
    %p167 = scmp.eq.s32.totalorder %s166, 0
    %s169 = sadd.s32 %s168, 1
    %s170 = scalar_select %p167, %s168, %s169
    %p173 = pneg %p167
    %p174 = scmp.eq.s32.totalorder %s12, 1
    %p175 = por %p173, %p174
    %p176 = scmp.ne.s32.totalorder %s168, %s171
    %p177 = scmp.eq.s32.totalorder %s12, 0
    %p178 = por %p176, %p177
    %p179 = scmp.ne.s32.totalorder %s168, %s171
    %p180 = scmp.eq.s32.totalorder %s17, 1
    %p181 = por %p179, %p180
    %p182 = scmp.ne.s32.totalorder %s171, %s172
    %p183 = scmp.eq.s32.totalorder %s17, 0
    %p184 = por %p182, %p183
    %p185 = scmp.ne.s32.totalorder %s171, %s172
    %p186 = scmp.eq.s32.totalorder %s18, 1
    %p187 = por %p185, %p186
    %p189 = scmp.ne.s32.totalorder %s172, %s188
    %p190 = scmp.eq.s32.totalorder %s18, 0
    %p191 = por %p189, %p190
    %p192 = scmp.le.s32.totalorder 1, %s12
    %p193 = scmp.lt.s32.totalorder %s12, 3
    %p194 = pnand %p192, %p193
    %p195 = pneg %p194
    // Predicated region
    $region9: #{discriminator_forward.19} parent=5 // pred_check
      _
    $region10: #{discriminator_forward.19} parent=5 // pred_check_branch
      %197 = sbr.rel (%p194) target = $region12
    $region11: #{discriminator_forward.19} parent=5 // pred_region
      %s198 = ssub.s32 %s12, 1
      // Predicated region
      $region13: #{discriminator_forward.19} parent=11 // pred_check
        %p199 = pneg %p137
      $region14: #{discriminator_forward.19} parent=11 // pred_check_branch
        %201 = sbr.rel (%p199) target = $region16
      $region15: #{discriminator_forward.19} parent=11 // pred_region
        _
      $region16: #{discriminator_forward.19} parent=11 // pred_fallthru
        _
      // Predicated region
      $region17: #{discriminator_forward.19} parent=11 // pred_check
        %p202 = pneg %p158
      $region18: #{discriminator_forward.19} parent=11 // pred_check_branch
        %204 = sbr.rel (%p202) target = $region20
      $region19: #{discriminator_forward.19} parent=11 // pred_region
        _
      $region20: #{discriminator_forward.19} parent=11 // pred_fallthru
        _
    $region12: #{discriminator_forward.19} parent=5 // pred_fallthru
      _
    %p205 = scmp.lt.s32.totalorder %s12, 2
    // Predicated region
    $region21: #{discriminator_forward.19} parent=5 // pred_check
      %p206 = pneg %p205
    $region22: #{discriminator_forward.19} parent=5 // pred_check_branch
      %208 = sbr.rel (%p206) target = $region24
    $region23: #{discriminator_forward.19} parent=5 // pred_region
      // Predicated region
      $region25: #{discriminator_forward.19} parent=23 // pred_check
        %p209 = pneg %p32
      $region26: #{discriminator_forward.19} parent=23 // pred_check_branch
        %211 = sbr.rel (%p209) target = $region28
      $region27: #{discriminator_forward.19} parent=23 // pred_region
        %p212 = scmp.lt.s32.totalorder %s12, 1
        %s213 = scalar_select %p212, %s12, 1
        %s214 = smul.addr %s213, 2
        %s215 = smul.addr %s214, 4
        %s216 = scalar_lea.vmem %s0, %s215
      $region28: #{discriminator_forward.19} parent=23 // pred_fallthru
        _
      // Predicated region
      $region29: #{discriminator_forward.19} parent=23 // pred_check
        %p217 = pneg %p58
      $region30: #{discriminator_forward.19} parent=23 // pred_check_branch
        %219 = sbr.rel (%p217) target = $region32
      $region31: #{discriminator_forward.19} parent=23 // pred_region
        %p220 = scmp.lt.s32.totalorder %s12, 1
        %s221 = scalar_select %p220, %s12, 1
        %s222 = smul.addr %s221, 2
        %s223 = smul.addr %s222, 4
        %s224 = scalar_lea.vmem %s1, %s223
      $region32: #{discriminator_forward.19} parent=23 // pred_fallthru
        _
      // Predicated region
      $region33: #{discriminator_forward.19} parent=23 // pred_check
        %p225 = pneg %p84
      $region34: #{discriminator_forward.19} parent=23 // pred_check_branch
        %227 = sbr.rel (%p225) target = $region36
      $region35: #{discriminator_forward.19} parent=23 // pred_region
        %p228 = scmp.lt.s32.totalorder %s12, 1
        %s229 = scalar_select %p228, %s12, 1
        %s230 = smul.addr %s229, 2
        %s231 = smul.addr %s230, 4
        %s232 = scalar_lea.vmem %s2, %s231
      $region36: #{discriminator_forward.19} parent=23 // pred_fallthru
        _
      // Predicated region
      $region37: #{discriminator_forward.19} parent=23 // pred_check
        %p233 = pneg %p110
      $region38: #{discriminator_forward.19} parent=23 // pred_check_branch
        %235 = sbr.rel (%p233) target = $region40
      $region39: #{discriminator_forward.19} parent=23 // pred_region
        %p236 = scmp.lt.s32.totalorder %s12, 1
        %s237 = scalar_select %p236, %s12, 1
        %s238 = smul.addr %s237, 2
        %s239 = smul.addr %s238, 4
        %s240 = scalar_lea.vmem %s3, %s239
      $region40: #{discriminator_forward.19} parent=23 // pred_fallthru
        _
    $region24: #{discriminator_forward.19} parent=5 // pred_fallthru
      _
    %p241 = scmp.le.s32.totalorder 1, %s12
    %p242 = scmp.lt.s32.totalorder %s12, 3
    %p243 = pnand %p241, %p242
    %p244 = pneg %p243
    // Predicated region
    $region41: #{discriminator_forward.19} parent=5 // pred_check
      _
    $region42: #{discriminator_forward.19} parent=5 // pred_check_branch
      %246 = sbr.rel (%p243) target = $region44
    $region43: #{discriminator_forward.19} parent=5 // pred_region
      %s247 = ssub.s32 %s12, 1
      %p248 = scmp.lt.s32.totalorder %s17, 1
      %s249 = scalar_select %p248, %s17, 1
      %s250 = smul.addr %s249, 2
      %s251 = smul.addr %s250, 4
      %s252 = scalar_lea.vmem %s0, %s251
      %p253 = pneg %p38
      %p254 = pneg %p35
      %p255 = scmp.lt.s32.totalorder %s17, 1
      %s256 = scalar_select %p255, %s17, 1
      %s257 = smul.addr %s256, 2
      %s258 = smul.addr %s257, 4
      %s259 = scalar_lea.vmem %s1, %s258
      %p260 = pneg %p64
      %p261 = pneg %p61
      %p262 = scmp.lt.s32.totalorder %s17, 1
      %s263 = scalar_select %p262, %s17, 1
      %s264 = smul.addr %s263, 2
      %s265 = smul.addr %s264, 4
      %s266 = scalar_lea.vmem %s2, %s265
      %p267 = pneg %p90
      %p268 = pneg %p87
      %p269 = scmp.lt.s32.totalorder %s17, 1
      %s270 = scalar_select %p269, %s17, 1
      %s271 = smul.addr %s270, 2
      %s272 = smul.addr %s271, 4
      %s273 = scalar_lea.vmem %s3, %s272
      %p274 = pneg %p116
      %p275 = pneg %p113
      %p276 = pneg %p137
      %p277 = pneg %p134
      %p278 = pneg %p158
      %p279 = pneg %p155
      %p280 = pneg %p184
      %p281 = pneg %p181
      %p282 = scmp.lt.s32.totalorder %s17, 1
      %s283 = scalar_select %p282, %s17, 1
      %s284 = smul.addr %s283, 4
      %s285 = smul.addr %s284, 4
      %s286 = scalar_lea.vmem %s6, %s285
      %p287 = scmp.lt.s32.totalorder %s17, 1
      %s288 = scalar_select %p287, %s17, 1
      %s289 = smul.addr %s288, 2
      %s290 = smul.addr %s289, 4
      %s291 = scalar_lea.vmem %s0, %s290
      %p292 = scmp.lt.s32.totalorder %s17, 1
      %s293 = scalar_select %p292, %s17, 1
      %s294 = smul.addr %s293, 2
      %s295 = smul.addr %s294, 4
      %s296 = scalar_lea.vmem %s1, %s295
      %p297 = scmp.lt.s32.totalorder %s17, 1
      %s298 = scalar_select %p297, %s17, 1
      %s299 = smul.addr %s298, 2
      %s300 = smul.addr %s299, 4
      %s301 = scalar_lea.vmem %s2, %s300
      %p302 = scmp.lt.s32.totalorder %s17, 1
      %s303 = scalar_select %p302, %s17, 1
      %s304 = smul.addr %s303, 2
      %s305 = smul.addr %s304, 4
      %s306 = scalar_lea.vmem %s3, %s305
      %p307 = scmp.lt.s32.totalorder %s17, 1
      %s308 = scalar_select %p307, %s17, 1
      %s309 = smul.addr %s308, 4
      %s310 = smul.addr %s309, 4
      %s311 = scalar_lea.vmem %s6, %s310
      %v313 = vld [vmem:[%s291] sm:$0xf]
      %v314 = vld [vmem:[%s291 + $0x4] sm:$0xf]
      %v315 = vld [vmem:[%s4] sm:$0xf]
      %v316 = vld [vmem:[%s4 + $0x4] sm:$0xf]
      %v317 = vld [vmem:[%s4 + $0x8] sm:$0xf]
      %v318 = vld [vmem:[%s4 + $0xc] sm:$0xf]
      %v319 = vld [vmem:[%s296] sm:$0xf]
      %v320 = vld [vmem:[%s296 + $0x4] sm:$0xf]
      %s321 = scalar_lea.vmem %s4, 16
      %v322 = vld [vmem:[%s321] sm:$0xf]
      %v323 = vld [vmem:[%s321 + $0x4] sm:$0xf]
      %v324 = vld [vmem:[%s321 + $0x8] sm:$0xf]
      %v325 = vld [vmem:[%s321 + $0xc] sm:$0xf]
      %v330 = vunpack.c.l.b16 %v322
      %v331 = vunpack.c.l.b16 %v323
      %v332 = vunpack.c.l.b16 %v324
      %v333 = vunpack.c.l.b16 %v325
      %v334 = vpack.c.b16 %v331, %v330
      %v335 = vpack.c.b16 %v333, %v332
      %v338 = vunpack.c.l.b16 %v319
      %v339 = vunpack.c.l.b16 %v320
      %v340 = vpack.c.b16 %v339, %v338
      %vm342 = vcmask 130048
      %v344 = vsel %vm342, %v334, 0
      %v347 = vsel %vm342, %v335, 0
      %349 = vmatpush.bf16.msra.mxu0 0
      %350 = vmatpush.bf16.msra.mxu0 0
      %351 = vmatpush.bf16.msra.mxu0 0
      %352 = vmatpush.bf16.msra.mxu0 0
      %353 = vmatpush.bf16.msra.mxu0 0
      %354 = vmatpush.bf16.msra.mxu0 0
      %355 = vmatpush.bf16.msra.mxu0 0
      %356 = vmatpush.bf16.msra.mxu0 %v340
      %357 = vmatmul.bf16.gmra.mxu0 %v344
      %v358 = vpop.f32.mrf.mxu0
      %v359 = vadd.f32 0.0, %v358
      %v360 = vpop.f32.mrf.mxu0
      %v361 = vadd.f32 0.0, %v360
      %362 = vmatmul.bf16.gmra.mxu0 %v347
      %v363 = vpop.f32.mrf.mxu0
      %v364 = vadd.f32 0.0, %v363
      %v365 = vpop.f32.mrf.mxu0
      %v366 = vadd.f32 0.0, %v365
      %367 = vdwg.mxu0
      %v372 = vunpack.c.l.b16 %v315
      %v373 = vunpack.c.l.b16 %v316
      %v374 = vunpack.c.l.b16 %v317
      %v375 = vunpack.c.l.b16 %v318
      %v376 = vpack.c.b16 %v373, %v372
      %v377 = vpack.c.b16 %v375, %v374
      %v380 = vunpack.c.l.b16 %v313
      %v381 = vunpack.c.l.b16 %v314
      %v382 = vpack.c.b16 %v381, %v380
      %v385 = vsel %vm342, %v376, 0
      %v388 = vsel %vm342, %v377, 0
      %390 = vmatpush.bf16.msra.mxu0 0
      %391 = vmatpush.bf16.msra.mxu0 0
      %392 = vmatpush.bf16.msra.mxu0 0
      %393 = vmatpush.bf16.msra.mxu0 0
      %394 = vmatpush.bf16.msra.mxu0 0
      %395 = vmatpush.bf16.msra.mxu0 0
      %396 = vmatpush.bf16.msra.mxu0 0
      %397 = vmatpush.bf16.msra.mxu0 %v382
      %398 = vmatmul.bf16.gmra.mxu0 %v385
      %v399 = vpop.f32.mrf.mxu0
      %v400 = vadd.f32 %v359, %v399
      %v401 = vpop.f32.mrf.mxu0
      %v402 = vadd.f32 %v361, %v401
      %403 = vmatmul.bf16.gmra.mxu0 %v388
      %v404 = vpop.f32.mrf.mxu0
      %v405 = vadd.f32 %v364, %v404
      %v406 = vpop.f32.mrf.mxu0
      %v407 = vadd.f32 %v366, %v406
      %408 = vdwg.mxu0
      %s409 = scalar_lea.vmem %s4, 32
      %v410 = vld [vmem:[%s409] sm:$0xf]
      %v411 = vld [vmem:[%s409 + $0x4] sm:$0xf]
      %v412 = vld [vmem:[%s409 + $0x8] sm:$0xf]
      %v413 = vld [vmem:[%s409 + $0xc] sm:$0xf]
      %v418 = vunpack.c.l.b16 %v410
      %v419 = vunpack.c.l.b16 %v411
      %v420 = vunpack.c.l.b16 %v412
      %v421 = vunpack.c.l.b16 %v413
      %v422 = vpack.c.b16 %v419, %v418
      %v423 = vpack.c.b16 %v421, %v420
      %424 = vrot.lane.b32.xlu0 %v382, 127
      %v425 = vpop.permute.xlu0 %424
      %v428 = vsel %vm342, %v422, 0
      %v431 = vsel %vm342, %v423, 0
      %433 = vmatpush.bf16.msra.mxu0 0
      %434 = vmatpush.bf16.msra.mxu0 0
      %435 = vmatpush.bf16.msra.mxu0 0
      %436 = vmatpush.bf16.msra.mxu0 0
      %437 = vmatpush.bf16.msra.mxu0 0
      %438 = vmatpush.bf16.msra.mxu0 0
      %439 = vmatpush.bf16.msra.mxu0 0
      %440 = vmatpush.bf16.msra.mxu0 %v425
      %441 = vmatmul.bf16.gmra.mxu0 %v428
      %v442 = vpop.f32.mrf.mxu0
      %v443 = vadd.f32 0.0, %v442
      %v444 = vpop.f32.mrf.mxu0
      %v445 = vadd.f32 0.0, %v444
      %446 = vmatmul.bf16.gmra.mxu0 %v431
      %v447 = vpop.f32.mrf.mxu0
      %v448 = vadd.f32 0.0, %v447
      %v449 = vpop.f32.mrf.mxu0
      %v450 = vadd.f32 0.0, %v449
      %451 = vdwg.mxu0
      %v452 = vadd.f32 %v400, %v443
      %v453 = vadd.f32 %v402, %v445
      %v454 = vadd.f32 %v405, %v448
      %v455 = vadd.f32 %v407, %v450
      %v456 = vld [vmem:[%s301] sm:$0xf]
      %v457 = vld [vmem:[%s301 + $0x4] sm:$0xf]
      %s458 = scalar_lea.vmem %s4, 48
      %v459 = vld [vmem:[%s458] sm:$0xf]
      %v460 = vld [vmem:[%s458 + $0x4] sm:$0xf]
      %v461 = vld [vmem:[%s458 + $0x8] sm:$0xf]
      %v462 = vld [vmem:[%s458 + $0xc] sm:$0xf]
      %v467 = vunpack.c.l.b16 %v459
      %v468 = vunpack.c.l.b16 %v460
      %v469 = vunpack.c.l.b16 %v461
      %v470 = vunpack.c.l.b16 %v462
      %v471 = vpack.c.b16 %v468, %v467
      %v472 = vpack.c.b16 %v470, %v469
      %v475 = vunpack.c.l.b16 %v456
      %v476 = vunpack.c.l.b16 %v457
      %v477 = vpack.c.b16 %v476, %v475
      %v480 = vsel %vm342, %v471, 0
      %v483 = vsel %vm342, %v472, 0
      %485 = vmatpush.bf16.msra.mxu0 0
      %486 = vmatpush.bf16.msra.mxu0 0
      %487 = vmatpush.bf16.msra.mxu0 0
      %488 = vmatpush.bf16.msra.mxu0 0
      %489 = vmatpush.bf16.msra.mxu0 0
      %490 = vmatpush.bf16.msra.mxu0 0
      %491 = vmatpush.bf16.msra.mxu0 0
      %492 = vmatpush.bf16.msra.mxu0 %v477
      %493 = vmatmul.bf16.gmra.mxu0 %v480
      %v494 = vpop.f32.mrf.mxu0
      %v495 = vadd.f32 0.0, %v494
      %v496 = vpop.f32.mrf.mxu0
      %v497 = vadd.f32 0.0, %v496
      %498 = vmatmul.bf16.gmra.mxu0 %v483
      %v499 = vpop.f32.mrf.mxu0
      %v500 = vadd.f32 0.0, %v499
      %v501 = vpop.f32.mrf.mxu0
      %v502 = vadd.f32 0.0, %v501
      %503 = vdwg.mxu0
      %v504 = vadd.f32 %v452, %v495
      %v505 = vadd.f32 %v453, %v497
      %v506 = vadd.f32 %v454, %v500
      %v507 = vadd.f32 %v455, %v502
      %v508 = vld [vmem:[%s306] sm:$0xf]
      %v509 = vld [vmem:[%s306 + $0x4] sm:$0xf]
      %s510 = scalar_lea.vmem %s4, 64
      %v511 = vld [vmem:[%s510] sm:$0xf]
      %v512 = vld [vmem:[%s510 + $0x4] sm:$0xf]
      %v513 = vld [vmem:[%s510 + $0x8] sm:$0xf]
      %v514 = vld [vmem:[%s510 + $0xc] sm:$0xf]
      %v519 = vunpack.c.l.b16 %v511
      %v520 = vunpack.c.l.b16 %v512
      %v521 = vunpack.c.l.b16 %v513
      %v522 = vunpack.c.l.b16 %v514
      %v523 = vpack.c.b16 %v520, %v519
      %v524 = vpack.c.b16 %v522, %v521
      %v527 = vunpack.c.l.b16 %v508
      %v528 = vunpack.c.l.b16 %v509
      %v529 = vpack.c.b16 %v528, %v527
      %v532 = vsel %vm342, %v523, 0
      %v535 = vsel %vm342, %v524, 0
      %537 = vmatpush.bf16.msra.mxu0 0
      %538 = vmatpush.bf16.msra.mxu0 0
      %539 = vmatpush.bf16.msra.mxu0 0
      %540 = vmatpush.bf16.msra.mxu0 0
      %541 = vmatpush.bf16.msra.mxu0 0
      %542 = vmatpush.bf16.msra.mxu0 0
      %543 = vmatpush.bf16.msra.mxu0 0
      %544 = vmatpush.bf16.msra.mxu0 %v529
      %545 = vmatmul.bf16.gmra.mxu0 %v532
      %v546 = vpop.f32.mrf.mxu0
      %v547 = vadd.f32 0.0, %v546
      %v548 = vpop.f32.mrf.mxu0
      %v549 = vadd.f32 0.0, %v548
      %550 = vmatmul.bf16.gmra.mxu0 %v535
      %v551 = vpop.f32.mrf.mxu0
      %v552 = vadd.f32 0.0, %v551
      %v553 = vpop.f32.mrf.mxu0
      %v554 = vadd.f32 0.0, %v553
      %555 = vdwg.mxu0
      %v556 = vadd.f32 %v504, %v547
      %v557 = vadd.f32 %v505, %v549
      %v558 = vadd.f32 %v506, %v552
      %v559 = vadd.f32 %v507, %v554
      %s560 = scalar_lea.vmem %s4, 80
      %v561 = vld [vmem:[%s560] sm:$0xf]
      %v562 = vld [vmem:[%s560 + $0x4] sm:$0xf]
      %v563 = vld [vmem:[%s560 + $0x8] sm:$0xf]
      %v564 = vld [vmem:[%s560 + $0xc] sm:$0xf]
      %v569 = vunpack.c.l.b16 %v561
      %v570 = vunpack.c.l.b16 %v562
      %v571 = vunpack.c.l.b16 %v563
      %v572 = vunpack.c.l.b16 %v564
      %v573 = vpack.c.b16 %v570, %v569
      %v574 = vpack.c.b16 %v572, %v571
      %575 = vrot.lane.b32.xlu0 %v477, 127
      %v576 = vpop.permute.xlu0 %575
      %v579 = vsel %vm342, %v573, 0
      %v582 = vsel %vm342, %v574, 0
      %584 = vmatpush.bf16.msra.mxu0 0
      %585 = vmatpush.bf16.msra.mxu0 0
      %586 = vmatpush.bf16.msra.mxu0 0
      %587 = vmatpush.bf16.msra.mxu0 0
      %588 = vmatpush.bf16.msra.mxu0 0
      %589 = vmatpush.bf16.msra.mxu0 0
      %590 = vmatpush.bf16.msra.mxu0 0
      %591 = vmatpush.bf16.msra.mxu0 %v576
      %592 = vmatmul.bf16.gmra.mxu0 %v579
      %v593 = vpop.f32.mrf.mxu0
      %v594 = vadd.f32 0.0, %v593
      %v595 = vpop.f32.mrf.mxu0
      %v596 = vadd.f32 0.0, %v595
      %597 = vmatmul.bf16.gmra.mxu0 %v582
      %v598 = vpop.f32.mrf.mxu0
      %v599 = vadd.f32 0.0, %v598
      %v600 = vpop.f32.mrf.mxu0
      %v601 = vadd.f32 0.0, %v600
      %602 = vdwg.mxu0
      %v603 = vadd.f32 %v556, %v594
      %v604 = vadd.f32 %v557, %v596
      %v605 = vadd.f32 %v558, %v599
      %v606 = vadd.f32 %v559, %v601
      %s607 = scalar_lea.vmem %s4, 96
      %v608 = vld [vmem:[%s607] sm:$0xf]
      %v609 = vld [vmem:[%s607 + $0x4] sm:$0xf]
      %v610 = vld [vmem:[%s607 + $0x8] sm:$0xf]
      %v611 = vld [vmem:[%s607 + $0xc] sm:$0xf]
      %v616 = vunpack.c.l.b16 %v608
      %v617 = vunpack.c.l.b16 %v609
      %v618 = vunpack.c.l.b16 %v610
      %v619 = vunpack.c.l.b16 %v611
      %v620 = vpack.c.b16 %v617, %v616
      %v621 = vpack.c.b16 %v619, %v618
      %622 = vrot.lane.b32.xlu0 %v382, 125
      %v623 = vpop.permute.xlu0 %622
      %v626 = vsel %vm342, %v620, 0
      %v629 = vsel %vm342, %v621, 0
      %631 = vmatpush.bf16.msra.mxu0 0
      %632 = vmatpush.bf16.msra.mxu0 0
      %633 = vmatpush.bf16.msra.mxu0 0
      %634 = vmatpush.bf16.msra.mxu0 0
      %635 = vmatpush.bf16.msra.mxu0 0
      %636 = vmatpush.bf16.msra.mxu0 0
      %637 = vmatpush.bf16.msra.mxu0 0
      %638 = vmatpush.bf16.msra.mxu0 %v623
      %639 = vmatmul.bf16.gmra.mxu0 %v626
      %v640 = vpop.f32.mrf.mxu0
      %v641 = vadd.f32 0.0, %v640
      %v642 = vpop.f32.mrf.mxu0
      %v643 = vadd.f32 0.0, %v642
      %644 = vmatmul.bf16.gmra.mxu0 %v629
      %v645 = vpop.f32.mrf.mxu0
      %v646 = vadd.f32 0.0, %v645
      %v647 = vpop.f32.mrf.mxu0
      %v648 = vadd.f32 0.0, %v647
      %649 = vdwg.mxu0
      %v650 = vadd.f32 %v603, %v641
      %v651 = vadd.f32 %v604, %v643
      %v652 = vadd.f32 %v605, %v646
      %v653 = vadd.f32 %v606, %v648
      %s654 = scalar_lea.vmem %s4, 112
      %v655 = vld [vmem:[%s654] sm:$0xf]
      %v656 = vld [vmem:[%s654 + $0x4] sm:$0xf]
      %v657 = vld [vmem:[%s654 + $0x8] sm:$0xf]
      %v658 = vld [vmem:[%s654 + $0xc] sm:$0xf]
      %v663 = vunpack.c.l.b16 %v655
      %v664 = vunpack.c.l.b16 %v656
      %v665 = vunpack.c.l.b16 %v657
      %v666 = vunpack.c.l.b16 %v658
      %v667 = vpack.c.b16 %v664, %v663
      %v668 = vpack.c.b16 %v666, %v665
      %669 = vrot.lane.b32.xlu0 %v340, 125
      %v670 = vpop.permute.xlu0 %669
      %v673 = vsel %vm342, %v667, 0
      %v676 = vsel %vm342, %v668, 0
      %678 = vmatpush.bf16.msra.mxu0 0
      %679 = vmatpush.bf16.msra.mxu0 0
      %680 = vmatpush.bf16.msra.mxu0 0
      %681 = vmatpush.bf16.msra.mxu0 0
      %682 = vmatpush.bf16.msra.mxu0 0
      %683 = vmatpush.bf16.msra.mxu0 0
      %684 = vmatpush.bf16.msra.mxu0 0
      %685 = vmatpush.bf16.msra.mxu0 %v670
      %686 = vmatmul.bf16.gmra.mxu0 %v673
      %v687 = vpop.f32.mrf.mxu0
      %v688 = vadd.f32 0.0, %v687
      %v689 = vpop.f32.mrf.mxu0
      %v690 = vadd.f32 0.0, %v689
      %691 = vmatmul.bf16.gmra.mxu0 %v676
      %v692 = vpop.f32.mrf.mxu0
      %v693 = vadd.f32 0.0, %v692
      %v694 = vpop.f32.mrf.mxu0
      %v695 = vadd.f32 0.0, %v694
      %696 = vdwg.mxu0
      %v697 = vadd.f32 %v650, %v688
      %v698 = vadd.f32 %v651, %v690
      %v699 = vadd.f32 %v652, %v693
      %v700 = vadd.f32 %v653, %v695
      %s701 = scalar_lea.vmem %s4, 128
      %v702 = vld [vmem:[%s701] sm:$0xf]
      %v703 = vld [vmem:[%s701 + $0x4] sm:$0xf]
      %v704 = vld [vmem:[%s701 + $0x8] sm:$0xf]
      %v705 = vld [vmem:[%s701 + $0xc] sm:$0xf]
      %v710 = vunpack.c.l.b16 %v702
      %v711 = vunpack.c.l.b16 %v703
      %v712 = vunpack.c.l.b16 %v704
      %v713 = vunpack.c.l.b16 %v705
      %v714 = vpack.c.b16 %v711, %v710
      %v715 = vpack.c.b16 %v713, %v712
      %716 = vrot.lane.b32.xlu0 %v382, 124
      %v717 = vpop.permute.xlu0 %716
      %v720 = vsel %vm342, %v714, 0
      %v723 = vsel %vm342, %v715, 0
      %725 = vmatpush.bf16.msra.mxu0 0
      %726 = vmatpush.bf16.msra.mxu0 0
      %727 = vmatpush.bf16.msra.mxu0 0
      %728 = vmatpush.bf16.msra.mxu0 0
      %729 = vmatpush.bf16.msra.mxu0 0
      %730 = vmatpush.bf16.msra.mxu0 0
      %731 = vmatpush.bf16.msra.mxu0 0
      %732 = vmatpush.bf16.msra.mxu0 %v717
      %733 = vmatmul.bf16.gmra.mxu0 %v720
      %v734 = vpop.f32.mrf.mxu0
      %v735 = vadd.f32 0.0, %v734
      %v736 = vpop.f32.mrf.mxu0
      %v737 = vadd.f32 0.0, %v736
      %738 = vmatmul.bf16.gmra.mxu0 %v723
      %v739 = vpop.f32.mrf.mxu0
      %v740 = vadd.f32 0.0, %v739
      %v741 = vpop.f32.mrf.mxu0
      %v742 = vadd.f32 0.0, %v741
      %743 = vdwg.mxu0
      %v744 = vadd.f32 %v697, %v735
      %v745 = vadd.f32 %v698, %v737
      %v746 = vadd.f32 %v699, %v740
      %v747 = vadd.f32 %v700, %v742
      %v748 = vld [vmem:[%s5] sm:$0xff]
      %v749 = vld [vmem:[%s5 + $0x8] sm:$0xff]
      %v750 = vld [vmem:[%s5 + $0x10] sm:$0xff]
      %v751 = vld [vmem:[%s5 + $0x18] sm:$0xff]
      %753 = vset.pattern.permute.xlu0 0
      %754 = vperm.xlu0 %753, %v748
      %v755 = vpop.permute.xlu0 %754
      %758 = vset.pattern.permute.xlu0 0
      %759 = vperm.xlu0 %758, %v749
      %v760 = vpop.permute.xlu0 %759
      %763 = vset.pattern.permute.xlu0 0
      %764 = vperm.xlu0 %763, %v750
      %v765 = vpop.permute.xlu0 %764
      %768 = vset.pattern.permute.xlu0 0
      %769 = vperm.xlu0 %768, %v751
      %v770 = vpop.permute.xlu0 %769
      %v772 = vadd.f32 %v744, %v755
      %v773 = vadd.f32 %v745, %v760
      %v774 = vadd.f32 %v746, %v765
      %v775 = vadd.f32 %v747, %v770
      %vm776 = vcmp.ge.f32.partialorder %v772, 0.0
      %vm777 = vcmp.ge.f32.partialorder %v773, 0.0
      %vm778 = vcmp.ge.f32.partialorder %v774, 0.0
      %vm779 = vcmp.ge.f32.partialorder %v775, 0.0
      %v780 = vmul.f32 %v772, 0.2
      %v781 = vmul.f32 %v773, 0.2
      %v782 = vmul.f32 %v774, 0.2
      %v783 = vmul.f32 %v775, 0.2
      %v784 = vsel %vm776, %v772, %v780
      %v785 = vsel %vm777, %v773, %v781
      %v786 = vsel %vm778, %v774, %v782
      %v787 = vsel %vm779, %v775, %v783
      %v788 = vpack.c.bf16 %v784, %v784
      %v789 = vpack.c.bf16 %v785, %v785
      %v790 = vpack.c.bf16 %v786, %v786
      %v791 = vpack.c.bf16 %v787, %v787
      %vm792 = vcmask 44032
      %793 = vst.msk [vmem:[%s311] sm:$0xf] %vm792, %v788
      %794 = vst.msk [vmem:[%s311 + $0x4] sm:$0xf] %vm792, %v789
      %795 = vst.msk [vmem:[%s311 + $0x8] sm:$0xf] %vm792, %v790
      %796 = vst.msk [vmem:[%s311 + $0xc] sm:$0xf] %vm792, %v791
      %p797 = scmp.lt.s32.totalorder %s17, 1
      %s798 = scalar_select %p797, %s17, 1
      %s799 = smul.addr %s798, 4
      %s800 = smul.addr %s799, 4
      %s801 = scalar_lea.vmem %s6, %s800
      // Predicated region
      $region45: #{discriminator_forward.19} parent=43 // pred_check
        %p802 = pneg %p181
      $region46: #{discriminator_forward.19} parent=43 // pred_check_branch
        %804 = sbr.rel (%p802) target = $region48
      $region47: #{discriminator_forward.19} parent=43 // pred_region
        _
      $region48: #{discriminator_forward.19} parent=43 // pred_fallthru
        _
    $region44: #{discriminator_forward.19} parent=5 // pred_fallthru
      _
    %p805 = scmp.le.s32.totalorder 2, %s12
    // Predicated region
    $region49: #{discriminator_forward.19} parent=5 // pred_check
      %p806 = pneg %p805
    $region50: #{discriminator_forward.19} parent=5 // pred_check_branch
      %808 = sbr.rel (%p806) target = $region52
    $region51: #{discriminator_forward.19} parent=5 // pred_region
      %s809 = ssub.s32 %s12, 2
      // Predicated region
      $region53: #{discriminator_forward.19} parent=51 // pred_check
        %p810 = pneg %p187
      $region54: #{discriminator_forward.19} parent=51 // pred_check_branch
        %812 = sbr.rel (%p810) target = $region56
      $region55: #{discriminator_forward.19} parent=51 // pred_region
        %p813 = scmp.lt.s32.totalorder %s18, 1
        %s814 = scalar_select %p813, %s18, 1
        %s815 = smul.addr %s814, 4
        %s816 = smul.addr %s815, 4
        %s817 = scalar_lea.vmem %s6, %s816
      $region56: #{discriminator_forward.19} parent=51 // pred_fallthru
        _
    $region52: #{discriminator_forward.19} parent=5 // pred_fallthru
      _
  $region6: #{discriminator_forward.19} parent=0 // loop_footer
    %s16 = sadd.s32 1, %s12
  $region7: #{discriminator_forward.19} parent=0 // loop_footer_branch
    %11 = sbr.rel target = $region3
  $region8: #{discriminator_forward.19} parent=0 // loop_exit
    _

</llo_original>
